<compile_context>
chip_gen: v5e
topology: v5e:2x2
jax: 0.10.0
libtpu: 0.0.40
codegen_flags: <defaults>
</compile_context>

<pallas_src>
import functools

import jax
import jax.numpy as jnp
from jax.experimental import pallas as pl
from jax.experimental.pallas import tpu as pltpu


def _embed(h, w_ref, nlayers):
    """Per-layer diag-scale + relu between layers + row-wise L2 normalize."""
    for l in range(nlayers):                      # static unroll over layers
        h = h * w_ref[l, :][None, :]              # x @ diag(w_l)  (Attentive layer)
        if l != nlayers - 1:
            h = jnp.maximum(h, 0.0)               # relu (mlp_act='relu')
    sumsq = jnp.sum(h * h, axis=-1, keepdims=True)
    # F.normalize(dim=1, p=2, eps=1e-12) == divide by max(norm, 1e-12);
    # rsqrt(max(sumsq, eps^2)) is the same thing but runs on the EUP slot.
    return h * jax.lax.rsqrt(jnp.maximum(sumsq, 1e-24))


def fused_att_kernel(w_ref, fall_ref, out_ref, *, nlayers, topk, col_chunk):
    """Per row-tile: embed all nodes + this tile's rows, S = E_rows @ E_all^T
    chunked over columns.  Pass 1 tracks the running top-(k+1) per row (no
    stores); pass 2 recomputes each chunk, masks + relus, and stores once."""
    row_tile = out_ref.shape[0]
    n = fall_ref.shape[0]
    n_chunks = n // col_chunk

    # Embeddings recomputed per grid step: trivial VPU work (N*D elements) that
    # hides under the matmul/DMA, and it keeps the row grid axis embarrassingly
    # parallel (no init-once scratch dependency).
    e_all = _embed(fall_ref[...], w_ref, nlayers)                    # (N, D) f32

    # This tile's rows: slice the grid-invariant block (no extra per-step DMA)
    # and re-embed them (row_tile x D, negligible duplicate work).
    row_start = pl.multiple_of(pl.program_id(0) * row_tile, row_tile)
    e_rows = _embed(fall_ref[pl.ds(row_start, row_tile), :], w_ref, nlayers)  # (TN, D)

    neg_inf = jnp.float32(-jnp.inf)
    # Running top-(k+1) distinct values per row, one (TN, topk) array.
    topvals = jnp.full((row_tile, topk), neg_inf, dtype=jnp.float32)

    # ---- Pass 1: running top-(k+1) over column chunks; nothing is stored.
    for c in range(n_chunks):
        lo = c * col_chunk
        e_c = e_all[lo:lo + col_chunk, :]                            # static slice
        s_c = jax.lax.dot_general(                                   # MXU, contract on D
            e_rows, e_c, (((1,), (1,)), ((), ())),
            preferred_element_type=jnp.float32)                      # (TN, CC)

        cur_s = s_c
        cur_t = topvals
        cols = []
        for peel in range(topk):                                     # k+1 is small: static peel
            m = jnp.maximum(jnp.max(cur_s, axis=-1, keepdims=True),
                            jnp.max(cur_t, axis=-1, keepdims=True))  # (TN, 1)
            cols.append(m)
            if peel != topk - 1:   # last peel's mask result is never used
                cur_s = jnp.where(cur_s >= m, neg_inf, cur_s)
                cur_t = jnp.where(cur_t >= m, neg_inf, cur_t)
        topvals = jnp.concatenate(cols, axis=-1)                     # (TN, topk), descending

    thresh = topvals[:, topk - 1:topk]                               # (TN, 1): (k+1)-th largest

    # ---- Pass 2: recompute S per chunk (MXU is idle anyway), mask + relu,
    # single lane-dense store per chunk.
    for c in range(n_chunks):
        lo = c * col_chunk
        e_c = e_all[lo:lo + col_chunk, :]
        s_c = jax.lax.dot_general(
            e_rows, e_c, (((1,), (1,)), ((), ())),
            preferred_element_type=jnp.float32)
        out_ref[:, lo:lo + col_chunk] = jnp.where(
            s_c >= thresh, jnp.maximum(s_c, 0.0), 0.0)               # top_k then relu


def att_learner_forward(features, weights, k, *, row_tile=None, col_chunk=None):
    """features: [N, D] f32; weights: [nlayers, D] f32 (one Attentive diag per layer)."""
    N, D = features.shape
    nlayers = weights.shape[0]

    # Generation-aware VMEM budget (v5e/v6e: 128 MiB, v7x: 64 MiB per core).
    try:
        vmem_cap = int(pltpu.get_tpu_info().vmem_capacity_bytes)
    except Exception:
        vmem_cap = 64 << 20                      # conservative (v7x-sized) fallback
    vmem_budget = int(0.8 * vmem_cap)            # leave headroom for compiler scratch

    if col_chunk is None:
        # Bigger chunks amortize the cross-lane max epilogues where VMEM allows.
        col_chunk = 1024 if vmem_budget >= (96 << 20) else 512
    col_chunk = min(col_chunk, N)
    assert N % col_chunk == 0, "N must be divisible by col_chunk"
    assert col_chunk % 128 == 0 or col_chunk == N, "col_chunk must stay lane-dense"

    def vmem_need(rt):
        return (2 * rt * N * 4                       # double-buffered output stripe
                + (N * D + nlayers * D) * 4          # grid-invariant inputs (single buffer)
                + N * D * 4                          # resident e_all temporary
                + 6 * rt * col_chunk * 4             # chunk temporaries
                + (4 << 20))                         # headroom

    if row_tile is None:
        row_tile = 128
    row_tile = min(row_tile, N)
    # Auto-shrink row_tile until the footprint fits the generation's budget
    # (keeps pipelining intact on v7x's 64 MiB; stays 128 on v5e/v6e).
    while row_tile > 8 and vmem_need(row_tile) > vmem_budget:
        row_tile //= 2
    assert N % row_tile == 0, "N must be divisible by row_tile"

    vmem_limit = int(min(max(vmem_need(row_tile), 16 << 20), vmem_budget))

    kernel = functools.partial(
        fused_att_kernel, nlayers=nlayers, topk=k + 1, col_chunk=col_chunk)

    def call(invariant_mode):
        kw = {} if invariant_mode is None else {"pipeline_mode": invariant_mode}
        grid_spec = pltpu.PrefetchScalarGridSpec(
            num_scalar_prefetch=0,
            grid=(N // row_tile,),
            in_specs=[
                pl.BlockSpec((nlayers, D), lambda i: (0, 0), **kw),  # weight table (invariant)
                pl.BlockSpec((N, D), lambda i: (0, 0), **kw),        # all features (invariant)
            ],
            out_specs=pl.BlockSpec((row_tile, N), lambda i: (i, 0)),
        )
        return pl.pallas_call(
            kernel,
            out_shape=jax.ShapeDtypeStruct((N, N), jnp.float32),
            grid_spec=grid_spec,
            compiler_params=pltpu.CompilerParams(
                dimension_semantics=("parallel",),
                vmem_limit_bytes=vmem_limit,
            ),
        )(weights, features)

    try:
        # Grid-invariant inputs are fetched once; drop their second pipeline buffer.
        return call(pl.Buffered(1))
    except Exception:
        # Fallback for JAX versions without pipeline_mode support on BlockSpec.
        return call(None)


def ref_forward(features, weights, k):
    """Pure-JAX reference mirroring the PyTorch module."""
    h = features
    nlayers = weights.shape[0]
    for l in range(nlayers):
        h = h * weights[l]
        if l != nlayers - 1:
            h = jnp.maximum(h, 0.0)
    norm = jnp.linalg.norm(h, axis=1, keepdims=True)
    emb = h / jnp.maximum(norm, 1e-12)
    s = emb @ emb.T
    _, idx = jax.lax.top_k(s, k + 1)
    mask = jnp.zeros_like(s).at[jnp.arange(s.shape[0])[:, None], idx].set(1.0)
    return jnp.maximum(s * mask, 0.0)


if __name__ == "__main__":
    # Small, module-consistent shapes: N nodes x isize features.
    # col_chunk=256 < N so the chunked top-k + recompute path is exercised.
    N, isize, nlayers, k = 512, 32, 2, 3

    key = jax.random.PRNGKey(0)
    kf, kw = jax.random.split(key)
    features = jax.random.normal(kf, (N, isize), dtype=jnp.float32)
    # Attentive.__init__ uses torch.ones(isize); perturb deterministically so the
    # scaling path is actually exercised (still a synthetic, in-script init).
    weights = 1.0 + 0.05 * jax.random.normal(kw, (nlayers, isize), dtype=jnp.float32)

    out = att_learner_forward(features, weights, k, row_tile=128, col_chunk=256)
    out = jax.block_until_ready(out)

    ref = ref_forward(features, weights, k)
    assert out.shape == (N, N)
    assert jnp.allclose(out, ref, atol=1e-5, rtol=1e-5), "mismatch vs JAX reference"

    print("KERNEL_OK")
</pallas_src>

<mosaic_0001>
module attributes {stable_mosaic.version = 11 : i64} {
  func.func @fused_att_kernel(%arg0: i32, %arg1: memref<2x32xf32, #tpu.memory_space<vmem>>, %arg2: memref<512x32xf32, #tpu.memory_space<vmem>>, %arg3: memref<128x512xf32, #tpu.memory_space<vmem>>) attributes {dimension_semantics = [#tpu.dimension_semantics<parallel>], iteration_bounds = array<i64: 4>, scalar_prefetch = 0 : i64, scratch_operands = 0 : i64, tpu.core_type = #tpu.core_type<tc>, window_params = [{pipeline_mode = #tpu.pipeline_mode<synchronous>, transform_indices = @transform_0, window_bounds = array<i64: 2, 32>}, {pipeline_mode = #tpu.pipeline_mode<synchronous>, transform_indices = @transform_1, window_bounds = array<i64: 512, 32>}, {transform_indices = @transform_2, window_bounds = array<i64: 128, 512>}]} {
    %c0 = arith.constant 0 : index
    %c0_0 = arith.constant 0 : index
    %0 = vector.load %arg2[%c0, %c0_0] : memref<512x32xf32, #tpu.memory_space<vmem>>, vector<512x32xf32>
    %c0_1 = arith.constant 0 : index
    %c0_2 = arith.constant 0 : index
    %1 = vector.load %arg1[%c0_1, %c0_2] : memref<2x32xf32, #tpu.memory_space<vmem>>, vector<1x32xf32>
    %2 = vector.shape_cast %1 : vector<1x32xf32> to vector<32xf32>
    %3 = vector.shape_cast %2 : vector<32xf32> to vector<1x32xf32>
    %4 = vector.broadcast %3 : vector<1x32xf32> to vector<512x32xf32>
    %5 = arith.mulf %0, %4 : vector<512x32xf32>
    %cst = arith.constant 0.000000e+00 : f32
    %6 = vector.broadcast %cst : f32 to vector<512x32xf32>
    %7 = arith.maximumf %5, %6 : vector<512x32xf32>
    %c1 = arith.constant 1 : index
    %c0_3 = arith.constant 0 : index
    %8 = vector.load %arg1[%c1, %c0_3] : memref<2x32xf32, #tpu.memory_space<vmem>>, vector<1x32xf32>
    %9 = vector.shape_cast %8 : vector<1x32xf32> to vector<32xf32>
    %10 = vector.shape_cast %9 : vector<32xf32> to vector<1x32xf32>
    %11 = vector.broadcast %10 : vector<1x32xf32> to vector<512x32xf32>
    %12 = arith.mulf %7, %11 : vector<512x32xf32>
    %13 = arith.mulf %12, %12 : vector<512x32xf32>
    %cst_4 = arith.constant dense<0.000000e+00> : vector<512xf32>
    %14 = vector.multi_reduction <add>, %13, %cst_4 [1] : vector<512x32xf32> to vector<512xf32>
    %15 = vector.shape_cast %14 : vector<512xf32> to vector<512x1xf32>
    %cst_5 = arith.constant 1.000000e-24 : f32
    %16 = vector.broadcast %cst_5 : f32 to vector<512x1xf32>
    %17 = arith.maximumf %15, %16 : vector<512x1xf32>
    %18 = math.rsqrt %17 : vector<512x1xf32>
    %19 = vector.broadcast %18 : vector<512x1xf32> to vector<512x32xf32>
    %20 = arith.mulf %12, %19 : vector<512x32xf32>
    %c128_i32 = arith.constant 128 : i32
    %21 = arith.muli %arg0, %c128_i32 : i32
    %22 = tpu.assume_multiple %21, 128 : i32
    %23 = arith.index_cast %22 : i32 to index
    %c0_6 = arith.constant 0 : index
    %24 = vector.load %arg2[%23, %c0_6] : memref<512x32xf32, #tpu.memory_space<vmem>>, vector<128x32xf32>
    %c0_7 = arith.constant 0 : index
    %c0_8 = arith.constant 0 : index
    %25 = vector.load %arg1[%c0_7, %c0_8] : memref<2x32xf32, #tpu.memory_space<vmem>>, vector<1x32xf32>
    %26 = vector.shape_cast %25 : vector<1x32xf32> to vector<32xf32>
    %27 = vector.shape_cast %26 : vector<32xf32> to vector<1x32xf32>
    %28 = vector.broadcast %27 : vector<1x32xf32> to vector<128x32xf32>
    %29 = arith.mulf %24, %28 : vector<128x32xf32>
    %cst_9 = arith.constant 0.000000e+00 : f32
    %30 = vector.broadcast %cst_9 : f32 to vector<128x32xf32>
    %31 = arith.maximumf %29, %30 : vector<128x32xf32>
    %c1_10 = arith.constant 1 : index
    %c0_11 = arith.constant 0 : index
    %32 = vector.load %arg1[%c1_10, %c0_11] : memref<2x32xf32, #tpu.memory_space<vmem>>, vector<1x32xf32>
    %33 = vector.shape_cast %32 : vector<1x32xf32> to vector<32xf32>
    %34 = vector.shape_cast %33 : vector<32xf32> to vector<1x32xf32>
    %35 = vector.broadcast %34 : vector<1x32xf32> to vector<128x32xf32>
    %36 = arith.mulf %31, %35 : vector<128x32xf32>
    %37 = arith.mulf %36, %36 : vector<128x32xf32>
    %cst_12 = arith.constant dense<0.000000e+00> : vector<128xf32>
    %38 = vector.multi_reduction <add>, %37, %cst_12 [1] : vector<128x32xf32> to vector<128xf32>
    %39 = vector.shape_cast %38 : vector<128xf32> to vector<128x1xf32>
    %cst_13 = arith.constant 1.000000e-24 : f32
    %40 = vector.broadcast %cst_13 : f32 to vector<128x1xf32>
    %41 = arith.maximumf %39, %40 : vector<128x1xf32>
    %42 = math.rsqrt %41 : vector<128x1xf32>
    %43 = vector.broadcast %42 : vector<128x1xf32> to vector<128x32xf32>
    %44 = arith.mulf %36, %43 : vector<128x32xf32>
    %cst_14 = arith.constant 0xFF800000 : f32
    %45 = vector.broadcast %cst_14 : f32 to vector<128x4xf32>
    %46 = vector.extract_strided_slice %20 {offsets = [0, 0], sizes = [256, 32], strides = [1, 1]} : vector<512x32xf32> to vector<256x32xf32>
    %cst_15 = arith.constant dense<0.000000e+00> : vector<128x256xf32>
    %47 = tpu.matmul %44, %46, %cst_15 {dimension_numbers = #tpu.dot_dimension_numbers<[1], [1], [0], [0], [0, 0, 1, 0], [], []>} : vector<128x32xf32>, vector<256x32xf32>, vector<128x256xf32> -> vector<128x256xf32>
    %cst_16 = arith.constant dense<0xFF800000> : vector<128xf32>
    %48 = vector.multi_reduction <maximumf>, %47, %cst_16 [1] : vector<128x256xf32> to vector<128xf32>
    %49 = vector.shape_cast %48 : vector<128xf32> to vector<128x1xf32>
    %cst_17 = arith.constant dense<0xFF800000> : vector<128xf32>
    %50 = vector.multi_reduction <maximumf>, %45, %cst_17 [1] : vector<128x4xf32> to vector<128xf32>
    %51 = vector.shape_cast %50 : vector<128xf32> to vector<128x1xf32>
    %52 = arith.maximumf %49, %51 : vector<128x1xf32>
    %53 = vector.broadcast %52 : vector<128x1xf32> to vector<128x256xf32>
    %54 = arith.cmpf oge, %47, %53 : vector<128x256xf32>
    %cst_18 = arith.constant 0xFF800000 : f32
    %55 = vector.broadcast %cst_18 : f32 to vector<128x256xf32>
    %56 = arith.select %54, %55, %47 : vector<128x256xi1>, vector<128x256xf32>
    %57 = vector.broadcast %52 : vector<128x1xf32> to vector<128x4xf32>
    %58 = arith.cmpf oge, %45, %57 : vector<128x4xf32>
    %cst_19 = arith.constant 0xFF800000 : f32
    %59 = vector.broadcast %cst_19 : f32 to vector<128x4xf32>
    %60 = arith.select %58, %59, %45 : vector<128x4xi1>, vector<128x4xf32>
    %cst_20 = arith.constant dense<0xFF800000> : vector<128xf32>
    %61 = vector.multi_reduction <maximumf>, %56, %cst_20 [1] : vector<128x256xf32> to vector<128xf32>
    %62 = vector.shape_cast %61 : vector<128xf32> to vector<128x1xf32>
    %cst_21 = arith.constant dense<0xFF800000> : vector<128xf32>
    %63 = vector.multi_reduction <maximumf>, %60, %cst_21 [1] : vector<128x4xf32> to vector<128xf32>
    %64 = vector.shape_cast %63 : vector<128xf32> to vector<128x1xf32>
    %65 = arith.maximumf %62, %64 : vector<128x1xf32>
    %66 = vector.broadcast %65 : vector<128x1xf32> to vector<128x256xf32>
    %67 = arith.cmpf oge, %56, %66 : vector<128x256xf32>
    %cst_22 = arith.constant 0xFF800000 : f32
    %68 = vector.broadcast %cst_22 : f32 to vector<128x256xf32>
    %69 = arith.select %67, %68, %56 : vector<128x256xi1>, vector<128x256xf32>
    %70 = vector.broadcast %65 : vector<128x1xf32> to vector<128x4xf32>
    %71 = arith.cmpf oge, %60, %70 : vector<128x4xf32>
    %cst_23 = arith.constant 0xFF800000 : f32
    %72 = vector.broadcast %cst_23 : f32 to vector<128x4xf32>
    %73 = arith.select %71, %72, %60 : vector<128x4xi1>, vector<128x4xf32>
    %cst_24 = arith.constant dense<0xFF800000> : vector<128xf32>
    %74 = vector.multi_reduction <maximumf>, %69, %cst_24 [1] : vector<128x256xf32> to vector<128xf32>
    %75 = vector.shape_cast %74 : vector<128xf32> to vector<128x1xf32>
    %cst_25 = arith.constant dense<0xFF800000> : vector<128xf32>
    %76 = vector.multi_reduction <maximumf>, %73, %cst_25 [1] : vector<128x4xf32> to vector<128xf32>
    %77 = vector.shape_cast %76 : vector<128xf32> to vector<128x1xf32>
    %78 = arith.maximumf %75, %77 : vector<128x1xf32>
    %79 = vector.broadcast %78 : vector<128x1xf32> to vector<128x256xf32>
    %80 = arith.cmpf oge, %69, %79 : vector<128x256xf32>
    %cst_26 = arith.constant 0xFF800000 : f32
    %81 = vector.broadcast %cst_26 : f32 to vector<128x256xf32>
    %82 = arith.select %80, %81, %69 : vector<128x256xi1>, vector<128x256xf32>
    %83 = vector.broadcast %78 : vector<128x1xf32> to vector<128x4xf32>
    %84 = arith.cmpf oge, %73, %83 : vector<128x4xf32>
    %cst_27 = arith.constant 0xFF800000 : f32
    %85 = vector.broadcast %cst_27 : f32 to vector<128x4xf32>
    %86 = arith.select %84, %85, %73 : vector<128x4xi1>, vector<128x4xf32>
    %cst_28 = arith.constant dense<0xFF800000> : vector<128xf32>
    %87 = vector.multi_reduction <maximumf>, %82, %cst_28 [1] : vector<128x256xf32> to vector<128xf32>
    %88 = vector.shape_cast %87 : vector<128xf32> to vector<128x1xf32>
    %cst_29 = arith.constant dense<0xFF800000> : vector<128xf32>
    %89 = vector.multi_reduction <maximumf>, %86, %cst_29 [1] : vector<128x4xf32> to vector<128xf32>
    %90 = vector.shape_cast %89 : vector<128xf32> to vector<128x1xf32>
    %91 = arith.maximumf %88, %90 : vector<128x1xf32>
    %92 = tpu.concatenate %52, %65, %78, %91 in 1 : vector<128x1xf32>, vector<128x1xf32>, vector<128x1xf32>, vector<128x1xf32> -> vector<128x4xf32>
    %93 = vector.extract_strided_slice %20 {offsets = [256, 0], sizes = [256, 32], strides = [1, 1]} : vector<512x32xf32> to vector<256x32xf32>
    %cst_30 = arith.constant dense<0.000000e+00> : vector<128x256xf32>
    %94 = tpu.matmul %44, %93, %cst_30 {dimension_numbers = #tpu.dot_dimension_numbers<[1], [1], [0], [0], [0, 0, 1, 0], [], []>} : vector<128x32xf32>, vector<256x32xf32>, vector<128x256xf32> -> vector<128x256xf32>
    %cst_31 = arith.constant dense<0xFF800000> : vector<128xf32>
    %95 = vector.multi_reduction <maximumf>, %94, %cst_31 [1] : vector<128x256xf32> to vector<128xf32>
    %96 = vector.shape_cast %95 : vector<128xf32> to vector<128x1xf32>
    %cst_32 = arith.constant dense<0xFF800000> : vector<128xf32>
    %97 = vector.multi_reduction <maximumf>, %92, %cst_32 [1] : vector<128x4xf32> to vector<128xf32>
    %98 = vector.shape_cast %97 : vector<128xf32> to vector<128x1xf32>
    %99 = arith.maximumf %96, %98 : vector<128x1xf32>
    %100 = vector.broadcast %99 : vector<128x1xf32> to vector<128x256xf32>
    %101 = arith.cmpf oge, %94, %100 : vector<128x256xf32>
    %cst_33 = arith.constant 0xFF800000 : f32
    %102 = vector.broadcast %cst_33 : f32 to vector<128x256xf32>
    %103 = arith.select %101, %102, %94 : vector<128x256xi1>, vector<128x256xf32>
    %104 = vector.broadcast %99 : vector<128x1xf32> to vector<128x4xf32>
    %105 = arith.cmpf oge, %92, %104 : vector<128x4xf32>
    %cst_34 = arith.constant 0xFF800000 : f32
    %106 = vector.broadcast %cst_34 : f32 to vector<128x4xf32>
    %107 = arith.select %105, %106, %92 : vector<128x4xi1>, vector<128x4xf32>
    %cst_35 = arith.constant dense<0xFF800000> : vector<128xf32>
    %108 = vector.multi_reduction <maximumf>, %103, %cst_35 [1] : vector<128x256xf32> to vector<128xf32>
    %109 = vector.shape_cast %108 : vector<128xf32> to vector<128x1xf32>
    %cst_36 = arith.constant dense<0xFF800000> : vector<128xf32>
    %110 = vector.multi_reduction <maximumf>, %107, %cst_36 [1] : vector<128x4xf32> to vector<128xf32>
    %111 = vector.shape_cast %110 : vector<128xf32> to vector<128x1xf32>
    %112 = arith.maximumf %109, %111 : vector<128x1xf32>
    %113 = vector.broadcast %112 : vector<128x1xf32> to vector<128x256xf32>
    %114 = arith.cmpf oge, %103, %113 : vector<128x256xf32>
    %cst_37 = arith.constant 0xFF800000 : f32
    %115 = vector.broadcast %cst_37 : f32 to vector<128x256xf32>
    %116 = arith.select %114, %115, %103 : vector<128x256xi1>, vector<128x256xf32>
    %117 = vector.broadcast %112 : vector<128x1xf32> to vector<128x4xf32>
    %118 = arith.cmpf oge, %107, %117 : vector<128x4xf32>
    %cst_38 = arith.constant 0xFF800000 : f32
    %119 = vector.broadcast %cst_38 : f32 to vector<128x4xf32>
    %120 = arith.select %118, %119, %107 : vector<128x4xi1>, vector<128x4xf32>
    %cst_39 = arith.constant dense<0xFF800000> : vector<128xf32>
    %121 = vector.multi_reduction <maximumf>, %116, %cst_39 [1] : vector<128x256xf32> to vector<128xf32>
    %122 = vector.shape_cast %121 : vector<128xf32> to vector<128x1xf32>
    %cst_40 = arith.constant dense<0xFF800000> : vector<128xf32>
    %123 = vector.multi_reduction <maximumf>, %120, %cst_40 [1] : vector<128x4xf32> to vector<128xf32>
    %124 = vector.shape_cast %123 : vector<128xf32> to vector<128x1xf32>
    %125 = arith.maximumf %122, %124 : vector<128x1xf32>
    %126 = vector.broadcast %125 : vector<128x1xf32> to vector<128x256xf32>
    %127 = arith.cmpf oge, %116, %126 : vector<128x256xf32>
    %cst_41 = arith.constant 0xFF800000 : f32
    %128 = vector.broadcast %cst_41 : f32 to vector<128x256xf32>
    %129 = arith.select %127, %128, %116 : vector<128x256xi1>, vector<128x256xf32>
    %130 = vector.broadcast %125 : vector<128x1xf32> to vector<128x4xf32>
    %131 = arith.cmpf oge, %120, %130 : vector<128x4xf32>
    %cst_42 = arith.constant 0xFF800000 : f32
    %132 = vector.broadcast %cst_42 : f32 to vector<128x4xf32>
    %133 = arith.select %131, %132, %120 : vector<128x4xi1>, vector<128x4xf32>
    %cst_43 = arith.constant dense<0xFF800000> : vector<128xf32>
    %134 = vector.multi_reduction <maximumf>, %129, %cst_43 [1] : vector<128x256xf32> to vector<128xf32>
    %135 = vector.shape_cast %134 : vector<128xf32> to vector<128x1xf32>
    %cst_44 = arith.constant dense<0xFF800000> : vector<128xf32>
    %136 = vector.multi_reduction <maximumf>, %133, %cst_44 [1] : vector<128x4xf32> to vector<128xf32>
    %137 = vector.shape_cast %136 : vector<128xf32> to vector<128x1xf32>
    %138 = arith.maximumf %135, %137 : vector<128x1xf32>
    %139 = tpu.concatenate %99, %112, %125, %138 in 1 : vector<128x1xf32>, vector<128x1xf32>, vector<128x1xf32>, vector<128x1xf32> -> vector<128x4xf32>
    %140 = vector.extract_strided_slice %139 {offsets = [0, 3], sizes = [128, 1], strides = [1, 1]} : vector<128x4xf32> to vector<128x1xf32>
    %141 = vector.extract_strided_slice %20 {offsets = [0, 0], sizes = [256, 32], strides = [1, 1]} : vector<512x32xf32> to vector<256x32xf32>
    %cst_45 = arith.constant dense<0.000000e+00> : vector<128x256xf32>
    %142 = tpu.matmul %44, %141, %cst_45 {dimension_numbers = #tpu.dot_dimension_numbers<[1], [1], [0], [0], [0, 0, 1, 0], [], []>} : vector<128x32xf32>, vector<256x32xf32>, vector<128x256xf32> -> vector<128x256xf32>
    %143 = vector.broadcast %140 : vector<128x1xf32> to vector<128x256xf32>
    %144 = arith.cmpf oge, %142, %143 : vector<128x256xf32>
    %cst_46 = arith.constant 0.000000e+00 : f32
    %145 = vector.broadcast %cst_46 : f32 to vector<128x256xf32>
    %146 = arith.maximumf %142, %145 : vector<128x256xf32>
    %cst_47 = arith.constant 0.000000e+00 : f32
    %147 = vector.broadcast %cst_47 : f32 to vector<128x256xf32>
    %148 = arith.select %144, %146, %147 : vector<128x256xi1>, vector<128x256xf32>
    %c0_48 = arith.constant 0 : index
    %c0_49 = arith.constant 0 : index
    %149 = vector.load %arg3[%c0_48, %c0_49] : memref<128x512xf32, #tpu.memory_space<vmem>>, vector<128x256xf32>
    tpu.vector_store %arg3[%c0_48, %c0_49], %148 {strides = array<i32>} : memref<128x512xf32, #tpu.memory_space<vmem>>, vector<128x256xf32>,
    %150 = vector.extract_strided_slice %20 {offsets = [256, 0], sizes = [256, 32], strides = [1, 1]} : vector<512x32xf32> to vector<256x32xf32>
    %cst_50 = arith.constant dense<0.000000e+00> : vector<128x256xf32>
    %151 = tpu.matmul %44, %150, %cst_50 {dimension_numbers = #tpu.dot_dimension_numbers<[1], [1], [0], [0], [0, 0, 1, 0], [], []>} : vector<128x32xf32>, vector<256x32xf32>, vector<128x256xf32> -> vector<128x256xf32>
    %152 = vector.broadcast %140 : vector<128x1xf32> to vector<128x256xf32>
    %153 = arith.cmpf oge, %151, %152 : vector<128x256xf32>
    %cst_51 = arith.constant 0.000000e+00 : f32
    %154 = vector.broadcast %cst_51 : f32 to vector<128x256xf32>
    %155 = arith.maximumf %151, %154 : vector<128x256xf32>
    %cst_52 = arith.constant 0.000000e+00 : f32
    %156 = vector.broadcast %cst_52 : f32 to vector<128x256xf32>
    %157 = arith.select %153, %155, %156 : vector<128x256xi1>, vector<128x256xf32>
    %c0_53 = arith.constant 0 : index
    %c256 = arith.constant 256 : index
    %158 = vector.load %arg3[%c0_53, %c256] : memref<128x512xf32, #tpu.memory_space<vmem>>, vector<128x256xf32>
    tpu.vector_store %arg3[%c0_53, %c256], %157 {strides = array<i32>} : memref<128x512xf32, #tpu.memory_space<vmem>>, vector<128x256xf32>,
    return
  }
  func.func @transform_0(%arg0: i32) -> (i32, i32) {
    %c0_i32 = arith.constant 0 : i32
    %c0_i32_0 = arith.constant 0 : i32
    %c0_i32_1 = arith.constant 0 : i32
    return %c0_i32, %c0_i32_0 : i32, i32
  }
  func.func @transform_1(%arg0: i32) -> (i32, i32) {
    %c0_i32 = arith.constant 0 : i32
    %c0_i32_0 = arith.constant 0 : i32
    %c0_i32_1 = arith.constant 0 : i32
    return %c0_i32, %c0_i32_0 : i32, i32
  }
  func.func @transform_2(%arg0: i32) -> (i32, i32) {
    %c0_i32 = arith.constant 0 : i32
    %c0_i32_0 = arith.constant 0 : i32
    return %arg0, %c0_i32 : i32, i32
  }
}

module attributes {stable_mosaic.version = 11 : i64} {
  func.func @fused_att_kernel(%arg0: i32, %arg1: memref<2x32xf32, #tpu.memory_space<vmem>>, %arg2: memref<512x32xf32, #tpu.memory_space<vmem>>, %arg3: memref<128x512xf32, #tpu.memory_space<vmem>>) attributes {dimension_semantics = [#tpu.dimension_semantics<parallel>], iteration_bounds = array<i64: 4>, scalar_prefetch = 0 : i64, scratch_operands = 0 : i64, tpu.core_type = #tpu.core_type<tc>, window_params = [{pipeline_mode = #tpu.pipeline_mode<synchronous>, transform_indices = @transform_0, window_bounds = array<i64: 2, 32>}, {pipeline_mode = #tpu.pipeline_mode<synchronous>, transform_indices = @transform_1, window_bounds = array<i64: 512, 32>}, {transform_indices = @transform_2, window_bounds = array<i64: 128, 512>}]} {
    %c0 = arith.constant 0 : index
    %c0_0 = arith.constant 0 : index
    %0 = vector.load %arg2[%c0, %c0_0] : memref<512x32xf32, #tpu.memory_space<vmem>>, vector<512x32xf32>
    %c0_1 = arith.constant 0 : index
    %c0_2 = arith.constant 0 : index
    %1 = vector.load %arg1[%c0_1, %c0_2] : memref<2x32xf32, #tpu.memory_space<vmem>>, vector<1x32xf32>
    %2 = vector.shape_cast %1 : vector<1x32xf32> to vector<32xf32>
    %3 = vector.shape_cast %2 : vector<32xf32> to vector<1x32xf32>
    %4 = vector.broadcast %3 : vector<1x32xf32> to vector<512x32xf32>
    %5 = arith.mulf %0, %4 : vector<512x32xf32>
    %cst = arith.constant 0.000000e+00 : f32
    %6 = vector.broadcast %cst : f32 to vector<512x32xf32>
    %7 = arith.maximumf %5, %6 : vector<512x32xf32>
    %c1 = arith.constant 1 : index
    %c0_3 = arith.constant 0 : index
    %8 = vector.load %arg1[%c1, %c0_3] : memref<2x32xf32, #tpu.memory_space<vmem>>, vector<1x32xf32>
    %9 = vector.shape_cast %8 : vector<1x32xf32> to vector<32xf32>
    %10 = vector.shape_cast %9 : vector<32xf32> to vector<1x32xf32>
    %11 = vector.broadcast %10 : vector<1x32xf32> to vector<512x32xf32>
    %12 = arith.mulf %7, %11 : vector<512x32xf32>
    %13 = arith.mulf %12, %12 : vector<512x32xf32>
    %cst_4 = arith.constant dense<0.000000e+00> : vector<512xf32>
    %14 = vector.multi_reduction <add>, %13, %cst_4 [1] : vector<512x32xf32> to vector<512xf32>
    %15 = vector.shape_cast %14 : vector<512xf32> to vector<512x1xf32>
    %cst_5 = arith.constant 1.000000e-24 : f32
    %16 = vector.broadcast %cst_5 : f32 to vector<512x1xf32>
    %17 = arith.maximumf %15, %16 : vector<512x1xf32>
    %18 = math.rsqrt %17 : vector<512x1xf32>
    %19 = vector.broadcast %18 : vector<512x1xf32> to vector<512x32xf32>
    %20 = arith.mulf %12, %19 : vector<512x32xf32>
    %c128_i32 = arith.constant 128 : i32
    %21 = arith.muli %arg0, %c128_i32 : i32
    %22 = tpu.assume_multiple %21, 128 : i32
    %23 = arith.index_cast %22 : i32 to index
    %c0_6 = arith.constant 0 : index
    %24 = vector.load %arg2[%23, %c0_6] : memref<512x32xf32, #tpu.memory_space<vmem>>, vector<128x32xf32>
    %c0_7 = arith.constant 0 : index
    %c0_8 = arith.constant 0 : index
    %25 = vector.load %arg1[%c0_7, %c0_8] : memref<2x32xf32, #tpu.memory_space<vmem>>, vector<1x32xf32>
    %26 = vector.shape_cast %25 : vector<1x32xf32> to vector<32xf32>
    %27 = vector.shape_cast %26 : vector<32xf32> to vector<1x32xf32>
    %28 = vector.broadcast %27 : vector<1x32xf32> to vector<128x32xf32>
    %29 = arith.mulf %24, %28 : vector<128x32xf32>
    %cst_9 = arith.constant 0.000000e+00 : f32
    %30 = vector.broadcast %cst_9 : f32 to vector<128x32xf32>
    %31 = arith.maximumf %29, %30 : vector<128x32xf32>
    %c1_10 = arith.constant 1 : index
    %c0_11 = arith.constant 0 : index
    %32 = vector.load %arg1[%c1_10, %c0_11] : memref<2x32xf32, #tpu.memory_space<vmem>>, vector<1x32xf32>
    %33 = vector.shape_cast %32 : vector<1x32xf32> to vector<32xf32>
    %34 = vector.shape_cast %33 : vector<32xf32> to vector<1x32xf32>
    %35 = vector.broadcast %34 : vector<1x32xf32> to vector<128x32xf32>
    %36 = arith.mulf %31, %35 : vector<128x32xf32>
    %37 = arith.mulf %36, %36 : vector<128x32xf32>
    %cst_12 = arith.constant dense<0.000000e+00> : vector<128xf32>
    %38 = vector.multi_reduction <add>, %37, %cst_12 [1] : vector<128x32xf32> to vector<128xf32>
    %39 = vector.shape_cast %38 : vector<128xf32> to vector<128x1xf32>
    %cst_13 = arith.constant 1.000000e-24 : f32
    %40 = vector.broadcast %cst_13 : f32 to vector<128x1xf32>
    %41 = arith.maximumf %39, %40 : vector<128x1xf32>
    %42 = math.rsqrt %41 : vector<128x1xf32>
    %43 = vector.broadcast %42 : vector<128x1xf32> to vector<128x32xf32>
    %44 = arith.mulf %36, %43 : vector<128x32xf32>
    %cst_14 = arith.constant 0xFF800000 : f32
    %45 = vector.broadcast %cst_14 : f32 to vector<128x4xf32>
    %46 = vector.extract_strided_slice %20 {offsets = [0, 0], sizes = [256, 32], strides = [1, 1]} : vector<512x32xf32> to vector<256x32xf32>
    %cst_15 = arith.constant dense<0.000000e+00> : vector<128x256xf32>
    %47 = tpu.matmul %44, %46, %cst_15 {dimension_numbers = #tpu.dot_dimension_numbers<[1], [1], [0], [0], [0, 0, 1, 0], [], []>} : vector<128x32xf32>, vector<256x32xf32>, vector<128x256xf32> -> vector<128x256xf32>
    %cst_16 = arith.constant dense<0xFF800000> : vector<128xf32>
    %48 = vector.multi_reduction <maximumf>, %47, %cst_16 [1] : vector<128x256xf32> to vector<128xf32>
    %49 = vector.shape_cast %48 : vector<128xf32> to vector<128x1xf32>
    %cst_17 = arith.constant dense<0xFF800000> : vector<128xf32>
    %50 = vector.multi_reduction <maximumf>, %45, %cst_17 [1] : vector<128x4xf32> to vector<128xf32>
    %51 = vector.shape_cast %50 : vector<128xf32> to vector<128x1xf32>
    %52 = arith.maximumf %49, %51 : vector<128x1xf32>
    %53 = vector.broadcast %52 : vector<128x1xf32> to vector<128x256xf32>
    %54 = arith.cmpf oge, %47, %53 : vector<128x256xf32>
    %cst_18 = arith.constant 0xFF800000 : f32
    %55 = vector.broadcast %cst_18 : f32 to vector<128x256xf32>
    %56 = arith.select %54, %55, %47 : vector<128x256xi1>, vector<128x256xf32>
    %57 = vector.broadcast %52 : vector<128x1xf32> to vector<128x4xf32>
    %58 = arith.cmpf oge, %45, %57 : vector<128x4xf32>
    %cst_19 = arith.constant 0xFF800000 : f32
    %59 = vector.broadcast %cst_19 : f32 to vector<128x4xf32>
    %60 = arith.select %58, %59, %45 : vector<128x4xi1>, vector<128x4xf32>
    %cst_20 = arith.constant dense<0xFF800000> : vector<128xf32>
    %61 = vector.multi_reduction <maximumf>, %56, %cst_20 [1] : vector<128x256xf32> to vector<128xf32>
    %62 = vector.shape_cast %61 : vector<128xf32> to vector<128x1xf32>
    %cst_21 = arith.constant dense<0xFF800000> : vector<128xf32>
    %63 = vector.multi_reduction <maximumf>, %60, %cst_21 [1] : vector<128x4xf32> to vector<128xf32>
    %64 = vector.shape_cast %63 : vector<128xf32> to vector<128x1xf32>
    %65 = arith.maximumf %62, %64 : vector<128x1xf32>
    %66 = vector.broadcast %65 : vector<128x1xf32> to vector<128x256xf32>
    %67 = arith.cmpf oge, %56, %66 : vector<128x256xf32>
    %cst_22 = arith.constant 0xFF800000 : f32
    %68 = vector.broadcast %cst_22 : f32 to vector<128x256xf32>
    %69 = arith.select %67, %68, %56 : vector<128x256xi1>, vector<128x256xf32>
    %70 = vector.broadcast %65 : vector<128x1xf32> to vector<128x4xf32>
    %71 = arith.cmpf oge, %60, %70 : vector<128x4xf32>
    %cst_23 = arith.constant 0xFF800000 : f32
    %72 = vector.broadcast %cst_23 : f32 to vector<128x4xf32>
    %73 = arith.select %71, %72, %60 : vector<128x4xi1>, vector<128x4xf32>
    %cst_24 = arith.constant dense<0xFF800000> : vector<128xf32>
    %74 = vector.multi_reduction <maximumf>, %69, %cst_24 [1] : vector<128x256xf32> to vector<128xf32>
    %75 = vector.shape_cast %74 : vector<128xf32> to vector<128x1xf32>
    %cst_25 = arith.constant dense<0xFF800000> : vector<128xf32>
    %76 = vector.multi_reduction <maximumf>, %73, %cst_25 [1] : vector<128x4xf32> to vector<128xf32>
    %77 = vector.shape_cast %76 : vector<128xf32> to vector<128x1xf32>
    %78 = arith.maximumf %75, %77 : vector<128x1xf32>
    %79 = vector.broadcast %78 : vector<128x1xf32> to vector<128x256xf32>
    %80 = arith.cmpf oge, %69, %79 : vector<128x256xf32>
    %cst_26 = arith.constant 0xFF800000 : f32
    %81 = vector.broadcast %cst_26 : f32 to vector<128x256xf32>
    %82 = arith.select %80, %81, %69 : vector<128x256xi1>, vector<128x256xf32>
    %83 = vector.broadcast %78 : vector<128x1xf32> to vector<128x4xf32>
    %84 = arith.cmpf oge, %73, %83 : vector<128x4xf32>
    %cst_27 = arith.constant 0xFF800000 : f32
    %85 = vector.broadcast %cst_27 : f32 to vector<128x4xf32>
    %86 = arith.select %84, %85, %73 : vector<128x4xi1>, vector<128x4xf32>
    %cst_28 = arith.constant dense<0xFF800000> : vector<128xf32>
    %87 = vector.multi_reduction <maximumf>, %82, %cst_28 [1] : vector<128x256xf32> to vector<128xf32>
    %88 = vector.shape_cast %87 : vector<128xf32> to vector<128x1xf32>
    %cst_29 = arith.constant dense<0xFF800000> : vector<128xf32>
    %89 = vector.multi_reduction <maximumf>, %86, %cst_29 [1] : vector<128x4xf32> to vector<128xf32>
    %90 = vector.shape_cast %89 : vector<128xf32> to vector<128x1xf32>
    %91 = arith.maximumf %88, %90 : vector<128x1xf32>
    %92 = tpu.concatenate %52, %65, %78, %91 in 1 : vector<128x1xf32>, vector<128x1xf32>, vector<128x1xf32>, vector<128x1xf32> -> vector<128x4xf32>
    %93 = vector.extract_strided_slice %20 {offsets = [256, 0], sizes = [256, 32], strides = [1, 1]} : vector<512x32xf32> to vector<256x32xf32>
    %cst_30 = arith.constant dense<0.000000e+00> : vector<128x256xf32>
    %94 = tpu.matmul %44, %93, %cst_30 {dimension_numbers = #tpu.dot_dimension_numbers<[1], [1], [0], [0], [0, 0, 1, 0], [], []>} : vector<128x32xf32>, vector<256x32xf32>, vector<128x256xf32> -> vector<128x256xf32>
    %cst_31 = arith.constant dense<0xFF800000> : vector<128xf32>
    %95 = vector.multi_reduction <maximumf>, %94, %cst_31 [1] : vector<128x256xf32> to vector<128xf32>
    %96 = vector.shape_cast %95 : vector<128xf32> to vector<128x1xf32>
    %cst_32 = arith.constant dense<0xFF800000> : vector<128xf32>
    %97 = vector.multi_reduction <maximumf>, %92, %cst_32 [1] : vector<128x4xf32> to vector<128xf32>
    %98 = vector.shape_cast %97 : vector<128xf32> to vector<128x1xf32>
    %99 = arith.maximumf %96, %98 : vector<128x1xf32>
    %100 = vector.broadcast %99 : vector<128x1xf32> to vector<128x256xf32>
    %101 = arith.cmpf oge, %94, %100 : vector<128x256xf32>
    %cst_33 = arith.constant 0xFF800000 : f32
    %102 = vector.broadcast %cst_33 : f32 to vector<128x256xf32>
    %103 = arith.select %101, %102, %94 : vector<128x256xi1>, vector<128x256xf32>
    %104 = vector.broadcast %99 : vector<128x1xf32> to vector<128x4xf32>
    %105 = arith.cmpf oge, %92, %104 : vector<128x4xf32>
    %cst_34 = arith.constant 0xFF800000 : f32
    %106 = vector.broadcast %cst_34 : f32 to vector<128x4xf32>
    %107 = arith.select %105, %106, %92 : vector<128x4xi1>, vector<128x4xf32>
    %cst_35 = arith.constant dense<0xFF800000> : vector<128xf32>
    %108 = vector.multi_reduction <maximumf>, %103, %cst_35 [1] : vector<128x256xf32> to vector<128xf32>
    %109 = vector.shape_cast %108 : vector<128xf32> to vector<128x1xf32>
    %cst_36 = arith.constant dense<0xFF800000> : vector<128xf32>
    %110 = vector.multi_reduction <maximumf>, %107, %cst_36 [1] : vector<128x4xf32> to vector<128xf32>
    %111 = vector.shape_cast %110 : vector<128xf32> to vector<128x1xf32>
    %112 = arith.maximumf %109, %111 : vector<128x1xf32>
    %113 = vector.broadcast %112 : vector<128x1xf32> to vector<128x256xf32>
    %114 = arith.cmpf oge, %103, %113 : vector<128x256xf32>
    %cst_37 = arith.constant 0xFF800000 : f32
    %115 = vector.broadcast %cst_37 : f32 to vector<128x256xf32>
    %116 = arith.select %114, %115, %103 : vector<128x256xi1>, vector<128x256xf32>
    %117 = vector.broadcast %112 : vector<128x1xf32> to vector<128x4xf32>
    %118 = arith.cmpf oge, %107, %117 : vector<128x4xf32>
    %cst_38 = arith.constant 0xFF800000 : f32
    %119 = vector.broadcast %cst_38 : f32 to vector<128x4xf32>
    %120 = arith.select %118, %119, %107 : vector<128x4xi1>, vector<128x4xf32>
    %cst_39 = arith.constant dense<0xFF800000> : vector<128xf32>
    %121 = vector.multi_reduction <maximumf>, %116, %cst_39 [1] : vector<128x256xf32> to vector<128xf32>
    %122 = vector.shape_cast %121 : vector<128xf32> to vector<128x1xf32>
    %cst_40 = arith.constant dense<0xFF800000> : vector<128xf32>
    %123 = vector.multi_reduction <maximumf>, %120, %cst_40 [1] : vector<128x4xf32> to vector<128xf32>
    %124 = vector.shape_cast %123 : vector<128xf32> to vector<128x1xf32>
    %125 = arith.maximumf %122, %124 : vector<128x1xf32>
    %126 = vector.broadcast %125 : vector<128x1xf32> to vector<128x256xf32>
    %127 = arith.cmpf oge, %116, %126 : vector<128x256xf32>
    %cst_41 = arith.constant 0xFF800000 : f32
    %128 = vector.broadcast %cst_41 : f32 to vector<128x256xf32>
    %129 = arith.select %127, %128, %116 : vector<128x256xi1>, vector<128x256xf32>
    %130 = vector.broadcast %125 : vector<128x1xf32> to vector<128x4xf32>
    %131 = arith.cmpf oge, %120, %130 : vector<128x4xf32>
    %cst_42 = arith.constant 0xFF800000 : f32
    %132 = vector.broadcast %cst_42 : f32 to vector<128x4xf32>
    %133 = arith.select %131, %132, %120 : vector<128x4xi1>, vector<128x4xf32>
    %cst_43 = arith.constant dense<0xFF800000> : vector<128xf32>
    %134 = vector.multi_reduction <maximumf>, %129, %cst_43 [1] : vector<128x256xf32> to vector<128xf32>
    %135 = vector.shape_cast %134 : vector<128xf32> to vector<128x1xf32>
    %cst_44 = arith.constant dense<0xFF800000> : vector<128xf32>
    %136 = vector.multi_reduction <maximumf>, %133, %cst_44 [1] : vector<128x4xf32> to vector<128xf32>
    %137 = vector.shape_cast %136 : vector<128xf32> to vector<128x1xf32>
    %138 = arith.maximumf %135, %137 : vector<128x1xf32>
    %139 = tpu.concatenate %99, %112, %125, %138 in 1 : vector<128x1xf32>, vector<128x1xf32>, vector<128x1xf32>, vector<128x1xf32> -> vector<128x4xf32>
    %140 = vector.extract_strided_slice %139 {offsets = [0, 3], sizes = [128, 1], strides = [1, 1]} : vector<128x4xf32> to vector<128x1xf32>
    %141 = vector.extract_strided_slice %20 {offsets = [0, 0], sizes = [256, 32], strides = [1, 1]} : vector<512x32xf32> to vector<256x32xf32>
    %cst_45 = arith.constant dense<0.000000e+00> : vector<128x256xf32>
    %142 = tpu.matmul %44, %141, %cst_45 {dimension_numbers = #tpu.dot_dimension_numbers<[1], [1], [0], [0], [0, 0, 1, 0], [], []>} : vector<128x32xf32>, vector<256x32xf32>, vector<128x256xf32> -> vector<128x256xf32>
    %143 = vector.broadcast %140 : vector<128x1xf32> to vector<128x256xf32>
    %144 = arith.cmpf oge, %142, %143 : vector<128x256xf32>
    %cst_46 = arith.constant 0.000000e+00 : f32
    %145 = vector.broadcast %cst_46 : f32 to vector<128x256xf32>
    %146 = arith.maximumf %142, %145 : vector<128x256xf32>
    %cst_47 = arith.constant 0.000000e+00 : f32
    %147 = vector.broadcast %cst_47 : f32 to vector<128x256xf32>
    %148 = arith.select %144, %146, %147 : vector<128x256xi1>, vector<128x256xf32>
    %c0_48 = arith.constant 0 : index
    %c0_49 = arith.constant 0 : index
    %149 = vector.load %arg3[%c0_48, %c0_49] : memref<128x512xf32, #tpu.memory_space<vmem>>, vector<128x256xf32>
    tpu.vector_store %arg3[%c0_48, %c0_49], %148 {strides = array<i32>} : memref<128x512xf32, #tpu.memory_space<vmem>>, vector<128x256xf32>,
    %150 = vector.extract_strided_slice %20 {offsets = [256, 0], sizes = [256, 32], strides = [1, 1]} : vector<512x32xf32> to vector<256x32xf32>
    %cst_50 = arith.constant dense<0.000000e+00> : vector<128x256xf32>
    %151 = tpu.matmul %44, %150, %cst_50 {dimension_numbers = #tpu.dot_dimension_numbers<[1], [1], [0], [0], [0, 0, 1, 0], [], []>} : vector<128x32xf32>, vector<256x32xf32>, vector<128x256xf32> -> vector<128x256xf32>
    %152 = vector.broadcast %140 : vector<128x1xf32> to vector<128x256xf32>
    %153 = arith.cmpf oge, %151, %152 : vector<128x256xf32>
    %cst_51 = arith.constant 0.000000e+00 : f32
    %154 = vector.broadcast %cst_51 : f32 to vector<128x256xf32>
    %155 = arith.maximumf %151, %154 : vector<128x256xf32>
    %cst_52 = arith.constant 0.000000e+00 : f32
    %156 = vector.broadcast %cst_52 : f32 to vector<128x256xf32>
    %157 = arith.select %153, %155, %156 : vector<128x256xi1>, vector<128x256xf32>
    %c0_53 = arith.constant 0 : index
    %c256 = arith.constant 256 : index
    %158 = vector.load %arg3[%c0_53, %c256] : memref<128x512xf32, #tpu.memory_space<vmem>>, vector<128x256xf32>
    tpu.vector_store %arg3[%c0_53, %c256], %157 {strides = array<i32>} : memref<128x512xf32, #tpu.memory_space<vmem>>, vector<128x256xf32>,
    return
  }
  func.func @transform_0(%arg0: i32) -> (i32, i32) {
    %c0_i32 = arith.constant 0 : i32
    %c0_i32_0 = arith.constant 0 : i32
    %c0_i32_1 = arith.constant 0 : i32
    return %c0_i32, %c0_i32_0 : i32, i32
  }
  func.func @transform_1(%arg0: i32) -> (i32, i32) {
    %c0_i32 = arith.constant 0 : i32
    %c0_i32_0 = arith.constant 0 : i32
    %c0_i32_1 = arith.constant 0 : i32
    return %c0_i32, %c0_i32_0 : i32, i32
  }
  func.func @transform_2(%arg0: i32) -> (i32, i32) {
    %c0_i32 = arith.constant 0 : i32
    %c0_i32_0 = arith.constant 0 : i32
    return %arg0, %c0_i32 : i32, i32
  }
}

</mosaic_0001>

<llo_original>
// kernel: tpu_custom_call.1
$region0: #{tpu_custom_call.1}
  #allocation0 [shape = 'u32[]', space=smem, size = 0x4, offset = 0x4, fixed_abs, tag = 'smem constant byte address 0x4 - core index']
  #allocation1 [shape = 'u32[72,128]{1,0:T(1,128)}', space=vmem, size = 0x9000, scoped, tag = 'internal scratch']
  %s0 = inlined_call_operand.vmem [shape: f32[2,32], index: 0, kind: input, shape index: {}]
  %s1 = inlined_call_operand.vmem [shape: f32[512,32], index: 1, kind: input, shape index: {}]
  %s2 = inlined_call_operand.hbm [shape: f32[512,512], index: 2, kind: output, shape index: {}]
  %s3 = sld [smem:[#allocation0]]
  $region41: #{tpu_custom_call.1} parent=0
    _
  %s5 = ssub.s32 1, %s3
  %s6 = scalar_select 0, %s5, %s3
  $region1: #{tpu_custom_call.1} parent=0
    #allocation2 [shape = 'u8[524288]{0}', space=vmem, size = 0x80000, scoped, tag = 'output window, operand 0']
    #allocation3 [shape = 's32[2]{0}', space=sflag, size = 0x8, scoped, tag = 'scoped memory for tpu_custom_call.1']
    %7 = vsyncpa [#allocation3], 0
    %s8 = scalar_lea.sflag [#allocation3], 1
    %9 = vsyncpa %s8, 0
    loop: start=0, step=1, limit=6
    $region2: #{tpu_custom_call.1} parent=1 // loop_pre_header
      _
    $region3: #{tpu_custom_call.1} parent=1 // loop_header
      %s11 = sphi 0, %s15
      %p12 = scmp.ge.s32.totalorder %s11, 6
      %s19 = sphi 0, %s19
      %s21 = sphi 0, %s19
      %s22 = sphi 0, %s21
      %s36 = sphi 0, %s22
      %s40 = sphi 0, %s40
      %s42 = sphi 0, %s40
      %s43 = sphi 0, %s42
      %s57 = sphi 0, %s43
      %s63 = sphi 0, %s65
      %s66 = sphi 0, %s63
      %s67 = sphi 0, %s66
      %s83 = sphi 0, %s67
    $region4: #{tpu_custom_call.1} parent=1 // loop_header_branch
      %14 = sbr.rel (%p12) target = $region8
    $region5: #{tpu_custom_call.1} parent=1 // loop_body
      %s16 = ssub.s32 %s11, 1
      %s17 = ssub.s32 %s11, 2
      %s18 = sadd.s32 %s11, 1
      %s20 = sadd.s32 %s19, 1
      %p23 = scmp.eq.s32.totalorder %s11, 3
      %p24 = scmp.ne.s32.totalorder %s19, %s21
      %p25 = scmp.eq.s32.totalorder %s11, 0
      %p26 = por %p24, %p25
      %p27 = scmp.ne.s32.totalorder %s19, %s21
      %p28 = scmp.eq.s32.totalorder %s16, 3
      %p29 = por %p27, %p28
      %p30 = scmp.ne.s32.totalorder %s21, %s22
      %p31 = scmp.eq.s32.totalorder %s16, 0
      %p32 = por %p30, %p31
      %p33 = scmp.ne.s32.totalorder %s21, %s22
      %p34 = scmp.eq.s32.totalorder %s17, 3
      %p35 = por %p33, %p34
      %p37 = scmp.ne.s32.totalorder %s22, %s36
      %p38 = scmp.eq.s32.totalorder %s17, 0
      %p39 = por %p37, %p38
      %s41 = sadd.s32 %s40, 1
      %p44 = scmp.eq.s32.totalorder %s11, 3
      %p45 = scmp.ne.s32.totalorder %s40, %s42
      %p46 = scmp.eq.s32.totalorder %s11, 0
      %p47 = por %p45, %p46
      %p48 = scmp.ne.s32.totalorder %s40, %s42
      %p49 = scmp.eq.s32.totalorder %s16, 3
      %p50 = por %p48, %p49
      %p51 = scmp.ne.s32.totalorder %s42, %s43
      %p52 = scmp.eq.s32.totalorder %s16, 0
      %p53 = por %p51, %p52
      %p54 = scmp.ne.s32.totalorder %s42, %s43
      %p55 = scmp.eq.s32.totalorder %s17, 3
      %p56 = por %p54, %p55
      %p58 = scmp.ne.s32.totalorder %s43, %s57
      %p59 = scmp.eq.s32.totalorder %s17, 0
      %p60 = por %p58, %p59
      %s61 = ssub.s32 %s11, %s18
      %p62 = scmp.eq.s32.totalorder %s61, 0
      %s64 = sadd.s32 %s63, 1
      %s65 = scalar_select %p62, %s63, %s64
      %p68 = pneg %p62
      %p69 = scmp.eq.s32.totalorder %s11, 3
      %p70 = por %p68, %p69
      %p71 = scmp.ne.s32.totalorder %s63, %s66
      %p72 = scmp.eq.s32.totalorder %s11, 0
      %p73 = por %p71, %p72
      %p74 = scmp.ne.s32.totalorder %s63, %s66
      %p75 = scmp.eq.s32.totalorder %s16, 3
      %p76 = por %p74, %p75
      %p77 = scmp.ne.s32.totalorder %s66, %s67
      %p78 = scmp.eq.s32.totalorder %s16, 0
      %p79 = por %p77, %p78
      %p80 = scmp.ne.s32.totalorder %s66, %s67
      %p81 = scmp.eq.s32.totalorder %s17, 3
      %p82 = por %p80, %p81
      %p84 = scmp.ne.s32.totalorder %s67, %s83
      %p85 = scmp.eq.s32.totalorder %s17, 0
      %p86 = por %p84, %p85
      %p87 = scmp.le.s32.totalorder 1, %s11
      %p88 = scmp.lt.s32.totalorder %s11, 5
      %p89 = pnand %p87, %p88
      %p90 = pneg %p89
      // Predicated region
      $region9: #{tpu_custom_call.1} parent=5 // pred_check
        _
      $region10: #{tpu_custom_call.1} parent=5 // pred_check_branch
        %92 = sbr.rel (%p89) target = $region12
      $region11: #{tpu_custom_call.1} parent=5 // pred_region
        %s93 = ssub.s32 %s11, 1
        // Predicated region
        $region13: #{tpu_custom_call.1} parent=11 // pred_check
          %p94 = pneg %p32
        $region14: #{tpu_custom_call.1} parent=11 // pred_check_branch
          %96 = sbr.rel (%p94) target = $region16
        $region15: #{tpu_custom_call.1} parent=11 // pred_region
          _
        $region16: #{tpu_custom_call.1} parent=11 // pred_fallthru
          _
        // Predicated region
        $region17: #{tpu_custom_call.1} parent=11 // pred_check
          %p97 = pneg %p53
        $region18: #{tpu_custom_call.1} parent=11 // pred_check_branch
          %99 = sbr.rel (%p97) target = $region20
        $region19: #{tpu_custom_call.1} parent=11 // pred_region
          _
        $region20: #{tpu_custom_call.1} parent=11 // pred_fallthru
          _
      $region12: #{tpu_custom_call.1} parent=5 // pred_fallthru
        _
      %p100 = scmp.lt.s32.totalorder %s11, 4
      // Predicated region
      $region21: #{tpu_custom_call.1} parent=5 // pred_check
        %p101 = pneg %p100
      $region22: #{tpu_custom_call.1} parent=5 // pred_check_branch
        %103 = sbr.rel (%p101) target = $region24
      $region23: #{tpu_custom_call.1} parent=5 // pred_region
        _
      $region24: #{tpu_custom_call.1} parent=5 // pred_fallthru
        _
      %p104 = scmp.le.s32.totalorder 1, %s11
      %p105 = scmp.lt.s32.totalorder %s11, 5
      %p106 = pnand %p104, %p105
      %p107 = pneg %p106
      // Predicated region
      $region25: #{tpu_custom_call.1} parent=5 // pred_check
        _
      $region26: #{tpu_custom_call.1} parent=5 // pred_check_branch
        %109 = sbr.rel (%p106) target = $region28
      $region27: #{tpu_custom_call.1} parent=5 // pred_region
        %s110 = ssub.s32 %s11, 1
        %p111 = pneg %p32
        %p112 = pneg %p29
        %p113 = pneg %p53
        %p114 = pneg %p50
        %p115 = pneg %p79
        %p116 = pneg %p76
        %s117 = sand.u32 %s66, 1
        %s118 = scalar_lea.sflag [#allocation3], %s117
        %s119 = sand.u32 %s66, 1
        %s120 = smul.addr %s119, 512
        %s121 = scalar_lea.vmem [#allocation2], %s120
        %s122 = smul.u32 16, %s16
        %v123 = vld [vmem:[%s1] sm:$0xff]
        %v124 = vld [vmem:[%s1 + $0x8] sm:$0xff]
        %v125 = vld [vmem:[%s1 + $0x10] sm:$0xff]
        %v126 = vld [vmem:[%s1 + $0x18] sm:$0xff]
        %v127 = vld [vmem:[%s1 + $0x20] sm:$0xff]
        %v128 = vld [vmem:[%s1 + $0x28] sm:$0xff]
        %v129 = vld [vmem:[%s1 + $0x30] sm:$0xff]
        %v130 = vld [vmem:[%s1 + $0x38] sm:$0xff]
        %v131 = vld [vmem:[%s1 + $0x40] sm:$0xff]
        %v132 = vld [vmem:[%s1 + $0x48] sm:$0xff]
        %v133 = vld [vmem:[%s1 + $0x50] sm:$0xff]
        %v134 = vld [vmem:[%s1 + $0x58] sm:$0xff]
        %v135 = vld [vmem:[%s1 + $0x60] sm:$0xff]
        %v136 = vld [vmem:[%s1 + $0x68] sm:$0xff]
        %v137 = vld [vmem:[%s1 + $0x70] sm:$0xff]
        %v138 = vld [vmem:[%s1 + $0x78] sm:$0xff]
        %v139 = vld [vmem:[%s1 + $0x80] sm:$0xff]
        %v140 = vld [vmem:[%s1 + $0x88] sm:$0xff]
        %v141 = vld [vmem:[%s1 + $0x90] sm:$0xff]
        %v142 = vld [vmem:[%s1 + $0x98] sm:$0xff]
        %v143 = vld [vmem:[%s1 + $0xa0] sm:$0xff]
        %v144 = vld [vmem:[%s1 + $0xa8] sm:$0xff]
        %v145 = vld [vmem:[%s1 + $0xb0] sm:$0xff]
        %v146 = vld [vmem:[%s1 + $0xb8] sm:$0xff]
        %v147 = vld [vmem:[%s1 + $0xc0] sm:$0xff]
        %v148 = vld [vmem:[%s1 + $0xc8] sm:$0xff]
        %v149 = vld [vmem:[%s1 + $0xd0] sm:$0xff]
        %v150 = vld [vmem:[%s1 + $0xd8] sm:$0xff]
        %v151 = vld [vmem:[%s1 + $0xe0] sm:$0xff]
        %v152 = vld [vmem:[%s1 + $0xe8] sm:$0xff]
        %v153 = vld [vmem:[%s1 + $0xf0] sm:$0xff]
        %v154 = vld [vmem:[%s1 + $0xf8] sm:$0xff]
        %v155 = vld [vmem:[%s1 + $0x100] sm:$0xff]
        %v156 = vld [vmem:[%s1 + $0x108] sm:$0xff]
        %v157 = vld [vmem:[%s1 + $0x110] sm:$0xff]
        %v158 = vld [vmem:[%s1 + $0x118] sm:$0xff]
        %v159 = vld [vmem:[%s1 + $0x120] sm:$0xff]
        %v160 = vld [vmem:[%s1 + $0x128] sm:$0xff]
        %v161 = vld [vmem:[%s1 + $0x130] sm:$0xff]
        %v162 = vld [vmem:[%s1 + $0x138] sm:$0xff]
        %v163 = vld [vmem:[%s1 + $0x140] sm:$0xff]
        %v164 = vld [vmem:[%s1 + $0x148] sm:$0xff]
        %v165 = vld [vmem:[%s1 + $0x150] sm:$0xff]
        %v166 = vld [vmem:[%s1 + $0x158] sm:$0xff]
        %v167 = vld [vmem:[%s1 + $0x160] sm:$0xff]
        %v168 = vld [vmem:[%s1 + $0x168] sm:$0xff]
        %v169 = vld [vmem:[%s1 + $0x170] sm:$0xff]
        %v170 = vld [vmem:[%s1 + $0x178] sm:$0xff]
        %v171 = vld [vmem:[%s1 + $0x180] sm:$0xff]
        %v172 = vld [vmem:[%s1 + $0x188] sm:$0xff]
        %v173 = vld [vmem:[%s1 + $0x190] sm:$0xff]
        %v174 = vld [vmem:[%s1 + $0x198] sm:$0xff]
        %v175 = vld [vmem:[%s1 + $0x1a0] sm:$0xff]
        %v176 = vld [vmem:[%s1 + $0x1a8] sm:$0xff]
        %v177 = vld [vmem:[%s1 + $0x1b0] sm:$0xff]
        %v178 = vld [vmem:[%s1 + $0x1b8] sm:$0xff]
        %v179 = vld [vmem:[%s1 + $0x1c0] sm:$0xff]
        %v180 = vld [vmem:[%s1 + $0x1c8] sm:$0xff]
        %v181 = vld [vmem:[%s1 + $0x1d0] sm:$0xff]
        %v182 = vld [vmem:[%s1 + $0x1d8] sm:$0xff]
        %v183 = vld [vmem:[%s1 + $0x1e0] sm:$0xff]
        %v184 = vld [vmem:[%s1 + $0x1e8] sm:$0xff]
        %v185 = vld [vmem:[%s1 + $0x1f0] sm:$0xff]
        %v186 = vld [vmem:[%s1 + $0x1f8] sm:$0xff]
        %v187 = vld [vmem:[%s0] sm:$0x1]
        %v188 = vperm.slane %v187, 0
        %v189 = vmul.f32 %v123, %v188
        %v190 = vmul.f32 %v124, %v188
        %v191 = vmul.f32 %v125, %v188
        %v192 = vmul.f32 %v126, %v188
        %v193 = vmul.f32 %v127, %v188
        %v194 = vmul.f32 %v128, %v188
        %v195 = vmul.f32 %v129, %v188
        %v196 = vmul.f32 %v130, %v188
        %v197 = vmul.f32 %v131, %v188
        %v198 = vmul.f32 %v132, %v188
        %v199 = vmul.f32 %v133, %v188
        %v200 = vmul.f32 %v134, %v188
        %v201 = vmul.f32 %v135, %v188
        %v202 = vmul.f32 %v136, %v188
        %v203 = vmul.f32 %v137, %v188
        %v204 = vmul.f32 %v138, %v188
        %v205 = vmul.f32 %v139, %v188
        %v206 = vmul.f32 %v140, %v188
        %v207 = vmul.f32 %v141, %v188
        %v208 = vmul.f32 %v142, %v188
        %v209 = vmul.f32 %v143, %v188
        %v210 = vmul.f32 %v144, %v188
        %v211 = vmul.f32 %v145, %v188
        %v212 = vmul.f32 %v146, %v188
        %v213 = vmul.f32 %v147, %v188
        %v214 = vmul.f32 %v148, %v188
        %v215 = vmul.f32 %v149, %v188
        %v216 = vmul.f32 %v150, %v188
        %v217 = vmul.f32 %v151, %v188
        %v218 = vmul.f32 %v152, %v188
        %v219 = vmul.f32 %v153, %v188
        %v220 = vmul.f32 %v154, %v188
        %v221 = vmul.f32 %v155, %v188
        %v222 = vmul.f32 %v156, %v188
        %v223 = vmul.f32 %v157, %v188
        %v224 = vmul.f32 %v158, %v188
        %v225 = vmul.f32 %v159, %v188
        %v226 = vmul.f32 %v160, %v188
        %v227 = vmul.f32 %v161, %v188
        %v228 = vmul.f32 %v162, %v188
        %v229 = vmul.f32 %v163, %v188
        %v230 = vmul.f32 %v164, %v188
        %v231 = vmul.f32 %v165, %v188
        %v232 = vmul.f32 %v166, %v188
        %v233 = vmul.f32 %v167, %v188
        %v234 = vmul.f32 %v168, %v188
        %v235 = vmul.f32 %v169, %v188
        %v236 = vmul.f32 %v170, %v188
        %v237 = vmul.f32 %v171, %v188
        %v238 = vmul.f32 %v172, %v188
        %v239 = vmul.f32 %v173, %v188
        %v240 = vmul.f32 %v174, %v188
        %v241 = vmul.f32 %v175, %v188
        %v242 = vmul.f32 %v176, %v188
        %v243 = vmul.f32 %v177, %v188
        %v244 = vmul.f32 %v178, %v188
        %v245 = vmul.f32 %v179, %v188
        %v246 = vmul.f32 %v180, %v188
        %v247 = vmul.f32 %v181, %v188
        %v248 = vmul.f32 %v182, %v188
        %v249 = vmul.f32 %v183, %v188
        %v250 = vmul.f32 %v184, %v188
        %v251 = vmul.f32 %v185, %v188
        %v252 = vmul.f32 %v186, %v188
        %v253 = vmax.f32 %v189, 0.0
        %v254 = vmax.f32 %v190, 0.0
        %v255 = vmax.f32 %v191, 0.0
        %v256 = vmax.f32 %v192, 0.0
        %v257 = vmax.f32 %v193, 0.0
        %v258 = vmax.f32 %v194, 0.0
        %v259 = vmax.f32 %v195, 0.0
        %v260 = vmax.f32 %v196, 0.0
        %v261 = vmax.f32 %v197, 0.0
        %v262 = vmax.f32 %v198, 0.0
        %v263 = vmax.f32 %v199, 0.0
        %v264 = vmax.f32 %v200, 0.0
        %v265 = vmax.f32 %v201, 0.0
        %v266 = vmax.f32 %v202, 0.0
        %v267 = vmax.f32 %v203, 0.0
        %v268 = vmax.f32 %v204, 0.0
        %v269 = vmax.f32 %v205, 0.0
        %v270 = vmax.f32 %v206, 0.0
        %v271 = vmax.f32 %v207, 0.0
        %v272 = vmax.f32 %v208, 0.0
        %v273 = vmax.f32 %v209, 0.0
        %v274 = vmax.f32 %v210, 0.0
        %v275 = vmax.f32 %v211, 0.0
        %v276 = vmax.f32 %v212, 0.0
        %v277 = vmax.f32 %v213, 0.0
        %v278 = vmax.f32 %v214, 0.0
        %v279 = vmax.f32 %v215, 0.0
        %v280 = vmax.f32 %v216, 0.0
        %v281 = vmax.f32 %v217, 0.0
        %v282 = vmax.f32 %v218, 0.0
        %v283 = vmax.f32 %v219, 0.0
        %v284 = vmax.f32 %v220, 0.0
        %v285 = vmax.f32 %v221, 0.0
        %v286 = vmax.f32 %v222, 0.0
        %v287 = vmax.f32 %v223, 0.0
        %v288 = vmax.f32 %v224, 0.0
        %v289 = vmax.f32 %v225, 0.0
        %v290 = vmax.f32 %v226, 0.0
        %v291 = vmax.f32 %v227, 0.0
        %v292 = vmax.f32 %v228, 0.0
        %v293 = vmax.f32 %v229, 0.0
        %v294 = vmax.f32 %v230, 0.0
        %v295 = vmax.f32 %v231, 0.0
        %v296 = vmax.f32 %v232, 0.0
        %v297 = vmax.f32 %v233, 0.0
        %v298 = vmax.f32 %v234, 0.0
        %v299 = vmax.f32 %v235, 0.0
        %v300 = vmax.f32 %v236, 0.0
        %v301 = vmax.f32 %v237, 0.0
        %v302 = vmax.f32 %v238, 0.0
        %v303 = vmax.f32 %v239, 0.0
        %v304 = vmax.f32 %v240, 0.0
        %v305 = vmax.f32 %v241, 0.0
        %v306 = vmax.f32 %v242, 0.0
        %v307 = vmax.f32 %v243, 0.0
        %v308 = vmax.f32 %v244, 0.0
        %v309 = vmax.f32 %v245, 0.0
        %v310 = vmax.f32 %v246, 0.0
        %v311 = vmax.f32 %v247, 0.0
        %v312 = vmax.f32 %v248, 0.0
        %v313 = vmax.f32 %v249, 0.0
        %v314 = vmax.f32 %v250, 0.0
        %v315 = vmax.f32 %v251, 0.0
        %v316 = vmax.f32 %v252, 0.0
        %v317 = vld [vmem:[%s0 + $0x1] sm:$0x1]
        %v318 = vperm.slane %v317, 0
        %v319 = vmul.f32 %v253, %v318
        %v320 = vmul.f32 %v254, %v318
        %v321 = vmul.f32 %v255, %v318
        %v322 = vmul.f32 %v256, %v318
        %v323 = vmul.f32 %v257, %v318
        %v324 = vmul.f32 %v258, %v318
        %v325 = vmul.f32 %v259, %v318
        %v326 = vmul.f32 %v260, %v318
        %v327 = vmul.f32 %v261, %v318
        %v328 = vmul.f32 %v262, %v318
        %v329 = vmul.f32 %v263, %v318
        %v330 = vmul.f32 %v264, %v318
        %v331 = vmul.f32 %v265, %v318
        %v332 = vmul.f32 %v266, %v318
        %v333 = vmul.f32 %v267, %v318
        %v334 = vmul.f32 %v268, %v318
        %v335 = vmul.f32 %v269, %v318
        %v336 = vmul.f32 %v270, %v318
        %v337 = vmul.f32 %v271, %v318
        %v338 = vmul.f32 %v272, %v318
        %v339 = vmul.f32 %v273, %v318
        %v340 = vmul.f32 %v274, %v318
        %v341 = vmul.f32 %v275, %v318
        %v342 = vmul.f32 %v276, %v318
        %v343 = vmul.f32 %v277, %v318
        %v344 = vmul.f32 %v278, %v318
        %v345 = vmul.f32 %v279, %v318
        %v346 = vmul.f32 %v280, %v318
        %v347 = vmul.f32 %v281, %v318
        %v348 = vmul.f32 %v282, %v318
        %v349 = vmul.f32 %v283, %v318
        %v350 = vmul.f32 %v284, %v318
        %v351 = vmul.f32 %v285, %v318
        %v352 = vmul.f32 %v286, %v318
        %v353 = vmul.f32 %v287, %v318
        %v354 = vmul.f32 %v288, %v318
        %v355 = vmul.f32 %v289, %v318
        %v356 = vmul.f32 %v290, %v318
        %v357 = vmul.f32 %v291, %v318
        %v358 = vmul.f32 %v292, %v318
        %v359 = vmul.f32 %v293, %v318
        %v360 = vmul.f32 %v294, %v318
        %v361 = vmul.f32 %v295, %v318
        %v362 = vmul.f32 %v296, %v318
        %v363 = vmul.f32 %v297, %v318
        %v364 = vmul.f32 %v298, %v318
        %v365 = vmul.f32 %v299, %v318
        %v366 = vmul.f32 %v300, %v318
        %v367 = vmul.f32 %v301, %v318
        %v368 = vmul.f32 %v302, %v318
        %v369 = vmul.f32 %v303, %v318
        %v370 = vmul.f32 %v304, %v318
        %v371 = vmul.f32 %v305, %v318
        %v372 = vmul.f32 %v306, %v318
        %v373 = vmul.f32 %v307, %v318
        %v374 = vmul.f32 %v308, %v318
        %v375 = vmul.f32 %v309, %v318
        %v376 = vmul.f32 %v310, %v318
        %v377 = vmul.f32 %v311, %v318
        %v378 = vmul.f32 %v312, %v318
        %v379 = vmul.f32 %v313, %v318
        %v380 = vmul.f32 %v314, %v318
        %v381 = vmul.f32 %v315, %v318
        %v382 = vmul.f32 %v316, %v318
        %v383 = vmul.f32 %v319, %v319
        %v384 = vmul.f32 %v320, %v320
        %v385 = vmul.f32 %v321, %v321
        %v386 = vmul.f32 %v322, %v322
        %v387 = vmul.f32 %v323, %v323
        %v388 = vmul.f32 %v324, %v324
        %v389 = vmul.f32 %v325, %v325
        %v390 = vmul.f32 %v326, %v326
        %v391 = vmul.f32 %v327, %v327
        %v392 = vmul.f32 %v328, %v328
        %v393 = vmul.f32 %v329, %v329
        %v394 = vmul.f32 %v330, %v330
        %v395 = vmul.f32 %v331, %v331
        %v396 = vmul.f32 %v332, %v332
        %v397 = vmul.f32 %v333, %v333
        %v398 = vmul.f32 %v334, %v334
        %v399 = vmul.f32 %v335, %v335
        %v400 = vmul.f32 %v336, %v336
        %v401 = vmul.f32 %v337, %v337
        %v402 = vmul.f32 %v338, %v338
        %v403 = vmul.f32 %v339, %v339
        %v404 = vmul.f32 %v340, %v340
        %v405 = vmul.f32 %v341, %v341
        %v406 = vmul.f32 %v342, %v342
        %v407 = vmul.f32 %v343, %v343
        %v408 = vmul.f32 %v344, %v344
        %v409 = vmul.f32 %v345, %v345
        %v410 = vmul.f32 %v346, %v346
        %v411 = vmul.f32 %v347, %v347
        %v412 = vmul.f32 %v348, %v348
        %v413 = vmul.f32 %v349, %v349
        %v414 = vmul.f32 %v350, %v350
        %v415 = vmul.f32 %v351, %v351
        %v416 = vmul.f32 %v352, %v352
        %v417 = vmul.f32 %v353, %v353
        %v418 = vmul.f32 %v354, %v354
        %v419 = vmul.f32 %v355, %v355
        %v420 = vmul.f32 %v356, %v356
        %v421 = vmul.f32 %v357, %v357
        %v422 = vmul.f32 %v358, %v358
        %v423 = vmul.f32 %v359, %v359
        %v424 = vmul.f32 %v360, %v360
        %v425 = vmul.f32 %v361, %v361
        %v426 = vmul.f32 %v362, %v362
        %v427 = vmul.f32 %v363, %v363
        %v428 = vmul.f32 %v364, %v364
        %v429 = vmul.f32 %v365, %v365
        %v430 = vmul.f32 %v366, %v366
        %v431 = vmul.f32 %v367, %v367
        %v432 = vmul.f32 %v368, %v368
        %v433 = vmul.f32 %v369, %v369
        %v434 = vmul.f32 %v370, %v370
        %v435 = vmul.f32 %v371, %v371
        %v436 = vmul.f32 %v372, %v372
        %v437 = vmul.f32 %v373, %v373
        %v438 = vmul.f32 %v374, %v374
        %v439 = vmul.f32 %v375, %v375
        %v440 = vmul.f32 %v376, %v376
        %v441 = vmul.f32 %v377, %v377
        %v442 = vmul.f32 %v378, %v378
        %v443 = vmul.f32 %v379, %v379
        %v444 = vmul.f32 %v380, %v380
        %v445 = vmul.f32 %v381, %v381
        %v446 = vmul.f32 %v382, %v382
        %vm447 = vcmask 261120
        %v448 = vsel %vm447, %v383, 0.0
        %449 = vadd.xlane.f32.xlu0 %v448
        %v450 = vpop.xlane.xlu0 %449
        %v451 = vsel %vm447, %v384, 0.0
        %452 = vadd.xlane.f32.xlu0 %v451
        %v453 = vpop.xlane.xlu0 %452
        %v454 = vsel %vm447, %v385, 0.0
        %455 = vadd.xlane.f32.xlu0 %v454
        %v456 = vpop.xlane.xlu0 %455
        %v457 = vsel %vm447, %v386, 0.0
        %458 = vadd.xlane.f32.xlu0 %v457
        %v459 = vpop.xlane.xlu0 %458
        %v460 = vsel %vm447, %v387, 0.0
        %461 = vadd.xlane.f32.xlu0 %v460
        %v462 = vpop.xlane.xlu0 %461
        %v463 = vsel %vm447, %v388, 0.0
        %464 = vadd.xlane.f32.xlu0 %v463
        %v465 = vpop.xlane.xlu0 %464
        %v466 = vsel %vm447, %v389, 0.0
        %467 = vadd.xlane.f32.xlu0 %v466
        %v468 = vpop.xlane.xlu0 %467
        %v469 = vsel %vm447, %v390, 0.0
        %470 = vadd.xlane.f32.xlu0 %v469
        %v471 = vpop.xlane.xlu0 %470
        %v472 = vsel %vm447, %v391, 0.0
        %473 = vadd.xlane.f32.xlu0 %v472
        %v474 = vpop.xlane.xlu0 %473
        %v475 = vsel %vm447, %v392, 0.0
        %476 = vadd.xlane.f32.xlu0 %v475
        %v477 = vpop.xlane.xlu0 %476
        %v478 = vsel %vm447, %v393, 0.0
        %479 = vadd.xlane.f32.xlu0 %v478
        %v480 = vpop.xlane.xlu0 %479
        %v481 = vsel %vm447, %v394, 0.0
        %482 = vadd.xlane.f32.xlu0 %v481
        %v483 = vpop.xlane.xlu0 %482
        %v484 = vsel %vm447, %v395, 0.0
        %485 = vadd.xlane.f32.xlu0 %v484
        %v486 = vpop.xlane.xlu0 %485
        %v487 = vsel %vm447, %v396, 0.0
        %488 = vadd.xlane.f32.xlu0 %v487
        %v489 = vpop.xlane.xlu0 %488
        %v490 = vsel %vm447, %v397, 0.0
        %491 = vadd.xlane.f32.xlu0 %v490
        %v492 = vpop.xlane.xlu0 %491
        %v493 = vsel %vm447, %v398, 0.0
        %494 = vadd.xlane.f32.xlu0 %v493
        %v495 = vpop.xlane.xlu0 %494
        %v496 = vsel %vm447, %v399, 0.0
        %497 = vadd.xlane.f32.xlu0 %v496
        %v498 = vpop.xlane.xlu0 %497
        %v499 = vsel %vm447, %v400, 0.0
        %500 = vadd.xlane.f32.xlu0 %v499
        %v501 = vpop.xlane.xlu0 %500
        %v502 = vsel %vm447, %v401, 0.0
        %503 = vadd.xlane.f32.xlu0 %v502
        %v504 = vpop.xlane.xlu0 %503
        %v505 = vsel %vm447, %v402, 0.0
        %506 = vadd.xlane.f32.xlu0 %v505
        %v507 = vpop.xlane.xlu0 %506
        %v508 = vsel %vm447, %v403, 0.0
        %509 = vadd.xlane.f32.xlu0 %v508
        %v510 = vpop.xlane.xlu0 %509
        %v511 = vsel %vm447, %v404, 0.0
        %512 = vadd.xlane.f32.xlu0 %v511
        %v513 = vpop.xlane.xlu0 %512
        %v514 = vsel %vm447, %v405, 0.0
        %515 = vadd.xlane.f32.xlu0 %v514
        %v516 = vpop.xlane.xlu0 %515
        %v517 = vsel %vm447, %v406, 0.0
        %518 = vadd.xlane.f32.xlu0 %v517
        %v519 = vpop.xlane.xlu0 %518
        %v520 = vsel %vm447, %v407, 0.0
        %521 = vadd.xlane.f32.xlu0 %v520
        %v522 = vpop.xlane.xlu0 %521
        %v523 = vsel %vm447, %v408, 0.0
        %524 = vadd.xlane.f32.xlu0 %v523
        %v525 = vpop.xlane.xlu0 %524
        %v526 = vsel %vm447, %v409, 0.0
        %527 = vadd.xlane.f32.xlu0 %v526
        %v528 = vpop.xlane.xlu0 %527
        %v529 = vsel %vm447, %v410, 0.0
        %530 = vadd.xlane.f32.xlu0 %v529
        %v531 = vpop.xlane.xlu0 %530
        %v532 = vsel %vm447, %v411, 0.0
        %533 = vadd.xlane.f32.xlu0 %v532
        %v534 = vpop.xlane.xlu0 %533
        %v535 = vsel %vm447, %v412, 0.0
        %536 = vadd.xlane.f32.xlu0 %v535
        %v537 = vpop.xlane.xlu0 %536
        %v538 = vsel %vm447, %v413, 0.0
        %539 = vadd.xlane.f32.xlu0 %v538
        %v540 = vpop.xlane.xlu0 %539
        %v541 = vsel %vm447, %v414, 0.0
        %542 = vadd.xlane.f32.xlu0 %v541
        %v543 = vpop.xlane.xlu0 %542
        %v544 = vsel %vm447, %v415, 0.0
        %545 = vadd.xlane.f32.xlu0 %v544
        %v546 = vpop.xlane.xlu0 %545
        %v547 = vsel %vm447, %v416, 0.0
        %548 = vadd.xlane.f32.xlu0 %v547
        %v549 = vpop.xlane.xlu0 %548
        %v550 = vsel %vm447, %v417, 0.0
        %551 = vadd.xlane.f32.xlu0 %v550
        %v552 = vpop.xlane.xlu0 %551
        %v553 = vsel %vm447, %v418, 0.0
        %554 = vadd.xlane.f32.xlu0 %v553
        %v555 = vpop.xlane.xlu0 %554
        %v556 = vsel %vm447, %v419, 0.0
        %557 = vadd.xlane.f32.xlu0 %v556
        %v558 = vpop.xlane.xlu0 %557
        %v559 = vsel %vm447, %v420, 0.0
        %560 = vadd.xlane.f32.xlu0 %v559
        %v561 = vpop.xlane.xlu0 %560
        %v562 = vsel %vm447, %v421, 0.0
        %563 = vadd.xlane.f32.xlu0 %v562
        %v564 = vpop.xlane.xlu0 %563
        %v565 = vsel %vm447, %v422, 0.0
        %566 = vadd.xlane.f32.xlu0 %v565
        %v567 = vpop.xlane.xlu0 %566
        %v568 = vsel %vm447, %v423, 0.0
        %569 = vadd.xlane.f32.xlu0 %v568
        %v570 = vpop.xlane.xlu0 %569
        %v571 = vsel %vm447, %v424, 0.0
        %572 = vadd.xlane.f32.xlu0 %v571
        %v573 = vpop.xlane.xlu0 %572
        %v574 = vsel %vm447, %v425, 0.0
        %575 = vadd.xlane.f32.xlu0 %v574
        %v576 = vpop.xlane.xlu0 %575
        %v577 = vsel %vm447, %v426, 0.0
        %578 = vadd.xlane.f32.xlu0 %v577
        %v579 = vpop.xlane.xlu0 %578
        %v580 = vsel %vm447, %v427, 0.0
        %581 = vadd.xlane.f32.xlu0 %v580
        %v582 = vpop.xlane.xlu0 %581
        %v583 = vsel %vm447, %v428, 0.0
        %584 = vadd.xlane.f32.xlu0 %v583
        %v585 = vpop.xlane.xlu0 %584
        %v586 = vsel %vm447, %v429, 0.0
        %587 = vadd.xlane.f32.xlu0 %v586
        %v588 = vpop.xlane.xlu0 %587
        %v589 = vsel %vm447, %v430, 0.0
        %590 = vadd.xlane.f32.xlu0 %v589
        %v591 = vpop.xlane.xlu0 %590
        %v592 = vsel %vm447, %v431, 0.0
        %593 = vadd.xlane.f32.xlu0 %v592
        %v594 = vpop.xlane.xlu0 %593
        %v595 = vsel %vm447, %v432, 0.0
        %596 = vadd.xlane.f32.xlu0 %v595
        %v597 = vpop.xlane.xlu0 %596
        %v598 = vsel %vm447, %v433, 0.0
        %599 = vadd.xlane.f32.xlu0 %v598
        %v600 = vpop.xlane.xlu0 %599
        %v601 = vsel %vm447, %v434, 0.0
        %602 = vadd.xlane.f32.xlu0 %v601
        %v603 = vpop.xlane.xlu0 %602
        %v604 = vsel %vm447, %v435, 0.0
        %605 = vadd.xlane.f32.xlu0 %v604
        %v606 = vpop.xlane.xlu0 %605
        %v607 = vsel %vm447, %v436, 0.0
        %608 = vadd.xlane.f32.xlu0 %v607
        %v609 = vpop.xlane.xlu0 %608
        %v610 = vsel %vm447, %v437, 0.0
        %611 = vadd.xlane.f32.xlu0 %v610
        %v612 = vpop.xlane.xlu0 %611
        %v613 = vsel %vm447, %v438, 0.0
        %614 = vadd.xlane.f32.xlu0 %v613
        %v615 = vpop.xlane.xlu0 %614
        %v616 = vsel %vm447, %v439, 0.0
        %617 = vadd.xlane.f32.xlu0 %v616
        %v618 = vpop.xlane.xlu0 %617
        %v619 = vsel %vm447, %v440, 0.0
        %620 = vadd.xlane.f32.xlu0 %v619
        %v621 = vpop.xlane.xlu0 %620
        %v622 = vsel %vm447, %v441, 0.0
        %623 = vadd.xlane.f32.xlu0 %v622
        %v624 = vpop.xlane.xlu0 %623
        %v625 = vsel %vm447, %v442, 0.0
        %626 = vadd.xlane.f32.xlu0 %v625
        %v627 = vpop.xlane.xlu0 %626
        %v628 = vsel %vm447, %v443, 0.0
        %629 = vadd.xlane.f32.xlu0 %v628
        %v630 = vpop.xlane.xlu0 %629
        %v631 = vsel %vm447, %v444, 0.0
        %632 = vadd.xlane.f32.xlu0 %v631
        %v633 = vpop.xlane.xlu0 %632
        %v634 = vsel %vm447, %v445, 0.0
        %635 = vadd.xlane.f32.xlu0 %v634
        %v636 = vpop.xlane.xlu0 %635
        %v637 = vsel %vm447, %v446, 0.0
        %638 = vadd.xlane.f32.xlu0 %v637
        %v639 = vpop.xlane.xlu0 %638
        %v640 = vmax.f32 %v450, 1e-24
        %v641 = vmax.f32 %v453, 1e-24
        %v642 = vmax.f32 %v456, 1e-24
        %v643 = vmax.f32 %v459, 1e-24
        %v644 = vmax.f32 %v462, 1e-24
        %v645 = vmax.f32 %v465, 1e-24
        %v646 = vmax.f32 %v468, 1e-24
        %v647 = vmax.f32 %v471, 1e-24
        %v648 = vmax.f32 %v474, 1e-24
        %v649 = vmax.f32 %v477, 1e-24
        %v650 = vmax.f32 %v480, 1e-24
        %v651 = vmax.f32 %v483, 1e-24
        %v652 = vmax.f32 %v486, 1e-24
        %v653 = vmax.f32 %v489, 1e-24
        %v654 = vmax.f32 %v492, 1e-24
        %v655 = vmax.f32 %v495, 1e-24
        %v656 = vmax.f32 %v498, 1e-24
        %v657 = vmax.f32 %v501, 1e-24
        %v658 = vmax.f32 %v504, 1e-24
        %v659 = vmax.f32 %v507, 1e-24
        %v660 = vmax.f32 %v510, 1e-24
        %v661 = vmax.f32 %v513, 1e-24
        %v662 = vmax.f32 %v516, 1e-24
        %v663 = vmax.f32 %v519, 1e-24
        %v664 = vmax.f32 %v522, 1e-24
        %v665 = vmax.f32 %v525, 1e-24
        %v666 = vmax.f32 %v528, 1e-24
        %v667 = vmax.f32 %v531, 1e-24
        %v668 = vmax.f32 %v534, 1e-24
        %v669 = vmax.f32 %v537, 1e-24
        %v670 = vmax.f32 %v540, 1e-24
        %v671 = vmax.f32 %v543, 1e-24
        %v672 = vmax.f32 %v546, 1e-24
        %v673 = vmax.f32 %v549, 1e-24
        %v674 = vmax.f32 %v552, 1e-24
        %v675 = vmax.f32 %v555, 1e-24
        %v676 = vmax.f32 %v558, 1e-24
        %v677 = vmax.f32 %v561, 1e-24
        %v678 = vmax.f32 %v564, 1e-24
        %v679 = vmax.f32 %v567, 1e-24
        %v680 = vmax.f32 %v570, 1e-24
        %v681 = vmax.f32 %v573, 1e-24
        %v682 = vmax.f32 %v576, 1e-24
        %v683 = vmax.f32 %v579, 1e-24
        %v684 = vmax.f32 %v582, 1e-24
        %v685 = vmax.f32 %v585, 1e-24
        %v686 = vmax.f32 %v588, 1e-24
        %v687 = vmax.f32 %v591, 1e-24
        %v688 = vmax.f32 %v594, 1e-24
        %v689 = vmax.f32 %v597, 1e-24
        %v690 = vmax.f32 %v600, 1e-24
        %v691 = vmax.f32 %v603, 1e-24
        %v692 = vmax.f32 %v606, 1e-24
        %v693 = vmax.f32 %v609, 1e-24
        %v694 = vmax.f32 %v612, 1e-24
        %v695 = vmax.f32 %v615, 1e-24
        %v696 = vmax.f32 %v618, 1e-24
        %v697 = vmax.f32 %v621, 1e-24
        %v698 = vmax.f32 %v624, 1e-24
        %v699 = vmax.f32 %v627, 1e-24
        %v700 = vmax.f32 %v630, 1e-24
        %v701 = vmax.f32 %v633, 1e-24
        %v702 = vmax.f32 %v636, 1e-24
        %v703 = vmax.f32 %v639, 1e-24
        %v704 = vrsqrt.pop %v640
        %v705 = vmul.f32 %v704, %v640
        %v706 = vmul.f32 %v705, %v704
        %v707 = vmul.f32 0.5, %v706
        %v708 = vsub.f32 1.5, %v707
        %v709 = vmul.f32 %v704, %v708
        %vm710 = vweird.f32 %v640
        %vm711 = vweird.f32 %v704
        %vm712 = vmor %vm710, %vm711
        %v713 = vsel %vm712, %v704, %v709
        %v714 = vrsqrt.pop %v641
        %v715 = vmul.f32 %v714, %v641
        %v716 = vmul.f32 %v715, %v714
        %v717 = vmul.f32 0.5, %v716
        %v718 = vsub.f32 1.5, %v717
        %v719 = vmul.f32 %v714, %v718
        %vm720 = vweird.f32 %v641
        %vm721 = vweird.f32 %v714
        %vm722 = vmor %vm720, %vm721
        %v723 = vsel %vm722, %v714, %v719
        %v724 = vrsqrt.pop %v642
        %v725 = vmul.f32 %v724, %v642
        %v726 = vmul.f32 %v725, %v724
        %v727 = vmul.f32 0.5, %v726
        %v728 = vsub.f32 1.5, %v727
        %v729 = vmul.f32 %v724, %v728
        %vm730 = vweird.f32 %v642
        %vm731 = vweird.f32 %v724
        %vm732 = vmor %vm730, %vm731
        %v733 = vsel %vm732, %v724, %v729
        %v734 = vrsqrt.pop %v643
        %v735 = vmul.f32 %v734, %v643
        %v736 = vmul.f32 %v735, %v734
        %v737 = vmul.f32 0.5, %v736
        %v738 = vsub.f32 1.5, %v737
        %v739 = vmul.f32 %v734, %v738
        %vm740 = vweird.f32 %v643
        %vm741 = vweird.f32 %v734
        %vm742 = vmor %vm740, %vm741
        %v743 = vsel %vm742, %v734, %v739
        %v744 = vrsqrt.pop %v644
        %v745 = vmul.f32 %v744, %v644
        %v746 = vmul.f32 %v745, %v744
        %v747 = vmul.f32 0.5, %v746
        %v748 = vsub.f32 1.5, %v747
        %v749 = vmul.f32 %v744, %v748
        %vm750 = vweird.f32 %v644
        %vm751 = vweird.f32 %v744
        %vm752 = vmor %vm750, %vm751
        %v753 = vsel %vm752, %v744, %v749
        %v754 = vrsqrt.pop %v645
        %v755 = vmul.f32 %v754, %v645
        %v756 = vmul.f32 %v755, %v754
        %v757 = vmul.f32 0.5, %v756
        %v758 = vsub.f32 1.5, %v757
        %v759 = vmul.f32 %v754, %v758
        %vm760 = vweird.f32 %v645
        %vm761 = vweird.f32 %v754
        %vm762 = vmor %vm760, %vm761
        %v763 = vsel %vm762, %v754, %v759
        %v764 = vrsqrt.pop %v646
        %v765 = vmul.f32 %v764, %v646
        %v766 = vmul.f32 %v765, %v764
        %v767 = vmul.f32 0.5, %v766
        %v768 = vsub.f32 1.5, %v767
        %v769 = vmul.f32 %v764, %v768
        %vm770 = vweird.f32 %v646
        %vm771 = vweird.f32 %v764
        %vm772 = vmor %vm770, %vm771
        %v773 = vsel %vm772, %v764, %v769
        %v774 = vrsqrt.pop %v647
        %v775 = vmul.f32 %v774, %v647
        %v776 = vmul.f32 %v775, %v774
        %v777 = vmul.f32 0.5, %v776
        %v778 = vsub.f32 1.5, %v777
        %v779 = vmul.f32 %v774, %v778
        %vm780 = vweird.f32 %v647
        %vm781 = vweird.f32 %v774
        %vm782 = vmor %vm780, %vm781
        %v783 = vsel %vm782, %v774, %v779
        %v784 = vrsqrt.pop %v648
        %v785 = vmul.f32 %v784, %v648
        %v786 = vmul.f32 %v785, %v784
        %v787 = vmul.f32 0.5, %v786
        %v788 = vsub.f32 1.5, %v787
        %v789 = vmul.f32 %v784, %v788
        %vm790 = vweird.f32 %v648
        %vm791 = vweird.f32 %v784
        %vm792 = vmor %vm790, %vm791
        %v793 = vsel %vm792, %v784, %v789
        %v794 = vrsqrt.pop %v649
        %v795 = vmul.f32 %v794, %v649
        %v796 = vmul.f32 %v795, %v794
        %v797 = vmul.f32 0.5, %v796
        %v798 = vsub.f32 1.5, %v797
        %v799 = vmul.f32 %v794, %v798
        %vm800 = vweird.f32 %v649
        %vm801 = vweird.f32 %v794
        %vm802 = vmor %vm800, %vm801
        %v803 = vsel %vm802, %v794, %v799
        %v804 = vrsqrt.pop %v650
        %v805 = vmul.f32 %v804, %v650
        %v806 = vmul.f32 %v805, %v804
        %v807 = vmul.f32 0.5, %v806
        %v808 = vsub.f32 1.5, %v807
        %v809 = vmul.f32 %v804, %v808
        %vm810 = vweird.f32 %v650
        %vm811 = vweird.f32 %v804
        %vm812 = vmor %vm810, %vm811
        %v813 = vsel %vm812, %v804, %v809
        %v814 = vrsqrt.pop %v651
        %v815 = vmul.f32 %v814, %v651
        %v816 = vmul.f32 %v815, %v814
        %v817 = vmul.f32 0.5, %v816
        %v818 = vsub.f32 1.5, %v817
        %v819 = vmul.f32 %v814, %v818
        %vm820 = vweird.f32 %v651
        %vm821 = vweird.f32 %v814
        %vm822 = vmor %vm820, %vm821
        %v823 = vsel %vm822, %v814, %v819
        %v824 = vrsqrt.pop %v652
        %v825 = vmul.f32 %v824, %v652
        %v826 = vmul.f32 %v825, %v824
        %v827 = vmul.f32 0.5, %v826
        %v828 = vsub.f32 1.5, %v827
        %v829 = vmul.f32 %v824, %v828
        %vm830 = vweird.f32 %v652
        %vm831 = vweird.f32 %v824
        %vm832 = vmor %vm830, %vm831
        %v833 = vsel %vm832, %v824, %v829
        %v834 = vrsqrt.pop %v653
        %v835 = vmul.f32 %v834, %v653
        %v836 = vmul.f32 %v835, %v834
        %v837 = vmul.f32 0.5, %v836
        %v838 = vsub.f32 1.5, %v837
        %v839 = vmul.f32 %v834, %v838
        %vm840 = vweird.f32 %v653
        %vm841 = vweird.f32 %v834
        %vm842 = vmor %vm840, %vm841
        %v843 = vsel %vm842, %v834, %v839
        %v844 = vrsqrt.pop %v654
        %v845 = vmul.f32 %v844, %v654
        %v846 = vmul.f32 %v845, %v844
        %v847 = vmul.f32 0.5, %v846
        %v848 = vsub.f32 1.5, %v847
        %v849 = vmul.f32 %v844, %v848
        %vm850 = vweird.f32 %v654
        %vm851 = vweird.f32 %v844
        %vm852 = vmor %vm850, %vm851
        %v853 = vsel %vm852, %v844, %v849
        %v854 = vrsqrt.pop %v655
        %v855 = vmul.f32 %v854, %v655
        %v856 = vmul.f32 %v855, %v854
        %v857 = vmul.f32 0.5, %v856
        %v858 = vsub.f32 1.5, %v857
        %v859 = vmul.f32 %v854, %v858
        %vm860 = vweird.f32 %v655
        %vm861 = vweird.f32 %v854
        %vm862 = vmor %vm860, %vm861
        %v863 = vsel %vm862, %v854, %v859
        %v864 = vrsqrt.pop %v656
        %v865 = vmul.f32 %v864, %v656
        %v866 = vmul.f32 %v865, %v864
        %v867 = vmul.f32 0.5, %v866
        %v868 = vsub.f32 1.5, %v867
        %v869 = vmul.f32 %v864, %v868
        %vm870 = vweird.f32 %v656
        %vm871 = vweird.f32 %v864
        %vm872 = vmor %vm870, %vm871
        %v873 = vsel %vm872, %v864, %v869
        %v874 = vrsqrt.pop %v657
        %v875 = vmul.f32 %v874, %v657
        %v876 = vmul.f32 %v875, %v874
        %v877 = vmul.f32 0.5, %v876
        %v878 = vsub.f32 1.5, %v877
        %v879 = vmul.f32 %v874, %v878
        %vm880 = vweird.f32 %v657
        %vm881 = vweird.f32 %v874
        %vm882 = vmor %vm880, %vm881
        %v883 = vsel %vm882, %v874, %v879
        %v884 = vrsqrt.pop %v658
        %v885 = vmul.f32 %v884, %v658
        %v886 = vmul.f32 %v885, %v884
        %v887 = vmul.f32 0.5, %v886
        %v888 = vsub.f32 1.5, %v887
        %v889 = vmul.f32 %v884, %v888
        %vm890 = vweird.f32 %v658
        %vm891 = vweird.f32 %v884
        %vm892 = vmor %vm890, %vm891
        %v893 = vsel %vm892, %v884, %v889
        %v894 = vrsqrt.pop %v659
        %v895 = vmul.f32 %v894, %v659
        %v896 = vmul.f32 %v895, %v894
        %v897 = vmul.f32 0.5, %v896
        %v898 = vsub.f32 1.5, %v897
        %v899 = vmul.f32 %v894, %v898
        %vm900 = vweird.f32 %v659
        %vm901 = vweird.f32 %v894
        %vm902 = vmor %vm900, %vm901
        %v903 = vsel %vm902, %v894, %v899
        %v904 = vrsqrt.pop %v660
        %v905 = vmul.f32 %v904, %v660
        %v906 = vmul.f32 %v905, %v904
        %v907 = vmul.f32 0.5, %v906
        %v908 = vsub.f32 1.5, %v907
        %v909 = vmul.f32 %v904, %v908
        %vm910 = vweird.f32 %v660
        %vm911 = vweird.f32 %v904
        %vm912 = vmor %vm910, %vm911
        %v913 = vsel %vm912, %v904, %v909
        %v914 = vrsqrt.pop %v661
        %v915 = vmul.f32 %v914, %v661
        %v916 = vmul.f32 %v915, %v914
        %v917 = vmul.f32 0.5, %v916
        %v918 = vsub.f32 1.5, %v917
        %v919 = vmul.f32 %v914, %v918
        %vm920 = vweird.f32 %v661
        %vm921 = vweird.f32 %v914
        %vm922 = vmor %vm920, %vm921
        %v923 = vsel %vm922, %v914, %v919
        %v924 = vrsqrt.pop %v662
        %v925 = vmul.f32 %v924, %v662
        %v926 = vmul.f32 %v925, %v924
        %v927 = vmul.f32 0.5, %v926
        %v928 = vsub.f32 1.5, %v927
        %v929 = vmul.f32 %v924, %v928
        %vm930 = vweird.f32 %v662
        %vm931 = vweird.f32 %v924
        %vm932 = vmor %vm930, %vm931
        %v933 = vsel %vm932, %v924, %v929
        %v934 = vrsqrt.pop %v663
        %v935 = vmul.f32 %v934, %v663
        %v936 = vmul.f32 %v935, %v934
        %v937 = vmul.f32 0.5, %v936
        %v938 = vsub.f32 1.5, %v937
        %v939 = vmul.f32 %v934, %v938
        %vm940 = vweird.f32 %v663
        %vm941 = vweird.f32 %v934
        %vm942 = vmor %vm940, %vm941
        %v943 = vsel %vm942, %v934, %v939
        %v944 = vrsqrt.pop %v664
        %v945 = vmul.f32 %v944, %v664
        %v946 = vmul.f32 %v945, %v944
        %v947 = vmul.f32 0.5, %v946
        %v948 = vsub.f32 1.5, %v947
        %v949 = vmul.f32 %v944, %v948
        %vm950 = vweird.f32 %v664
        %vm951 = vweird.f32 %v944
        %vm952 = vmor %vm950, %vm951
        %v953 = vsel %vm952, %v944, %v949
        %v954 = vrsqrt.pop %v665
        %v955 = vmul.f32 %v954, %v665
        %v956 = vmul.f32 %v955, %v954
        %v957 = vmul.f32 0.5, %v956
        %v958 = vsub.f32 1.5, %v957
        %v959 = vmul.f32 %v954, %v958
        %vm960 = vweird.f32 %v665
        %vm961 = vweird.f32 %v954
        %vm962 = vmor %vm960, %vm961
        %v963 = vsel %vm962, %v954, %v959
        %v964 = vrsqrt.pop %v666
        %v965 = vmul.f32 %v964, %v666
        %v966 = vmul.f32 %v965, %v964
        %v967 = vmul.f32 0.5, %v966
        %v968 = vsub.f32 1.5, %v967
        %v969 = vmul.f32 %v964, %v968
        %vm970 = vweird.f32 %v666
        %vm971 = vweird.f32 %v964
        %vm972 = vmor %vm970, %vm971
        %v973 = vsel %vm972, %v964, %v969
        %v974 = vrsqrt.pop %v667
        %v975 = vmul.f32 %v974, %v667
        %v976 = vmul.f32 %v975, %v974
        %v977 = vmul.f32 0.5, %v976
        %v978 = vsub.f32 1.5, %v977
        %v979 = vmul.f32 %v974, %v978
        %vm980 = vweird.f32 %v667
        %vm981 = vweird.f32 %v974
        %vm982 = vmor %vm980, %vm981
        %v983 = vsel %vm982, %v974, %v979
        %v984 = vrsqrt.pop %v668
        %v985 = vmul.f32 %v984, %v668
        %v986 = vmul.f32 %v985, %v984
        %v987 = vmul.f32 0.5, %v986
        %v988 = vsub.f32 1.5, %v987
        %v989 = vmul.f32 %v984, %v988
        %vm990 = vweird.f32 %v668
        %vm991 = vweird.f32 %v984
        %vm992 = vmor %vm990, %vm991
        %v993 = vsel %vm992, %v984, %v989
        %v994 = vrsqrt.pop %v669
        %v995 = vmul.f32 %v994, %v669
        %v996 = vmul.f32 %v995, %v994
        %v997 = vmul.f32 0.5, %v996
        %v998 = vsub.f32 1.5, %v997
        %v999 = vmul.f32 %v994, %v998
        %vm1000 = vweird.f32 %v669
        %vm1001 = vweird.f32 %v994
        %vm1002 = vmor %vm1000, %vm1001
        %v1003 = vsel %vm1002, %v994, %v999
        %v1004 = vrsqrt.pop %v670
        %v1005 = vmul.f32 %v1004, %v670
        %v1006 = vmul.f32 %v1005, %v1004
        %v1007 = vmul.f32 0.5, %v1006
        %v1008 = vsub.f32 1.5, %v1007
        %v1009 = vmul.f32 %v1004, %v1008
        %vm1010 = vweird.f32 %v670
        %vm1011 = vweird.f32 %v1004
        %vm1012 = vmor %vm1010, %vm1011
        %v1013 = vsel %vm1012, %v1004, %v1009
        %v1014 = vrsqrt.pop %v671
        %v1015 = vmul.f32 %v1014, %v671
        %v1016 = vmul.f32 %v1015, %v1014
        %v1017 = vmul.f32 0.5, %v1016
        %v1018 = vsub.f32 1.5, %v1017
        %v1019 = vmul.f32 %v1014, %v1018
        %vm1020 = vweird.f32 %v671
        %vm1021 = vweird.f32 %v1014
        %vm1022 = vmor %vm1020, %vm1021
        %v1023 = vsel %vm1022, %v1014, %v1019
        %v1024 = vrsqrt.pop %v672
        %v1025 = vmul.f32 %v1024, %v672
        %v1026 = vmul.f32 %v1025, %v1024
        %v1027 = vmul.f32 0.5, %v1026
        %v1028 = vsub.f32 1.5, %v1027
        %v1029 = vmul.f32 %v1024, %v1028
        %vm1030 = vweird.f32 %v672
        %vm1031 = vweird.f32 %v1024
        %vm1032 = vmor %vm1030, %vm1031
        %v1033 = vsel %vm1032, %v1024, %v1029
        %v1034 = vrsqrt.pop %v673
        %v1035 = vmul.f32 %v1034, %v673
        %v1036 = vmul.f32 %v1035, %v1034
        %v1037 = vmul.f32 0.5, %v1036
        %v1038 = vsub.f32 1.5, %v1037
        %v1039 = vmul.f32 %v1034, %v1038
        %vm1040 = vweird.f32 %v673
        %vm1041 = vweird.f32 %v1034
        %vm1042 = vmor %vm1040, %vm1041
        %v1043 = vsel %vm1042, %v1034, %v1039
        %v1044 = vrsqrt.pop %v674
        %v1045 = vmul.f32 %v1044, %v674
        %v1046 = vmul.f32 %v1045, %v1044
        %v1047 = vmul.f32 0.5, %v1046
        %v1048 = vsub.f32 1.5, %v1047
        %v1049 = vmul.f32 %v1044, %v1048
        %vm1050 = vweird.f32 %v674
        %vm1051 = vweird.f32 %v1044
        %vm1052 = vmor %vm1050, %vm1051
        %v1053 = vsel %vm1052, %v1044, %v1049
        %v1054 = vrsqrt.pop %v675
        %v1055 = vmul.f32 %v1054, %v675
        %v1056 = vmul.f32 %v1055, %v1054
        %v1057 = vmul.f32 0.5, %v1056
        %v1058 = vsub.f32 1.5, %v1057
        %v1059 = vmul.f32 %v1054, %v1058
        %vm1060 = vweird.f32 %v675
        %vm1061 = vweird.f32 %v1054
        %vm1062 = vmor %vm1060, %vm1061
        %v1063 = vsel %vm1062, %v1054, %v1059
        %v1064 = vrsqrt.pop %v676
        %v1065 = vmul.f32 %v1064, %v676
        %v1066 = vmul.f32 %v1065, %v1064
        %v1067 = vmul.f32 0.5, %v1066
        %v1068 = vsub.f32 1.5, %v1067
        %v1069 = vmul.f32 %v1064, %v1068
        %vm1070 = vweird.f32 %v676
        %vm1071 = vweird.f32 %v1064
        %vm1072 = vmor %vm1070, %vm1071
        %v1073 = vsel %vm1072, %v1064, %v1069
        %v1074 = vrsqrt.pop %v677
        %v1075 = vmul.f32 %v1074, %v677
        %v1076 = vmul.f32 %v1075, %v1074
        %v1077 = vmul.f32 0.5, %v1076
        %v1078 = vsub.f32 1.5, %v1077
        %v1079 = vmul.f32 %v1074, %v1078
        %vm1080 = vweird.f32 %v677
        %vm1081 = vweird.f32 %v1074
        %vm1082 = vmor %vm1080, %vm1081
        %v1083 = vsel %vm1082, %v1074, %v1079
        %v1084 = vrsqrt.pop %v678
        %v1085 = vmul.f32 %v1084, %v678
        %v1086 = vmul.f32 %v1085, %v1084
        %v1087 = vmul.f32 0.5, %v1086
        %v1088 = vsub.f32 1.5, %v1087
        %v1089 = vmul.f32 %v1084, %v1088
        %vm1090 = vweird.f32 %v678
        %vm1091 = vweird.f32 %v1084
        %vm1092 = vmor %vm1090, %vm1091
        %v1093 = vsel %vm1092, %v1084, %v1089
        %v1094 = vrsqrt.pop %v679
        %v1095 = vmul.f32 %v1094, %v679
        %v1096 = vmul.f32 %v1095, %v1094
        %v1097 = vmul.f32 0.5, %v1096
        %v1098 = vsub.f32 1.5, %v1097
        %v1099 = vmul.f32 %v1094, %v1098
        %vm1100 = vweird.f32 %v679
        %vm1101 = vweird.f32 %v1094
        %vm1102 = vmor %vm1100, %vm1101
        %v1103 = vsel %vm1102, %v1094, %v1099
        %v1104 = vrsqrt.pop %v680
        %v1105 = vmul.f32 %v1104, %v680
        %v1106 = vmul.f32 %v1105, %v1104
        %v1107 = vmul.f32 0.5, %v1106
        %v1108 = vsub.f32 1.5, %v1107
        %v1109 = vmul.f32 %v1104, %v1108
        %vm1110 = vweird.f32 %v680
        %vm1111 = vweird.f32 %v1104
        %vm1112 = vmor %vm1110, %vm1111
        %v1113 = vsel %vm1112, %v1104, %v1109
        %v1114 = vrsqrt.pop %v681
        %v1115 = vmul.f32 %v1114, %v681
        %v1116 = vmul.f32 %v1115, %v1114
        %v1117 = vmul.f32 0.5, %v1116
        %v1118 = vsub.f32 1.5, %v1117
        %v1119 = vmul.f32 %v1114, %v1118
        %vm1120 = vweird.f32 %v681
        %vm1121 = vweird.f32 %v1114
        %vm1122 = vmor %vm1120, %vm1121
        %v1123 = vsel %vm1122, %v1114, %v1119
        %v1124 = vrsqrt.pop %v682
        %v1125 = vmul.f32 %v1124, %v682
        %v1126 = vmul.f32 %v1125, %v1124
        %v1127 = vmul.f32 0.5, %v1126
        %v1128 = vsub.f32 1.5, %v1127
        %v1129 = vmul.f32 %v1124, %v1128
        %vm1130 = vweird.f32 %v682
        %vm1131 = vweird.f32 %v1124
        %vm1132 = vmor %vm1130, %vm1131
        %v1133 = vsel %vm1132, %v1124, %v1129
        %v1134 = vrsqrt.pop %v683
        %v1135 = vmul.f32 %v1134, %v683
        %v1136 = vmul.f32 %v1135, %v1134
        %v1137 = vmul.f32 0.5, %v1136
        %v1138 = vsub.f32 1.5, %v1137
        %v1139 = vmul.f32 %v1134, %v1138
        %vm1140 = vweird.f32 %v683
        %vm1141 = vweird.f32 %v1134
        %vm1142 = vmor %vm1140, %vm1141
        %v1143 = vsel %vm1142, %v1134, %v1139
        %v1144 = vrsqrt.pop %v684
        %v1145 = vmul.f32 %v1144, %v684
        %v1146 = vmul.f32 %v1145, %v1144
        %v1147 = vmul.f32 0.5, %v1146
        %v1148 = vsub.f32 1.5, %v1147
        %v1149 = vmul.f32 %v1144, %v1148
        %vm1150 = vweird.f32 %v684
        %vm1151 = vweird.f32 %v1144
        %vm1152 = vmor %vm1150, %vm1151
        %v1153 = vsel %vm1152, %v1144, %v1149
        %v1154 = vrsqrt.pop %v685
        %v1155 = vmul.f32 %v1154, %v685
        %v1156 = vmul.f32 %v1155, %v1154
        %v1157 = vmul.f32 0.5, %v1156
        %v1158 = vsub.f32 1.5, %v1157
        %v1159 = vmul.f32 %v1154, %v1158
        %vm1160 = vweird.f32 %v685
        %vm1161 = vweird.f32 %v1154
        %vm1162 = vmor %vm1160, %vm1161
        %v1163 = vsel %vm1162, %v1154, %v1159
        %v1164 = vrsqrt.pop %v686
        %v1165 = vmul.f32 %v1164, %v686
        %v1166 = vmul.f32 %v1165, %v1164
        %v1167 = vmul.f32 0.5, %v1166
        %v1168 = vsub.f32 1.5, %v1167
        %v1169 = vmul.f32 %v1164, %v1168
        %vm1170 = vweird.f32 %v686
        %vm1171 = vweird.f32 %v1164
        %vm1172 = vmor %vm1170, %vm1171
        %v1173 = vsel %vm1172, %v1164, %v1169
        %v1174 = vrsqrt.pop %v687
        %v1175 = vmul.f32 %v1174, %v687
        %v1176 = vmul.f32 %v1175, %v1174
        %v1177 = vmul.f32 0.5, %v1176
        %v1178 = vsub.f32 1.5, %v1177
        %v1179 = vmul.f32 %v1174, %v1178
        %vm1180 = vweird.f32 %v687
        %vm1181 = vweird.f32 %v1174
        %vm1182 = vmor %vm1180, %vm1181
        %v1183 = vsel %vm1182, %v1174, %v1179
        %v1184 = vrsqrt.pop %v688
        %v1185 = vmul.f32 %v1184, %v688
        %v1186 = vmul.f32 %v1185, %v1184
        %v1187 = vmul.f32 0.5, %v1186
        %v1188 = vsub.f32 1.5, %v1187
        %v1189 = vmul.f32 %v1184, %v1188
        %vm1190 = vweird.f32 %v688
        %vm1191 = vweird.f32 %v1184
        %vm1192 = vmor %vm1190, %vm1191
        %v1193 = vsel %vm1192, %v1184, %v1189
        %v1194 = vrsqrt.pop %v689
        %v1195 = vmul.f32 %v1194, %v689
        %v1196 = vmul.f32 %v1195, %v1194
        %v1197 = vmul.f32 0.5, %v1196
        %v1198 = vsub.f32 1.5, %v1197
        %v1199 = vmul.f32 %v1194, %v1198
        %vm1200 = vweird.f32 %v689
        %vm1201 = vweird.f32 %v1194
        %vm1202 = vmor %vm1200, %vm1201
        %v1203 = vsel %vm1202, %v1194, %v1199
        %v1204 = vrsqrt.pop %v690
        %v1205 = vmul.f32 %v1204, %v690
        %v1206 = vmul.f32 %v1205, %v1204
        %v1207 = vmul.f32 0.5, %v1206
        %v1208 = vsub.f32 1.5, %v1207
        %v1209 = vmul.f32 %v1204, %v1208
        %vm1210 = vweird.f32 %v690
        %vm1211 = vweird.f32 %v1204
        %vm1212 = vmor %vm1210, %vm1211
        %v1213 = vsel %vm1212, %v1204, %v1209
        %v1214 = vrsqrt.pop %v691
        %v1215 = vmul.f32 %v1214, %v691
        %v1216 = vmul.f32 %v1215, %v1214
        %v1217 = vmul.f32 0.5, %v1216
        %v1218 = vsub.f32 1.5, %v1217
        %v1219 = vmul.f32 %v1214, %v1218
        %vm1220 = vweird.f32 %v691
        %vm1221 = vweird.f32 %v1214
        %vm1222 = vmor %vm1220, %vm1221
        %v1223 = vsel %vm1222, %v1214, %v1219
        %v1224 = vrsqrt.pop %v692
        %v1225 = vmul.f32 %v1224, %v692
        %v1226 = vmul.f32 %v1225, %v1224
        %v1227 = vmul.f32 0.5, %v1226
        %v1228 = vsub.f32 1.5, %v1227
        %v1229 = vmul.f32 %v1224, %v1228
        %vm1230 = vweird.f32 %v692
        %vm1231 = vweird.f32 %v1224
        %vm1232 = vmor %vm1230, %vm1231
        %v1233 = vsel %vm1232, %v1224, %v1229
        %v1234 = vrsqrt.pop %v693
        %v1235 = vmul.f32 %v1234, %v693
        %v1236 = vmul.f32 %v1235, %v1234
        %v1237 = vmul.f32 0.5, %v1236
        %v1238 = vsub.f32 1.5, %v1237
        %v1239 = vmul.f32 %v1234, %v1238
        %vm1240 = vweird.f32 %v693
        %vm1241 = vweird.f32 %v1234
        %vm1242 = vmor %vm1240, %vm1241
        %v1243 = vsel %vm1242, %v1234, %v1239
        %v1244 = vrsqrt.pop %v694
        %v1245 = vmul.f32 %v1244, %v694
        %v1246 = vmul.f32 %v1245, %v1244
        %v1247 = vmul.f32 0.5, %v1246
        %v1248 = vsub.f32 1.5, %v1247
        %v1249 = vmul.f32 %v1244, %v1248
        %vm1250 = vweird.f32 %v694
        %vm1251 = vweird.f32 %v1244
        %vm1252 = vmor %vm1250, %vm1251
        %v1253 = vsel %vm1252, %v1244, %v1249
        %v1254 = vrsqrt.pop %v695
        %v1255 = vmul.f32 %v1254, %v695
        %v1256 = vmul.f32 %v1255, %v1254
        %v1257 = vmul.f32 0.5, %v1256
        %v1258 = vsub.f32 1.5, %v1257
        %v1259 = vmul.f32 %v1254, %v1258
        %vm1260 = vweird.f32 %v695
        %vm1261 = vweird.f32 %v1254
        %vm1262 = vmor %vm1260, %vm1261
        %v1263 = vsel %vm1262, %v1254, %v1259
        %v1264 = vrsqrt.pop %v696
        %v1265 = vmul.f32 %v1264, %v696
        %v1266 = vmul.f32 %v1265, %v1264
        %v1267 = vmul.f32 0.5, %v1266
        %v1268 = vsub.f32 1.5, %v1267
        %v1269 = vmul.f32 %v1264, %v1268
        %vm1270 = vweird.f32 %v696
        %vm1271 = vweird.f32 %v1264
        %vm1272 = vmor %vm1270, %vm1271
        %v1273 = vsel %vm1272, %v1264, %v1269
        %v1274 = vrsqrt.pop %v697
        %v1275 = vmul.f32 %v1274, %v697
        %v1276 = vmul.f32 %v1275, %v1274
        %v1277 = vmul.f32 0.5, %v1276
        %v1278 = vsub.f32 1.5, %v1277
        %v1279 = vmul.f32 %v1274, %v1278
        %vm1280 = vweird.f32 %v697
        %vm1281 = vweird.f32 %v1274
        %vm1282 = vmor %vm1280, %vm1281
        %v1283 = vsel %vm1282, %v1274, %v1279
        %v1284 = vrsqrt.pop %v698
        %v1285 = vmul.f32 %v1284, %v698
        %v1286 = vmul.f32 %v1285, %v1284
        %v1287 = vmul.f32 0.5, %v1286
        %v1288 = vsub.f32 1.5, %v1287
        %v1289 = vmul.f32 %v1284, %v1288
        %vm1290 = vweird.f32 %v698
        %vm1291 = vweird.f32 %v1284
        %vm1292 = vmor %vm1290, %vm1291
        %v1293 = vsel %vm1292, %v1284, %v1289
        %v1294 = vrsqrt.pop %v699
        %v1295 = vmul.f32 %v1294, %v699
        %v1296 = vmul.f32 %v1295, %v1294
        %v1297 = vmul.f32 0.5, %v1296
        %v1298 = vsub.f32 1.5, %v1297
        %v1299 = vmul.f32 %v1294, %v1298
        %vm1300 = vweird.f32 %v699
        %vm1301 = vweird.f32 %v1294
        %vm1302 = vmor %vm1300, %vm1301
        %v1303 = vsel %vm1302, %v1294, %v1299
        %v1304 = vrsqrt.pop %v700
        %v1305 = vmul.f32 %v1304, %v700
        %v1306 = vmul.f32 %v1305, %v1304
        %v1307 = vmul.f32 0.5, %v1306
        %v1308 = vsub.f32 1.5, %v1307
        %v1309 = vmul.f32 %v1304, %v1308
        %vm1310 = vweird.f32 %v700
        %vm1311 = vweird.f32 %v1304
        %vm1312 = vmor %vm1310, %vm1311
        %v1313 = vsel %vm1312, %v1304, %v1309
        %v1314 = vrsqrt.pop %v701
        %v1315 = vmul.f32 %v1314, %v701
        %v1316 = vmul.f32 %v1315, %v1314
        %v1317 = vmul.f32 0.5, %v1316
        %v1318 = vsub.f32 1.5, %v1317
        %v1319 = vmul.f32 %v1314, %v1318
        %vm1320 = vweird.f32 %v701
        %vm1321 = vweird.f32 %v1314
        %vm1322 = vmor %vm1320, %vm1321
        %v1323 = vsel %vm1322, %v1314, %v1319
        %v1324 = vrsqrt.pop %v702
        %v1325 = vmul.f32 %v1324, %v702
        %v1326 = vmul.f32 %v1325, %v1324
        %v1327 = vmul.f32 0.5, %v1326
        %v1328 = vsub.f32 1.5, %v1327
        %v1329 = vmul.f32 %v1324, %v1328
        %vm1330 = vweird.f32 %v702
        %vm1331 = vweird.f32 %v1324
        %vm1332 = vmor %vm1330, %vm1331
        %v1333 = vsel %vm1332, %v1324, %v1329
        %v1334 = vrsqrt.pop %v703
        %v1335 = vmul.f32 %v1334, %v703
        %v1336 = vmul.f32 %v1335, %v1334
        %v1337 = vmul.f32 0.5, %v1336
        %v1338 = vsub.f32 1.5, %v1337
        %v1339 = vmul.f32 %v1334, %v1338
        %vm1340 = vweird.f32 %v703
        %vm1341 = vweird.f32 %v1334
        %vm1342 = vmor %vm1340, %vm1341
        %v1343 = vsel %vm1342, %v1334, %v1339
        %v1344 = vmul.f32 %v319, %v713
        %v1345 = vmul.f32 %v320, %v723
        %v1346 = vmul.f32 %v321, %v733
        %v1347 = vmul.f32 %v322, %v743
        %v1348 = vmul.f32 %v323, %v753
        %v1349 = vmul.f32 %v324, %v763
        %v1350 = vmul.f32 %v325, %v773
        %v1351 = vmul.f32 %v326, %v783
        %v1352 = vmul.f32 %v327, %v793
        %v1353 = vmul.f32 %v328, %v803
        %v1354 = vmul.f32 %v329, %v813
        %v1355 = vmul.f32 %v330, %v823
        %v1356 = vmul.f32 %v331, %v833
        %v1357 = vmul.f32 %v332, %v843
        %v1358 = vmul.f32 %v333, %v853
        %v1359 = vmul.f32 %v334, %v863
        %v1360 = vmul.f32 %v335, %v873
        %v1361 = vmul.f32 %v336, %v883
        %v1362 = vmul.f32 %v337, %v893
        %v1363 = vmul.f32 %v338, %v903
        %v1364 = vmul.f32 %v339, %v913
        %v1365 = vmul.f32 %v340, %v923
        %v1366 = vmul.f32 %v341, %v933
        %v1367 = vmul.f32 %v342, %v943
        %v1368 = vmul.f32 %v343, %v953
        %v1369 = vmul.f32 %v344, %v963
        %v1370 = vmul.f32 %v345, %v973
        %v1371 = vmul.f32 %v346, %v983
        %v1372 = vmul.f32 %v347, %v993
        %v1373 = vmul.f32 %v348, %v1003
        %v1374 = vmul.f32 %v349, %v1013
        %v1375 = vmul.f32 %v350, %v1023
        %v1376 = vmul.f32 %v351, %v1033
        %v1377 = vmul.f32 %v352, %v1043
        %v1378 = vmul.f32 %v353, %v1053
        %v1379 = vmul.f32 %v354, %v1063
        %v1380 = vmul.f32 %v355, %v1073
        %v1381 = vmul.f32 %v356, %v1083
        %v1382 = vmul.f32 %v357, %v1093
        %v1383 = vmul.f32 %v358, %v1103
        %v1384 = vmul.f32 %v359, %v1113
        %v1385 = vmul.f32 %v360, %v1123
        %v1386 = vmul.f32 %v361, %v1133
        %v1387 = vmul.f32 %v362, %v1143
        %v1388 = vmul.f32 %v363, %v1153
        %v1389 = vmul.f32 %v364, %v1163
        %v1390 = vmul.f32 %v365, %v1173
        %v1391 = vmul.f32 %v366, %v1183
        %v1392 = vmul.f32 %v367, %v1193
        %v1393 = vmul.f32 %v368, %v1203
        %v1394 = vmul.f32 %v369, %v1213
        %v1395 = vmul.f32 %v370, %v1223
        %v1396 = vmul.f32 %v371, %v1233
        %v1397 = vmul.f32 %v372, %v1243
        %v1398 = vmul.f32 %v373, %v1253
        %v1399 = vmul.f32 %v374, %v1263
        %v1400 = vmul.f32 %v375, %v1273
        %v1401 = vmul.f32 %v376, %v1283
        %v1402 = vmul.f32 %v377, %v1293
        %v1403 = vmul.f32 %v378, %v1303
        %v1404 = vmul.f32 %v379, %v1313
        %v1405 = vmul.f32 %v380, %v1323
        %v1406 = vmul.f32 %v381, %v1333
        %v1407 = vmul.f32 %v382, %v1343
        %s1408 = smul.u32 %s16, 128
        %s1409 = scalar_lea.vmem %s1, %s1408
        %v1410 = vld [vmem:[%s1409] sm:$0xff]
        %v1411 = vld [vmem:[%s1409 + $0x8] sm:$0xff]
        %v1412 = vld [vmem:[%s1409 + $0x10] sm:$0xff]
        %v1413 = vld [vmem:[%s1409 + $0x18] sm:$0xff]
        %v1414 = vld [vmem:[%s1409 + $0x20] sm:$0xff]
        %v1415 = vld [vmem:[%s1409 + $0x28] sm:$0xff]
        %v1416 = vld [vmem:[%s1409 + $0x30] sm:$0xff]
        %v1417 = vld [vmem:[%s1409 + $0x38] sm:$0xff]
        %v1418 = vld [vmem:[%s1409 + $0x40] sm:$0xff]
        %v1419 = vld [vmem:[%s1409 + $0x48] sm:$0xff]
        %v1420 = vld [vmem:[%s1409 + $0x50] sm:$0xff]
        %v1421 = vld [vmem:[%s1409 + $0x58] sm:$0xff]
        %v1422 = vld [vmem:[%s1409 + $0x60] sm:$0xff]
        %v1423 = vld [vmem:[%s1409 + $0x68] sm:$0xff]
        %v1424 = vld [vmem:[%s1409 + $0x70] sm:$0xff]
        %v1425 = vld [vmem:[%s1409 + $0x78] sm:$0xff]
        %v1426 = vmul.f32 %v1410, %v188
        %v1427 = vmul.f32 %v1411, %v188
        %v1428 = vmul.f32 %v1412, %v188
        %v1429 = vmul.f32 %v1413, %v188
        %v1430 = vmul.f32 %v1414, %v188
        %v1431 = vmul.f32 %v1415, %v188
        %v1432 = vmul.f32 %v1416, %v188
        %v1433 = vmul.f32 %v1417, %v188
        %v1434 = vmul.f32 %v1418, %v188
        %v1435 = vmul.f32 %v1419, %v188
        %v1436 = vmul.f32 %v1420, %v188
        %v1437 = vmul.f32 %v1421, %v188
        %v1438 = vmul.f32 %v1422, %v188
        %v1439 = vmul.f32 %v1423, %v188
        %v1440 = vmul.f32 %v1424, %v188
        %v1441 = vmul.f32 %v1425, %v188
        %v1442 = vmax.f32 %v1426, 0.0
        %v1443 = vmax.f32 %v1427, 0.0
        %v1444 = vmax.f32 %v1428, 0.0
        %v1445 = vmax.f32 %v1429, 0.0
        %v1446 = vmax.f32 %v1430, 0.0
        %v1447 = vmax.f32 %v1431, 0.0
        %v1448 = vmax.f32 %v1432, 0.0
        %v1449 = vmax.f32 %v1433, 0.0
        %v1450 = vmax.f32 %v1434, 0.0
        %v1451 = vmax.f32 %v1435, 0.0
        %v1452 = vmax.f32 %v1436, 0.0
        %v1453 = vmax.f32 %v1437, 0.0
        %v1454 = vmax.f32 %v1438, 0.0
        %v1455 = vmax.f32 %v1439, 0.0
        %v1456 = vmax.f32 %v1440, 0.0
        %v1457 = vmax.f32 %v1441, 0.0
        %v1458 = vmul.f32 %v1442, %v318
        %v1459 = vmul.f32 %v1443, %v318
        %v1460 = vmul.f32 %v1444, %v318
        %v1461 = vmul.f32 %v1445, %v318
        %v1462 = vmul.f32 %v1446, %v318
        %v1463 = vmul.f32 %v1447, %v318
        %v1464 = vmul.f32 %v1448, %v318
        %v1465 = vmul.f32 %v1449, %v318
        %v1466 = vmul.f32 %v1450, %v318
        %v1467 = vmul.f32 %v1451, %v318
        %v1468 = vmul.f32 %v1452, %v318
        %v1469 = vmul.f32 %v1453, %v318
        %v1470 = vmul.f32 %v1454, %v318
        %v1471 = vmul.f32 %v1455, %v318
        %v1472 = vmul.f32 %v1456, %v318
        %v1473 = vmul.f32 %v1457, %v318
        %v1474 = vmul.f32 %v1458, %v1458
        %v1475 = vmul.f32 %v1459, %v1459
        %v1476 = vmul.f32 %v1460, %v1460
        %v1477 = vmul.f32 %v1461, %v1461
        %v1478 = vmul.f32 %v1462, %v1462
        %v1479 = vmul.f32 %v1463, %v1463
        %v1480 = vmul.f32 %v1464, %v1464
        %v1481 = vmul.f32 %v1465, %v1465
        %v1482 = vmul.f32 %v1466, %v1466
        %v1483 = vmul.f32 %v1467, %v1467
        %v1484 = vmul.f32 %v1468, %v1468
        %v1485 = vmul.f32 %v1469, %v1469
        %v1486 = vmul.f32 %v1470, %v1470
        %v1487 = vmul.f32 %v1471, %v1471
        %v1488 = vmul.f32 %v1472, %v1472
        %v1489 = vmul.f32 %v1473, %v1473
        %v1490 = vsel %vm447, %v1474, 0.0
        %1491 = vadd.xlane.f32.xlu0 %v1490
        %v1492 = vpop.xlane.xlu0 %1491
        %v1493 = vsel %vm447, %v1475, 0.0
        %1494 = vadd.xlane.f32.xlu0 %v1493
        %v1495 = vpop.xlane.xlu0 %1494
        %v1496 = vsel %vm447, %v1476, 0.0
        %1497 = vadd.xlane.f32.xlu0 %v1496
        %v1498 = vpop.xlane.xlu0 %1497
        %v1499 = vsel %vm447, %v1477, 0.0
        %1500 = vadd.xlane.f32.xlu0 %v1499
        %v1501 = vpop.xlane.xlu0 %1500
        %v1502 = vsel %vm447, %v1478, 0.0
        %1503 = vadd.xlane.f32.xlu0 %v1502
        %v1504 = vpop.xlane.xlu0 %1503
        %v1505 = vsel %vm447, %v1479, 0.0
        %1506 = vadd.xlane.f32.xlu0 %v1505
        %v1507 = vpop.xlane.xlu0 %1506
        %v1508 = vsel %vm447, %v1480, 0.0
        %1509 = vadd.xlane.f32.xlu0 %v1508
        %v1510 = vpop.xlane.xlu0 %1509
        %v1511 = vsel %vm447, %v1481, 0.0
        %1512 = vadd.xlane.f32.xlu0 %v1511
        %v1513 = vpop.xlane.xlu0 %1512
        %v1514 = vsel %vm447, %v1482, 0.0
        %1515 = vadd.xlane.f32.xlu0 %v1514
        %v1516 = vpop.xlane.xlu0 %1515
        %v1517 = vsel %vm447, %v1483, 0.0
        %1518 = vadd.xlane.f32.xlu0 %v1517
        %v1519 = vpop.xlane.xlu0 %1518
        %v1520 = vsel %vm447, %v1484, 0.0
        %1521 = vadd.xlane.f32.xlu0 %v1520
        %v1522 = vpop.xlane.xlu0 %1521
        %v1523 = vsel %vm447, %v1485, 0.0
        %1524 = vadd.xlane.f32.xlu0 %v1523
        %v1525 = vpop.xlane.xlu0 %1524
        %v1526 = vsel %vm447, %v1486, 0.0
        %1527 = vadd.xlane.f32.xlu0 %v1526
        %v1528 = vpop.xlane.xlu0 %1527
        %v1529 = vsel %vm447, %v1487, 0.0
        %1530 = vadd.xlane.f32.xlu0 %v1529
        %v1531 = vpop.xlane.xlu0 %1530
        %v1532 = vsel %vm447, %v1488, 0.0
        %1533 = vadd.xlane.f32.xlu0 %v1532
        %v1534 = vpop.xlane.xlu0 %1533
        %v1535 = vsel %vm447, %v1489, 0.0
        %1536 = vadd.xlane.f32.xlu0 %v1535
        %v1537 = vpop.xlane.xlu0 %1536
        %v1538 = vmax.f32 %v1492, 1e-24
        %v1539 = vmax.f32 %v1495, 1e-24
        %v1540 = vmax.f32 %v1498, 1e-24
        %v1541 = vmax.f32 %v1501, 1e-24
        %v1542 = vmax.f32 %v1504, 1e-24
        %v1543 = vmax.f32 %v1507, 1e-24
        %v1544 = vmax.f32 %v1510, 1e-24
        %v1545 = vmax.f32 %v1513, 1e-24
        %v1546 = vmax.f32 %v1516, 1e-24
        %v1547 = vmax.f32 %v1519, 1e-24
        %v1548 = vmax.f32 %v1522, 1e-24
        %v1549 = vmax.f32 %v1525, 1e-24
        %v1550 = vmax.f32 %v1528, 1e-24
        %v1551 = vmax.f32 %v1531, 1e-24
        %v1552 = vmax.f32 %v1534, 1e-24
        %v1553 = vmax.f32 %v1537, 1e-24
        %v1554 = vrsqrt.pop %v1538
        %v1555 = vmul.f32 %v1554, %v1538
        %v1556 = vmul.f32 %v1555, %v1554
        %v1557 = vmul.f32 0.5, %v1556
        %v1558 = vsub.f32 1.5, %v1557
        %v1559 = vmul.f32 %v1554, %v1558
        %vm1560 = vweird.f32 %v1538
        %vm1561 = vweird.f32 %v1554
        %vm1562 = vmor %vm1560, %vm1561
        %v1563 = vsel %vm1562, %v1554, %v1559
        %v1564 = vrsqrt.pop %v1539
        %v1565 = vmul.f32 %v1564, %v1539
        %v1566 = vmul.f32 %v1565, %v1564
        %v1567 = vmul.f32 0.5, %v1566
        %v1568 = vsub.f32 1.5, %v1567
        %v1569 = vmul.f32 %v1564, %v1568
        %vm1570 = vweird.f32 %v1539
        %vm1571 = vweird.f32 %v1564
        %vm1572 = vmor %vm1570, %vm1571
        %v1573 = vsel %vm1572, %v1564, %v1569
        %v1574 = vrsqrt.pop %v1540
        %v1575 = vmul.f32 %v1574, %v1540
        %v1576 = vmul.f32 %v1575, %v1574
        %v1577 = vmul.f32 0.5, %v1576
        %v1578 = vsub.f32 1.5, %v1577
        %v1579 = vmul.f32 %v1574, %v1578
        %vm1580 = vweird.f32 %v1540
        %vm1581 = vweird.f32 %v1574
        %vm1582 = vmor %vm1580, %vm1581
        %v1583 = vsel %vm1582, %v1574, %v1579
        %v1584 = vrsqrt.pop %v1541
        %v1585 = vmul.f32 %v1584, %v1541
        %v1586 = vmul.f32 %v1585, %v1584
        %v1587 = vmul.f32 0.5, %v1586
        %v1588 = vsub.f32 1.5, %v1587
        %v1589 = vmul.f32 %v1584, %v1588
        %vm1590 = vweird.f32 %v1541
        %vm1591 = vweird.f32 %v1584
        %vm1592 = vmor %vm1590, %vm1591
        %v1593 = vsel %vm1592, %v1584, %v1589
        %v1594 = vrsqrt.pop %v1542
        %v1595 = vmul.f32 %v1594, %v1542
        %v1596 = vmul.f32 %v1595, %v1594
        %v1597 = vmul.f32 0.5, %v1596
        %v1598 = vsub.f32 1.5, %v1597
        %v1599 = vmul.f32 %v1594, %v1598
        %vm1600 = vweird.f32 %v1542
        %vm1601 = vweird.f32 %v1594
        %vm1602 = vmor %vm1600, %vm1601
        %v1603 = vsel %vm1602, %v1594, %v1599
        %v1604 = vrsqrt.pop %v1543
        %v1605 = vmul.f32 %v1604, %v1543
        %v1606 = vmul.f32 %v1605, %v1604
        %v1607 = vmul.f32 0.5, %v1606
        %v1608 = vsub.f32 1.5, %v1607
        %v1609 = vmul.f32 %v1604, %v1608
        %vm1610 = vweird.f32 %v1543
        %vm1611 = vweird.f32 %v1604
        %vm1612 = vmor %vm1610, %vm1611
        %v1613 = vsel %vm1612, %v1604, %v1609
        %v1614 = vrsqrt.pop %v1544
        %v1615 = vmul.f32 %v1614, %v1544
        %v1616 = vmul.f32 %v1615, %v1614
        %v1617 = vmul.f32 0.5, %v1616
        %v1618 = vsub.f32 1.5, %v1617
        %v1619 = vmul.f32 %v1614, %v1618
        %vm1620 = vweird.f32 %v1544
        %vm1621 = vweird.f32 %v1614
        %vm1622 = vmor %vm1620, %vm1621
        %v1623 = vsel %vm1622, %v1614, %v1619
        %v1624 = vrsqrt.pop %v1545
        %v1625 = vmul.f32 %v1624, %v1545
        %v1626 = vmul.f32 %v1625, %v1624
        %v1627 = vmul.f32 0.5, %v1626
        %v1628 = vsub.f32 1.5, %v1627
        %v1629 = vmul.f32 %v1624, %v1628
        %vm1630 = vweird.f32 %v1545
        %vm1631 = vweird.f32 %v1624
        %vm1632 = vmor %vm1630, %vm1631
        %v1633 = vsel %vm1632, %v1624, %v1629
        %v1634 = vrsqrt.pop %v1546
        %v1635 = vmul.f32 %v1634, %v1546
        %v1636 = vmul.f32 %v1635, %v1634
        %v1637 = vmul.f32 0.5, %v1636
        %v1638 = vsub.f32 1.5, %v1637
        %v1639 = vmul.f32 %v1634, %v1638
        %vm1640 = vweird.f32 %v1546
        %vm1641 = vweird.f32 %v1634
        %vm1642 = vmor %vm1640, %vm1641
        %v1643 = vsel %vm1642, %v1634, %v1639
        %v1644 = vrsqrt.pop %v1547
        %v1645 = vmul.f32 %v1644, %v1547
        %v1646 = vmul.f32 %v1645, %v1644
        %v1647 = vmul.f32 0.5, %v1646
        %v1648 = vsub.f32 1.5, %v1647
        %v1649 = vmul.f32 %v1644, %v1648
        %vm1650 = vweird.f32 %v1547
        %vm1651 = vweird.f32 %v1644
        %vm1652 = vmor %vm1650, %vm1651
        %v1653 = vsel %vm1652, %v1644, %v1649
        %v1654 = vrsqrt.pop %v1548
        %v1655 = vmul.f32 %v1654, %v1548
        %v1656 = vmul.f32 %v1655, %v1654
        %v1657 = vmul.f32 0.5, %v1656
        %v1658 = vsub.f32 1.5, %v1657
        %v1659 = vmul.f32 %v1654, %v1658
        %vm1660 = vweird.f32 %v1548
        %vm1661 = vweird.f32 %v1654
        %vm1662 = vmor %vm1660, %vm1661
        %v1663 = vsel %vm1662, %v1654, %v1659
        %v1664 = vrsqrt.pop %v1549
        %v1665 = vmul.f32 %v1664, %v1549
        %v1666 = vmul.f32 %v1665, %v1664
        %v1667 = vmul.f32 0.5, %v1666
        %v1668 = vsub.f32 1.5, %v1667
        %v1669 = vmul.f32 %v1664, %v1668
        %vm1670 = vweird.f32 %v1549
        %vm1671 = vweird.f32 %v1664
        %vm1672 = vmor %vm1670, %vm1671
        %v1673 = vsel %vm1672, %v1664, %v1669
        %v1674 = vrsqrt.pop %v1550
        %v1675 = vmul.f32 %v1674, %v1550
        %v1676 = vmul.f32 %v1675, %v1674
        %v1677 = vmul.f32 0.5, %v1676
        %v1678 = vsub.f32 1.5, %v1677
        %v1679 = vmul.f32 %v1674, %v1678
        %vm1680 = vweird.f32 %v1550
        %vm1681 = vweird.f32 %v1674
        %vm1682 = vmor %vm1680, %vm1681
        %v1683 = vsel %vm1682, %v1674, %v1679
        %v1684 = vrsqrt.pop %v1551
        %v1685 = vmul.f32 %v1684, %v1551
        %v1686 = vmul.f32 %v1685, %v1684
        %v1687 = vmul.f32 0.5, %v1686
        %v1688 = vsub.f32 1.5, %v1687
        %v1689 = vmul.f32 %v1684, %v1688
        %vm1690 = vweird.f32 %v1551
        %vm1691 = vweird.f32 %v1684
        %vm1692 = vmor %vm1690, %vm1691
        %v1693 = vsel %vm1692, %v1684, %v1689
        %v1694 = vrsqrt.pop %v1552
        %v1695 = vmul.f32 %v1694, %v1552
        %v1696 = vmul.f32 %v1695, %v1694
        %v1697 = vmul.f32 0.5, %v1696
        %v1698 = vsub.f32 1.5, %v1697
        %v1699 = vmul.f32 %v1694, %v1698
        %vm1700 = vweird.f32 %v1552
        %vm1701 = vweird.f32 %v1694
        %vm1702 = vmor %vm1700, %vm1701
        %v1703 = vsel %vm1702, %v1694, %v1699
        %v1704 = vrsqrt.pop %v1553
        %v1705 = vmul.f32 %v1704, %v1553
        %v1706 = vmul.f32 %v1705, %v1704
        %v1707 = vmul.f32 0.5, %v1706
        %v1708 = vsub.f32 1.5, %v1707
        %v1709 = vmul.f32 %v1704, %v1708
        %vm1710 = vweird.f32 %v1553
        %vm1711 = vweird.f32 %v1704
        %vm1712 = vmor %vm1710, %vm1711
        %v1713 = vsel %vm1712, %v1704, %v1709
        %v1714 = vmul.f32 %v1458, %v1563
        %v1715 = vmul.f32 %v1459, %v1573
        %v1716 = vmul.f32 %v1460, %v1583
        %v1717 = vmul.f32 %v1461, %v1593
        %v1718 = vmul.f32 %v1462, %v1603
        %v1719 = vmul.f32 %v1463, %v1613
        %v1720 = vmul.f32 %v1464, %v1623
        %v1721 = vmul.f32 %v1465, %v1633
        %v1722 = vmul.f32 %v1466, %v1643
        %v1723 = vmul.f32 %v1467, %v1653
        %v1724 = vmul.f32 %v1468, %v1663
        %v1725 = vmul.f32 %v1469, %v1673
        %v1726 = vmul.f32 %v1470, %v1683
        %v1727 = vmul.f32 %v1471, %v1693
        %v1728 = vmul.f32 %v1472, %v1703
        %v1729 = vmul.f32 %v1473, %v1713
        %v1731 = vsel %vm447, %v1714, 0
        %v1734 = vsel %vm447, %v1715, 0
        %v1737 = vsel %vm447, %v1716, 0
        %v1740 = vsel %vm447, %v1717, 0
        %v1743 = vsel %vm447, %v1718, 0
        %v1746 = vsel %vm447, %v1719, 0
        %v1749 = vsel %vm447, %v1720, 0
        %v1752 = vsel %vm447, %v1721, 0
        %v1755 = vsel %vm447, %v1722, 0
        %v1758 = vsel %vm447, %v1723, 0
        %v1761 = vsel %vm447, %v1724, 0
        %v1764 = vsel %vm447, %v1725, 0
        %v1767 = vsel %vm447, %v1726, 0
        %v1770 = vsel %vm447, %v1727, 0
        %v1773 = vsel %vm447, %v1728, 0
        %v1776 = vsel %vm447, %v1729, 0
        %v1779 = vsel %vm447, %v1344, 0
        %v1782 = vsel %vm447, %v1345, 0
        %v1785 = vsel %vm447, %v1346, 0
        %v1788 = vsel %vm447, %v1347, 0
        %v1791 = vsel %vm447, %v1348, 0
        %v1794 = vsel %vm447, %v1349, 0
        %v1797 = vsel %vm447, %v1350, 0
        %v1800 = vsel %vm447, %v1351, 0
        %v1803 = vsel %vm447, %v1352, 0
        %v1806 = vsel %vm447, %v1353, 0
        %v1809 = vsel %vm447, %v1354, 0
        %v1812 = vsel %vm447, %v1355, 0
        %v1815 = vsel %vm447, %v1356, 0
        %v1818 = vsel %vm447, %v1357, 0
        %v1821 = vsel %vm447, %v1358, 0
        %v1824 = vsel %vm447, %v1359, 0
        %v1827 = vsel %vm447, %v1360, 0
        %v1830 = vsel %vm447, %v1361, 0
        %v1833 = vsel %vm447, %v1362, 0
        %v1836 = vsel %vm447, %v1363, 0
        %v1839 = vsel %vm447, %v1364, 0
        %v1842 = vsel %vm447, %v1365, 0
        %v1845 = vsel %vm447, %v1366, 0
        %v1848 = vsel %vm447, %v1367, 0
        %v1851 = vsel %vm447, %v1368, 0
        %v1854 = vsel %vm447, %v1369, 0
        %v1857 = vsel %vm447, %v1370, 0
        %v1860 = vsel %vm447, %v1371, 0
        %v1863 = vsel %vm447, %v1372, 0
        %v1866 = vsel %vm447, %v1373, 0
        %v1869 = vsel %vm447, %v1374, 0
        %v1872 = vsel %vm447, %v1375, 0
        %1874 = vmatpush.xpose.msra.mxu0 %v1824
        %1875 = vmatpush.xpose.msra.mxu0 %v1821
        %1876 = vmatpush.xpose.msra.mxu0 %v1818
        %1877 = vmatpush.xpose.msra.mxu0 %v1815
        %1878 = vmatpush.xpose.msra.mxu0 %v1812
        %1879 = vmatpush.xpose.msra.mxu0 %v1809
        %1880 = vmatpush.xpose.msra.mxu0 %v1806
        %1881 = vmatpush.xpose.msra.mxu0 %v1803
        %1882 = vmatpush.xpose.msra.mxu0 %v1800
        %1883 = vmatpush.xpose.msra.mxu0 %v1797
        %1884 = vmatpush.xpose.msra.mxu0 %v1794
        %1885 = vmatpush.xpose.msra.mxu0 %v1791
        %1886 = vmatpush.xpose.msra.mxu0 %v1788
        %1887 = vmatpush.xpose.msra.mxu0 %v1785
        %1888 = vmatpush.xpose.msra.mxu0 %v1782
        %1889 = vmatpush.xpose.msra.mxu0 %v1779
        %1890 = vmatmul.f32.gmra.mxu0 %v1731
        %v1891 = vpop.f32.mrf.mxu0
        %v1892 = vadd.f32 0.0, %v1891
        %1893 = vmatmul.f32.gmra.mxu0 %v1734
        %v1894 = vpop.f32.mrf.mxu0
        %v1895 = vadd.f32 0.0, %v1894
        %1896 = vmatmul.f32.gmra.mxu0 %v1737
        %v1897 = vpop.f32.mrf.mxu0
        %v1898 = vadd.f32 0.0, %v1897
        %1899 = vmatmul.f32.gmra.mxu0 %v1740
        %v1900 = vpop.f32.mrf.mxu0
        %v1901 = vadd.f32 0.0, %v1900
        %1902 = vmatmul.f32.gmra.mxu0 %v1743
        %v1903 = vpop.f32.mrf.mxu0
        %v1904 = vadd.f32 0.0, %v1903
        %1905 = vmatmul.f32.gmra.mxu0 %v1746
        %v1906 = vpop.f32.mrf.mxu0
        %v1907 = vadd.f32 0.0, %v1906
        %1908 = vmatmul.f32.gmra.mxu0 %v1749
        %v1909 = vpop.f32.mrf.mxu0
        %v1910 = vadd.f32 0.0, %v1909
        %1911 = vmatmul.f32.gmra.mxu0 %v1752
        %v1912 = vpop.f32.mrf.mxu0
        %v1913 = vadd.f32 0.0, %v1912
        %1914 = vmatmul.f32.gmra.mxu0 %v1755
        %v1915 = vpop.f32.mrf.mxu0
        %v1916 = vadd.f32 0.0, %v1915
        %1917 = vmatmul.f32.gmra.mxu0 %v1758
        %v1918 = vpop.f32.mrf.mxu0
        %v1919 = vadd.f32 0.0, %v1918
        %1920 = vmatmul.f32.gmra.mxu0 %v1761
        %v1921 = vpop.f32.mrf.mxu0
        %v1922 = vadd.f32 0.0, %v1921
        %1923 = vmatmul.f32.gmra.mxu0 %v1764
        %v1924 = vpop.f32.mrf.mxu0
        %v1925 = vadd.f32 0.0, %v1924
        %1926 = vmatmul.f32.gmra.mxu0 %v1767
        %v1927 = vpop.f32.mrf.mxu0
        %v1928 = vadd.f32 0.0, %v1927
        %1929 = vmatmul.f32.gmra.mxu0 %v1770
        %v1930 = vpop.f32.mrf.mxu0
        %v1931 = vadd.f32 0.0, %v1930
        %1932 = vmatmul.f32.gmra.mxu0 %v1773
        %v1933 = vpop.f32.mrf.mxu0
        %v1934 = vadd.f32 0.0, %v1933
        %1935 = vmatmul.f32.gmra.mxu0 %v1776
        %v1936 = vpop.f32.mrf.mxu0
        %v1937 = vadd.f32 0.0, %v1936
        %1938 = vdwg.mxu0
        %1939 = vmatpush.xpose.msra.mxu0 %v1872
        %1940 = vmatpush.xpose.msra.mxu0 %v1869
        %1941 = vmatpush.xpose.msra.mxu0 %v1866
        %1942 = vmatpush.xpose.msra.mxu0 %v1863
        %1943 = vmatpush.xpose.msra.mxu0 %v1860
        %1944 = vmatpush.xpose.msra.mxu0 %v1857
        %1945 = vmatpush.xpose.msra.mxu0 %v1854
        %1946 = vmatpush.xpose.msra.mxu0 %v1851
        %1947 = vmatpush.xpose.msra.mxu0 %v1848
        %1948 = vmatpush.xpose.msra.mxu0 %v1845
        %1949 = vmatpush.xpose.msra.mxu0 %v1842
        %1950 = vmatpush.xpose.msra.mxu0 %v1839
        %1951 = vmatpush.xpose.msra.mxu0 %v1836
        %1952 = vmatpush.xpose.msra.mxu0 %v1833
        %1953 = vmatpush.xpose.msra.mxu0 %v1830
        %1954 = vmatpush.xpose.msra.mxu0 %v1827
        %1955 = vmatmul.f32.gmra.mxu0 %v1731
        %v1956 = vpop.f32.mrf.mxu0
        %v1957 = vadd.f32 0.0, %v1956
        %1958 = vmatmul.f32.gmra.mxu0 %v1734
        %v1959 = vpop.f32.mrf.mxu0
        %v1960 = vadd.f32 0.0, %v1959
        %1961 = vmatmul.f32.gmra.mxu0 %v1737
        %v1962 = vpop.f32.mrf.mxu0
        %v1963 = vadd.f32 0.0, %v1962
        %1964 = vmatmul.f32.gmra.mxu0 %v1740
        %v1965 = vpop.f32.mrf.mxu0
        %v1966 = vadd.f32 0.0, %v1965
        %1967 = vmatmul.f32.gmra.mxu0 %v1743
        %v1968 = vpop.f32.mrf.mxu0
        %v1969 = vadd.f32 0.0, %v1968
        %1970 = vmatmul.f32.gmra.mxu0 %v1746
        %v1971 = vpop.f32.mrf.mxu0
        %v1972 = vadd.f32 0.0, %v1971
        %1973 = vmatmul.f32.gmra.mxu0 %v1749
        %v1974 = vpop.f32.mrf.mxu0
        %v1975 = vadd.f32 0.0, %v1974
        %1976 = vmatmul.f32.gmra.mxu0 %v1752
        %v1977 = vpop.f32.mrf.mxu0
        %v1978 = vadd.f32 0.0, %v1977
        %1979 = vmatmul.f32.gmra.mxu0 %v1755
        %v1980 = vpop.f32.mrf.mxu0
        %v1981 = vadd.f32 0.0, %v1980
        %1982 = vmatmul.f32.gmra.mxu0 %v1758
        %v1983 = vpop.f32.mrf.mxu0
        %v1984 = vadd.f32 0.0, %v1983
        %1985 = vmatmul.f32.gmra.mxu0 %v1761
        %v1986 = vpop.f32.mrf.mxu0
        %v1987 = vadd.f32 0.0, %v1986
        %1988 = vmatmul.f32.gmra.mxu0 %v1764
        %v1989 = vpop.f32.mrf.mxu0
        %v1990 = vadd.f32 0.0, %v1989
        %1991 = vmatmul.f32.gmra.mxu0 %v1767
        %v1992 = vpop.f32.mrf.mxu0
        %v1993 = vadd.f32 0.0, %v1992
        %1994 = vmatmul.f32.gmra.mxu0 %v1770
        %v1995 = vpop.f32.mrf.mxu0
        %v1996 = vadd.f32 0.0, %v1995
        %1997 = vmatmul.f32.gmra.mxu0 %v1773
        %v1998 = vpop.f32.mrf.mxu0
        %v1999 = vadd.f32 0.0, %v1998
        %2000 = vmatmul.f32.gmra.mxu0 %v1776
        %v2001 = vpop.f32.mrf.mxu0
        %v2002 = vadd.f32 0.0, %v2001
        %2003 = vdwg.mxu0
        %v2004 = vmax.f32 %v1892, %v1957
        %2005 = vmax.xlane.f32.xlu0 %v2004
        %v2006 = vpop.xlane.xlu0 %2005
        %v2007 = vmax.f32 %v1895, %v1960
        %2008 = vmax.xlane.f32.xlu0 %v2007
        %v2009 = vpop.xlane.xlu0 %2008
        %v2010 = vmax.f32 %v1898, %v1963
        %2011 = vmax.xlane.f32.xlu0 %v2010
        %v2012 = vpop.xlane.xlu0 %2011
        %v2013 = vmax.f32 %v1901, %v1966
        %2014 = vmax.xlane.f32.xlu0 %v2013
        %v2015 = vpop.xlane.xlu0 %2014
        %v2016 = vmax.f32 %v1904, %v1969
        %2017 = vmax.xlane.f32.xlu0 %v2016
        %v2018 = vpop.xlane.xlu0 %2017
        %v2019 = vmax.f32 %v1907, %v1972
        %2020 = vmax.xlane.f32.xlu0 %v2019
        %v2021 = vpop.xlane.xlu0 %2020
        %v2022 = vmax.f32 %v1910, %v1975
        %2023 = vmax.xlane.f32.xlu0 %v2022
        %v2024 = vpop.xlane.xlu0 %2023
        %v2025 = vmax.f32 %v1913, %v1978
        %2026 = vmax.xlane.f32.xlu0 %v2025
        %v2027 = vpop.xlane.xlu0 %2026
        %v2028 = vmax.f32 %v1916, %v1981
        %2029 = vmax.xlane.f32.xlu0 %v2028
        %v2030 = vpop.xlane.xlu0 %2029
        %v2031 = vmax.f32 %v1919, %v1984
        %2032 = vmax.xlane.f32.xlu0 %v2031
        %v2033 = vpop.xlane.xlu0 %2032
        %v2034 = vmax.f32 %v1922, %v1987
        %2035 = vmax.xlane.f32.xlu0 %v2034
        %v2036 = vpop.xlane.xlu0 %2035
        %v2037 = vmax.f32 %v1925, %v1990
        %2038 = vmax.xlane.f32.xlu0 %v2037
        %v2039 = vpop.xlane.xlu0 %2038
        %v2040 = vmax.f32 %v1928, %v1993
        %2041 = vmax.xlane.f32.xlu0 %v2040
        %v2042 = vpop.xlane.xlu0 %2041
        %v2043 = vmax.f32 %v1931, %v1996
        %2044 = vmax.xlane.f32.xlu0 %v2043
        %v2045 = vpop.xlane.xlu0 %2044
        %v2046 = vmax.f32 %v1934, %v1999
        %2047 = vmax.xlane.f32.xlu0 %v2046
        %v2048 = vpop.xlane.xlu0 %2047
        %v2049 = vmax.f32 %v1937, %v2002
        %2050 = vmax.xlane.f32.xlu0 %v2049
        %v2051 = vpop.xlane.xlu0 %2050
        %vm2052 = vcmp.ge.f32.partialorder %v1892, %v2006
        %vm2053 = vcmp.ge.f32.partialorder %v1957, %v2006
        %vm2054 = vcmp.ge.f32.partialorder %v1895, %v2009
        %vm2055 = vcmp.ge.f32.partialorder %v1960, %v2009
        %vm2056 = vcmp.ge.f32.partialorder %v1898, %v2012
        %vm2057 = vcmp.ge.f32.partialorder %v1963, %v2012
        %vm2058 = vcmp.ge.f32.partialorder %v1901, %v2015
        %vm2059 = vcmp.ge.f32.partialorder %v1966, %v2015
        %vm2060 = vcmp.ge.f32.partialorder %v1904, %v2018
        %vm2061 = vcmp.ge.f32.partialorder %v1969, %v2018
        %vm2062 = vcmp.ge.f32.partialorder %v1907, %v2021
        %vm2063 = vcmp.ge.f32.partialorder %v1972, %v2021
        %vm2064 = vcmp.ge.f32.partialorder %v1910, %v2024
        %vm2065 = vcmp.ge.f32.partialorder %v1975, %v2024
        %vm2066 = vcmp.ge.f32.partialorder %v1913, %v2027
        %vm2067 = vcmp.ge.f32.partialorder %v1978, %v2027
        %vm2068 = vcmp.ge.f32.partialorder %v1916, %v2030
        %vm2069 = vcmp.ge.f32.partialorder %v1981, %v2030
        %vm2070 = vcmp.ge.f32.partialorder %v1919, %v2033
        %vm2071 = vcmp.ge.f32.partialorder %v1984, %v2033
        %vm2072 = vcmp.ge.f32.partialorder %v1922, %v2036
        %vm2073 = vcmp.ge.f32.partialorder %v1987, %v2036
        %vm2074 = vcmp.ge.f32.partialorder %v1925, %v2039
        %vm2075 = vcmp.ge.f32.partialorder %v1990, %v2039
        %vm2076 = vcmp.ge.f32.partialorder %v1928, %v2042
        %vm2077 = vcmp.ge.f32.partialorder %v1993, %v2042
        %vm2078 = vcmp.ge.f32.partialorder %v1931, %v2045
        %vm2079 = vcmp.ge.f32.partialorder %v1996, %v2045
        %vm2080 = vcmp.ge.f32.partialorder %v1934, %v2048
        %vm2081 = vcmp.ge.f32.partialorder %v1999, %v2048
        %vm2082 = vcmp.ge.f32.partialorder %v1937, %v2051
        %vm2083 = vcmp.ge.f32.partialorder %v2002, %v2051
        %v2084 = vsel %vm2052, -inf, %v1892
        %v2085 = vsel %vm2053, -inf, %v1957
        %v2086 = vsel %vm2054, -inf, %v1895
        %v2087 = vsel %vm2055, -inf, %v1960
        %v2088 = vsel %vm2056, -inf, %v1898
        %v2089 = vsel %vm2057, -inf, %v1963
        %v2090 = vsel %vm2058, -inf, %v1901
        %v2091 = vsel %vm2059, -inf, %v1966
        %v2092 = vsel %vm2060, -inf, %v1904
        %v2093 = vsel %vm2061, -inf, %v1969
        %v2094 = vsel %vm2062, -inf, %v1907
        %v2095 = vsel %vm2063, -inf, %v1972
        %v2096 = vsel %vm2064, -inf, %v1910
        %v2097 = vsel %vm2065, -inf, %v1975
        %v2098 = vsel %vm2066, -inf, %v1913
        %v2099 = vsel %vm2067, -inf, %v1978
        %v2100 = vsel %vm2068, -inf, %v1916
        %v2101 = vsel %vm2069, -inf, %v1981
        %v2102 = vsel %vm2070, -inf, %v1919
        %v2103 = vsel %vm2071, -inf, %v1984
        %v2104 = vsel %vm2072, -inf, %v1922
        %v2105 = vsel %vm2073, -inf, %v1987
        %v2106 = vsel %vm2074, -inf, %v1925
        %v2107 = vsel %vm2075, -inf, %v1990
        %v2108 = vsel %vm2076, -inf, %v1928
        %v2109 = vsel %vm2077, -inf, %v1993
        %v2110 = vsel %vm2078, -inf, %v1931
        %v2111 = vsel %vm2079, -inf, %v1996
        %v2112 = vsel %vm2080, -inf, %v1934
        %v2113 = vsel %vm2081, -inf, %v1999
        %v2114 = vsel %vm2082, -inf, %v1937
        %v2115 = vsel %vm2083, -inf, %v2002
        %v2116 = vmax.f32 %v2084, %v2085
        %2117 = vmax.xlane.f32.xlu0 %v2116
        %v2118 = vpop.xlane.xlu0 %2117
        %v2119 = vmax.f32 %v2086, %v2087
        %2120 = vmax.xlane.f32.xlu0 %v2119
        %v2121 = vpop.xlane.xlu0 %2120
        %v2122 = vmax.f32 %v2088, %v2089
        %2123 = vmax.xlane.f32.xlu0 %v2122
        %v2124 = vpop.xlane.xlu0 %2123
        %v2125 = vmax.f32 %v2090, %v2091
        %2126 = vmax.xlane.f32.xlu0 %v2125
        %v2127 = vpop.xlane.xlu0 %2126
        %v2128 = vmax.f32 %v2092, %v2093
        %2129 = vmax.xlane.f32.xlu0 %v2128
        %v2130 = vpop.xlane.xlu0 %2129
        %v2131 = vmax.f32 %v2094, %v2095
        %2132 = vmax.xlane.f32.xlu0 %v2131
        %v2133 = vpop.xlane.xlu0 %2132
        %v2134 = vmax.f32 %v2096, %v2097
        %2135 = vmax.xlane.f32.xlu0 %v2134
        %v2136 = vpop.xlane.xlu0 %2135
        %v2137 = vmax.f32 %v2098, %v2099
        %2138 = vmax.xlane.f32.xlu0 %v2137
        %v2139 = vpop.xlane.xlu0 %2138
        %v2140 = vmax.f32 %v2100, %v2101
        %2141 = vmax.xlane.f32.xlu0 %v2140
        %v2142 = vpop.xlane.xlu0 %2141
        %v2143 = vmax.f32 %v2102, %v2103
        %2144 = vmax.xlane.f32.xlu0 %v2143
        %v2145 = vpop.xlane.xlu0 %2144
        %v2146 = vmax.f32 %v2104, %v2105
        %2147 = vmax.xlane.f32.xlu0 %v2146
        %v2148 = vpop.xlane.xlu0 %2147
        %v2149 = vmax.f32 %v2106, %v2107
        %2150 = vmax.xlane.f32.xlu0 %v2149
        %v2151 = vpop.xlane.xlu0 %2150
        %v2152 = vmax.f32 %v2108, %v2109
        %2153 = vmax.xlane.f32.xlu0 %v2152
        %v2154 = vpop.xlane.xlu0 %2153
        %v2155 = vmax.f32 %v2110, %v2111
        %2156 = vmax.xlane.f32.xlu0 %v2155
        %v2157 = vpop.xlane.xlu0 %2156
        %v2158 = vmax.f32 %v2112, %v2113
        %2159 = vmax.xlane.f32.xlu0 %v2158
        %v2160 = vpop.xlane.xlu0 %2159
        %v2161 = vmax.f32 %v2114, %v2115
        %2162 = vmax.xlane.f32.xlu0 %v2161
        %v2163 = vpop.xlane.xlu0 %2162
        %vm2164 = vcmp.ge.f32.partialorder %v2084, %v2118
        %vm2165 = vcmp.ge.f32.partialorder %v2085, %v2118
        %vm2166 = vcmp.ge.f32.partialorder %v2086, %v2121
        %vm2167 = vcmp.ge.f32.partialorder %v2087, %v2121
        %vm2168 = vcmp.ge.f32.partialorder %v2088, %v2124
        %vm2169 = vcmp.ge.f32.partialorder %v2089, %v2124
        %vm2170 = vcmp.ge.f32.partialorder %v2090, %v2127
        %vm2171 = vcmp.ge.f32.partialorder %v2091, %v2127
        %vm2172 = vcmp.ge.f32.partialorder %v2092, %v2130
        %vm2173 = vcmp.ge.f32.partialorder %v2093, %v2130
        %vm2174 = vcmp.ge.f32.partialorder %v2094, %v2133
        %vm2175 = vcmp.ge.f32.partialorder %v2095, %v2133
        %vm2176 = vcmp.ge.f32.partialorder %v2096, %v2136
        %vm2177 = vcmp.ge.f32.partialorder %v2097, %v2136
        %vm2178 = vcmp.ge.f32.partialorder %v2098, %v2139
        %vm2179 = vcmp.ge.f32.partialorder %v2099, %v2139
        %vm2180 = vcmp.ge.f32.partialorder %v2100, %v2142
        %vm2181 = vcmp.ge.f32.partialorder %v2101, %v2142
        %vm2182 = vcmp.ge.f32.partialorder %v2102, %v2145
        %vm2183 = vcmp.ge.f32.partialorder %v2103, %v2145
        %vm2184 = vcmp.ge.f32.partialorder %v2104, %v2148
        %vm2185 = vcmp.ge.f32.partialorder %v2105, %v2148
        %vm2186 = vcmp.ge.f32.partialorder %v2106, %v2151
        %vm2187 = vcmp.ge.f32.partialorder %v2107, %v2151
        %vm2188 = vcmp.ge.f32.partialorder %v2108, %v2154
        %vm2189 = vcmp.ge.f32.partialorder %v2109, %v2154
        %vm2190 = vcmp.ge.f32.partialorder %v2110, %v2157
        %vm2191 = vcmp.ge.f32.partialorder %v2111, %v2157
        %vm2192 = vcmp.ge.f32.partialorder %v2112, %v2160
        %vm2193 = vcmp.ge.f32.partialorder %v2113, %v2160
        %vm2194 = vcmp.ge.f32.partialorder %v2114, %v2163
        %vm2195 = vcmp.ge.f32.partialorder %v2115, %v2163
        %v2196 = vsel %vm2164, -inf, %v2084
        %v2197 = vsel %vm2165, -inf, %v2085
        %v2198 = vsel %vm2166, -inf, %v2086
        %v2199 = vsel %vm2167, -inf, %v2087
        %v2200 = vsel %vm2168, -inf, %v2088
        %v2201 = vsel %vm2169, -inf, %v2089
        %v2202 = vsel %vm2170, -inf, %v2090
        %v2203 = vsel %vm2171, -inf, %v2091
        %v2204 = vsel %vm2172, -inf, %v2092
        %v2205 = vsel %vm2173, -inf, %v2093
        %v2206 = vsel %vm2174, -inf, %v2094
        %v2207 = vsel %vm2175, -inf, %v2095
        %v2208 = vsel %vm2176, -inf, %v2096
        %v2209 = vsel %vm2177, -inf, %v2097
        %v2210 = vsel %vm2178, -inf, %v2098
        %v2211 = vsel %vm2179, -inf, %v2099
        %v2212 = vsel %vm2180, -inf, %v2100
        %v2213 = vsel %vm2181, -inf, %v2101
        %v2214 = vsel %vm2182, -inf, %v2102
        %v2215 = vsel %vm2183, -inf, %v2103
        %v2216 = vsel %vm2184, -inf, %v2104
        %v2217 = vsel %vm2185, -inf, %v2105
        %v2218 = vsel %vm2186, -inf, %v2106
        %v2219 = vsel %vm2187, -inf, %v2107
        %v2220 = vsel %vm2188, -inf, %v2108
        %v2221 = vsel %vm2189, -inf, %v2109
        %v2222 = vsel %vm2190, -inf, %v2110
        %v2223 = vsel %vm2191, -inf, %v2111
        %v2224 = vsel %vm2192, -inf, %v2112
        %v2225 = vsel %vm2193, -inf, %v2113
        %v2226 = vsel %vm2194, -inf, %v2114
        %v2227 = vsel %vm2195, -inf, %v2115
        %v2228 = vmax.f32 %v2196, %v2197
        %2229 = vmax.xlane.f32.xlu0 %v2228
        %v2230 = vpop.xlane.xlu0 %2229
        %v2231 = vmax.f32 %v2198, %v2199
        %2232 = vmax.xlane.f32.xlu0 %v2231
        %v2233 = vpop.xlane.xlu0 %2232
        %v2234 = vmax.f32 %v2200, %v2201
        %2235 = vmax.xlane.f32.xlu0 %v2234
        %v2236 = vpop.xlane.xlu0 %2235
        %v2237 = vmax.f32 %v2202, %v2203
        %2238 = vmax.xlane.f32.xlu0 %v2237
        %v2239 = vpop.xlane.xlu0 %2238
        %v2240 = vmax.f32 %v2204, %v2205
        %2241 = vmax.xlane.f32.xlu0 %v2240
        %v2242 = vpop.xlane.xlu0 %2241
        %v2243 = vmax.f32 %v2206, %v2207
        %2244 = vmax.xlane.f32.xlu0 %v2243
        %v2245 = vpop.xlane.xlu0 %2244
        %v2246 = vmax.f32 %v2208, %v2209
        %2247 = vmax.xlane.f32.xlu0 %v2246
        %v2248 = vpop.xlane.xlu0 %2247
        %v2249 = vmax.f32 %v2210, %v2211
        %2250 = vmax.xlane.f32.xlu0 %v2249
        %v2251 = vpop.xlane.xlu0 %2250
        %v2252 = vmax.f32 %v2212, %v2213
        %2253 = vmax.xlane.f32.xlu0 %v2252
        %v2254 = vpop.xlane.xlu0 %2253
        %v2255 = vmax.f32 %v2214, %v2215
        %2256 = vmax.xlane.f32.xlu0 %v2255
        %v2257 = vpop.xlane.xlu0 %2256
        %v2258 = vmax.f32 %v2216, %v2217
        %2259 = vmax.xlane.f32.xlu0 %v2258
        %v2260 = vpop.xlane.xlu0 %2259
        %v2261 = vmax.f32 %v2218, %v2219
        %2262 = vmax.xlane.f32.xlu0 %v2261
        %v2263 = vpop.xlane.xlu0 %2262
        %v2264 = vmax.f32 %v2220, %v2221
        %2265 = vmax.xlane.f32.xlu0 %v2264
        %v2266 = vpop.xlane.xlu0 %2265
        %v2267 = vmax.f32 %v2222, %v2223
        %2268 = vmax.xlane.f32.xlu0 %v2267
        %v2269 = vpop.xlane.xlu0 %2268
        %v2270 = vmax.f32 %v2224, %v2225
        %2271 = vmax.xlane.f32.xlu0 %v2270
        %v2272 = vpop.xlane.xlu0 %2271
        %v2273 = vmax.f32 %v2226, %v2227
        %2274 = vmax.xlane.f32.xlu0 %v2273
        %v2275 = vpop.xlane.xlu0 %2274
        %vm2276 = vcmp.ge.f32.partialorder %v2196, %v2230
        %vm2277 = vcmp.ge.f32.partialorder %v2197, %v2230
        %vm2278 = vcmp.ge.f32.partialorder %v2198, %v2233
        %vm2279 = vcmp.ge.f32.partialorder %v2199, %v2233
        %vm2280 = vcmp.ge.f32.partialorder %v2200, %v2236
        %vm2281 = vcmp.ge.f32.partialorder %v2201, %v2236
        %vm2282 = vcmp.ge.f32.partialorder %v2202, %v2239
        %vm2283 = vcmp.ge.f32.partialorder %v2203, %v2239
        %vm2284 = vcmp.ge.f32.partialorder %v2204, %v2242
        %vm2285 = vcmp.ge.f32.partialorder %v2205, %v2242
        %vm2286 = vcmp.ge.f32.partialorder %v2206, %v2245
        %vm2287 = vcmp.ge.f32.partialorder %v2207, %v2245
        %vm2288 = vcmp.ge.f32.partialorder %v2208, %v2248
        %vm2289 = vcmp.ge.f32.partialorder %v2209, %v2248
        %vm2290 = vcmp.ge.f32.partialorder %v2210, %v2251
        %vm2291 = vcmp.ge.f32.partialorder %v2211, %v2251
        %vm2292 = vcmp.ge.f32.partialorder %v2212, %v2254
        %vm2293 = vcmp.ge.f32.partialorder %v2213, %v2254
        %vm2294 = vcmp.ge.f32.partialorder %v2214, %v2257
        %vm2295 = vcmp.ge.f32.partialorder %v2215, %v2257
        %vm2296 = vcmp.ge.f32.partialorder %v2216, %v2260
        %vm2297 = vcmp.ge.f32.partialorder %v2217, %v2260
        %vm2298 = vcmp.ge.f32.partialorder %v2218, %v2263
        %vm2299 = vcmp.ge.f32.partialorder %v2219, %v2263
        %vm2300 = vcmp.ge.f32.partialorder %v2220, %v2266
        %vm2301 = vcmp.ge.f32.partialorder %v2221, %v2266
        %vm2302 = vcmp.ge.f32.partialorder %v2222, %v2269
        %vm2303 = vcmp.ge.f32.partialorder %v2223, %v2269
        %vm2304 = vcmp.ge.f32.partialorder %v2224, %v2272
        %vm2305 = vcmp.ge.f32.partialorder %v2225, %v2272
        %vm2306 = vcmp.ge.f32.partialorder %v2226, %v2275
        %vm2307 = vcmp.ge.f32.partialorder %v2227, %v2275
        %v2308 = vsel %vm2276, -inf, %v2196
        %v2309 = vsel %vm2277, -inf, %v2197
        %v2310 = vsel %vm2278, -inf, %v2198
        %v2311 = vsel %vm2279, -inf, %v2199
        %v2312 = vsel %vm2280, -inf, %v2200
        %v2313 = vsel %vm2281, -inf, %v2201
        %v2314 = vsel %vm2282, -inf, %v2202
        %v2315 = vsel %vm2283, -inf, %v2203
        %v2316 = vsel %vm2284, -inf, %v2204
        %v2317 = vsel %vm2285, -inf, %v2205
        %v2318 = vsel %vm2286, -inf, %v2206
        %v2319 = vsel %vm2287, -inf, %v2207
        %v2320 = vsel %vm2288, -inf, %v2208
        %v2321 = vsel %vm2289, -inf, %v2209
        %v2322 = vsel %vm2290, -inf, %v2210
        %v2323 = vsel %vm2291, -inf, %v2211
        %v2324 = vsel %vm2292, -inf, %v2212
        %v2325 = vsel %vm2293, -inf, %v2213
        %v2326 = vsel %vm2294, -inf, %v2214
        %v2327 = vsel %vm2295, -inf, %v2215
        %v2328 = vsel %vm2296, -inf, %v2216
        %v2329 = vsel %vm2297, -inf, %v2217
        %v2330 = vsel %vm2298, -inf, %v2218
        %v2331 = vsel %vm2299, -inf, %v2219
        %v2332 = vsel %vm2300, -inf, %v2220
        %v2333 = vsel %vm2301, -inf, %v2221
        %v2334 = vsel %vm2302, -inf, %v2222
        %v2335 = vsel %vm2303, -inf, %v2223
        %v2336 = vsel %vm2304, -inf, %v2224
        %v2337 = vsel %vm2305, -inf, %v2225
        %v2338 = vsel %vm2306, -inf, %v2226
        %v2339 = vsel %vm2307, -inf, %v2227
        %v2340 = vmax.f32 %v2308, %v2309
        %2341 = vmax.xlane.f32.xlu0 %v2340
        %v2342 = vpop.xlane.xlu0 %2341
        %v2343 = vmax.f32 %v2310, %v2311
        %2344 = vmax.xlane.f32.xlu0 %v2343
        %v2345 = vpop.xlane.xlu0 %2344
        %v2346 = vmax.f32 %v2312, %v2313
        %2347 = vmax.xlane.f32.xlu0 %v2346
        %v2348 = vpop.xlane.xlu0 %2347
        %v2349 = vmax.f32 %v2314, %v2315
        %2350 = vmax.xlane.f32.xlu0 %v2349
        %v2351 = vpop.xlane.xlu0 %2350
        %v2352 = vmax.f32 %v2316, %v2317
        %2353 = vmax.xlane.f32.xlu0 %v2352
        %v2354 = vpop.xlane.xlu0 %2353
        %v2355 = vmax.f32 %v2318, %v2319
        %2356 = vmax.xlane.f32.xlu0 %v2355
        %v2357 = vpop.xlane.xlu0 %2356
        %v2358 = vmax.f32 %v2320, %v2321
        %2359 = vmax.xlane.f32.xlu0 %v2358
        %v2360 = vpop.xlane.xlu0 %2359
        %v2361 = vmax.f32 %v2322, %v2323
        %2362 = vmax.xlane.f32.xlu0 %v2361
        %v2363 = vpop.xlane.xlu0 %2362
        %v2364 = vmax.f32 %v2324, %v2325
        %2365 = vmax.xlane.f32.xlu0 %v2364
        %v2366 = vpop.xlane.xlu0 %2365
        %v2367 = vmax.f32 %v2326, %v2327
        %2368 = vmax.xlane.f32.xlu0 %v2367
        %v2369 = vpop.xlane.xlu0 %2368
        %v2370 = vmax.f32 %v2328, %v2329
        %2371 = vmax.xlane.f32.xlu0 %v2370
        %v2372 = vpop.xlane.xlu0 %2371
        %v2373 = vmax.f32 %v2330, %v2331
        %2374 = vmax.xlane.f32.xlu0 %v2373
        %v2375 = vpop.xlane.xlu0 %2374
        %v2376 = vmax.f32 %v2332, %v2333
        %2377 = vmax.xlane.f32.xlu0 %v2376
        %v2378 = vpop.xlane.xlu0 %2377
        %v2379 = vmax.f32 %v2334, %v2335
        %2380 = vmax.xlane.f32.xlu0 %v2379
        %v2381 = vpop.xlane.xlu0 %2380
        %v2382 = vmax.f32 %v2336, %v2337
        %2383 = vmax.xlane.f32.xlu0 %v2382
        %v2384 = vpop.xlane.xlu0 %2383
        %v2385 = vmax.f32 %v2338, %v2339
        %2386 = vmax.xlane.f32.xlu0 %v2385
        %v2387 = vpop.xlane.xlu0 %2386
        %vm2388 = vcmask 7168
        %v2389 = vsel %vm2388, %v2006, %v2118
        %v2390 = vsel %vm2388, %v2009, %v2121
        %v2391 = vsel %vm2388, %v2012, %v2124
        %v2392 = vsel %vm2388, %v2015, %v2127
        %v2393 = vsel %vm2388, %v2018, %v2130
        %v2394 = vsel %vm2388, %v2021, %v2133
        %v2395 = vsel %vm2388, %v2024, %v2136
        %v2396 = vsel %vm2388, %v2027, %v2139
        %v2397 = vsel %vm2388, %v2030, %v2142
        %v2398 = vsel %vm2388, %v2033, %v2145
        %v2399 = vsel %vm2388, %v2036, %v2148
        %v2400 = vsel %vm2388, %v2039, %v2151
        %v2401 = vsel %vm2388, %v2042, %v2154
        %v2402 = vsel %vm2388, %v2045, %v2157
        %v2403 = vsel %vm2388, %v2048, %v2160
        %v2404 = vsel %vm2388, %v2051, %v2163
        %vm2405 = vcmask 15360
        %v2406 = vsel %vm2405, %v2389, %v2230
        %v2407 = vsel %vm2405, %v2390, %v2233
        %v2408 = vsel %vm2405, %v2391, %v2236
        %v2409 = vsel %vm2405, %v2392, %v2239
        %v2410 = vsel %vm2405, %v2393, %v2242
        %v2411 = vsel %vm2405, %v2394, %v2245
        %v2412 = vsel %vm2405, %v2395, %v2248
        %v2413 = vsel %vm2405, %v2396, %v2251
        %v2414 = vsel %vm2405, %v2397, %v2254
        %v2415 = vsel %vm2405, %v2398, %v2257
        %v2416 = vsel %vm2405, %v2399, %v2260
        %v2417 = vsel %vm2405, %v2400, %v2263
        %v2418 = vsel %vm2405, %v2401, %v2266
        %v2419 = vsel %vm2405, %v2402, %v2269
        %v2420 = vsel %vm2405, %v2403, %v2272
        %v2421 = vsel %vm2405, %v2404, %v2275
        %vm2422 = vcmask 23552
        %v2423 = vsel %vm2422, %v2406, %v2342
        %v2424 = vsel %vm2422, %v2407, %v2345
        %v2425 = vsel %vm2422, %v2408, %v2348
        %v2426 = vsel %vm2422, %v2409, %v2351
        %v2427 = vsel %vm2422, %v2410, %v2354
        %v2428 = vsel %vm2422, %v2411, %v2357
        %v2429 = vsel %vm2422, %v2412, %v2360
        %v2430 = vsel %vm2422, %v2413, %v2363
        %v2431 = vsel %vm2422, %v2414, %v2366
        %v2432 = vsel %vm2422, %v2415, %v2369
        %v2433 = vsel %vm2422, %v2416, %v2372
        %v2434 = vsel %vm2422, %v2417, %v2375
        %v2435 = vsel %vm2422, %v2418, %v2378
        %v2436 = vsel %vm2422, %v2419, %v2381
        %v2437 = vsel %vm2422, %v2420, %v2384
        %v2438 = vsel %vm2422, %v2421, %v2387
        %v2440 = vsel %vm447, %v1376, 0
        %v2443 = vsel %vm447, %v1377, 0
        %v2446 = vsel %vm447, %v1378, 0
        %v2449 = vsel %vm447, %v1379, 0
        %v2452 = vsel %vm447, %v1380, 0
        %v2455 = vsel %vm447, %v1381, 0
        %v2458 = vsel %vm447, %v1382, 0
        %v2461 = vsel %vm447, %v1383, 0
        %v2464 = vsel %vm447, %v1384, 0
        %v2467 = vsel %vm447, %v1385, 0
        %v2470 = vsel %vm447, %v1386, 0
        %v2473 = vsel %vm447, %v1387, 0
        %v2476 = vsel %vm447, %v1388, 0
        %v2479 = vsel %vm447, %v1389, 0
        %v2482 = vsel %vm447, %v1390, 0
        %v2485 = vsel %vm447, %v1391, 0
        %v2488 = vsel %vm447, %v1392, 0
        %v2491 = vsel %vm447, %v1393, 0
        %v2494 = vsel %vm447, %v1394, 0
        %v2497 = vsel %vm447, %v1395, 0
        %v2500 = vsel %vm447, %v1396, 0
        %v2503 = vsel %vm447, %v1397, 0
        %v2506 = vsel %vm447, %v1398, 0
        %v2509 = vsel %vm447, %v1399, 0
        %v2512 = vsel %vm447, %v1400, 0
        %v2515 = vsel %vm447, %v1401, 0
        %v2518 = vsel %vm447, %v1402, 0
        %v2521 = vsel %vm447, %v1403, 0
        %v2524 = vsel %vm447, %v1404, 0
        %v2527 = vsel %vm447, %v1405, 0
        %v2530 = vsel %vm447, %v1406, 0
        %v2533 = vsel %vm447, %v1407, 0
        %2535 = vmatpush.xpose.msra.mxu0 %v2485
        %2536 = vmatpush.xpose.msra.mxu0 %v2482
        %2537 = vmatpush.xpose.msra.mxu0 %v2479
        %2538 = vmatpush.xpose.msra.mxu0 %v2476
        %2539 = vmatpush.xpose.msra.mxu0 %v2473
        %2540 = vmatpush.xpose.msra.mxu0 %v2470
        %2541 = vmatpush.xpose.msra.mxu0 %v2467
        %2542 = vmatpush.xpose.msra.mxu0 %v2464
        %2543 = vmatpush.xpose.msra.mxu0 %v2461
        %2544 = vmatpush.xpose.msra.mxu0 %v2458
        %2545 = vmatpush.xpose.msra.mxu0 %v2455
        %2546 = vmatpush.xpose.msra.mxu0 %v2452
        %2547 = vmatpush.xpose.msra.mxu0 %v2449
        %2548 = vmatpush.xpose.msra.mxu0 %v2446
        %2549 = vmatpush.xpose.msra.mxu0 %v2443
        %2550 = vmatpush.xpose.msra.mxu0 %v2440
        %2551 = vmatmul.f32.gmra.mxu0 %v1731
        %v2552 = vpop.f32.mrf.mxu0
        %v2553 = vadd.f32 0.0, %v2552
        %2554 = vmatmul.f32.gmra.mxu0 %v1734
        %v2555 = vpop.f32.mrf.mxu0
        %v2556 = vadd.f32 0.0, %v2555
        %2557 = vmatmul.f32.gmra.mxu0 %v1737
        %v2558 = vpop.f32.mrf.mxu0
        %v2559 = vadd.f32 0.0, %v2558
        %2560 = vmatmul.f32.gmra.mxu0 %v1740
        %v2561 = vpop.f32.mrf.mxu0
        %v2562 = vadd.f32 0.0, %v2561
        %2563 = vmatmul.f32.gmra.mxu0 %v1743
        %v2564 = vpop.f32.mrf.mxu0
        %v2565 = vadd.f32 0.0, %v2564
        %2566 = vmatmul.f32.gmra.mxu0 %v1746
        %v2567 = vpop.f32.mrf.mxu0
        %v2568 = vadd.f32 0.0, %v2567
        %2569 = vmatmul.f32.gmra.mxu0 %v1749
        %v2570 = vpop.f32.mrf.mxu0
        %v2571 = vadd.f32 0.0, %v2570
        %2572 = vmatmul.f32.gmra.mxu0 %v1752
        %v2573 = vpop.f32.mrf.mxu0
        %v2574 = vadd.f32 0.0, %v2573
        %2575 = vmatmul.f32.gmra.mxu0 %v1755
        %v2576 = vpop.f32.mrf.mxu0
        %v2577 = vadd.f32 0.0, %v2576
        %2578 = vmatmul.f32.gmra.mxu0 %v1758
        %v2579 = vpop.f32.mrf.mxu0
        %v2580 = vadd.f32 0.0, %v2579
        %2581 = vmatmul.f32.gmra.mxu0 %v1761
        %v2582 = vpop.f32.mrf.mxu0
        %v2583 = vadd.f32 0.0, %v2582
        %2584 = vmatmul.f32.gmra.mxu0 %v1764
        %v2585 = vpop.f32.mrf.mxu0
        %v2586 = vadd.f32 0.0, %v2585
        %2587 = vmatmul.f32.gmra.mxu0 %v1767
        %v2588 = vpop.f32.mrf.mxu0
        %v2589 = vadd.f32 0.0, %v2588
        %2590 = vmatmul.f32.gmra.mxu0 %v1770
        %v2591 = vpop.f32.mrf.mxu0
        %v2592 = vadd.f32 0.0, %v2591
        %2593 = vmatmul.f32.gmra.mxu0 %v1773
        %v2594 = vpop.f32.mrf.mxu0
        %v2595 = vadd.f32 0.0, %v2594
        %2596 = vmatmul.f32.gmra.mxu0 %v1776
        %v2597 = vpop.f32.mrf.mxu0
        %v2598 = vadd.f32 0.0, %v2597
        %2599 = vdwg.mxu0
        %2600 = vmatpush.xpose.msra.mxu0 %v2533
        %2601 = vmatpush.xpose.msra.mxu0 %v2530
        %2602 = vmatpush.xpose.msra.mxu0 %v2527
        %2603 = vmatpush.xpose.msra.mxu0 %v2524
        %2604 = vmatpush.xpose.msra.mxu0 %v2521
        %2605 = vmatpush.xpose.msra.mxu0 %v2518
        %2606 = vmatpush.xpose.msra.mxu0 %v2515
        %2607 = vmatpush.xpose.msra.mxu0 %v2512
        %2608 = vmatpush.xpose.msra.mxu0 %v2509
        %2609 = vmatpush.xpose.msra.mxu0 %v2506
        %2610 = vmatpush.xpose.msra.mxu0 %v2503
        %2611 = vmatpush.xpose.msra.mxu0 %v2500
        %2612 = vmatpush.xpose.msra.mxu0 %v2497
        %2613 = vmatpush.xpose.msra.mxu0 %v2494
        %2614 = vmatpush.xpose.msra.mxu0 %v2491
        %2615 = vmatpush.xpose.msra.mxu0 %v2488
        %2616 = vmatmul.f32.gmra.mxu0 %v1731
        %v2617 = vpop.f32.mrf.mxu0
        %v2618 = vadd.f32 0.0, %v2617
        %2619 = vmatmul.f32.gmra.mxu0 %v1734
        %v2620 = vpop.f32.mrf.mxu0
        %v2621 = vadd.f32 0.0, %v2620
        %2622 = vmatmul.f32.gmra.mxu0 %v1737
        %v2623 = vpop.f32.mrf.mxu0
        %v2624 = vadd.f32 0.0, %v2623
        %2625 = vmatmul.f32.gmra.mxu0 %v1740
        %v2626 = vpop.f32.mrf.mxu0
        %v2627 = vadd.f32 0.0, %v2626
        %2628 = vmatmul.f32.gmra.mxu0 %v1743
        %v2629 = vpop.f32.mrf.mxu0
        %v2630 = vadd.f32 0.0, %v2629
        %2631 = vmatmul.f32.gmra.mxu0 %v1746
        %v2632 = vpop.f32.mrf.mxu0
        %v2633 = vadd.f32 0.0, %v2632
        %2634 = vmatmul.f32.gmra.mxu0 %v1749
        %v2635 = vpop.f32.mrf.mxu0
        %v2636 = vadd.f32 0.0, %v2635
        %2637 = vmatmul.f32.gmra.mxu0 %v1752
        %v2638 = vpop.f32.mrf.mxu0
        %v2639 = vadd.f32 0.0, %v2638
        %2640 = vmatmul.f32.gmra.mxu0 %v1755
        %v2641 = vpop.f32.mrf.mxu0
        %v2642 = vadd.f32 0.0, %v2641
        %2643 = vmatmul.f32.gmra.mxu0 %v1758
        %v2644 = vpop.f32.mrf.mxu0
        %v2645 = vadd.f32 0.0, %v2644
        %2646 = vmatmul.f32.gmra.mxu0 %v1761
        %v2647 = vpop.f32.mrf.mxu0
        %v2648 = vadd.f32 0.0, %v2647
        %2649 = vmatmul.f32.gmra.mxu0 %v1764
        %v2650 = vpop.f32.mrf.mxu0
        %v2651 = vadd.f32 0.0, %v2650
        %2652 = vmatmul.f32.gmra.mxu0 %v1767
        %v2653 = vpop.f32.mrf.mxu0
        %v2654 = vadd.f32 0.0, %v2653
        %2655 = vmatmul.f32.gmra.mxu0 %v1770
        %v2656 = vpop.f32.mrf.mxu0
        %v2657 = vadd.f32 0.0, %v2656
        %2658 = vmatmul.f32.gmra.mxu0 %v1773
        %v2659 = vpop.f32.mrf.mxu0
        %v2660 = vadd.f32 0.0, %v2659
        %2661 = vmatmul.f32.gmra.mxu0 %v1776
        %v2662 = vpop.f32.mrf.mxu0
        %v2663 = vadd.f32 0.0, %v2662
        %2664 = vdwg.mxu0
        %v2665 = vmax.f32 %v2553, %v2618
        %2666 = vmax.xlane.f32.xlu0 %v2665
        %v2667 = vpop.xlane.xlu0 %2666
        %v2668 = vmax.f32 %v2556, %v2621
        %2669 = vmax.xlane.f32.xlu0 %v2668
        %v2670 = vpop.xlane.xlu0 %2669
        %v2671 = vmax.f32 %v2559, %v2624
        %2672 = vmax.xlane.f32.xlu0 %v2671
        %v2673 = vpop.xlane.xlu0 %2672
        %v2674 = vmax.f32 %v2562, %v2627
        %2675 = vmax.xlane.f32.xlu0 %v2674
        %v2676 = vpop.xlane.xlu0 %2675
        %v2677 = vmax.f32 %v2565, %v2630
        %2678 = vmax.xlane.f32.xlu0 %v2677
        %v2679 = vpop.xlane.xlu0 %2678
        %v2680 = vmax.f32 %v2568, %v2633
        %2681 = vmax.xlane.f32.xlu0 %v2680
        %v2682 = vpop.xlane.xlu0 %2681
        %v2683 = vmax.f32 %v2571, %v2636
        %2684 = vmax.xlane.f32.xlu0 %v2683
        %v2685 = vpop.xlane.xlu0 %2684
        %v2686 = vmax.f32 %v2574, %v2639
        %2687 = vmax.xlane.f32.xlu0 %v2686
        %v2688 = vpop.xlane.xlu0 %2687
        %v2689 = vmax.f32 %v2577, %v2642
        %2690 = vmax.xlane.f32.xlu0 %v2689
        %v2691 = vpop.xlane.xlu0 %2690
        %v2692 = vmax.f32 %v2580, %v2645
        %2693 = vmax.xlane.f32.xlu0 %v2692
        %v2694 = vpop.xlane.xlu0 %2693
        %v2695 = vmax.f32 %v2583, %v2648
        %2696 = vmax.xlane.f32.xlu0 %v2695
        %v2697 = vpop.xlane.xlu0 %2696
        %v2698 = vmax.f32 %v2586, %v2651
        %2699 = vmax.xlane.f32.xlu0 %v2698
        %v2700 = vpop.xlane.xlu0 %2699
        %v2701 = vmax.f32 %v2589, %v2654
        %2702 = vmax.xlane.f32.xlu0 %v2701
        %v2703 = vpop.xlane.xlu0 %2702
        %v2704 = vmax.f32 %v2592, %v2657
        %2705 = vmax.xlane.f32.xlu0 %v2704
        %v2706 = vpop.xlane.xlu0 %2705
        %v2707 = vmax.f32 %v2595, %v2660
        %2708 = vmax.xlane.f32.xlu0 %v2707
        %v2709 = vpop.xlane.xlu0 %2708
        %v2710 = vmax.f32 %v2598, %v2663
        %2711 = vmax.xlane.f32.xlu0 %v2710
        %v2712 = vpop.xlane.xlu0 %2711
        %vm2713 = vcmask 31744
        %v2714 = vsel %vm2713, %v2423, -inf
        %2715 = vmax.xlane.f32.xlu0 %v2714
        %v2716 = vpop.xlane.xlu0 %2715
        %v2717 = vsel %vm2713, %v2424, -inf
        %2718 = vmax.xlane.f32.xlu0 %v2717
        %v2719 = vpop.xlane.xlu0 %2718
        %v2720 = vsel %vm2713, %v2425, -inf
        %2721 = vmax.xlane.f32.xlu0 %v2720
        %v2722 = vpop.xlane.xlu0 %2721
        %v2723 = vsel %vm2713, %v2426, -inf
        %2724 = vmax.xlane.f32.xlu0 %v2723
        %v2725 = vpop.xlane.xlu0 %2724
        %v2726 = vsel %vm2713, %v2427, -inf
        %2727 = vmax.xlane.f32.xlu0 %v2726
        %v2728 = vpop.xlane.xlu0 %2727
        %v2729 = vsel %vm2713, %v2428, -inf
        %2730 = vmax.xlane.f32.xlu0 %v2729
        %v2731 = vpop.xlane.xlu0 %2730
        %v2732 = vsel %vm2713, %v2429, -inf
        %2733 = vmax.xlane.f32.xlu0 %v2732
        %v2734 = vpop.xlane.xlu0 %2733
        %v2735 = vsel %vm2713, %v2430, -inf
        %2736 = vmax.xlane.f32.xlu0 %v2735
        %v2737 = vpop.xlane.xlu0 %2736
        %v2738 = vsel %vm2713, %v2431, -inf
        %2739 = vmax.xlane.f32.xlu0 %v2738
        %v2740 = vpop.xlane.xlu0 %2739
        %v2741 = vsel %vm2713, %v2432, -inf
        %2742 = vmax.xlane.f32.xlu0 %v2741
        %v2743 = vpop.xlane.xlu0 %2742
        %v2744 = vsel %vm2713, %v2433, -inf
        %2745 = vmax.xlane.f32.xlu0 %v2744
        %v2746 = vpop.xlane.xlu0 %2745
        %v2747 = vsel %vm2713, %v2434, -inf
        %2748 = vmax.xlane.f32.xlu0 %v2747
        %v2749 = vpop.xlane.xlu0 %2748
        %v2750 = vsel %vm2713, %v2435, -inf
        %2751 = vmax.xlane.f32.xlu0 %v2750
        %v2752 = vpop.xlane.xlu0 %2751
        %v2753 = vsel %vm2713, %v2436, -inf
        %2754 = vmax.xlane.f32.xlu0 %v2753
        %v2755 = vpop.xlane.xlu0 %2754
        %v2756 = vsel %vm2713, %v2437, -inf
        %2757 = vmax.xlane.f32.xlu0 %v2756
        %v2758 = vpop.xlane.xlu0 %2757
        %v2759 = vsel %vm2713, %v2438, -inf
        %2760 = vmax.xlane.f32.xlu0 %v2759
        %v2761 = vpop.xlane.xlu0 %2760
        %v2762 = vmax.f32 %v2667, %v2716
        %v2763 = vmax.f32 %v2670, %v2719
        %v2764 = vmax.f32 %v2673, %v2722
        %v2765 = vmax.f32 %v2676, %v2725
        %v2766 = vmax.f32 %v2679, %v2728
        %v2767 = vmax.f32 %v2682, %v2731
        %v2768 = vmax.f32 %v2685, %v2734
        %v2769 = vmax.f32 %v2688, %v2737
        %v2770 = vmax.f32 %v2691, %v2740
        %v2771 = vmax.f32 %v2694, %v2743
        %v2772 = vmax.f32 %v2697, %v2746
        %v2773 = vmax.f32 %v2700, %v2749
        %v2774 = vmax.f32 %v2703, %v2752
        %v2775 = vmax.f32 %v2706, %v2755
        %v2776 = vmax.f32 %v2709, %v2758
        %v2777 = vmax.f32 %v2712, %v2761
        %vm2778 = vcmp.ge.f32.partialorder %v2553, %v2762
        %vm2779 = vcmp.ge.f32.partialorder %v2618, %v2762
        %vm2780 = vcmp.ge.f32.partialorder %v2556, %v2763
        %vm2781 = vcmp.ge.f32.partialorder %v2621, %v2763
        %vm2782 = vcmp.ge.f32.partialorder %v2559, %v2764
        %vm2783 = vcmp.ge.f32.partialorder %v2624, %v2764
        %vm2784 = vcmp.ge.f32.partialorder %v2562, %v2765
        %vm2785 = vcmp.ge.f32.partialorder %v2627, %v2765
        %vm2786 = vcmp.ge.f32.partialorder %v2565, %v2766
        %vm2787 = vcmp.ge.f32.partialorder %v2630, %v2766
        %vm2788 = vcmp.ge.f32.partialorder %v2568, %v2767
        %vm2789 = vcmp.ge.f32.partialorder %v2633, %v2767
        %vm2790 = vcmp.ge.f32.partialorder %v2571, %v2768
        %vm2791 = vcmp.ge.f32.partialorder %v2636, %v2768
        %vm2792 = vcmp.ge.f32.partialorder %v2574, %v2769
        %vm2793 = vcmp.ge.f32.partialorder %v2639, %v2769
        %vm2794 = vcmp.ge.f32.partialorder %v2577, %v2770
        %vm2795 = vcmp.ge.f32.partialorder %v2642, %v2770
        %vm2796 = vcmp.ge.f32.partialorder %v2580, %v2771
        %vm2797 = vcmp.ge.f32.partialorder %v2645, %v2771
        %vm2798 = vcmp.ge.f32.partialorder %v2583, %v2772
        %vm2799 = vcmp.ge.f32.partialorder %v2648, %v2772
        %vm2800 = vcmp.ge.f32.partialorder %v2586, %v2773
        %vm2801 = vcmp.ge.f32.partialorder %v2651, %v2773
        %vm2802 = vcmp.ge.f32.partialorder %v2589, %v2774
        %vm2803 = vcmp.ge.f32.partialorder %v2654, %v2774
        %vm2804 = vcmp.ge.f32.partialorder %v2592, %v2775
        %vm2805 = vcmp.ge.f32.partialorder %v2657, %v2775
        %vm2806 = vcmp.ge.f32.partialorder %v2595, %v2776
        %vm2807 = vcmp.ge.f32.partialorder %v2660, %v2776
        %vm2808 = vcmp.ge.f32.partialorder %v2598, %v2777
        %vm2809 = vcmp.ge.f32.partialorder %v2663, %v2777
        %v2810 = vsel %vm2778, -inf, %v2553
        %v2811 = vsel %vm2779, -inf, %v2618
        %v2812 = vsel %vm2780, -inf, %v2556
        %v2813 = vsel %vm2781, -inf, %v2621
        %v2814 = vsel %vm2782, -inf, %v2559
        %v2815 = vsel %vm2783, -inf, %v2624
        %v2816 = vsel %vm2784, -inf, %v2562
        %v2817 = vsel %vm2785, -inf, %v2627
        %v2818 = vsel %vm2786, -inf, %v2565
        %v2819 = vsel %vm2787, -inf, %v2630
        %v2820 = vsel %vm2788, -inf, %v2568
        %v2821 = vsel %vm2789, -inf, %v2633
        %v2822 = vsel %vm2790, -inf, %v2571
        %v2823 = vsel %vm2791, -inf, %v2636
        %v2824 = vsel %vm2792, -inf, %v2574
        %v2825 = vsel %vm2793, -inf, %v2639
        %v2826 = vsel %vm2794, -inf, %v2577
        %v2827 = vsel %vm2795, -inf, %v2642
        %v2828 = vsel %vm2796, -inf, %v2580
        %v2829 = vsel %vm2797, -inf, %v2645
        %v2830 = vsel %vm2798, -inf, %v2583
        %v2831 = vsel %vm2799, -inf, %v2648
        %v2832 = vsel %vm2800, -inf, %v2586
        %v2833 = vsel %vm2801, -inf, %v2651
        %v2834 = vsel %vm2802, -inf, %v2589
        %v2835 = vsel %vm2803, -inf, %v2654
        %v2836 = vsel %vm2804, -inf, %v2592
        %v2837 = vsel %vm2805, -inf, %v2657
        %v2838 = vsel %vm2806, -inf, %v2595
        %v2839 = vsel %vm2807, -inf, %v2660
        %v2840 = vsel %vm2808, -inf, %v2598
        %v2841 = vsel %vm2809, -inf, %v2663
        %vm2842 = vcmp.ge.f32.partialorder %v2423, %v2762
        %vm2843 = vcmp.ge.f32.partialorder %v2424, %v2763
        %vm2844 = vcmp.ge.f32.partialorder %v2425, %v2764
        %vm2845 = vcmp.ge.f32.partialorder %v2426, %v2765
        %vm2846 = vcmp.ge.f32.partialorder %v2427, %v2766
        %vm2847 = vcmp.ge.f32.partialorder %v2428, %v2767
        %vm2848 = vcmp.ge.f32.partialorder %v2429, %v2768
        %vm2849 = vcmp.ge.f32.partialorder %v2430, %v2769
        %vm2850 = vcmp.ge.f32.partialorder %v2431, %v2770
        %vm2851 = vcmp.ge.f32.partialorder %v2432, %v2771
        %vm2852 = vcmp.ge.f32.partialorder %v2433, %v2772
        %vm2853 = vcmp.ge.f32.partialorder %v2434, %v2773
        %vm2854 = vcmp.ge.f32.partialorder %v2435, %v2774
        %vm2855 = vcmp.ge.f32.partialorder %v2436, %v2775
        %vm2856 = vcmp.ge.f32.partialorder %v2437, %v2776
        %vm2857 = vcmp.ge.f32.partialorder %v2438, %v2777
        %v2858 = vsel %vm2842, -inf, %v2423
        %v2859 = vsel %vm2843, -inf, %v2424
        %v2860 = vsel %vm2844, -inf, %v2425
        %v2861 = vsel %vm2845, -inf, %v2426
        %v2862 = vsel %vm2846, -inf, %v2427
        %v2863 = vsel %vm2847, -inf, %v2428
        %v2864 = vsel %vm2848, -inf, %v2429
        %v2865 = vsel %vm2849, -inf, %v2430
        %v2866 = vsel %vm2850, -inf, %v2431
        %v2867 = vsel %vm2851, -inf, %v2432
        %v2868 = vsel %vm2852, -inf, %v2433
        %v2869 = vsel %vm2853, -inf, %v2434
        %v2870 = vsel %vm2854, -inf, %v2435
        %v2871 = vsel %vm2855, -inf, %v2436
        %v2872 = vsel %vm2856, -inf, %v2437
        %v2873 = vsel %vm2857, -inf, %v2438
        %v2874 = vmax.f32 %v2810, %v2811
        %2875 = vmax.xlane.f32.xlu0 %v2874
        %v2876 = vpop.xlane.xlu0 %2875
        %v2877 = vmax.f32 %v2812, %v2813
        %2878 = vmax.xlane.f32.xlu0 %v2877
        %v2879 = vpop.xlane.xlu0 %2878
        %v2880 = vmax.f32 %v2814, %v2815
        %2881 = vmax.xlane.f32.xlu0 %v2880
        %v2882 = vpop.xlane.xlu0 %2881
        %v2883 = vmax.f32 %v2816, %v2817
        %2884 = vmax.xlane.f32.xlu0 %v2883
        %v2885 = vpop.xlane.xlu0 %2884
        %v2886 = vmax.f32 %v2818, %v2819
        %2887 = vmax.xlane.f32.xlu0 %v2886
        %v2888 = vpop.xlane.xlu0 %2887
        %v2889 = vmax.f32 %v2820, %v2821
        %2890 = vmax.xlane.f32.xlu0 %v2889
        %v2891 = vpop.xlane.xlu0 %2890
        %v2892 = vmax.f32 %v2822, %v2823
        %2893 = vmax.xlane.f32.xlu0 %v2892
        %v2894 = vpop.xlane.xlu0 %2893
        %v2895 = vmax.f32 %v2824, %v2825
        %2896 = vmax.xlane.f32.xlu0 %v2895
        %v2897 = vpop.xlane.xlu0 %2896
        %v2898 = vmax.f32 %v2826, %v2827
        %2899 = vmax.xlane.f32.xlu0 %v2898
        %v2900 = vpop.xlane.xlu0 %2899
        %v2901 = vmax.f32 %v2828, %v2829
        %2902 = vmax.xlane.f32.xlu0 %v2901
        %v2903 = vpop.xlane.xlu0 %2902
        %v2904 = vmax.f32 %v2830, %v2831
        %2905 = vmax.xlane.f32.xlu0 %v2904
        %v2906 = vpop.xlane.xlu0 %2905
        %v2907 = vmax.f32 %v2832, %v2833
        %2908 = vmax.xlane.f32.xlu0 %v2907
        %v2909 = vpop.xlane.xlu0 %2908
        %v2910 = vmax.f32 %v2834, %v2835
        %2911 = vmax.xlane.f32.xlu0 %v2910
        %v2912 = vpop.xlane.xlu0 %2911
        %v2913 = vmax.f32 %v2836, %v2837
        %2914 = vmax.xlane.f32.xlu0 %v2913
        %v2915 = vpop.xlane.xlu0 %2914
        %v2916 = vmax.f32 %v2838, %v2839
        %2917 = vmax.xlane.f32.xlu0 %v2916
        %v2918 = vpop.xlane.xlu0 %2917
        %v2919 = vmax.f32 %v2840, %v2841
        %2920 = vmax.xlane.f32.xlu0 %v2919
        %v2921 = vpop.xlane.xlu0 %2920
        %v2922 = vsel %vm2713, %v2858, -inf
        %2923 = vmax.xlane.f32.xlu0 %v2922
        %v2924 = vpop.xlane.xlu0 %2923
        %v2925 = vsel %vm2713, %v2859, -inf
        %2926 = vmax.xlane.f32.xlu0 %v2925
        %v2927 = vpop.xlane.xlu0 %2926
        %v2928 = vsel %vm2713, %v2860, -inf
        %2929 = vmax.xlane.f32.xlu0 %v2928
        %v2930 = vpop.xlane.xlu0 %2929
        %v2931 = vsel %vm2713, %v2861, -inf
        %2932 = vmax.xlane.f32.xlu0 %v2931
        %v2933 = vpop.xlane.xlu0 %2932
        %v2934 = vsel %vm2713, %v2862, -inf
        %2935 = vmax.xlane.f32.xlu0 %v2934
        %v2936 = vpop.xlane.xlu0 %2935
        %v2937 = vsel %vm2713, %v2863, -inf
        %2938 = vmax.xlane.f32.xlu0 %v2937
        %v2939 = vpop.xlane.xlu0 %2938
        %v2940 = vsel %vm2713, %v2864, -inf
        %2941 = vmax.xlane.f32.xlu0 %v2940
        %v2942 = vpop.xlane.xlu0 %2941
        %v2943 = vsel %vm2713, %v2865, -inf
        %2944 = vmax.xlane.f32.xlu0 %v2943
        %v2945 = vpop.xlane.xlu0 %2944
        %v2946 = vsel %vm2713, %v2866, -inf
        %2947 = vmax.xlane.f32.xlu0 %v2946
        %v2948 = vpop.xlane.xlu0 %2947
        %v2949 = vsel %vm2713, %v2867, -inf
        %2950 = vmax.xlane.f32.xlu0 %v2949
        %v2951 = vpop.xlane.xlu0 %2950
        %v2952 = vsel %vm2713, %v2868, -inf
        %2953 = vmax.xlane.f32.xlu0 %v2952
        %v2954 = vpop.xlane.xlu0 %2953
        %v2955 = vsel %vm2713, %v2869, -inf
        %2956 = vmax.xlane.f32.xlu0 %v2955
        %v2957 = vpop.xlane.xlu0 %2956
        %v2958 = vsel %vm2713, %v2870, -inf
        %2959 = vmax.xlane.f32.xlu0 %v2958
        %v2960 = vpop.xlane.xlu0 %2959
        %v2961 = vsel %vm2713, %v2871, -inf
        %2962 = vmax.xlane.f32.xlu0 %v2961
        %v2963 = vpop.xlane.xlu0 %2962
        %v2964 = vsel %vm2713, %v2872, -inf
        %2965 = vmax.xlane.f32.xlu0 %v2964
        %v2966 = vpop.xlane.xlu0 %2965
        %v2967 = vsel %vm2713, %v2873, -inf
        %2968 = vmax.xlane.f32.xlu0 %v2967
        %v2969 = vpop.xlane.xlu0 %2968
        %v2970 = vmax.f32 %v2876, %v2924
        %v2971 = vmax.f32 %v2879, %v2927
        %v2972 = vmax.f32 %v2882, %v2930
        %v2973 = vmax.f32 %v2885, %v2933
        %v2974 = vmax.f32 %v2888, %v2936
        %v2975 = vmax.f32 %v2891, %v2939
        %v2976 = vmax.f32 %v2894, %v2942
        %v2977 = vmax.f32 %v2897, %v2945
        %v2978 = vmax.f32 %v2900, %v2948
        %v2979 = vmax.f32 %v2903, %v2951
        %v2980 = vmax.f32 %v2906, %v2954
        %v2981 = vmax.f32 %v2909, %v2957
        %v2982 = vmax.f32 %v2912, %v2960
        %v2983 = vmax.f32 %v2915, %v2963
        %v2984 = vmax.f32 %v2918, %v2966
        %v2985 = vmax.f32 %v2921, %v2969
        %vm2986 = vcmp.ge.f32.partialorder %v2810, %v2970
        %vm2987 = vcmp.ge.f32.partialorder %v2811, %v2970
        %vm2988 = vcmp.ge.f32.partialorder %v2812, %v2971
        %vm2989 = vcmp.ge.f32.partialorder %v2813, %v2971
        %vm2990 = vcmp.ge.f32.partialorder %v2814, %v2972
        %vm2991 = vcmp.ge.f32.partialorder %v2815, %v2972
        %vm2992 = vcmp.ge.f32.partialorder %v2816, %v2973
        %vm2993 = vcmp.ge.f32.partialorder %v2817, %v2973
        %vm2994 = vcmp.ge.f32.partialorder %v2818, %v2974
        %vm2995 = vcmp.ge.f32.partialorder %v2819, %v2974
        %vm2996 = vcmp.ge.f32.partialorder %v2820, %v2975
        %vm2997 = vcmp.ge.f32.partialorder %v2821, %v2975
        %vm2998 = vcmp.ge.f32.partialorder %v2822, %v2976
        %vm2999 = vcmp.ge.f32.partialorder %v2823, %v2976
        %vm3000 = vcmp.ge.f32.partialorder %v2824, %v2977
        %vm3001 = vcmp.ge.f32.partialorder %v2825, %v2977
        %vm3002 = vcmp.ge.f32.partialorder %v2826, %v2978
        %vm3003 = vcmp.ge.f32.partialorder %v2827, %v2978
        %vm3004 = vcmp.ge.f32.partialorder %v2828, %v2979
        %vm3005 = vcmp.ge.f32.partialorder %v2829, %v2979
        %vm3006 = vcmp.ge.f32.partialorder %v2830, %v2980
        %vm3007 = vcmp.ge.f32.partialorder %v2831, %v2980
        %vm3008 = vcmp.ge.f32.partialorder %v2832, %v2981
        %vm3009 = vcmp.ge.f32.partialorder %v2833, %v2981
        %vm3010 = vcmp.ge.f32.partialorder %v2834, %v2982
        %vm3011 = vcmp.ge.f32.partialorder %v2835, %v2982
        %vm3012 = vcmp.ge.f32.partialorder %v2836, %v2983
        %vm3013 = vcmp.ge.f32.partialorder %v2837, %v2983
        %vm3014 = vcmp.ge.f32.partialorder %v2838, %v2984
        %vm3015 = vcmp.ge.f32.partialorder %v2839, %v2984
        %vm3016 = vcmp.ge.f32.partialorder %v2840, %v2985
        %vm3017 = vcmp.ge.f32.partialorder %v2841, %v2985
        %v3018 = vsel %vm2986, -inf, %v2810
        %v3019 = vsel %vm2987, -inf, %v2811
        %v3020 = vsel %vm2988, -inf, %v2812
        %v3021 = vsel %vm2989, -inf, %v2813
        %v3022 = vsel %vm2990, -inf, %v2814
        %v3023 = vsel %vm2991, -inf, %v2815
        %v3024 = vsel %vm2992, -inf, %v2816
        %v3025 = vsel %vm2993, -inf, %v2817
        %v3026 = vsel %vm2994, -inf, %v2818
        %v3027 = vsel %vm2995, -inf, %v2819
        %v3028 = vsel %vm2996, -inf, %v2820
        %v3029 = vsel %vm2997, -inf, %v2821
        %v3030 = vsel %vm2998, -inf, %v2822
        %v3031 = vsel %vm2999, -inf, %v2823
        %v3032 = vsel %vm3000, -inf, %v2824
        %v3033 = vsel %vm3001, -inf, %v2825
        %v3034 = vsel %vm3002, -inf, %v2826
        %v3035 = vsel %vm3003, -inf, %v2827
        %v3036 = vsel %vm3004, -inf, %v2828
        %v3037 = vsel %vm3005, -inf, %v2829
        %v3038 = vsel %vm3006, -inf, %v2830
        %v3039 = vsel %vm3007, -inf, %v2831
        %v3040 = vsel %vm3008, -inf, %v2832
        %v3041 = vsel %vm3009, -inf, %v2833
        %v3042 = vsel %vm3010, -inf, %v2834
        %v3043 = vsel %vm3011, -inf, %v2835
        %v3044 = vsel %vm3012, -inf, %v2836
        %v3045 = vsel %vm3013, -inf, %v2837
        %v3046 = vsel %vm3014, -inf, %v2838
        %v3047 = vsel %vm3015, -inf, %v2839
        %v3048 = vsel %vm3016, -inf, %v2840
        %v3049 = vsel %vm3017, -inf, %v2841
        %vm3050 = vcmp.ge.f32.partialorder %v2858, %v2970
        %vm3051 = vcmp.ge.f32.partialorder %v2859, %v2971
        %vm3052 = vcmp.ge.f32.partialorder %v2860, %v2972
        %vm3053 = vcmp.ge.f32.partialorder %v2861, %v2973
        %vm3054 = vcmp.ge.f32.partialorder %v2862, %v2974
        %vm3055 = vcmp.ge.f32.partialorder %v2863, %v2975
        %vm3056 = vcmp.ge.f32.partialorder %v2864, %v2976
        %vm3057 = vcmp.ge.f32.partialorder %v2865, %v2977
        %vm3058 = vcmp.ge.f32.partialorder %v2866, %v2978
        %vm3059 = vcmp.ge.f32.partialorder %v2867, %v2979
        %vm3060 = vcmp.ge.f32.partialorder %v2868, %v2980
        %vm3061 = vcmp.ge.f32.partialorder %v2869, %v2981
        %vm3062 = vcmp.ge.f32.partialorder %v2870, %v2982
        %vm3063 = vcmp.ge.f32.partialorder %v2871, %v2983
        %vm3064 = vcmp.ge.f32.partialorder %v2872, %v2984
        %vm3065 = vcmp.ge.f32.partialorder %v2873, %v2985
        %v3066 = vsel %vm3050, -inf, %v2858
        %v3067 = vsel %vm3051, -inf, %v2859
        %v3068 = vsel %vm3052, -inf, %v2860
        %v3069 = vsel %vm3053, -inf, %v2861
        %v3070 = vsel %vm3054, -inf, %v2862
        %v3071 = vsel %vm3055, -inf, %v2863
        %v3072 = vsel %vm3056, -inf, %v2864
        %v3073 = vsel %vm3057, -inf, %v2865
        %v3074 = vsel %vm3058, -inf, %v2866
        %v3075 = vsel %vm3059, -inf, %v2867
        %v3076 = vsel %vm3060, -inf, %v2868
        %v3077 = vsel %vm3061, -inf, %v2869
        %v3078 = vsel %vm3062, -inf, %v2870
        %v3079 = vsel %vm3063, -inf, %v2871
        %v3080 = vsel %vm3064, -inf, %v2872
        %v3081 = vsel %vm3065, -inf, %v2873
        %v3082 = vmax.f32 %v3018, %v3019
        %3083 = vmax.xlane.f32.xlu0 %v3082
        %v3084 = vpop.xlane.xlu0 %3083
        %v3085 = vmax.f32 %v3020, %v3021
        %3086 = vmax.xlane.f32.xlu0 %v3085
        %v3087 = vpop.xlane.xlu0 %3086
        %v3088 = vmax.f32 %v3022, %v3023
        %3089 = vmax.xlane.f32.xlu0 %v3088
        %v3090 = vpop.xlane.xlu0 %3089
        %v3091 = vmax.f32 %v3024, %v3025
        %3092 = vmax.xlane.f32.xlu0 %v3091
        %v3093 = vpop.xlane.xlu0 %3092
        %v3094 = vmax.f32 %v3026, %v3027
        %3095 = vmax.xlane.f32.xlu0 %v3094
        %v3096 = vpop.xlane.xlu0 %3095
        %v3097 = vmax.f32 %v3028, %v3029
        %3098 = vmax.xlane.f32.xlu0 %v3097
        %v3099 = vpop.xlane.xlu0 %3098
        %v3100 = vmax.f32 %v3030, %v3031
        %3101 = vmax.xlane.f32.xlu0 %v3100
        %v3102 = vpop.xlane.xlu0 %3101
        %v3103 = vmax.f32 %v3032, %v3033
        %3104 = vmax.xlane.f32.xlu0 %v3103
        %v3105 = vpop.xlane.xlu0 %3104
        %v3106 = vmax.f32 %v3034, %v3035
        %3107 = vmax.xlane.f32.xlu0 %v3106
        %v3108 = vpop.xlane.xlu0 %3107
        %v3109 = vmax.f32 %v3036, %v3037
        %3110 = vmax.xlane.f32.xlu0 %v3109
        %v3111 = vpop.xlane.xlu0 %3110
        %v3112 = vmax.f32 %v3038, %v3039
        %3113 = vmax.xlane.f32.xlu0 %v3112
        %v3114 = vpop.xlane.xlu0 %3113
        %v3115 = vmax.f32 %v3040, %v3041
        %3116 = vmax.xlane.f32.xlu0 %v3115
        %v3117 = vpop.xlane.xlu0 %3116
        %v3118 = vmax.f32 %v3042, %v3043
        %3119 = vmax.xlane.f32.xlu0 %v3118
        %v3120 = vpop.xlane.xlu0 %3119
        %v3121 = vmax.f32 %v3044, %v3045
        %3122 = vmax.xlane.f32.xlu0 %v3121
        %v3123 = vpop.xlane.xlu0 %3122
        %v3124 = vmax.f32 %v3046, %v3047
        %3125 = vmax.xlane.f32.xlu0 %v3124
        %v3126 = vpop.xlane.xlu0 %3125
        %v3127 = vmax.f32 %v3048, %v3049
        %3128 = vmax.xlane.f32.xlu0 %v3127
        %v3129 = vpop.xlane.xlu0 %3128
        %v3130 = vsel %vm2713, %v3066, -inf
        %3131 = vmax.xlane.f32.xlu0 %v3130
        %v3132 = vpop.xlane.xlu0 %3131
        %v3133 = vsel %vm2713, %v3067, -inf
        %3134 = vmax.xlane.f32.xlu0 %v3133
        %v3135 = vpop.xlane.xlu0 %3134
        %v3136 = vsel %vm2713, %v3068, -inf
        %3137 = vmax.xlane.f32.xlu0 %v3136
        %v3138 = vpop.xlane.xlu0 %3137
        %v3139 = vsel %vm2713, %v3069, -inf
        %3140 = vmax.xlane.f32.xlu0 %v3139
        %v3141 = vpop.xlane.xlu0 %3140
        %v3142 = vsel %vm2713, %v3070, -inf
        %3143 = vmax.xlane.f32.xlu0 %v3142
        %v3144 = vpop.xlane.xlu0 %3143
        %v3145 = vsel %vm2713, %v3071, -inf
        %3146 = vmax.xlane.f32.xlu0 %v3145
        %v3147 = vpop.xlane.xlu0 %3146
        %v3148 = vsel %vm2713, %v3072, -inf
        %3149 = vmax.xlane.f32.xlu0 %v3148
        %v3150 = vpop.xlane.xlu0 %3149
        %v3151 = vsel %vm2713, %v3073, -inf
        %3152 = vmax.xlane.f32.xlu0 %v3151
        %v3153 = vpop.xlane.xlu0 %3152
        %v3154 = vsel %vm2713, %v3074, -inf
        %3155 = vmax.xlane.f32.xlu0 %v3154
        %v3156 = vpop.xlane.xlu0 %3155
        %v3157 = vsel %vm2713, %v3075, -inf
        %3158 = vmax.xlane.f32.xlu0 %v3157
        %v3159 = vpop.xlane.xlu0 %3158
        %v3160 = vsel %vm2713, %v3076, -inf
        %3161 = vmax.xlane.f32.xlu0 %v3160
        %v3162 = vpop.xlane.xlu0 %3161
        %v3163 = vsel %vm2713, %v3077, -inf
        %3164 = vmax.xlane.f32.xlu0 %v3163
        %v3165 = vpop.xlane.xlu0 %3164
        %v3166 = vsel %vm2713, %v3078, -inf
        %3167 = vmax.xlane.f32.xlu0 %v3166
        %v3168 = vpop.xlane.xlu0 %3167
        %v3169 = vsel %vm2713, %v3079, -inf
        %3170 = vmax.xlane.f32.xlu0 %v3169
        %v3171 = vpop.xlane.xlu0 %3170
        %v3172 = vsel %vm2713, %v3080, -inf
        %3173 = vmax.xlane.f32.xlu0 %v3172
        %v3174 = vpop.xlane.xlu0 %3173
        %v3175 = vsel %vm2713, %v3081, -inf
        %3176 = vmax.xlane.f32.xlu0 %v3175
        %v3177 = vpop.xlane.xlu0 %3176
        %v3178 = vmax.f32 %v3084, %v3132
        %v3179 = vmax.f32 %v3087, %v3135
        %v3180 = vmax.f32 %v3090, %v3138
        %v3181 = vmax.f32 %v3093, %v3141
        %v3182 = vmax.f32 %v3096, %v3144
        %v3183 = vmax.f32 %v3099, %v3147
        %v3184 = vmax.f32 %v3102, %v3150
        %v3185 = vmax.f32 %v3105, %v3153
        %v3186 = vmax.f32 %v3108, %v3156
        %v3187 = vmax.f32 %v3111, %v3159
        %v3188 = vmax.f32 %v3114, %v3162
        %v3189 = vmax.f32 %v3117, %v3165
        %v3190 = vmax.f32 %v3120, %v3168
        %v3191 = vmax.f32 %v3123, %v3171
        %v3192 = vmax.f32 %v3126, %v3174
        %v3193 = vmax.f32 %v3129, %v3177
        %vm3194 = vcmp.ge.f32.partialorder %v3018, %v3178
        %vm3195 = vcmp.ge.f32.partialorder %v3019, %v3178
        %vm3196 = vcmp.ge.f32.partialorder %v3020, %v3179
        %vm3197 = vcmp.ge.f32.partialorder %v3021, %v3179
        %vm3198 = vcmp.ge.f32.partialorder %v3022, %v3180
        %vm3199 = vcmp.ge.f32.partialorder %v3023, %v3180
        %vm3200 = vcmp.ge.f32.partialorder %v3024, %v3181
        %vm3201 = vcmp.ge.f32.partialorder %v3025, %v3181
        %vm3202 = vcmp.ge.f32.partialorder %v3026, %v3182
        %vm3203 = vcmp.ge.f32.partialorder %v3027, %v3182
        %vm3204 = vcmp.ge.f32.partialorder %v3028, %v3183
        %vm3205 = vcmp.ge.f32.partialorder %v3029, %v3183
        %vm3206 = vcmp.ge.f32.partialorder %v3030, %v3184
        %vm3207 = vcmp.ge.f32.partialorder %v3031, %v3184
        %vm3208 = vcmp.ge.f32.partialorder %v3032, %v3185
        %vm3209 = vcmp.ge.f32.partialorder %v3033, %v3185
        %vm3210 = vcmp.ge.f32.partialorder %v3034, %v3186
        %vm3211 = vcmp.ge.f32.partialorder %v3035, %v3186
        %vm3212 = vcmp.ge.f32.partialorder %v3036, %v3187
        %vm3213 = vcmp.ge.f32.partialorder %v3037, %v3187
        %vm3214 = vcmp.ge.f32.partialorder %v3038, %v3188
        %vm3215 = vcmp.ge.f32.partialorder %v3039, %v3188
        %vm3216 = vcmp.ge.f32.partialorder %v3040, %v3189
        %vm3217 = vcmp.ge.f32.partialorder %v3041, %v3189
        %vm3218 = vcmp.ge.f32.partialorder %v3042, %v3190
        %vm3219 = vcmp.ge.f32.partialorder %v3043, %v3190
        %vm3220 = vcmp.ge.f32.partialorder %v3044, %v3191
        %vm3221 = vcmp.ge.f32.partialorder %v3045, %v3191
        %vm3222 = vcmp.ge.f32.partialorder %v3046, %v3192
        %vm3223 = vcmp.ge.f32.partialorder %v3047, %v3192
        %vm3224 = vcmp.ge.f32.partialorder %v3048, %v3193
        %vm3225 = vcmp.ge.f32.partialorder %v3049, %v3193
        %v3226 = vsel %vm3194, -inf, %v3018
        %v3227 = vsel %vm3195, -inf, %v3019
        %v3228 = vsel %vm3196, -inf, %v3020
        %v3229 = vsel %vm3197, -inf, %v3021
        %v3230 = vsel %vm3198, -inf, %v3022
        %v3231 = vsel %vm3199, -inf, %v3023
        %v3232 = vsel %vm3200, -inf, %v3024
        %v3233 = vsel %vm3201, -inf, %v3025
        %v3234 = vsel %vm3202, -inf, %v3026
        %v3235 = vsel %vm3203, -inf, %v3027
        %v3236 = vsel %vm3204, -inf, %v3028
        %v3237 = vsel %vm3205, -inf, %v3029
        %v3238 = vsel %vm3206, -inf, %v3030
        %v3239 = vsel %vm3207, -inf, %v3031
        %v3240 = vsel %vm3208, -inf, %v3032
        %v3241 = vsel %vm3209, -inf, %v3033
        %v3242 = vsel %vm3210, -inf, %v3034
        %v3243 = vsel %vm3211, -inf, %v3035
        %v3244 = vsel %vm3212, -inf, %v3036
        %v3245 = vsel %vm3213, -inf, %v3037
        %v3246 = vsel %vm3214, -inf, %v3038
        %v3247 = vsel %vm3215, -inf, %v3039
        %v3248 = vsel %vm3216, -inf, %v3040
        %v3249 = vsel %vm3217, -inf, %v3041
        %v3250 = vsel %vm3218, -inf, %v3042
        %v3251 = vsel %vm3219, -inf, %v3043
        %v3252 = vsel %vm3220, -inf, %v3044
        %v3253 = vsel %vm3221, -inf, %v3045
        %v3254 = vsel %vm3222, -inf, %v3046
        %v3255 = vsel %vm3223, -inf, %v3047
        %v3256 = vsel %vm3224, -inf, %v3048
        %v3257 = vsel %vm3225, -inf, %v3049
        %vm3258 = vcmp.ge.f32.partialorder %v3066, %v3178
        %vm3259 = vcmp.ge.f32.partialorder %v3067, %v3179
        %vm3260 = vcmp.ge.f32.partialorder %v3068, %v3180
        %vm3261 = vcmp.ge.f32.partialorder %v3069, %v3181
        %vm3262 = vcmp.ge.f32.partialorder %v3070, %v3182
        %vm3263 = vcmp.ge.f32.partialorder %v3071, %v3183
        %vm3264 = vcmp.ge.f32.partialorder %v3072, %v3184
        %vm3265 = vcmp.ge.f32.partialorder %v3073, %v3185
        %vm3266 = vcmp.ge.f32.partialorder %v3074, %v3186
        %vm3267 = vcmp.ge.f32.partialorder %v3075, %v3187
        %vm3268 = vcmp.ge.f32.partialorder %v3076, %v3188
        %vm3269 = vcmp.ge.f32.partialorder %v3077, %v3189
        %vm3270 = vcmp.ge.f32.partialorder %v3078, %v3190
        %vm3271 = vcmp.ge.f32.partialorder %v3079, %v3191
        %vm3272 = vcmp.ge.f32.partialorder %v3080, %v3192
        %vm3273 = vcmp.ge.f32.partialorder %v3081, %v3193
        %v3274 = vsel %vm3258, -inf, %v3066
        %v3275 = vsel %vm3259, -inf, %v3067
        %v3276 = vsel %vm3260, -inf, %v3068
        %v3277 = vsel %vm3261, -inf, %v3069
        %v3278 = vsel %vm3262, -inf, %v3070
        %v3279 = vsel %vm3263, -inf, %v3071
        %v3280 = vsel %vm3264, -inf, %v3072
        %v3281 = vsel %vm3265, -inf, %v3073
        %v3282 = vsel %vm3266, -inf, %v3074
        %v3283 = vsel %vm3267, -inf, %v3075
        %v3284 = vsel %vm3268, -inf, %v3076
        %v3285 = vsel %vm3269, -inf, %v3077
        %v3286 = vsel %vm3270, -inf, %v3078
        %v3287 = vsel %vm3271, -inf, %v3079
        %v3288 = vsel %vm3272, -inf, %v3080
        %v3289 = vsel %vm3273, -inf, %v3081
        %v3290 = vmax.f32 %v3226, %v3227
        %3291 = vmax.xlane.f32.xlu0 %v3290
        %v3292 = vpop.xlane.xlu0 %3291
        %v3293 = vmax.f32 %v3228, %v3229
        %3294 = vmax.xlane.f32.xlu0 %v3293
        %v3295 = vpop.xlane.xlu0 %3294
        %v3296 = vmax.f32 %v3230, %v3231
        %3297 = vmax.xlane.f32.xlu0 %v3296
        %v3298 = vpop.xlane.xlu0 %3297
        %v3299 = vmax.f32 %v3232, %v3233
        %3300 = vmax.xlane.f32.xlu0 %v3299
        %v3301 = vpop.xlane.xlu0 %3300
        %v3302 = vmax.f32 %v3234, %v3235
        %3303 = vmax.xlane.f32.xlu0 %v3302
        %v3304 = vpop.xlane.xlu0 %3303
        %v3305 = vmax.f32 %v3236, %v3237
        %3306 = vmax.xlane.f32.xlu0 %v3305
        %v3307 = vpop.xlane.xlu0 %3306
        %v3308 = vmax.f32 %v3238, %v3239
        %3309 = vmax.xlane.f32.xlu0 %v3308
        %v3310 = vpop.xlane.xlu0 %3309
        %v3311 = vmax.f32 %v3240, %v3241
        %3312 = vmax.xlane.f32.xlu0 %v3311
        %v3313 = vpop.xlane.xlu0 %3312
        %v3314 = vmax.f32 %v3242, %v3243
        %3315 = vmax.xlane.f32.xlu0 %v3314
        %v3316 = vpop.xlane.xlu0 %3315
        %v3317 = vmax.f32 %v3244, %v3245
        %3318 = vmax.xlane.f32.xlu0 %v3317
        %v3319 = vpop.xlane.xlu0 %3318
        %v3320 = vmax.f32 %v3246, %v3247
        %3321 = vmax.xlane.f32.xlu0 %v3320
        %v3322 = vpop.xlane.xlu0 %3321
        %v3323 = vmax.f32 %v3248, %v3249
        %3324 = vmax.xlane.f32.xlu0 %v3323
        %v3325 = vpop.xlane.xlu0 %3324
        %v3326 = vmax.f32 %v3250, %v3251
        %3327 = vmax.xlane.f32.xlu0 %v3326
        %v3328 = vpop.xlane.xlu0 %3327
        %v3329 = vmax.f32 %v3252, %v3253
        %3330 = vmax.xlane.f32.xlu0 %v3329
        %v3331 = vpop.xlane.xlu0 %3330
        %v3332 = vmax.f32 %v3254, %v3255
        %3333 = vmax.xlane.f32.xlu0 %v3332
        %v3334 = vpop.xlane.xlu0 %3333
        %v3335 = vmax.f32 %v3256, %v3257
        %3336 = vmax.xlane.f32.xlu0 %v3335
        %v3337 = vpop.xlane.xlu0 %3336
        %v3338 = vsel %vm2713, %v3274, -inf
        %3339 = vmax.xlane.f32.xlu0 %v3338
        %v3340 = vpop.xlane.xlu0 %3339
        %v3341 = vsel %vm2713, %v3275, -inf
        %3342 = vmax.xlane.f32.xlu0 %v3341
        %v3343 = vpop.xlane.xlu0 %3342
        %v3344 = vsel %vm2713, %v3276, -inf
        %3345 = vmax.xlane.f32.xlu0 %v3344
        %v3346 = vpop.xlane.xlu0 %3345
        %v3347 = vsel %vm2713, %v3277, -inf
        %3348 = vmax.xlane.f32.xlu0 %v3347
        %v3349 = vpop.xlane.xlu0 %3348
        %v3350 = vsel %vm2713, %v3278, -inf
        %3351 = vmax.xlane.f32.xlu0 %v3350
        %v3352 = vpop.xlane.xlu0 %3351
        %v3353 = vsel %vm2713, %v3279, -inf
        %3354 = vmax.xlane.f32.xlu0 %v3353
        %v3355 = vpop.xlane.xlu0 %3354
        %v3356 = vsel %vm2713, %v3280, -inf
        %3357 = vmax.xlane.f32.xlu0 %v3356
        %v3358 = vpop.xlane.xlu0 %3357
        %v3359 = vsel %vm2713, %v3281, -inf
        %3360 = vmax.xlane.f32.xlu0 %v3359
        %v3361 = vpop.xlane.xlu0 %3360
        %v3362 = vsel %vm2713, %v3282, -inf
        %3363 = vmax.xlane.f32.xlu0 %v3362
        %v3364 = vpop.xlane.xlu0 %3363
        %v3365 = vsel %vm2713, %v3283, -inf
        %3366 = vmax.xlane.f32.xlu0 %v3365
        %v3367 = vpop.xlane.xlu0 %3366
        %v3368 = vsel %vm2713, %v3284, -inf
        %3369 = vmax.xlane.f32.xlu0 %v3368
        %v3370 = vpop.xlane.xlu0 %3369
        %v3371 = vsel %vm2713, %v3285, -inf
        %3372 = vmax.xlane.f32.xlu0 %v3371
        %v3373 = vpop.xlane.xlu0 %3372
        %v3374 = vsel %vm2713, %v3286, -inf
        %3375 = vmax.xlane.f32.xlu0 %v3374
        %v3376 = vpop.xlane.xlu0 %3375
        %v3377 = vsel %vm2713, %v3287, -inf
        %3378 = vmax.xlane.f32.xlu0 %v3377
        %v3379 = vpop.xlane.xlu0 %3378
        %v3380 = vsel %vm2713, %v3288, -inf
        %3381 = vmax.xlane.f32.xlu0 %v3380
        %v3382 = vpop.xlane.xlu0 %3381
        %v3383 = vsel %vm2713, %v3289, -inf
        %3384 = vmax.xlane.f32.xlu0 %v3383
        %v3385 = vpop.xlane.xlu0 %3384
        %v3386 = vmax.f32 %v3292, %v3340
        %v3387 = vmax.f32 %v3295, %v3343
        %v3388 = vmax.f32 %v3298, %v3346
        %v3389 = vmax.f32 %v3301, %v3349
        %v3390 = vmax.f32 %v3304, %v3352
        %v3391 = vmax.f32 %v3307, %v3355
        %v3392 = vmax.f32 %v3310, %v3358
        %v3393 = vmax.f32 %v3313, %v3361
        %v3394 = vmax.f32 %v3316, %v3364
        %v3395 = vmax.f32 %v3319, %v3367
        %v3396 = vmax.f32 %v3322, %v3370
        %v3397 = vmax.f32 %v3325, %v3373
        %v3398 = vmax.f32 %v3328, %v3376
        %v3399 = vmax.f32 %v3331, %v3379
        %v3400 = vmax.f32 %v3334, %v3382
        %v3401 = vmax.f32 %v3337, %v3385
        %v3402 = vsel %vm2388, %v2762, %v2970
        %v3403 = vsel %vm2388, %v2763, %v2971
        %v3404 = vsel %vm2388, %v2764, %v2972
        %v3405 = vsel %vm2388, %v2765, %v2973
        %v3406 = vsel %vm2388, %v2766, %v2974
        %v3407 = vsel %vm2388, %v2767, %v2975
        %v3408 = vsel %vm2388, %v2768, %v2976
        %v3409 = vsel %vm2388, %v2769, %v2977
        %v3410 = vsel %vm2388, %v2770, %v2978
        %v3411 = vsel %vm2388, %v2771, %v2979
        %v3412 = vsel %vm2388, %v2772, %v2980
        %v3413 = vsel %vm2388, %v2773, %v2981
        %v3414 = vsel %vm2388, %v2774, %v2982
        %v3415 = vsel %vm2388, %v2775, %v2983
        %v3416 = vsel %vm2388, %v2776, %v2984
        %v3417 = vsel %vm2388, %v2777, %v2985
        %v3418 = vsel %vm2405, %v3402, %v3178
        %v3419 = vsel %vm2405, %v3403, %v3179
        %v3420 = vsel %vm2405, %v3404, %v3180
        %v3421 = vsel %vm2405, %v3405, %v3181
        %v3422 = vsel %vm2405, %v3406, %v3182
        %v3423 = vsel %vm2405, %v3407, %v3183
        %v3424 = vsel %vm2405, %v3408, %v3184
        %v3425 = vsel %vm2405, %v3409, %v3185
        %v3426 = vsel %vm2405, %v3410, %v3186
        %v3427 = vsel %vm2405, %v3411, %v3187
        %v3428 = vsel %vm2405, %v3412, %v3188
        %v3429 = vsel %vm2405, %v3413, %v3189
        %v3430 = vsel %vm2405, %v3414, %v3190
        %v3431 = vsel %vm2405, %v3415, %v3191
        %v3432 = vsel %vm2405, %v3416, %v3192
        %v3433 = vsel %vm2405, %v3417, %v3193
        %v3434 = vsel %vm2422, %v3418, %v3386
        %v3435 = vsel %vm2422, %v3419, %v3387
        %v3436 = vsel %vm2422, %v3420, %v3388
        %v3437 = vsel %vm2422, %v3421, %v3389
        %v3438 = vsel %vm2422, %v3422, %v3390
        %v3439 = vsel %vm2422, %v3423, %v3391
        %v3440 = vsel %vm2422, %v3424, %v3392
        %v3441 = vsel %vm2422, %v3425, %v3393
        %v3442 = vsel %vm2422, %v3426, %v3394
        %v3443 = vsel %vm2422, %v3427, %v3395
        %v3444 = vsel %vm2422, %v3428, %v3396
        %v3445 = vsel %vm2422, %v3429, %v3397
        %v3446 = vsel %vm2422, %v3430, %v3398
        %v3447 = vsel %vm2422, %v3431, %v3399
        %v3448 = vsel %vm2422, %v3432, %v3400
        %v3449 = vsel %vm2422, %v3433, %v3401
        %3451 = vset.pattern.permute.xlu0 3
        %3452 = vperm.xlu0 %3451, %v3434
        %v3453 = vpop.permute.xlu0 %3452
        %3456 = vset.pattern.permute.xlu0 3
        %3457 = vperm.xlu0 %3456, %v3435
        %v3458 = vpop.permute.xlu0 %3457
        %3461 = vset.pattern.permute.xlu0 3
        %3462 = vperm.xlu0 %3461, %v3436
        %v3463 = vpop.permute.xlu0 %3462
        %3466 = vset.pattern.permute.xlu0 3
        %3467 = vperm.xlu0 %3466, %v3437
        %v3468 = vpop.permute.xlu0 %3467
        %3471 = vset.pattern.permute.xlu0 3
        %3472 = vperm.xlu0 %3471, %v3438
        %v3473 = vpop.permute.xlu0 %3472
        %3476 = vset.pattern.permute.xlu0 3
        %3477 = vperm.xlu0 %3476, %v3439
        %v3478 = vpop.permute.xlu0 %3477
        %3481 = vset.pattern.permute.xlu0 3
        %3482 = vperm.xlu0 %3481, %v3440
        %v3483 = vpop.permute.xlu0 %3482
        %3486 = vset.pattern.permute.xlu0 3
        %3487 = vperm.xlu0 %3486, %v3441
        %v3488 = vpop.permute.xlu0 %3487
        %3491 = vset.pattern.permute.xlu0 3
        %3492 = vperm.xlu0 %3491, %v3442
        %v3493 = vpop.permute.xlu0 %3492
        %3496 = vset.pattern.permute.xlu0 3
        %3497 = vperm.xlu0 %3496, %v3443
        %v3498 = vpop.permute.xlu0 %3497
        %3501 = vset.pattern.permute.xlu0 3
        %3502 = vperm.xlu0 %3501, %v3444
        %v3503 = vpop.permute.xlu0 %3502
        %3506 = vset.pattern.permute.xlu0 3
        %3507 = vperm.xlu0 %3506, %v3445
        %v3508 = vpop.permute.xlu0 %3507
        %3511 = vset.pattern.permute.xlu0 3
        %3512 = vperm.xlu0 %3511, %v3446
        %v3513 = vpop.permute.xlu0 %3512
        %3516 = vset.pattern.permute.xlu0 3
        %3517 = vperm.xlu0 %3516, %v3447
        %v3518 = vpop.permute.xlu0 %3517
        %3521 = vset.pattern.permute.xlu0 3
        %3522 = vperm.xlu0 %3521, %v3448
        %v3523 = vpop.permute.xlu0 %3522
        %3526 = vset.pattern.permute.xlu0 3
        %3527 = vperm.xlu0 %3526, %v3449
        %v3528 = vpop.permute.xlu0 %3527
        %vm3530 = vcmp.ge.f32.partialorder %v1892, %v3453
        %vm3531 = vcmp.ge.f32.partialorder %v1957, %v3453
        %vm3532 = vcmp.ge.f32.partialorder %v1895, %v3458
        %vm3533 = vcmp.ge.f32.partialorder %v1960, %v3458
        %vm3534 = vcmp.ge.f32.partialorder %v1898, %v3463
        %vm3535 = vcmp.ge.f32.partialorder %v1963, %v3463
        %vm3536 = vcmp.ge.f32.partialorder %v1901, %v3468
        %vm3537 = vcmp.ge.f32.partialorder %v1966, %v3468
        %vm3538 = vcmp.ge.f32.partialorder %v1904, %v3473
        %vm3539 = vcmp.ge.f32.partialorder %v1969, %v3473
        %vm3540 = vcmp.ge.f32.partialorder %v1907, %v3478
        %vm3541 = vcmp.ge.f32.partialorder %v1972, %v3478
        %vm3542 = vcmp.ge.f32.partialorder %v1910, %v3483
        %vm3543 = vcmp.ge.f32.partialorder %v1975, %v3483
        %vm3544 = vcmp.ge.f32.partialorder %v1913, %v3488
        %vm3545 = vcmp.ge.f32.partialorder %v1978, %v3488
        %vm3546 = vcmp.ge.f32.partialorder %v1916, %v3493
        %vm3547 = vcmp.ge.f32.partialorder %v1981, %v3493
        %vm3548 = vcmp.ge.f32.partialorder %v1919, %v3498
        %vm3549 = vcmp.ge.f32.partialorder %v1984, %v3498
        %vm3550 = vcmp.ge.f32.partialorder %v1922, %v3503
        %vm3551 = vcmp.ge.f32.partialorder %v1987, %v3503
        %vm3552 = vcmp.ge.f32.partialorder %v1925, %v3508
        %vm3553 = vcmp.ge.f32.partialorder %v1990, %v3508
        %vm3554 = vcmp.ge.f32.partialorder %v1928, %v3513
        %vm3555 = vcmp.ge.f32.partialorder %v1993, %v3513
        %vm3556 = vcmp.ge.f32.partialorder %v1931, %v3518
        %vm3557 = vcmp.ge.f32.partialorder %v1996, %v3518
        %vm3558 = vcmp.ge.f32.partialorder %v1934, %v3523
        %vm3559 = vcmp.ge.f32.partialorder %v1999, %v3523
        %vm3560 = vcmp.ge.f32.partialorder %v1937, %v3528
        %vm3561 = vcmp.ge.f32.partialorder %v2002, %v3528
        %v3562 = vmax.f32 %v1892, 0.0
        %v3563 = vmax.f32 %v1957, 0.0
        %v3564 = vmax.f32 %v1895, 0.0
        %v3565 = vmax.f32 %v1960, 0.0
        %v3566 = vmax.f32 %v1898, 0.0
        %v3567 = vmax.f32 %v1963, 0.0
        %v3568 = vmax.f32 %v1901, 0.0
        %v3569 = vmax.f32 %v1966, 0.0
        %v3570 = vmax.f32 %v1904, 0.0
        %v3571 = vmax.f32 %v1969, 0.0
        %v3572 = vmax.f32 %v1907, 0.0
        %v3573 = vmax.f32 %v1972, 0.0
        %v3574 = vmax.f32 %v1910, 0.0
        %v3575 = vmax.f32 %v1975, 0.0
        %v3576 = vmax.f32 %v1913, 0.0
        %v3577 = vmax.f32 %v1978, 0.0
        %v3578 = vmax.f32 %v1916, 0.0
        %v3579 = vmax.f32 %v1981, 0.0
        %v3580 = vmax.f32 %v1919, 0.0
        %v3581 = vmax.f32 %v1984, 0.0
        %v3582 = vmax.f32 %v1922, 0.0
        %v3583 = vmax.f32 %v1987, 0.0
        %v3584 = vmax.f32 %v1925, 0.0
        %v3585 = vmax.f32 %v1990, 0.0
        %v3586 = vmax.f32 %v1928, 0.0
        %v3587 = vmax.f32 %v1993, 0.0
        %v3588 = vmax.f32 %v1931, 0.0
        %v3589 = vmax.f32 %v1996, 0.0
        %v3590 = vmax.f32 %v1934, 0.0
        %v3591 = vmax.f32 %v1999, 0.0
        %v3592 = vmax.f32 %v1937, 0.0
        %v3593 = vmax.f32 %v2002, 0.0
        %v3594 = vsel %vm3530, %v3562, 0.0
        %v3595 = vsel %vm3531, %v3563, 0.0
        %v3596 = vsel %vm3532, %v3564, 0.0
        %v3597 = vsel %vm3533, %v3565, 0.0
        %v3598 = vsel %vm3534, %v3566, 0.0
        %v3599 = vsel %vm3535, %v3567, 0.0
        %v3600 = vsel %vm3536, %v3568, 0.0
        %v3601 = vsel %vm3537, %v3569, 0.0
        %v3602 = vsel %vm3538, %v3570, 0.0
        %v3603 = vsel %vm3539, %v3571, 0.0
        %v3604 = vsel %vm3540, %v3572, 0.0
        %v3605 = vsel %vm3541, %v3573, 0.0
        %v3606 = vsel %vm3542, %v3574, 0.0
        %v3607 = vsel %vm3543, %v3575, 0.0
        %v3608 = vsel %vm3544, %v3576, 0.0
        %v3609 = vsel %vm3545, %v3577, 0.0
        %v3610 = vsel %vm3546, %v3578, 0.0
        %v3611 = vsel %vm3547, %v3579, 0.0
        %v3612 = vsel %vm3548, %v3580, 0.0
        %v3613 = vsel %vm3549, %v3581, 0.0
        %v3614 = vsel %vm3550, %v3582, 0.0
        %v3615 = vsel %vm3551, %v3583, 0.0
        %v3616 = vsel %vm3552, %v3584, 0.0
        %v3617 = vsel %vm3553, %v3585, 0.0
        %v3618 = vsel %vm3554, %v3586, 0.0
        %v3619 = vsel %vm3555, %v3587, 0.0
        %v3620 = vsel %vm3556, %v3588, 0.0
        %v3621 = vsel %vm3557, %v3589, 0.0
        %v3622 = vsel %vm3558, %v3590, 0.0
        %v3623 = vsel %vm3559, %v3591, 0.0
        %v3624 = vsel %vm3560, %v3592, 0.0
        %v3625 = vsel %vm3561, %v3593, 0.0
        %3626 = vst [vmem:[%s121] sm:$0xff] %v3594
        %3627 = vst [vmem:[%s121 + $0x8] sm:$0xff] %v3595
        %3628 = vst [vmem:[%s121 + $0x20] sm:$0xff] %v3596
        %3629 = vst [vmem:[%s121 + $0x28] sm:$0xff] %v3597
        %3630 = vst [vmem:[%s121 + $0x40] sm:$0xff] %v3598
        %3631 = vst [vmem:[%s121 + $0x48] sm:$0xff] %v3599
        %3632 = vst [vmem:[%s121 + $0x60] sm:$0xff] %v3600
        %3633 = vst [vmem:[%s121 + $0x68] sm:$0xff] %v3601
        %3634 = vst [vmem:[%s121 + $0x80] sm:$0xff] %v3602
        %3635 = vst [vmem:[%s121 + $0x88] sm:$0xff] %v3603
        %3636 = vst [vmem:[%s121 + $0xa0] sm:$0xff] %v3604
        %3637 = vst [vmem:[%s121 + $0xa8] sm:$0xff] %v3605
        %3638 = vst [vmem:[%s121 + $0xc0] sm:$0xff] %v3606
        %3639 = vst [vmem:[%s121 + $0xc8] sm:$0xff] %v3607
        %3640 = vst [vmem:[%s121 + $0xe0] sm:$0xff] %v3608
        %3641 = vst [vmem:[%s121 + $0xe8] sm:$0xff] %v3609
        %3642 = vst [vmem:[%s121 + $0x100] sm:$0xff] %v3610
        %3643 = vst [vmem:[%s121 + $0x108] sm:$0xff] %v3611
        %3644 = vst [vmem:[%s121 + $0x120] sm:$0xff] %v3612
        %3645 = vst [vmem:[%s121 + $0x128] sm:$0xff] %v3613
        %3646 = vst [vmem:[%s121 + $0x140] sm:$0xff] %v3614
        %3647 = vst [vmem:[%s121 + $0x148] sm:$0xff] %v3615
        %3648 = vst [vmem:[%s121 + $0x160] sm:$0xff] %v3616
        %3649 = vst [vmem:[%s121 + $0x168] sm:$0xff] %v3617
        %3650 = vst [vmem:[%s121 + $0x180] sm:$0xff] %v3618
        %3651 = vst [vmem:[%s121 + $0x188] sm:$0xff] %v3619
        %3652 = vst [vmem:[%s121 + $0x1a0] sm:$0xff] %v3620
        %3653 = vst [vmem:[%s121 + $0x1a8] sm:$0xff] %v3621
        %3654 = vst [vmem:[%s121 + $0x1c0] sm:$0xff] %v3622
        %3655 = vst [vmem:[%s121 + $0x1c8] sm:$0xff] %v3623
        %3656 = vst [vmem:[%s121 + $0x1e0] sm:$0xff] %v3624
        %3657 = vst [vmem:[%s121 + $0x1e8] sm:$0xff] %v3625
        %vm3658 = vcmp.ge.f32.partialorder %v2553, %v3453
        %vm3659 = vcmp.ge.f32.partialorder %v2618, %v3453
        %vm3660 = vcmp.ge.f32.partialorder %v2556, %v3458
        %vm3661 = vcmp.ge.f32.partialorder %v2621, %v3458
        %vm3662 = vcmp.ge.f32.partialorder %v2559, %v3463
        %vm3663 = vcmp.ge.f32.partialorder %v2624, %v3463
        %vm3664 = vcmp.ge.f32.partialorder %v2562, %v3468
        %vm3665 = vcmp.ge.f32.partialorder %v2627, %v3468
        %vm3666 = vcmp.ge.f32.partialorder %v2565, %v3473
        %vm3667 = vcmp.ge.f32.partialorder %v2630, %v3473
        %vm3668 = vcmp.ge.f32.partialorder %v2568, %v3478
        %vm3669 = vcmp.ge.f32.partialorder %v2633, %v3478
        %vm3670 = vcmp.ge.f32.partialorder %v2571, %v3483
        %vm3671 = vcmp.ge.f32.partialorder %v2636, %v3483
        %vm3672 = vcmp.ge.f32.partialorder %v2574, %v3488
        %vm3673 = vcmp.ge.f32.partialorder %v2639, %v3488
        %vm3674 = vcmp.ge.f32.partialorder %v2577, %v3493
        %vm3675 = vcmp.ge.f32.partialorder %v2642, %v3493
        %vm3676 = vcmp.ge.f32.partialorder %v2580, %v3498
        %vm3677 = vcmp.ge.f32.partialorder %v2645, %v3498
        %vm3678 = vcmp.ge.f32.partialorder %v2583, %v3503
        %vm3679 = vcmp.ge.f32.partialorder %v2648, %v3503
        %vm3680 = vcmp.ge.f32.partialorder %v2586, %v3508
        %vm3681 = vcmp.ge.f32.partialorder %v2651, %v3508
        %vm3682 = vcmp.ge.f32.partialorder %v2589, %v3513
        %vm3683 = vcmp.ge.f32.partialorder %v2654, %v3513
        %vm3684 = vcmp.ge.f32.partialorder %v2592, %v3518
        %vm3685 = vcmp.ge.f32.partialorder %v2657, %v3518
        %vm3686 = vcmp.ge.f32.partialorder %v2595, %v3523
        %vm3687 = vcmp.ge.f32.partialorder %v2660, %v3523
        %vm3688 = vcmp.ge.f32.partialorder %v2598, %v3528
        %vm3689 = vcmp.ge.f32.partialorder %v2663, %v3528
        %v3690 = vmax.f32 %v2553, 0.0
        %v3691 = vmax.f32 %v2618, 0.0
        %v3692 = vmax.f32 %v2556, 0.0
        %v3693 = vmax.f32 %v2621, 0.0
        %v3694 = vmax.f32 %v2559, 0.0
        %v3695 = vmax.f32 %v2624, 0.0
        %v3696 = vmax.f32 %v2562, 0.0
        %v3697 = vmax.f32 %v2627, 0.0
        %v3698 = vmax.f32 %v2565, 0.0
        %v3699 = vmax.f32 %v2630, 0.0
        %v3700 = vmax.f32 %v2568, 0.0
        %v3701 = vmax.f32 %v2633, 0.0
        %v3702 = vmax.f32 %v2571, 0.0
        %v3703 = vmax.f32 %v2636, 0.0
        %v3704 = vmax.f32 %v2574, 0.0
        %v3705 = vmax.f32 %v2639, 0.0
        %v3706 = vmax.f32 %v2577, 0.0
        %v3707 = vmax.f32 %v2642, 0.0
        %v3708 = vmax.f32 %v2580, 0.0
        %v3709 = vmax.f32 %v2645, 0.0
        %v3710 = vmax.f32 %v2583, 0.0
        %v3711 = vmax.f32 %v2648, 0.0
        %v3712 = vmax.f32 %v2586, 0.0
        %v3713 = vmax.f32 %v2651, 0.0
        %v3714 = vmax.f32 %v2589, 0.0
        %v3715 = vmax.f32 %v2654, 0.0
        %v3716 = vmax.f32 %v2592, 0.0
        %v3717 = vmax.f32 %v2657, 0.0
        %v3718 = vmax.f32 %v2595, 0.0
        %v3719 = vmax.f32 %v2660, 0.0
        %v3720 = vmax.f32 %v2598, 0.0
        %v3721 = vmax.f32 %v2663, 0.0
        %v3722 = vsel %vm3658, %v3690, 0.0
        %v3723 = vsel %vm3659, %v3691, 0.0
        %v3724 = vsel %vm3660, %v3692, 0.0
        %v3725 = vsel %vm3661, %v3693, 0.0
        %v3726 = vsel %vm3662, %v3694, 0.0
        %v3727 = vsel %vm3663, %v3695, 0.0
        %v3728 = vsel %vm3664, %v3696, 0.0
        %v3729 = vsel %vm3665, %v3697, 0.0
        %v3730 = vsel %vm3666, %v3698, 0.0
        %v3731 = vsel %vm3667, %v3699, 0.0
        %v3732 = vsel %vm3668, %v3700, 0.0
        %v3733 = vsel %vm3669, %v3701, 0.0
        %v3734 = vsel %vm3670, %v3702, 0.0
        %v3735 = vsel %vm3671, %v3703, 0.0
        %v3736 = vsel %vm3672, %v3704, 0.0
        %v3737 = vsel %vm3673, %v3705, 0.0
        %v3738 = vsel %vm3674, %v3706, 0.0
        %v3739 = vsel %vm3675, %v3707, 0.0
        %v3740 = vsel %vm3676, %v3708, 0.0
        %v3741 = vsel %vm3677, %v3709, 0.0
        %v3742 = vsel %vm3678, %v3710, 0.0
        %v3743 = vsel %vm3679, %v3711, 0.0
        %v3744 = vsel %vm3680, %v3712, 0.0
        %v3745 = vsel %vm3681, %v3713, 0.0
        %v3746 = vsel %vm3682, %v3714, 0.0
        %v3747 = vsel %vm3683, %v3715, 0.0
        %v3748 = vsel %vm3684, %v3716, 0.0
        %v3749 = vsel %vm3685, %v3717, 0.0
        %v3750 = vsel %vm3686, %v3718, 0.0
        %v3751 = vsel %vm3687, %v3719, 0.0
        %v3752 = vsel %vm3688, %v3720, 0.0
        %v3753 = vsel %vm3689, %v3721, 0.0
        %3754 = vst [vmem:[%s121 + $0x10] sm:$0xff] %v3722
        %3755 = vst [vmem:[%s121 + $0x18] sm:$0xff] %v3723
        %3756 = vst [vmem:[%s121 + $0x30] sm:$0xff] %v3724
        %3757 = vst [vmem:[%s121 + $0x38] sm:$0xff] %v3725
        %3758 = vst [vmem:[%s121 + $0x50] sm:$0xff] %v3726
        %3759 = vst [vmem:[%s121 + $0x58] sm:$0xff] %v3727
        %3760 = vst [vmem:[%s121 + $0x70] sm:$0xff] %v3728
        %3761 = vst [vmem:[%s121 + $0x78] sm:$0xff] %v3729
        %3762 = vst [vmem:[%s121 + $0x90] sm:$0xff] %v3730
        %3763 = vst [vmem:[%s121 + $0x98] sm:$0xff] %v3731
        %3764 = vst [vmem:[%s121 + $0xb0] sm:$0xff] %v3732
        %3765 = vst [vmem:[%s121 + $0xb8] sm:$0xff] %v3733
        %3766 = vst [vmem:[%s121 + $0xd0] sm:$0xff] %v3734
        %3767 = vst [vmem:[%s121 + $0xd8] sm:$0xff] %v3735
        %3768 = vst [vmem:[%s121 + $0xf0] sm:$0xff] %v3736
        %3769 = vst [vmem:[%s121 + $0xf8] sm:$0xff] %v3737
        %3770 = vst [vmem:[%s121 + $0x110] sm:$0xff] %v3738
        %3771 = vst [vmem:[%s121 + $0x118] sm:$0xff] %v3739
        %3772 = vst [vmem:[%s121 + $0x130] sm:$0xff] %v3740
        %3773 = vst [vmem:[%s121 + $0x138] sm:$0xff] %v3741
        %3774 = vst [vmem:[%s121 + $0x150] sm:$0xff] %v3742
        %3775 = vst [vmem:[%s121 + $0x158] sm:$0xff] %v3743
        %3776 = vst [vmem:[%s121 + $0x170] sm:$0xff] %v3744
        %3777 = vst [vmem:[%s121 + $0x178] sm:$0xff] %v3745
        %3778 = vst [vmem:[%s121 + $0x190] sm:$0xff] %v3746
        %3779 = vst [vmem:[%s121 + $0x198] sm:$0xff] %v3747
        %3780 = vst [vmem:[%s121 + $0x1b0] sm:$0xff] %v3748
        %3781 = vst [vmem:[%s121 + $0x1b8] sm:$0xff] %v3749
        %3782 = vst [vmem:[%s121 + $0x1d0] sm:$0xff] %v3750
        %3783 = vst [vmem:[%s121 + $0x1d8] sm:$0xff] %v3751
        %3784 = vst [vmem:[%s121 + $0x1f0] sm:$0xff] %v3752
        %3785 = vst [vmem:[%s121 + $0x1f8] sm:$0xff] %v3753
        %s3786 = sand.u32 %s66, 1
        %s3787 = scalar_lea.sflag [#allocation3], %s3786
        %s3788 = sand.u32 %s66, 1
        %s3789 = smul.addr %s3788, 512
        %s3790 = scalar_lea.vmem [#allocation2], %s3789
        // Predicated region
        $region29: #{tpu_custom_call.1} parent=27 // pred_check
          %p3791 = pneg %p76
        $region30: #{tpu_custom_call.1} parent=27 // pred_check_branch
          %3793 = sbr.rel (%p3791) target = $region32
        $region31: #{tpu_custom_call.1} parent=27 // pred_region
          %s3794 = smul.u32 16, %s16
          %3796 = vsyncadd %s3787, 0
          %s3797 = smul.addr %s3794, 4
          %s3798 = smul.addr %s3797, 8
          %s3799 = scalar_lea.hbm %s2, %s3798
          %s3800 = sshll.u32 %s3790, 4
          %s3801 = int_to_ptr.vmem [resolvable:$true] %s3800
          %s3802 = sshll.u32 %s3799, 4
          %s3803 = int_to_ptr.hbm [resolvable:$true] %s3802
          %3808 = dma.vmem_to_hbm [thread:$0]  %s3801, 8192, %s3803, %s3787, 512, 512, 32
        $region32: #{tpu_custom_call.1} parent=27 // pred_fallthru
          _
      $region28: #{tpu_custom_call.1} parent=5 // pred_fallthru
        _
      %p3809 = scmp.le.s32.totalorder 2, %s11
      // Predicated region
      $region33: #{tpu_custom_call.1} parent=5 // pred_check
        %p3810 = pneg %p3809
      $region34: #{tpu_custom_call.1} parent=5 // pred_check_branch
        %3812 = sbr.rel (%p3810) target = $region36
      $region35: #{tpu_custom_call.1} parent=5 // pred_region
        %s3813 = ssub.s32 %s11, 2
        // Predicated region
        $region37: #{tpu_custom_call.1} parent=35 // pred_check
          %p3814 = pneg %p82
        $region38: #{tpu_custom_call.1} parent=35 // pred_check_branch
          %3816 = sbr.rel (%p3814) target = $region40
        $region39: #{tpu_custom_call.1} parent=35 // pred_region
          %s3817 = sand.u32 %s67, 1
          %s3818 = scalar_lea.sflag [#allocation3], %s3817
          %s3819 = sand.u32 %s67, 1
          %s3820 = smul.addr %s3819, 512
          %s3821 = scalar_lea.vmem [#allocation2], %s3820
          %3823 = dma.done %s3818, 8192
        $region40: #{tpu_custom_call.1} parent=35 // pred_fallthru
          _
      $region36: #{tpu_custom_call.1} parent=5 // pred_fallthru
        _
    $region6: #{tpu_custom_call.1} parent=1 // loop_footer
      %s15 = sadd.s32 1, %s11
    $region7: #{tpu_custom_call.1} parent=1 // loop_footer_branch
      %10 = sbr.rel target = $region3
    $region8: #{tpu_custom_call.1} parent=1 // loop_exit
      _
    %3824 = vsyncpa [#allocation3], 1
    %s3825 = scalar_lea.sflag [#allocation3], 1
    %3826 = vsyncpa %s3825, 1

// kernel: tpu_custom_call.1
$region0: #{tpu_custom_call.1}
  #allocation0 [shape = 'u32[]', space=smem, size = 0x4, offset = 0x4, fixed_abs, tag = 'smem constant byte address 0x4 - core index']
  #allocation1 [shape = 'u32[72,128]{1,0:T(1,128)}', space=vmem, size = 0x9000, scoped, tag = 'internal scratch']
  %s0 = inlined_call_operand.vmem [shape: f32[2,32], index: 0, kind: input, shape index: {}]
  %s1 = inlined_call_operand.vmem [shape: f32[512,32], index: 1, kind: input, shape index: {}]
  %s2 = inlined_call_operand.hbm [shape: f32[512,512], index: 2, kind: output, shape index: {}]
  %s3 = sld [smem:[#allocation0]]
  $region41: #{tpu_custom_call.1} parent=0
    _
  %s5 = ssub.s32 1, %s3
  %s6 = scalar_select 0, %s5, %s3
  $region1: #{tpu_custom_call.1} parent=0
    #allocation2 [shape = 'u8[524288]{0}', space=vmem, size = 0x80000, scoped, tag = 'output window, operand 0']
    #allocation3 [shape = 's32[2]{0}', space=sflag, size = 0x8, scoped, tag = 'scoped memory for tpu_custom_call.1']
    %7 = vsyncpa [#allocation3], 0
    %s8 = scalar_lea.sflag [#allocation3], 1
    %9 = vsyncpa %s8, 0
    loop: start=0, step=1, limit=6
    $region2: #{tpu_custom_call.1} parent=1 // loop_pre_header
      _
    $region3: #{tpu_custom_call.1} parent=1 // loop_header
      %s11 = sphi 0, %s15
      %p12 = scmp.ge.s32.totalorder %s11, 6
      %s19 = sphi 0, %s19
      %s21 = sphi 0, %s19
      %s22 = sphi 0, %s21
      %s36 = sphi 0, %s22
      %s40 = sphi 0, %s40
      %s42 = sphi 0, %s40
      %s43 = sphi 0, %s42
      %s57 = sphi 0, %s43
      %s63 = sphi 0, %s65
      %s66 = sphi 0, %s63
      %s67 = sphi 0, %s66
      %s83 = sphi 0, %s67
    $region4: #{tpu_custom_call.1} parent=1 // loop_header_branch
      %14 = sbr.rel (%p12) target = $region8
    $region5: #{tpu_custom_call.1} parent=1 // loop_body
      %s16 = ssub.s32 %s11, 1
      %s17 = ssub.s32 %s11, 2
      %s18 = sadd.s32 %s11, 1
      %s20 = sadd.s32 %s19, 1
      %p23 = scmp.eq.s32.totalorder %s11, 3
      %p24 = scmp.ne.s32.totalorder %s19, %s21
      %p25 = scmp.eq.s32.totalorder %s11, 0
      %p26 = por %p24, %p25
      %p27 = scmp.ne.s32.totalorder %s19, %s21
      %p28 = scmp.eq.s32.totalorder %s16, 3
      %p29 = por %p27, %p28
      %p30 = scmp.ne.s32.totalorder %s21, %s22
      %p31 = scmp.eq.s32.totalorder %s16, 0
      %p32 = por %p30, %p31
      %p33 = scmp.ne.s32.totalorder %s21, %s22
      %p34 = scmp.eq.s32.totalorder %s17, 3
      %p35 = por %p33, %p34
      %p37 = scmp.ne.s32.totalorder %s22, %s36
      %p38 = scmp.eq.s32.totalorder %s17, 0
      %p39 = por %p37, %p38
      %s41 = sadd.s32 %s40, 1
      %p44 = scmp.eq.s32.totalorder %s11, 3
      %p45 = scmp.ne.s32.totalorder %s40, %s42
      %p46 = scmp.eq.s32.totalorder %s11, 0
      %p47 = por %p45, %p46
      %p48 = scmp.ne.s32.totalorder %s40, %s42
      %p49 = scmp.eq.s32.totalorder %s16, 3
      %p50 = por %p48, %p49
      %p51 = scmp.ne.s32.totalorder %s42, %s43
      %p52 = scmp.eq.s32.totalorder %s16, 0
      %p53 = por %p51, %p52
      %p54 = scmp.ne.s32.totalorder %s42, %s43
      %p55 = scmp.eq.s32.totalorder %s17, 3
      %p56 = por %p54, %p55
      %p58 = scmp.ne.s32.totalorder %s43, %s57
      %p59 = scmp.eq.s32.totalorder %s17, 0
      %p60 = por %p58, %p59
      %s61 = ssub.s32 %s11, %s18
      %p62 = scmp.eq.s32.totalorder %s61, 0
      %s64 = sadd.s32 %s63, 1
      %s65 = scalar_select %p62, %s63, %s64
      %p68 = pneg %p62
      %p69 = scmp.eq.s32.totalorder %s11, 3
      %p70 = por %p68, %p69
      %p71 = scmp.ne.s32.totalorder %s63, %s66
      %p72 = scmp.eq.s32.totalorder %s11, 0
      %p73 = por %p71, %p72
      %p74 = scmp.ne.s32.totalorder %s63, %s66
      %p75 = scmp.eq.s32.totalorder %s16, 3
      %p76 = por %p74, %p75
      %p77 = scmp.ne.s32.totalorder %s66, %s67
      %p78 = scmp.eq.s32.totalorder %s16, 0
      %p79 = por %p77, %p78
      %p80 = scmp.ne.s32.totalorder %s66, %s67
      %p81 = scmp.eq.s32.totalorder %s17, 3
      %p82 = por %p80, %p81
      %p84 = scmp.ne.s32.totalorder %s67, %s83
      %p85 = scmp.eq.s32.totalorder %s17, 0
      %p86 = por %p84, %p85
      %p87 = scmp.le.s32.totalorder 1, %s11
      %p88 = scmp.lt.s32.totalorder %s11, 5
      %p89 = pnand %p87, %p88
      %p90 = pneg %p89
      // Predicated region
      $region9: #{tpu_custom_call.1} parent=5 // pred_check
        _
      $region10: #{tpu_custom_call.1} parent=5 // pred_check_branch
        %92 = sbr.rel (%p89) target = $region12
      $region11: #{tpu_custom_call.1} parent=5 // pred_region
        %s93 = ssub.s32 %s11, 1
        // Predicated region
        $region13: #{tpu_custom_call.1} parent=11 // pred_check
          %p94 = pneg %p32
        $region14: #{tpu_custom_call.1} parent=11 // pred_check_branch
          %96 = sbr.rel (%p94) target = $region16
        $region15: #{tpu_custom_call.1} parent=11 // pred_region
          _
        $region16: #{tpu_custom_call.1} parent=11 // pred_fallthru
          _
        // Predicated region
        $region17: #{tpu_custom_call.1} parent=11 // pred_check
          %p97 = pneg %p53
        $region18: #{tpu_custom_call.1} parent=11 // pred_check_branch
          %99 = sbr.rel (%p97) target = $region20
        $region19: #{tpu_custom_call.1} parent=11 // pred_region
          _
        $region20: #{tpu_custom_call.1} parent=11 // pred_fallthru
          _
      $region12: #{tpu_custom_call.1} parent=5 // pred_fallthru
        _
      %p100 = scmp.lt.s32.totalorder %s11, 4
      // Predicated region
      $region21: #{tpu_custom_call.1} parent=5 // pred_check
        %p101 = pneg %p100
      $region22: #{tpu_custom_call.1} parent=5 // pred_check_branch
        %103 = sbr.rel (%p101) target = $region24
      $region23: #{tpu_custom_call.1} parent=5 // pred_region
        _
      $region24: #{tpu_custom_call.1} parent=5 // pred_fallthru
        _
      %p104 = scmp.le.s32.totalorder 1, %s11
      %p105 = scmp.lt.s32.totalorder %s11, 5
      %p106 = pnand %p104, %p105
      %p107 = pneg %p106
      // Predicated region
      $region25: #{tpu_custom_call.1} parent=5 // pred_check
        _
      $region26: #{tpu_custom_call.1} parent=5 // pred_check_branch
        %109 = sbr.rel (%p106) target = $region28
      $region27: #{tpu_custom_call.1} parent=5 // pred_region
        %s110 = ssub.s32 %s11, 1
        %p111 = pneg %p32
        %p112 = pneg %p29
        %p113 = pneg %p53
        %p114 = pneg %p50
        %p115 = pneg %p79
        %p116 = pneg %p76
        %s117 = sand.u32 %s66, 1
        %s118 = scalar_lea.sflag [#allocation3], %s117
        %s119 = sand.u32 %s66, 1
        %s120 = smul.addr %s119, 512
        %s121 = scalar_lea.vmem [#allocation2], %s120
        %s122 = smul.u32 16, %s16
        %v123 = vld [vmem:[%s1] sm:$0xff]
        %v124 = vld [vmem:[%s1 + $0x8] sm:$0xff]
        %v125 = vld [vmem:[%s1 + $0x10] sm:$0xff]
        %v126 = vld [vmem:[%s1 + $0x18] sm:$0xff]
        %v127 = vld [vmem:[%s1 + $0x20] sm:$0xff]
        %v128 = vld [vmem:[%s1 + $0x28] sm:$0xff]
        %v129 = vld [vmem:[%s1 + $0x30] sm:$0xff]
        %v130 = vld [vmem:[%s1 + $0x38] sm:$0xff]
        %v131 = vld [vmem:[%s1 + $0x40] sm:$0xff]
        %v132 = vld [vmem:[%s1 + $0x48] sm:$0xff]
        %v133 = vld [vmem:[%s1 + $0x50] sm:$0xff]
        %v134 = vld [vmem:[%s1 + $0x58] sm:$0xff]
        %v135 = vld [vmem:[%s1 + $0x60] sm:$0xff]
        %v136 = vld [vmem:[%s1 + $0x68] sm:$0xff]
        %v137 = vld [vmem:[%s1 + $0x70] sm:$0xff]
        %v138 = vld [vmem:[%s1 + $0x78] sm:$0xff]
        %v139 = vld [vmem:[%s1 + $0x80] sm:$0xff]
        %v140 = vld [vmem:[%s1 + $0x88] sm:$0xff]
        %v141 = vld [vmem:[%s1 + $0x90] sm:$0xff]
        %v142 = vld [vmem:[%s1 + $0x98] sm:$0xff]
        %v143 = vld [vmem:[%s1 + $0xa0] sm:$0xff]
        %v144 = vld [vmem:[%s1 + $0xa8] sm:$0xff]
        %v145 = vld [vmem:[%s1 + $0xb0] sm:$0xff]
        %v146 = vld [vmem:[%s1 + $0xb8] sm:$0xff]
        %v147 = vld [vmem:[%s1 + $0xc0] sm:$0xff]
        %v148 = vld [vmem:[%s1 + $0xc8] sm:$0xff]
        %v149 = vld [vmem:[%s1 + $0xd0] sm:$0xff]
        %v150 = vld [vmem:[%s1 + $0xd8] sm:$0xff]
        %v151 = vld [vmem:[%s1 + $0xe0] sm:$0xff]
        %v152 = vld [vmem:[%s1 + $0xe8] sm:$0xff]
        %v153 = vld [vmem:[%s1 + $0xf0] sm:$0xff]
        %v154 = vld [vmem:[%s1 + $0xf8] sm:$0xff]
        %v155 = vld [vmem:[%s1 + $0x100] sm:$0xff]
        %v156 = vld [vmem:[%s1 + $0x108] sm:$0xff]
        %v157 = vld [vmem:[%s1 + $0x110] sm:$0xff]
        %v158 = vld [vmem:[%s1 + $0x118] sm:$0xff]
        %v159 = vld [vmem:[%s1 + $0x120] sm:$0xff]
        %v160 = vld [vmem:[%s1 + $0x128] sm:$0xff]
        %v161 = vld [vmem:[%s1 + $0x130] sm:$0xff]
        %v162 = vld [vmem:[%s1 + $0x138] sm:$0xff]
        %v163 = vld [vmem:[%s1 + $0x140] sm:$0xff]
        %v164 = vld [vmem:[%s1 + $0x148] sm:$0xff]
        %v165 = vld [vmem:[%s1 + $0x150] sm:$0xff]
        %v166 = vld [vmem:[%s1 + $0x158] sm:$0xff]
        %v167 = vld [vmem:[%s1 + $0x160] sm:$0xff]
        %v168 = vld [vmem:[%s1 + $0x168] sm:$0xff]
        %v169 = vld [vmem:[%s1 + $0x170] sm:$0xff]
        %v170 = vld [vmem:[%s1 + $0x178] sm:$0xff]
        %v171 = vld [vmem:[%s1 + $0x180] sm:$0xff]
        %v172 = vld [vmem:[%s1 + $0x188] sm:$0xff]
        %v173 = vld [vmem:[%s1 + $0x190] sm:$0xff]
        %v174 = vld [vmem:[%s1 + $0x198] sm:$0xff]
        %v175 = vld [vmem:[%s1 + $0x1a0] sm:$0xff]
        %v176 = vld [vmem:[%s1 + $0x1a8] sm:$0xff]
        %v177 = vld [vmem:[%s1 + $0x1b0] sm:$0xff]
        %v178 = vld [vmem:[%s1 + $0x1b8] sm:$0xff]
        %v179 = vld [vmem:[%s1 + $0x1c0] sm:$0xff]
        %v180 = vld [vmem:[%s1 + $0x1c8] sm:$0xff]
        %v181 = vld [vmem:[%s1 + $0x1d0] sm:$0xff]
        %v182 = vld [vmem:[%s1 + $0x1d8] sm:$0xff]
        %v183 = vld [vmem:[%s1 + $0x1e0] sm:$0xff]
        %v184 = vld [vmem:[%s1 + $0x1e8] sm:$0xff]
        %v185 = vld [vmem:[%s1 + $0x1f0] sm:$0xff]
        %v186 = vld [vmem:[%s1 + $0x1f8] sm:$0xff]
        %v187 = vld [vmem:[%s0] sm:$0x1]
        %v188 = vperm.slane %v187, 0
        %v189 = vmul.f32 %v123, %v188
        %v190 = vmul.f32 %v124, %v188
        %v191 = vmul.f32 %v125, %v188
        %v192 = vmul.f32 %v126, %v188
        %v193 = vmul.f32 %v127, %v188
        %v194 = vmul.f32 %v128, %v188
        %v195 = vmul.f32 %v129, %v188
        %v196 = vmul.f32 %v130, %v188
        %v197 = vmul.f32 %v131, %v188
        %v198 = vmul.f32 %v132, %v188
        %v199 = vmul.f32 %v133, %v188
        %v200 = vmul.f32 %v134, %v188
        %v201 = vmul.f32 %v135, %v188
        %v202 = vmul.f32 %v136, %v188
        %v203 = vmul.f32 %v137, %v188
        %v204 = vmul.f32 %v138, %v188
        %v205 = vmul.f32 %v139, %v188
        %v206 = vmul.f32 %v140, %v188
        %v207 = vmul.f32 %v141, %v188
        %v208 = vmul.f32 %v142, %v188
        %v209 = vmul.f32 %v143, %v188
        %v210 = vmul.f32 %v144, %v188
        %v211 = vmul.f32 %v145, %v188
        %v212 = vmul.f32 %v146, %v188
        %v213 = vmul.f32 %v147, %v188
        %v214 = vmul.f32 %v148, %v188
        %v215 = vmul.f32 %v149, %v188
        %v216 = vmul.f32 %v150, %v188
        %v217 = vmul.f32 %v151, %v188
        %v218 = vmul.f32 %v152, %v188
        %v219 = vmul.f32 %v153, %v188
        %v220 = vmul.f32 %v154, %v188
        %v221 = vmul.f32 %v155, %v188
        %v222 = vmul.f32 %v156, %v188
        %v223 = vmul.f32 %v157, %v188
        %v224 = vmul.f32 %v158, %v188
        %v225 = vmul.f32 %v159, %v188
        %v226 = vmul.f32 %v160, %v188
        %v227 = vmul.f32 %v161, %v188
        %v228 = vmul.f32 %v162, %v188
        %v229 = vmul.f32 %v163, %v188
        %v230 = vmul.f32 %v164, %v188
        %v231 = vmul.f32 %v165, %v188
        %v232 = vmul.f32 %v166, %v188
        %v233 = vmul.f32 %v167, %v188
        %v234 = vmul.f32 %v168, %v188
        %v235 = vmul.f32 %v169, %v188
        %v236 = vmul.f32 %v170, %v188
        %v237 = vmul.f32 %v171, %v188
        %v238 = vmul.f32 %v172, %v188
        %v239 = vmul.f32 %v173, %v188
        %v240 = vmul.f32 %v174, %v188
        %v241 = vmul.f32 %v175, %v188
        %v242 = vmul.f32 %v176, %v188
        %v243 = vmul.f32 %v177, %v188
        %v244 = vmul.f32 %v178, %v188
        %v245 = vmul.f32 %v179, %v188
        %v246 = vmul.f32 %v180, %v188
        %v247 = vmul.f32 %v181, %v188
        %v248 = vmul.f32 %v182, %v188
        %v249 = vmul.f32 %v183, %v188
        %v250 = vmul.f32 %v184, %v188
        %v251 = vmul.f32 %v185, %v188
        %v252 = vmul.f32 %v186, %v188
        %v253 = vmax.f32 %v189, 0.0
        %v254 = vmax.f32 %v190, 0.0
        %v255 = vmax.f32 %v191, 0.0
        %v256 = vmax.f32 %v192, 0.0
        %v257 = vmax.f32 %v193, 0.0
        %v258 = vmax.f32 %v194, 0.0
        %v259 = vmax.f32 %v195, 0.0
        %v260 = vmax.f32 %v196, 0.0
        %v261 = vmax.f32 %v197, 0.0
        %v262 = vmax.f32 %v198, 0.0
        %v263 = vmax.f32 %v199, 0.0
        %v264 = vmax.f32 %v200, 0.0
        %v265 = vmax.f32 %v201, 0.0
        %v266 = vmax.f32 %v202, 0.0
        %v267 = vmax.f32 %v203, 0.0
        %v268 = vmax.f32 %v204, 0.0
        %v269 = vmax.f32 %v205, 0.0
        %v270 = vmax.f32 %v206, 0.0
        %v271 = vmax.f32 %v207, 0.0
        %v272 = vmax.f32 %v208, 0.0
        %v273 = vmax.f32 %v209, 0.0
        %v274 = vmax.f32 %v210, 0.0
        %v275 = vmax.f32 %v211, 0.0
        %v276 = vmax.f32 %v212, 0.0
        %v277 = vmax.f32 %v213, 0.0
        %v278 = vmax.f32 %v214, 0.0
        %v279 = vmax.f32 %v215, 0.0
        %v280 = vmax.f32 %v216, 0.0
        %v281 = vmax.f32 %v217, 0.0
        %v282 = vmax.f32 %v218, 0.0
        %v283 = vmax.f32 %v219, 0.0
        %v284 = vmax.f32 %v220, 0.0
        %v285 = vmax.f32 %v221, 0.0
        %v286 = vmax.f32 %v222, 0.0
        %v287 = vmax.f32 %v223, 0.0
        %v288 = vmax.f32 %v224, 0.0
        %v289 = vmax.f32 %v225, 0.0
        %v290 = vmax.f32 %v226, 0.0
        %v291 = vmax.f32 %v227, 0.0
        %v292 = vmax.f32 %v228, 0.0
        %v293 = vmax.f32 %v229, 0.0
        %v294 = vmax.f32 %v230, 0.0
        %v295 = vmax.f32 %v231, 0.0
        %v296 = vmax.f32 %v232, 0.0
        %v297 = vmax.f32 %v233, 0.0
        %v298 = vmax.f32 %v234, 0.0
        %v299 = vmax.f32 %v235, 0.0
        %v300 = vmax.f32 %v236, 0.0
        %v301 = vmax.f32 %v237, 0.0
        %v302 = vmax.f32 %v238, 0.0
        %v303 = vmax.f32 %v239, 0.0
        %v304 = vmax.f32 %v240, 0.0
        %v305 = vmax.f32 %v241, 0.0
        %v306 = vmax.f32 %v242, 0.0
        %v307 = vmax.f32 %v243, 0.0
        %v308 = vmax.f32 %v244, 0.0
        %v309 = vmax.f32 %v245, 0.0
        %v310 = vmax.f32 %v246, 0.0
        %v311 = vmax.f32 %v247, 0.0
        %v312 = vmax.f32 %v248, 0.0
        %v313 = vmax.f32 %v249, 0.0
        %v314 = vmax.f32 %v250, 0.0
        %v315 = vmax.f32 %v251, 0.0
        %v316 = vmax.f32 %v252, 0.0
        %v317 = vld [vmem:[%s0 + $0x1] sm:$0x1]
        %v318 = vperm.slane %v317, 0
        %v319 = vmul.f32 %v253, %v318
        %v320 = vmul.f32 %v254, %v318
        %v321 = vmul.f32 %v255, %v318
        %v322 = vmul.f32 %v256, %v318
        %v323 = vmul.f32 %v257, %v318
        %v324 = vmul.f32 %v258, %v318
        %v325 = vmul.f32 %v259, %v318
        %v326 = vmul.f32 %v260, %v318
        %v327 = vmul.f32 %v261, %v318
        %v328 = vmul.f32 %v262, %v318
        %v329 = vmul.f32 %v263, %v318
        %v330 = vmul.f32 %v264, %v318
        %v331 = vmul.f32 %v265, %v318
        %v332 = vmul.f32 %v266, %v318
        %v333 = vmul.f32 %v267, %v318
        %v334 = vmul.f32 %v268, %v318
        %v335 = vmul.f32 %v269, %v318
        %v336 = vmul.f32 %v270, %v318
        %v337 = vmul.f32 %v271, %v318
        %v338 = vmul.f32 %v272, %v318
        %v339 = vmul.f32 %v273, %v318
        %v340 = vmul.f32 %v274, %v318
        %v341 = vmul.f32 %v275, %v318
        %v342 = vmul.f32 %v276, %v318
        %v343 = vmul.f32 %v277, %v318
        %v344 = vmul.f32 %v278, %v318
        %v345 = vmul.f32 %v279, %v318
        %v346 = vmul.f32 %v280, %v318
        %v347 = vmul.f32 %v281, %v318
        %v348 = vmul.f32 %v282, %v318
        %v349 = vmul.f32 %v283, %v318
        %v350 = vmul.f32 %v284, %v318
        %v351 = vmul.f32 %v285, %v318
        %v352 = vmul.f32 %v286, %v318
        %v353 = vmul.f32 %v287, %v318
        %v354 = vmul.f32 %v288, %v318
        %v355 = vmul.f32 %v289, %v318
        %v356 = vmul.f32 %v290, %v318
        %v357 = vmul.f32 %v291, %v318
        %v358 = vmul.f32 %v292, %v318
        %v359 = vmul.f32 %v293, %v318
        %v360 = vmul.f32 %v294, %v318
        %v361 = vmul.f32 %v295, %v318
        %v362 = vmul.f32 %v296, %v318
        %v363 = vmul.f32 %v297, %v318
        %v364 = vmul.f32 %v298, %v318
        %v365 = vmul.f32 %v299, %v318
        %v366 = vmul.f32 %v300, %v318
        %v367 = vmul.f32 %v301, %v318
        %v368 = vmul.f32 %v302, %v318
        %v369 = vmul.f32 %v303, %v318
        %v370 = vmul.f32 %v304, %v318
        %v371 = vmul.f32 %v305, %v318
        %v372 = vmul.f32 %v306, %v318
        %v373 = vmul.f32 %v307, %v318
        %v374 = vmul.f32 %v308, %v318
        %v375 = vmul.f32 %v309, %v318
        %v376 = vmul.f32 %v310, %v318
        %v377 = vmul.f32 %v311, %v318
        %v378 = vmul.f32 %v312, %v318
        %v379 = vmul.f32 %v313, %v318
        %v380 = vmul.f32 %v314, %v318
        %v381 = vmul.f32 %v315, %v318
        %v382 = vmul.f32 %v316, %v318
        %v383 = vmul.f32 %v319, %v319
        %v384 = vmul.f32 %v320, %v320
        %v385 = vmul.f32 %v321, %v321
        %v386 = vmul.f32 %v322, %v322
        %v387 = vmul.f32 %v323, %v323
        %v388 = vmul.f32 %v324, %v324
        %v389 = vmul.f32 %v325, %v325
        %v390 = vmul.f32 %v326, %v326
        %v391 = vmul.f32 %v327, %v327
        %v392 = vmul.f32 %v328, %v328
        %v393 = vmul.f32 %v329, %v329
        %v394 = vmul.f32 %v330, %v330
        %v395 = vmul.f32 %v331, %v331
        %v396 = vmul.f32 %v332, %v332
        %v397 = vmul.f32 %v333, %v333
        %v398 = vmul.f32 %v334, %v334
        %v399 = vmul.f32 %v335, %v335
        %v400 = vmul.f32 %v336, %v336
        %v401 = vmul.f32 %v337, %v337
        %v402 = vmul.f32 %v338, %v338
        %v403 = vmul.f32 %v339, %v339
        %v404 = vmul.f32 %v340, %v340
        %v405 = vmul.f32 %v341, %v341
        %v406 = vmul.f32 %v342, %v342
        %v407 = vmul.f32 %v343, %v343
        %v408 = vmul.f32 %v344, %v344
        %v409 = vmul.f32 %v345, %v345
        %v410 = vmul.f32 %v346, %v346
        %v411 = vmul.f32 %v347, %v347
        %v412 = vmul.f32 %v348, %v348
        %v413 = vmul.f32 %v349, %v349
        %v414 = vmul.f32 %v350, %v350
        %v415 = vmul.f32 %v351, %v351
        %v416 = vmul.f32 %v352, %v352
        %v417 = vmul.f32 %v353, %v353
        %v418 = vmul.f32 %v354, %v354
        %v419 = vmul.f32 %v355, %v355
        %v420 = vmul.f32 %v356, %v356
        %v421 = vmul.f32 %v357, %v357
        %v422 = vmul.f32 %v358, %v358
        %v423 = vmul.f32 %v359, %v359
        %v424 = vmul.f32 %v360, %v360
        %v425 = vmul.f32 %v361, %v361
        %v426 = vmul.f32 %v362, %v362
        %v427 = vmul.f32 %v363, %v363
        %v428 = vmul.f32 %v364, %v364
        %v429 = vmul.f32 %v365, %v365
        %v430 = vmul.f32 %v366, %v366
        %v431 = vmul.f32 %v367, %v367
        %v432 = vmul.f32 %v368, %v368
        %v433 = vmul.f32 %v369, %v369
        %v434 = vmul.f32 %v370, %v370
        %v435 = vmul.f32 %v371, %v371
        %v436 = vmul.f32 %v372, %v372
        %v437 = vmul.f32 %v373, %v373
        %v438 = vmul.f32 %v374, %v374
        %v439 = vmul.f32 %v375, %v375
        %v440 = vmul.f32 %v376, %v376
        %v441 = vmul.f32 %v377, %v377
        %v442 = vmul.f32 %v378, %v378
        %v443 = vmul.f32 %v379, %v379
        %v444 = vmul.f32 %v380, %v380
        %v445 = vmul.f32 %v381, %v381
        %v446 = vmul.f32 %v382, %v382
        %vm447 = vcmask 261120
        %v448 = vsel %vm447, %v383, 0.0
        %449 = vadd.xlane.f32.xlu0 %v448
        %v450 = vpop.xlane.xlu0 %449
        %v451 = vsel %vm447, %v384, 0.0
        %452 = vadd.xlane.f32.xlu0 %v451
        %v453 = vpop.xlane.xlu0 %452
        %v454 = vsel %vm447, %v385, 0.0
        %455 = vadd.xlane.f32.xlu0 %v454
        %v456 = vpop.xlane.xlu0 %455
        %v457 = vsel %vm447, %v386, 0.0
        %458 = vadd.xlane.f32.xlu0 %v457
        %v459 = vpop.xlane.xlu0 %458
        %v460 = vsel %vm447, %v387, 0.0
        %461 = vadd.xlane.f32.xlu0 %v460
        %v462 = vpop.xlane.xlu0 %461
        %v463 = vsel %vm447, %v388, 0.0
        %464 = vadd.xlane.f32.xlu0 %v463
        %v465 = vpop.xlane.xlu0 %464
        %v466 = vsel %vm447, %v389, 0.0
        %467 = vadd.xlane.f32.xlu0 %v466
        %v468 = vpop.xlane.xlu0 %467
        %v469 = vsel %vm447, %v390, 0.0
        %470 = vadd.xlane.f32.xlu0 %v469
        %v471 = vpop.xlane.xlu0 %470
        %v472 = vsel %vm447, %v391, 0.0
        %473 = vadd.xlane.f32.xlu0 %v472
        %v474 = vpop.xlane.xlu0 %473
        %v475 = vsel %vm447, %v392, 0.0
        %476 = vadd.xlane.f32.xlu0 %v475
        %v477 = vpop.xlane.xlu0 %476
        %v478 = vsel %vm447, %v393, 0.0
        %479 = vadd.xlane.f32.xlu0 %v478
        %v480 = vpop.xlane.xlu0 %479
        %v481 = vsel %vm447, %v394, 0.0
        %482 = vadd.xlane.f32.xlu0 %v481
        %v483 = vpop.xlane.xlu0 %482
        %v484 = vsel %vm447, %v395, 0.0
        %485 = vadd.xlane.f32.xlu0 %v484
        %v486 = vpop.xlane.xlu0 %485
        %v487 = vsel %vm447, %v396, 0.0
        %488 = vadd.xlane.f32.xlu0 %v487
        %v489 = vpop.xlane.xlu0 %488
        %v490 = vsel %vm447, %v397, 0.0
        %491 = vadd.xlane.f32.xlu0 %v490
        %v492 = vpop.xlane.xlu0 %491
        %v493 = vsel %vm447, %v398, 0.0
        %494 = vadd.xlane.f32.xlu0 %v493
        %v495 = vpop.xlane.xlu0 %494
        %v496 = vsel %vm447, %v399, 0.0
        %497 = vadd.xlane.f32.xlu0 %v496
        %v498 = vpop.xlane.xlu0 %497
        %v499 = vsel %vm447, %v400, 0.0
        %500 = vadd.xlane.f32.xlu0 %v499
        %v501 = vpop.xlane.xlu0 %500
        %v502 = vsel %vm447, %v401, 0.0
        %503 = vadd.xlane.f32.xlu0 %v502
        %v504 = vpop.xlane.xlu0 %503
        %v505 = vsel %vm447, %v402, 0.0
        %506 = vadd.xlane.f32.xlu0 %v505
        %v507 = vpop.xlane.xlu0 %506
        %v508 = vsel %vm447, %v403, 0.0
        %509 = vadd.xlane.f32.xlu0 %v508
        %v510 = vpop.xlane.xlu0 %509
        %v511 = vsel %vm447, %v404, 0.0
        %512 = vadd.xlane.f32.xlu0 %v511
        %v513 = vpop.xlane.xlu0 %512
        %v514 = vsel %vm447, %v405, 0.0
        %515 = vadd.xlane.f32.xlu0 %v514
        %v516 = vpop.xlane.xlu0 %515
        %v517 = vsel %vm447, %v406, 0.0
        %518 = vadd.xlane.f32.xlu0 %v517
        %v519 = vpop.xlane.xlu0 %518
        %v520 = vsel %vm447, %v407, 0.0
        %521 = vadd.xlane.f32.xlu0 %v520
        %v522 = vpop.xlane.xlu0 %521
        %v523 = vsel %vm447, %v408, 0.0
        %524 = vadd.xlane.f32.xlu0 %v523
        %v525 = vpop.xlane.xlu0 %524
        %v526 = vsel %vm447, %v409, 0.0
        %527 = vadd.xlane.f32.xlu0 %v526
        %v528 = vpop.xlane.xlu0 %527
        %v529 = vsel %vm447, %v410, 0.0
        %530 = vadd.xlane.f32.xlu0 %v529
        %v531 = vpop.xlane.xlu0 %530
        %v532 = vsel %vm447, %v411, 0.0
        %533 = vadd.xlane.f32.xlu0 %v532
        %v534 = vpop.xlane.xlu0 %533
        %v535 = vsel %vm447, %v412, 0.0
        %536 = vadd.xlane.f32.xlu0 %v535
        %v537 = vpop.xlane.xlu0 %536
        %v538 = vsel %vm447, %v413, 0.0
        %539 = vadd.xlane.f32.xlu0 %v538
        %v540 = vpop.xlane.xlu0 %539
        %v541 = vsel %vm447, %v414, 0.0
        %542 = vadd.xlane.f32.xlu0 %v541
        %v543 = vpop.xlane.xlu0 %542
        %v544 = vsel %vm447, %v415, 0.0
        %545 = vadd.xlane.f32.xlu0 %v544
        %v546 = vpop.xlane.xlu0 %545
        %v547 = vsel %vm447, %v416, 0.0
        %548 = vadd.xlane.f32.xlu0 %v547
        %v549 = vpop.xlane.xlu0 %548
        %v550 = vsel %vm447, %v417, 0.0
        %551 = vadd.xlane.f32.xlu0 %v550
        %v552 = vpop.xlane.xlu0 %551
        %v553 = vsel %vm447, %v418, 0.0
        %554 = vadd.xlane.f32.xlu0 %v553
        %v555 = vpop.xlane.xlu0 %554
        %v556 = vsel %vm447, %v419, 0.0
        %557 = vadd.xlane.f32.xlu0 %v556
        %v558 = vpop.xlane.xlu0 %557
        %v559 = vsel %vm447, %v420, 0.0
        %560 = vadd.xlane.f32.xlu0 %v559
        %v561 = vpop.xlane.xlu0 %560
        %v562 = vsel %vm447, %v421, 0.0
        %563 = vadd.xlane.f32.xlu0 %v562
        %v564 = vpop.xlane.xlu0 %563
        %v565 = vsel %vm447, %v422, 0.0
        %566 = vadd.xlane.f32.xlu0 %v565
        %v567 = vpop.xlane.xlu0 %566
        %v568 = vsel %vm447, %v423, 0.0
        %569 = vadd.xlane.f32.xlu0 %v568
        %v570 = vpop.xlane.xlu0 %569
        %v571 = vsel %vm447, %v424, 0.0
        %572 = vadd.xlane.f32.xlu0 %v571
        %v573 = vpop.xlane.xlu0 %572
        %v574 = vsel %vm447, %v425, 0.0
        %575 = vadd.xlane.f32.xlu0 %v574
        %v576 = vpop.xlane.xlu0 %575
        %v577 = vsel %vm447, %v426, 0.0
        %578 = vadd.xlane.f32.xlu0 %v577
        %v579 = vpop.xlane.xlu0 %578
        %v580 = vsel %vm447, %v427, 0.0
        %581 = vadd.xlane.f32.xlu0 %v580
        %v582 = vpop.xlane.xlu0 %581
        %v583 = vsel %vm447, %v428, 0.0
        %584 = vadd.xlane.f32.xlu0 %v583
        %v585 = vpop.xlane.xlu0 %584
        %v586 = vsel %vm447, %v429, 0.0
        %587 = vadd.xlane.f32.xlu0 %v586
        %v588 = vpop.xlane.xlu0 %587
        %v589 = vsel %vm447, %v430, 0.0
        %590 = vadd.xlane.f32.xlu0 %v589
        %v591 = vpop.xlane.xlu0 %590
        %v592 = vsel %vm447, %v431, 0.0
        %593 = vadd.xlane.f32.xlu0 %v592
        %v594 = vpop.xlane.xlu0 %593
        %v595 = vsel %vm447, %v432, 0.0
        %596 = vadd.xlane.f32.xlu0 %v595
        %v597 = vpop.xlane.xlu0 %596
        %v598 = vsel %vm447, %v433, 0.0
        %599 = vadd.xlane.f32.xlu0 %v598
        %v600 = vpop.xlane.xlu0 %599
        %v601 = vsel %vm447, %v434, 0.0
        %602 = vadd.xlane.f32.xlu0 %v601
        %v603 = vpop.xlane.xlu0 %602
        %v604 = vsel %vm447, %v435, 0.0
        %605 = vadd.xlane.f32.xlu0 %v604
        %v606 = vpop.xlane.xlu0 %605
        %v607 = vsel %vm447, %v436, 0.0
        %608 = vadd.xlane.f32.xlu0 %v607
        %v609 = vpop.xlane.xlu0 %608
        %v610 = vsel %vm447, %v437, 0.0
        %611 = vadd.xlane.f32.xlu0 %v610
        %v612 = vpop.xlane.xlu0 %611
        %v613 = vsel %vm447, %v438, 0.0
        %614 = vadd.xlane.f32.xlu0 %v613
        %v615 = vpop.xlane.xlu0 %614
        %v616 = vsel %vm447, %v439, 0.0
        %617 = vadd.xlane.f32.xlu0 %v616
        %v618 = vpop.xlane.xlu0 %617
        %v619 = vsel %vm447, %v440, 0.0
        %620 = vadd.xlane.f32.xlu0 %v619
        %v621 = vpop.xlane.xlu0 %620
        %v622 = vsel %vm447, %v441, 0.0
        %623 = vadd.xlane.f32.xlu0 %v622
        %v624 = vpop.xlane.xlu0 %623
        %v625 = vsel %vm447, %v442, 0.0
        %626 = vadd.xlane.f32.xlu0 %v625
        %v627 = vpop.xlane.xlu0 %626
        %v628 = vsel %vm447, %v443, 0.0
        %629 = vadd.xlane.f32.xlu0 %v628
        %v630 = vpop.xlane.xlu0 %629
        %v631 = vsel %vm447, %v444, 0.0
        %632 = vadd.xlane.f32.xlu0 %v631
        %v633 = vpop.xlane.xlu0 %632
        %v634 = vsel %vm447, %v445, 0.0
        %635 = vadd.xlane.f32.xlu0 %v634
        %v636 = vpop.xlane.xlu0 %635
        %v637 = vsel %vm447, %v446, 0.0
        %638 = vadd.xlane.f32.xlu0 %v637
        %v639 = vpop.xlane.xlu0 %638
        %v640 = vmax.f32 %v450, 1e-24
        %v641 = vmax.f32 %v453, 1e-24
        %v642 = vmax.f32 %v456, 1e-24
        %v643 = vmax.f32 %v459, 1e-24
        %v644 = vmax.f32 %v462, 1e-24
        %v645 = vmax.f32 %v465, 1e-24
        %v646 = vmax.f32 %v468, 1e-24
        %v647 = vmax.f32 %v471, 1e-24
        %v648 = vmax.f32 %v474, 1e-24
        %v649 = vmax.f32 %v477, 1e-24
        %v650 = vmax.f32 %v480, 1e-24
        %v651 = vmax.f32 %v483, 1e-24
        %v652 = vmax.f32 %v486, 1e-24
        %v653 = vmax.f32 %v489, 1e-24
        %v654 = vmax.f32 %v492, 1e-24
        %v655 = vmax.f32 %v495, 1e-24
        %v656 = vmax.f32 %v498, 1e-24
        %v657 = vmax.f32 %v501, 1e-24
        %v658 = vmax.f32 %v504, 1e-24
        %v659 = vmax.f32 %v507, 1e-24
        %v660 = vmax.f32 %v510, 1e-24
        %v661 = vmax.f32 %v513, 1e-24
        %v662 = vmax.f32 %v516, 1e-24
        %v663 = vmax.f32 %v519, 1e-24
        %v664 = vmax.f32 %v522, 1e-24
        %v665 = vmax.f32 %v525, 1e-24
        %v666 = vmax.f32 %v528, 1e-24
        %v667 = vmax.f32 %v531, 1e-24
        %v668 = vmax.f32 %v534, 1e-24
        %v669 = vmax.f32 %v537, 1e-24
        %v670 = vmax.f32 %v540, 1e-24
        %v671 = vmax.f32 %v543, 1e-24
        %v672 = vmax.f32 %v546, 1e-24
        %v673 = vmax.f32 %v549, 1e-24
        %v674 = vmax.f32 %v552, 1e-24
        %v675 = vmax.f32 %v555, 1e-24
        %v676 = vmax.f32 %v558, 1e-24
        %v677 = vmax.f32 %v561, 1e-24
        %v678 = vmax.f32 %v564, 1e-24
        %v679 = vmax.f32 %v567, 1e-24
        %v680 = vmax.f32 %v570, 1e-24
        %v681 = vmax.f32 %v573, 1e-24
        %v682 = vmax.f32 %v576, 1e-24
        %v683 = vmax.f32 %v579, 1e-24
        %v684 = vmax.f32 %v582, 1e-24
        %v685 = vmax.f32 %v585, 1e-24
        %v686 = vmax.f32 %v588, 1e-24
        %v687 = vmax.f32 %v591, 1e-24
        %v688 = vmax.f32 %v594, 1e-24
        %v689 = vmax.f32 %v597, 1e-24
        %v690 = vmax.f32 %v600, 1e-24
        %v691 = vmax.f32 %v603, 1e-24
        %v692 = vmax.f32 %v606, 1e-24
        %v693 = vmax.f32 %v609, 1e-24
        %v694 = vmax.f32 %v612, 1e-24
        %v695 = vmax.f32 %v615, 1e-24
        %v696 = vmax.f32 %v618, 1e-24
        %v697 = vmax.f32 %v621, 1e-24
        %v698 = vmax.f32 %v624, 1e-24
        %v699 = vmax.f32 %v627, 1e-24
        %v700 = vmax.f32 %v630, 1e-24
        %v701 = vmax.f32 %v633, 1e-24
        %v702 = vmax.f32 %v636, 1e-24
        %v703 = vmax.f32 %v639, 1e-24
        %v704 = vrsqrt.pop %v640
        %v705 = vmul.f32 %v704, %v640
        %v706 = vmul.f32 %v705, %v704
        %v707 = vmul.f32 0.5, %v706
        %v708 = vsub.f32 1.5, %v707
        %v709 = vmul.f32 %v704, %v708
        %vm710 = vweird.f32 %v640
        %vm711 = vweird.f32 %v704
        %vm712 = vmor %vm710, %vm711
        %v713 = vsel %vm712, %v704, %v709
        %v714 = vrsqrt.pop %v641
        %v715 = vmul.f32 %v714, %v641
        %v716 = vmul.f32 %v715, %v714
        %v717 = vmul.f32 0.5, %v716
        %v718 = vsub.f32 1.5, %v717
        %v719 = vmul.f32 %v714, %v718
        %vm720 = vweird.f32 %v641
        %vm721 = vweird.f32 %v714
        %vm722 = vmor %vm720, %vm721
        %v723 = vsel %vm722, %v714, %v719
        %v724 = vrsqrt.pop %v642
        %v725 = vmul.f32 %v724, %v642
        %v726 = vmul.f32 %v725, %v724
        %v727 = vmul.f32 0.5, %v726
        %v728 = vsub.f32 1.5, %v727
        %v729 = vmul.f32 %v724, %v728
        %vm730 = vweird.f32 %v642
        %vm731 = vweird.f32 %v724
        %vm732 = vmor %vm730, %vm731
        %v733 = vsel %vm732, %v724, %v729
        %v734 = vrsqrt.pop %v643
        %v735 = vmul.f32 %v734, %v643
        %v736 = vmul.f32 %v735, %v734
        %v737 = vmul.f32 0.5, %v736
        %v738 = vsub.f32 1.5, %v737
        %v739 = vmul.f32 %v734, %v738
        %vm740 = vweird.f32 %v643
        %vm741 = vweird.f32 %v734
        %vm742 = vmor %vm740, %vm741
        %v743 = vsel %vm742, %v734, %v739
        %v744 = vrsqrt.pop %v644
        %v745 = vmul.f32 %v744, %v644
        %v746 = vmul.f32 %v745, %v744
        %v747 = vmul.f32 0.5, %v746
        %v748 = vsub.f32 1.5, %v747
        %v749 = vmul.f32 %v744, %v748
        %vm750 = vweird.f32 %v644
        %vm751 = vweird.f32 %v744
        %vm752 = vmor %vm750, %vm751
        %v753 = vsel %vm752, %v744, %v749
        %v754 = vrsqrt.pop %v645
        %v755 = vmul.f32 %v754, %v645
        %v756 = vmul.f32 %v755, %v754
        %v757 = vmul.f32 0.5, %v756
        %v758 = vsub.f32 1.5, %v757
        %v759 = vmul.f32 %v754, %v758
        %vm760 = vweird.f32 %v645
        %vm761 = vweird.f32 %v754
        %vm762 = vmor %vm760, %vm761
        %v763 = vsel %vm762, %v754, %v759
        %v764 = vrsqrt.pop %v646
        %v765 = vmul.f32 %v764, %v646
        %v766 = vmul.f32 %v765, %v764
        %v767 = vmul.f32 0.5, %v766
        %v768 = vsub.f32 1.5, %v767
        %v769 = vmul.f32 %v764, %v768
        %vm770 = vweird.f32 %v646
        %vm771 = vweird.f32 %v764
        %vm772 = vmor %vm770, %vm771
        %v773 = vsel %vm772, %v764, %v769
        %v774 = vrsqrt.pop %v647
        %v775 = vmul.f32 %v774, %v647
        %v776 = vmul.f32 %v775, %v774
        %v777 = vmul.f32 0.5, %v776
        %v778 = vsub.f32 1.5, %v777
        %v779 = vmul.f32 %v774, %v778
        %vm780 = vweird.f32 %v647
        %vm781 = vweird.f32 %v774
        %vm782 = vmor %vm780, %vm781
        %v783 = vsel %vm782, %v774, %v779
        %v784 = vrsqrt.pop %v648
        %v785 = vmul.f32 %v784, %v648
        %v786 = vmul.f32 %v785, %v784
        %v787 = vmul.f32 0.5, %v786
        %v788 = vsub.f32 1.5, %v787
        %v789 = vmul.f32 %v784, %v788
        %vm790 = vweird.f32 %v648
        %vm791 = vweird.f32 %v784
        %vm792 = vmor %vm790, %vm791
        %v793 = vsel %vm792, %v784, %v789
        %v794 = vrsqrt.pop %v649
        %v795 = vmul.f32 %v794, %v649
        %v796 = vmul.f32 %v795, %v794
        %v797 = vmul.f32 0.5, %v796
        %v798 = vsub.f32 1.5, %v797
        %v799 = vmul.f32 %v794, %v798
        %vm800 = vweird.f32 %v649
        %vm801 = vweird.f32 %v794
        %vm802 = vmor %vm800, %vm801
        %v803 = vsel %vm802, %v794, %v799
        %v804 = vrsqrt.pop %v650
        %v805 = vmul.f32 %v804, %v650
        %v806 = vmul.f32 %v805, %v804
        %v807 = vmul.f32 0.5, %v806
        %v808 = vsub.f32 1.5, %v807
        %v809 = vmul.f32 %v804, %v808
        %vm810 = vweird.f32 %v650
        %vm811 = vweird.f32 %v804
        %vm812 = vmor %vm810, %vm811
        %v813 = vsel %vm812, %v804, %v809
        %v814 = vrsqrt.pop %v651
        %v815 = vmul.f32 %v814, %v651
        %v816 = vmul.f32 %v815, %v814
        %v817 = vmul.f32 0.5, %v816
        %v818 = vsub.f32 1.5, %v817
        %v819 = vmul.f32 %v814, %v818
        %vm820 = vweird.f32 %v651
        %vm821 = vweird.f32 %v814
        %vm822 = vmor %vm820, %vm821
        %v823 = vsel %vm822, %v814, %v819
        %v824 = vrsqrt.pop %v652
        %v825 = vmul.f32 %v824, %v652
        %v826 = vmul.f32 %v825, %v824
        %v827 = vmul.f32 0.5, %v826
        %v828 = vsub.f32 1.5, %v827
        %v829 = vmul.f32 %v824, %v828
        %vm830 = vweird.f32 %v652
        %vm831 = vweird.f32 %v824
        %vm832 = vmor %vm830, %vm831
        %v833 = vsel %vm832, %v824, %v829
        %v834 = vrsqrt.pop %v653
        %v835 = vmul.f32 %v834, %v653
        %v836 = vmul.f32 %v835, %v834
        %v837 = vmul.f32 0.5, %v836
        %v838 = vsub.f32 1.5, %v837
        %v839 = vmul.f32 %v834, %v838
        %vm840 = vweird.f32 %v653
        %vm841 = vweird.f32 %v834
        %vm842 = vmor %vm840, %vm841
        %v843 = vsel %vm842, %v834, %v839
        %v844 = vrsqrt.pop %v654
        %v845 = vmul.f32 %v844, %v654
        %v846 = vmul.f32 %v845, %v844
        %v847 = vmul.f32 0.5, %v846
        %v848 = vsub.f32 1.5, %v847
        %v849 = vmul.f32 %v844, %v848
        %vm850 = vweird.f32 %v654
        %vm851 = vweird.f32 %v844
        %vm852 = vmor %vm850, %vm851
        %v853 = vsel %vm852, %v844, %v849
        %v854 = vrsqrt.pop %v655
        %v855 = vmul.f32 %v854, %v655
        %v856 = vmul.f32 %v855, %v854
        %v857 = vmul.f32 0.5, %v856
        %v858 = vsub.f32 1.5, %v857
        %v859 = vmul.f32 %v854, %v858
        %vm860 = vweird.f32 %v655
        %vm861 = vweird.f32 %v854
        %vm862 = vmor %vm860, %vm861
        %v863 = vsel %vm862, %v854, %v859
        %v864 = vrsqrt.pop %v656
        %v865 = vmul.f32 %v864, %v656
        %v866 = vmul.f32 %v865, %v864
        %v867 = vmul.f32 0.5, %v866
        %v868 = vsub.f32 1.5, %v867
        %v869 = vmul.f32 %v864, %v868
        %vm870 = vweird.f32 %v656
        %vm871 = vweird.f32 %v864
        %vm872 = vmor %vm870, %vm871
        %v873 = vsel %vm872, %v864, %v869
        %v874 = vrsqrt.pop %v657
        %v875 = vmul.f32 %v874, %v657
        %v876 = vmul.f32 %v875, %v874
        %v877 = vmul.f32 0.5, %v876
        %v878 = vsub.f32 1.5, %v877
        %v879 = vmul.f32 %v874, %v878
        %vm880 = vweird.f32 %v657
        %vm881 = vweird.f32 %v874
        %vm882 = vmor %vm880, %vm881
        %v883 = vsel %vm882, %v874, %v879
        %v884 = vrsqrt.pop %v658
        %v885 = vmul.f32 %v884, %v658
        %v886 = vmul.f32 %v885, %v884
        %v887 = vmul.f32 0.5, %v886
        %v888 = vsub.f32 1.5, %v887
        %v889 = vmul.f32 %v884, %v888
        %vm890 = vweird.f32 %v658
        %vm891 = vweird.f32 %v884
        %vm892 = vmor %vm890, %vm891
        %v893 = vsel %vm892, %v884, %v889
        %v894 = vrsqrt.pop %v659
        %v895 = vmul.f32 %v894, %v659
        %v896 = vmul.f32 %v895, %v894
        %v897 = vmul.f32 0.5, %v896
        %v898 = vsub.f32 1.5, %v897
        %v899 = vmul.f32 %v894, %v898
        %vm900 = vweird.f32 %v659
        %vm901 = vweird.f32 %v894
        %vm902 = vmor %vm900, %vm901
        %v903 = vsel %vm902, %v894, %v899
        %v904 = vrsqrt.pop %v660
        %v905 = vmul.f32 %v904, %v660
        %v906 = vmul.f32 %v905, %v904
        %v907 = vmul.f32 0.5, %v906
        %v908 = vsub.f32 1.5, %v907
        %v909 = vmul.f32 %v904, %v908
        %vm910 = vweird.f32 %v660
        %vm911 = vweird.f32 %v904
        %vm912 = vmor %vm910, %vm911
        %v913 = vsel %vm912, %v904, %v909
        %v914 = vrsqrt.pop %v661
        %v915 = vmul.f32 %v914, %v661
        %v916 = vmul.f32 %v915, %v914
        %v917 = vmul.f32 0.5, %v916
        %v918 = vsub.f32 1.5, %v917
        %v919 = vmul.f32 %v914, %v918
        %vm920 = vweird.f32 %v661
        %vm921 = vweird.f32 %v914
        %vm922 = vmor %vm920, %vm921
        %v923 = vsel %vm922, %v914, %v919
        %v924 = vrsqrt.pop %v662
        %v925 = vmul.f32 %v924, %v662
        %v926 = vmul.f32 %v925, %v924
        %v927 = vmul.f32 0.5, %v926
        %v928 = vsub.f32 1.5, %v927
        %v929 = vmul.f32 %v924, %v928
        %vm930 = vweird.f32 %v662
        %vm931 = vweird.f32 %v924
        %vm932 = vmor %vm930, %vm931
        %v933 = vsel %vm932, %v924, %v929
        %v934 = vrsqrt.pop %v663
        %v935 = vmul.f32 %v934, %v663
        %v936 = vmul.f32 %v935, %v934
        %v937 = vmul.f32 0.5, %v936
        %v938 = vsub.f32 1.5, %v937
        %v939 = vmul.f32 %v934, %v938
        %vm940 = vweird.f32 %v663
        %vm941 = vweird.f32 %v934
        %vm942 = vmor %vm940, %vm941
        %v943 = vsel %vm942, %v934, %v939
        %v944 = vrsqrt.pop %v664
        %v945 = vmul.f32 %v944, %v664
        %v946 = vmul.f32 %v945, %v944
        %v947 = vmul.f32 0.5, %v946
        %v948 = vsub.f32 1.5, %v947
        %v949 = vmul.f32 %v944, %v948
        %vm950 = vweird.f32 %v664
        %vm951 = vweird.f32 %v944
        %vm952 = vmor %vm950, %vm951
        %v953 = vsel %vm952, %v944, %v949
        %v954 = vrsqrt.pop %v665
        %v955 = vmul.f32 %v954, %v665
        %v956 = vmul.f32 %v955, %v954
        %v957 = vmul.f32 0.5, %v956
        %v958 = vsub.f32 1.5, %v957
        %v959 = vmul.f32 %v954, %v958
        %vm960 = vweird.f32 %v665
        %vm961 = vweird.f32 %v954
        %vm962 = vmor %vm960, %vm961
        %v963 = vsel %vm962, %v954, %v959
        %v964 = vrsqrt.pop %v666
        %v965 = vmul.f32 %v964, %v666
        %v966 = vmul.f32 %v965, %v964
        %v967 = vmul.f32 0.5, %v966
        %v968 = vsub.f32 1.5, %v967
        %v969 = vmul.f32 %v964, %v968
        %vm970 = vweird.f32 %v666
        %vm971 = vweird.f32 %v964
        %vm972 = vmor %vm970, %vm971
        %v973 = vsel %vm972, %v964, %v969
        %v974 = vrsqrt.pop %v667
        %v975 = vmul.f32 %v974, %v667
        %v976 = vmul.f32 %v975, %v974
        %v977 = vmul.f32 0.5, %v976
        %v978 = vsub.f32 1.5, %v977
        %v979 = vmul.f32 %v974, %v978
        %vm980 = vweird.f32 %v667
        %vm981 = vweird.f32 %v974
        %vm982 = vmor %vm980, %vm981
        %v983 = vsel %vm982, %v974, %v979
        %v984 = vrsqrt.pop %v668
        %v985 = vmul.f32 %v984, %v668
        %v986 = vmul.f32 %v985, %v984
        %v987 = vmul.f32 0.5, %v986
        %v988 = vsub.f32 1.5, %v987
        %v989 = vmul.f32 %v984, %v988
        %vm990 = vweird.f32 %v668
        %vm991 = vweird.f32 %v984
        %vm992 = vmor %vm990, %vm991
        %v993 = vsel %vm992, %v984, %v989
        %v994 = vrsqrt.pop %v669
        %v995 = vmul.f32 %v994, %v669
        %v996 = vmul.f32 %v995, %v994
        %v997 = vmul.f32 0.5, %v996
        %v998 = vsub.f32 1.5, %v997
        %v999 = vmul.f32 %v994, %v998
        %vm1000 = vweird.f32 %v669
        %vm1001 = vweird.f32 %v994
        %vm1002 = vmor %vm1000, %vm1001
        %v1003 = vsel %vm1002, %v994, %v999
        %v1004 = vrsqrt.pop %v670
        %v1005 = vmul.f32 %v1004, %v670
        %v1006 = vmul.f32 %v1005, %v1004
        %v1007 = vmul.f32 0.5, %v1006
        %v1008 = vsub.f32 1.5, %v1007
        %v1009 = vmul.f32 %v1004, %v1008
        %vm1010 = vweird.f32 %v670
        %vm1011 = vweird.f32 %v1004
        %vm1012 = vmor %vm1010, %vm1011
        %v1013 = vsel %vm1012, %v1004, %v1009
        %v1014 = vrsqrt.pop %v671
        %v1015 = vmul.f32 %v1014, %v671
        %v1016 = vmul.f32 %v1015, %v1014
        %v1017 = vmul.f32 0.5, %v1016
        %v1018 = vsub.f32 1.5, %v1017
        %v1019 = vmul.f32 %v1014, %v1018
        %vm1020 = vweird.f32 %v671
        %vm1021 = vweird.f32 %v1014
        %vm1022 = vmor %vm1020, %vm1021
        %v1023 = vsel %vm1022, %v1014, %v1019
        %v1024 = vrsqrt.pop %v672
        %v1025 = vmul.f32 %v1024, %v672
        %v1026 = vmul.f32 %v1025, %v1024
        %v1027 = vmul.f32 0.5, %v1026
        %v1028 = vsub.f32 1.5, %v1027
        %v1029 = vmul.f32 %v1024, %v1028
        %vm1030 = vweird.f32 %v672
        %vm1031 = vweird.f32 %v1024
        %vm1032 = vmor %vm1030, %vm1031
        %v1033 = vsel %vm1032, %v1024, %v1029
        %v1034 = vrsqrt.pop %v673
        %v1035 = vmul.f32 %v1034, %v673
        %v1036 = vmul.f32 %v1035, %v1034
        %v1037 = vmul.f32 0.5, %v1036
        %v1038 = vsub.f32 1.5, %v1037
        %v1039 = vmul.f32 %v1034, %v1038
        %vm1040 = vweird.f32 %v673
        %vm1041 = vweird.f32 %v1034
        %vm1042 = vmor %vm1040, %vm1041
        %v1043 = vsel %vm1042, %v1034, %v1039
        %v1044 = vrsqrt.pop %v674
        %v1045 = vmul.f32 %v1044, %v674
        %v1046 = vmul.f32 %v1045, %v1044
        %v1047 = vmul.f32 0.5, %v1046
        %v1048 = vsub.f32 1.5, %v1047
        %v1049 = vmul.f32 %v1044, %v1048
        %vm1050 = vweird.f32 %v674
        %vm1051 = vweird.f32 %v1044
        %vm1052 = vmor %vm1050, %vm1051
        %v1053 = vsel %vm1052, %v1044, %v1049
        %v1054 = vrsqrt.pop %v675
        %v1055 = vmul.f32 %v1054, %v675
        %v1056 = vmul.f32 %v1055, %v1054
        %v1057 = vmul.f32 0.5, %v1056
        %v1058 = vsub.f32 1.5, %v1057
        %v1059 = vmul.f32 %v1054, %v1058
        %vm1060 = vweird.f32 %v675
        %vm1061 = vweird.f32 %v1054
        %vm1062 = vmor %vm1060, %vm1061
        %v1063 = vsel %vm1062, %v1054, %v1059
        %v1064 = vrsqrt.pop %v676
        %v1065 = vmul.f32 %v1064, %v676
        %v1066 = vmul.f32 %v1065, %v1064
        %v1067 = vmul.f32 0.5, %v1066
        %v1068 = vsub.f32 1.5, %v1067
        %v1069 = vmul.f32 %v1064, %v1068
        %vm1070 = vweird.f32 %v676
        %vm1071 = vweird.f32 %v1064
        %vm1072 = vmor %vm1070, %vm1071
        %v1073 = vsel %vm1072, %v1064, %v1069
        %v1074 = vrsqrt.pop %v677
        %v1075 = vmul.f32 %v1074, %v677
        %v1076 = vmul.f32 %v1075, %v1074
        %v1077 = vmul.f32 0.5, %v1076
        %v1078 = vsub.f32 1.5, %v1077
        %v1079 = vmul.f32 %v1074, %v1078
        %vm1080 = vweird.f32 %v677
        %vm1081 = vweird.f32 %v1074
        %vm1082 = vmor %vm1080, %vm1081
        %v1083 = vsel %vm1082, %v1074, %v1079
        %v1084 = vrsqrt.pop %v678
        %v1085 = vmul.f32 %v1084, %v678
        %v1086 = vmul.f32 %v1085, %v1084
        %v1087 = vmul.f32 0.5, %v1086
        %v1088 = vsub.f32 1.5, %v1087
        %v1089 = vmul.f32 %v1084, %v1088
        %vm1090 = vweird.f32 %v678
        %vm1091 = vweird.f32 %v1084
        %vm1092 = vmor %vm1090, %vm1091
        %v1093 = vsel %vm1092, %v1084, %v1089
        %v1094 = vrsqrt.pop %v679
        %v1095 = vmul.f32 %v1094, %v679
        %v1096 = vmul.f32 %v1095, %v1094
        %v1097 = vmul.f32 0.5, %v1096
        %v1098 = vsub.f32 1.5, %v1097
        %v1099 = vmul.f32 %v1094, %v1098
        %vm1100 = vweird.f32 %v679
        %vm1101 = vweird.f32 %v1094
        %vm1102 = vmor %vm1100, %vm1101
        %v1103 = vsel %vm1102, %v1094, %v1099
        %v1104 = vrsqrt.pop %v680
        %v1105 = vmul.f32 %v1104, %v680
        %v1106 = vmul.f32 %v1105, %v1104
        %v1107 = vmul.f32 0.5, %v1106
        %v1108 = vsub.f32 1.5, %v1107
        %v1109 = vmul.f32 %v1104, %v1108
        %vm1110 = vweird.f32 %v680
        %vm1111 = vweird.f32 %v1104
        %vm1112 = vmor %vm1110, %vm1111
        %v1113 = vsel %vm1112, %v1104, %v1109
        %v1114 = vrsqrt.pop %v681
        %v1115 = vmul.f32 %v1114, %v681
        %v1116 = vmul.f32 %v1115, %v1114
        %v1117 = vmul.f32 0.5, %v1116
        %v1118 = vsub.f32 1.5, %v1117
        %v1119 = vmul.f32 %v1114, %v1118
        %vm1120 = vweird.f32 %v681
        %vm1121 = vweird.f32 %v1114
        %vm1122 = vmor %vm1120, %vm1121
        %v1123 = vsel %vm1122, %v1114, %v1119
        %v1124 = vrsqrt.pop %v682
        %v1125 = vmul.f32 %v1124, %v682
        %v1126 = vmul.f32 %v1125, %v1124
        %v1127 = vmul.f32 0.5, %v1126
        %v1128 = vsub.f32 1.5, %v1127
        %v1129 = vmul.f32 %v1124, %v1128
        %vm1130 = vweird.f32 %v682
        %vm1131 = vweird.f32 %v1124
        %vm1132 = vmor %vm1130, %vm1131
        %v1133 = vsel %vm1132, %v1124, %v1129
        %v1134 = vrsqrt.pop %v683
        %v1135 = vmul.f32 %v1134, %v683
        %v1136 = vmul.f32 %v1135, %v1134
        %v1137 = vmul.f32 0.5, %v1136
        %v1138 = vsub.f32 1.5, %v1137
        %v1139 = vmul.f32 %v1134, %v1138
        %vm1140 = vweird.f32 %v683
        %vm1141 = vweird.f32 %v1134
        %vm1142 = vmor %vm1140, %vm1141
        %v1143 = vsel %vm1142, %v1134, %v1139
        %v1144 = vrsqrt.pop %v684
        %v1145 = vmul.f32 %v1144, %v684
        %v1146 = vmul.f32 %v1145, %v1144
        %v1147 = vmul.f32 0.5, %v1146
        %v1148 = vsub.f32 1.5, %v1147
        %v1149 = vmul.f32 %v1144, %v1148
        %vm1150 = vweird.f32 %v684
        %vm1151 = vweird.f32 %v1144
        %vm1152 = vmor %vm1150, %vm1151
        %v1153 = vsel %vm1152, %v1144, %v1149
        %v1154 = vrsqrt.pop %v685
        %v1155 = vmul.f32 %v1154, %v685
        %v1156 = vmul.f32 %v1155, %v1154
        %v1157 = vmul.f32 0.5, %v1156
        %v1158 = vsub.f32 1.5, %v1157
        %v1159 = vmul.f32 %v1154, %v1158
        %vm1160 = vweird.f32 %v685
        %vm1161 = vweird.f32 %v1154
        %vm1162 = vmor %vm1160, %vm1161
        %v1163 = vsel %vm1162, %v1154, %v1159
        %v1164 = vrsqrt.pop %v686
        %v1165 = vmul.f32 %v1164, %v686
        %v1166 = vmul.f32 %v1165, %v1164
        %v1167 = vmul.f32 0.5, %v1166
        %v1168 = vsub.f32 1.5, %v1167
        %v1169 = vmul.f32 %v1164, %v1168
        %vm1170 = vweird.f32 %v686
        %vm1171 = vweird.f32 %v1164
        %vm1172 = vmor %vm1170, %vm1171
        %v1173 = vsel %vm1172, %v1164, %v1169
        %v1174 = vrsqrt.pop %v687
        %v1175 = vmul.f32 %v1174, %v687
        %v1176 = vmul.f32 %v1175, %v1174
        %v1177 = vmul.f32 0.5, %v1176
        %v1178 = vsub.f32 1.5, %v1177
        %v1179 = vmul.f32 %v1174, %v1178
        %vm1180 = vweird.f32 %v687
        %vm1181 = vweird.f32 %v1174
        %vm1182 = vmor %vm1180, %vm1181
        %v1183 = vsel %vm1182, %v1174, %v1179
        %v1184 = vrsqrt.pop %v688
        %v1185 = vmul.f32 %v1184, %v688
        %v1186 = vmul.f32 %v1185, %v1184
        %v1187 = vmul.f32 0.5, %v1186
        %v1188 = vsub.f32 1.5, %v1187
        %v1189 = vmul.f32 %v1184, %v1188
        %vm1190 = vweird.f32 %v688
        %vm1191 = vweird.f32 %v1184
        %vm1192 = vmor %vm1190, %vm1191
        %v1193 = vsel %vm1192, %v1184, %v1189
        %v1194 = vrsqrt.pop %v689
        %v1195 = vmul.f32 %v1194, %v689
        %v1196 = vmul.f32 %v1195, %v1194
        %v1197 = vmul.f32 0.5, %v1196
        %v1198 = vsub.f32 1.5, %v1197
        %v1199 = vmul.f32 %v1194, %v1198
        %vm1200 = vweird.f32 %v689
        %vm1201 = vweird.f32 %v1194
        %vm1202 = vmor %vm1200, %vm1201
        %v1203 = vsel %vm1202, %v1194, %v1199
        %v1204 = vrsqrt.pop %v690
        %v1205 = vmul.f32 %v1204, %v690
        %v1206 = vmul.f32 %v1205, %v1204
        %v1207 = vmul.f32 0.5, %v1206
        %v1208 = vsub.f32 1.5, %v1207
        %v1209 = vmul.f32 %v1204, %v1208
        %vm1210 = vweird.f32 %v690
        %vm1211 = vweird.f32 %v1204
        %vm1212 = vmor %vm1210, %vm1211
        %v1213 = vsel %vm1212, %v1204, %v1209
        %v1214 = vrsqrt.pop %v691
        %v1215 = vmul.f32 %v1214, %v691
        %v1216 = vmul.f32 %v1215, %v1214
        %v1217 = vmul.f32 0.5, %v1216
        %v1218 = vsub.f32 1.5, %v1217
        %v1219 = vmul.f32 %v1214, %v1218
        %vm1220 = vweird.f32 %v691
        %vm1221 = vweird.f32 %v1214
        %vm1222 = vmor %vm1220, %vm1221
        %v1223 = vsel %vm1222, %v1214, %v1219
        %v1224 = vrsqrt.pop %v692
        %v1225 = vmul.f32 %v1224, %v692
        %v1226 = vmul.f32 %v1225, %v1224
        %v1227 = vmul.f32 0.5, %v1226
        %v1228 = vsub.f32 1.5, %v1227
        %v1229 = vmul.f32 %v1224, %v1228
        %vm1230 = vweird.f32 %v692
        %vm1231 = vweird.f32 %v1224
        %vm1232 = vmor %vm1230, %vm1231
        %v1233 = vsel %vm1232, %v1224, %v1229
        %v1234 = vrsqrt.pop %v693
        %v1235 = vmul.f32 %v1234, %v693
        %v1236 = vmul.f32 %v1235, %v1234
        %v1237 = vmul.f32 0.5, %v1236
        %v1238 = vsub.f32 1.5, %v1237
        %v1239 = vmul.f32 %v1234, %v1238
        %vm1240 = vweird.f32 %v693
        %vm1241 = vweird.f32 %v1234
        %vm1242 = vmor %vm1240, %vm1241
        %v1243 = vsel %vm1242, %v1234, %v1239
        %v1244 = vrsqrt.pop %v694
        %v1245 = vmul.f32 %v1244, %v694
        %v1246 = vmul.f32 %v1245, %v1244
        %v1247 = vmul.f32 0.5, %v1246
        %v1248 = vsub.f32 1.5, %v1247
        %v1249 = vmul.f32 %v1244, %v1248
        %vm1250 = vweird.f32 %v694
        %vm1251 = vweird.f32 %v1244
        %vm1252 = vmor %vm1250, %vm1251
        %v1253 = vsel %vm1252, %v1244, %v1249
        %v1254 = vrsqrt.pop %v695
        %v1255 = vmul.f32 %v1254, %v695
        %v1256 = vmul.f32 %v1255, %v1254
        %v1257 = vmul.f32 0.5, %v1256
        %v1258 = vsub.f32 1.5, %v1257
        %v1259 = vmul.f32 %v1254, %v1258
        %vm1260 = vweird.f32 %v695
        %vm1261 = vweird.f32 %v1254
        %vm1262 = vmor %vm1260, %vm1261
        %v1263 = vsel %vm1262, %v1254, %v1259
        %v1264 = vrsqrt.pop %v696
        %v1265 = vmul.f32 %v1264, %v696
        %v1266 = vmul.f32 %v1265, %v1264
        %v1267 = vmul.f32 0.5, %v1266
        %v1268 = vsub.f32 1.5, %v1267
        %v1269 = vmul.f32 %v1264, %v1268
        %vm1270 = vweird.f32 %v696
        %vm1271 = vweird.f32 %v1264
        %vm1272 = vmor %vm1270, %vm1271
        %v1273 = vsel %vm1272, %v1264, %v1269
        %v1274 = vrsqrt.pop %v697
        %v1275 = vmul.f32 %v1274, %v697
        %v1276 = vmul.f32 %v1275, %v1274
        %v1277 = vmul.f32 0.5, %v1276
        %v1278 = vsub.f32 1.5, %v1277
        %v1279 = vmul.f32 %v1274, %v1278
        %vm1280 = vweird.f32 %v697
        %vm1281 = vweird.f32 %v1274
        %vm1282 = vmor %vm1280, %vm1281
        %v1283 = vsel %vm1282, %v1274, %v1279
        %v1284 = vrsqrt.pop %v698
        %v1285 = vmul.f32 %v1284, %v698
        %v1286 = vmul.f32 %v1285, %v1284
        %v1287 = vmul.f32 0.5, %v1286
        %v1288 = vsub.f32 1.5, %v1287
        %v1289 = vmul.f32 %v1284, %v1288
        %vm1290 = vweird.f32 %v698
        %vm1291 = vweird.f32 %v1284
        %vm1292 = vmor %vm1290, %vm1291
        %v1293 = vsel %vm1292, %v1284, %v1289
        %v1294 = vrsqrt.pop %v699
        %v1295 = vmul.f32 %v1294, %v699
        %v1296 = vmul.f32 %v1295, %v1294
        %v1297 = vmul.f32 0.5, %v1296
        %v1298 = vsub.f32 1.5, %v1297
        %v1299 = vmul.f32 %v1294, %v1298
        %vm1300 = vweird.f32 %v699
        %vm1301 = vweird.f32 %v1294
        %vm1302 = vmor %vm1300, %vm1301
        %v1303 = vsel %vm1302, %v1294, %v1299
        %v1304 = vrsqrt.pop %v700
        %v1305 = vmul.f32 %v1304, %v700
        %v1306 = vmul.f32 %v1305, %v1304
        %v1307 = vmul.f32 0.5, %v1306
        %v1308 = vsub.f32 1.5, %v1307
        %v1309 = vmul.f32 %v1304, %v1308
        %vm1310 = vweird.f32 %v700
        %vm1311 = vweird.f32 %v1304
        %vm1312 = vmor %vm1310, %vm1311
        %v1313 = vsel %vm1312, %v1304, %v1309
        %v1314 = vrsqrt.pop %v701
        %v1315 = vmul.f32 %v1314, %v701
        %v1316 = vmul.f32 %v1315, %v1314
        %v1317 = vmul.f32 0.5, %v1316
        %v1318 = vsub.f32 1.5, %v1317
        %v1319 = vmul.f32 %v1314, %v1318
        %vm1320 = vweird.f32 %v701
        %vm1321 = vweird.f32 %v1314
        %vm1322 = vmor %vm1320, %vm1321
        %v1323 = vsel %vm1322, %v1314, %v1319
        %v1324 = vrsqrt.pop %v702
        %v1325 = vmul.f32 %v1324, %v702
        %v1326 = vmul.f32 %v1325, %v1324
        %v1327 = vmul.f32 0.5, %v1326
        %v1328 = vsub.f32 1.5, %v1327
        %v1329 = vmul.f32 %v1324, %v1328
        %vm1330 = vweird.f32 %v702
        %vm1331 = vweird.f32 %v1324
        %vm1332 = vmor %vm1330, %vm1331
        %v1333 = vsel %vm1332, %v1324, %v1329
        %v1334 = vrsqrt.pop %v703
        %v1335 = vmul.f32 %v1334, %v703
        %v1336 = vmul.f32 %v1335, %v1334
        %v1337 = vmul.f32 0.5, %v1336
        %v1338 = vsub.f32 1.5, %v1337
        %v1339 = vmul.f32 %v1334, %v1338
        %vm1340 = vweird.f32 %v703
        %vm1341 = vweird.f32 %v1334
        %vm1342 = vmor %vm1340, %vm1341
        %v1343 = vsel %vm1342, %v1334, %v1339
        %v1344 = vmul.f32 %v319, %v713
        %v1345 = vmul.f32 %v320, %v723
        %v1346 = vmul.f32 %v321, %v733
        %v1347 = vmul.f32 %v322, %v743
        %v1348 = vmul.f32 %v323, %v753
        %v1349 = vmul.f32 %v324, %v763
        %v1350 = vmul.f32 %v325, %v773
        %v1351 = vmul.f32 %v326, %v783
        %v1352 = vmul.f32 %v327, %v793
        %v1353 = vmul.f32 %v328, %v803
        %v1354 = vmul.f32 %v329, %v813
        %v1355 = vmul.f32 %v330, %v823
        %v1356 = vmul.f32 %v331, %v833
        %v1357 = vmul.f32 %v332, %v843
        %v1358 = vmul.f32 %v333, %v853
        %v1359 = vmul.f32 %v334, %v863
        %v1360 = vmul.f32 %v335, %v873
        %v1361 = vmul.f32 %v336, %v883
        %v1362 = vmul.f32 %v337, %v893
        %v1363 = vmul.f32 %v338, %v903
        %v1364 = vmul.f32 %v339, %v913
        %v1365 = vmul.f32 %v340, %v923
        %v1366 = vmul.f32 %v341, %v933
        %v1367 = vmul.f32 %v342, %v943
        %v1368 = vmul.f32 %v343, %v953
        %v1369 = vmul.f32 %v344, %v963
        %v1370 = vmul.f32 %v345, %v973
        %v1371 = vmul.f32 %v346, %v983
        %v1372 = vmul.f32 %v347, %v993
        %v1373 = vmul.f32 %v348, %v1003
        %v1374 = vmul.f32 %v349, %v1013
        %v1375 = vmul.f32 %v350, %v1023
        %v1376 = vmul.f32 %v351, %v1033
        %v1377 = vmul.f32 %v352, %v1043
        %v1378 = vmul.f32 %v353, %v1053
        %v1379 = vmul.f32 %v354, %v1063
        %v1380 = vmul.f32 %v355, %v1073
        %v1381 = vmul.f32 %v356, %v1083
        %v1382 = vmul.f32 %v357, %v1093
        %v1383 = vmul.f32 %v358, %v1103
        %v1384 = vmul.f32 %v359, %v1113
        %v1385 = vmul.f32 %v360, %v1123
        %v1386 = vmul.f32 %v361, %v1133
        %v1387 = vmul.f32 %v362, %v1143
        %v1388 = vmul.f32 %v363, %v1153
        %v1389 = vmul.f32 %v364, %v1163
        %v1390 = vmul.f32 %v365, %v1173
        %v1391 = vmul.f32 %v366, %v1183
        %v1392 = vmul.f32 %v367, %v1193
        %v1393 = vmul.f32 %v368, %v1203
        %v1394 = vmul.f32 %v369, %v1213
        %v1395 = vmul.f32 %v370, %v1223
        %v1396 = vmul.f32 %v371, %v1233
        %v1397 = vmul.f32 %v372, %v1243
        %v1398 = vmul.f32 %v373, %v1253
        %v1399 = vmul.f32 %v374, %v1263
        %v1400 = vmul.f32 %v375, %v1273
        %v1401 = vmul.f32 %v376, %v1283
        %v1402 = vmul.f32 %v377, %v1293
        %v1403 = vmul.f32 %v378, %v1303
        %v1404 = vmul.f32 %v379, %v1313
        %v1405 = vmul.f32 %v380, %v1323
        %v1406 = vmul.f32 %v381, %v1333
        %v1407 = vmul.f32 %v382, %v1343
        %s1408 = smul.u32 %s16, 128
        %s1409 = scalar_lea.vmem %s1, %s1408
        %v1410 = vld [vmem:[%s1409] sm:$0xff]
        %v1411 = vld [vmem:[%s1409 + $0x8] sm:$0xff]
        %v1412 = vld [vmem:[%s1409 + $0x10] sm:$0xff]
        %v1413 = vld [vmem:[%s1409 + $0x18] sm:$0xff]
        %v1414 = vld [vmem:[%s1409 + $0x20] sm:$0xff]
        %v1415 = vld [vmem:[%s1409 + $0x28] sm:$0xff]
        %v1416 = vld [vmem:[%s1409 + $0x30] sm:$0xff]
        %v1417 = vld [vmem:[%s1409 + $0x38] sm:$0xff]
        %v1418 = vld [vmem:[%s1409 + $0x40] sm:$0xff]
        %v1419 = vld [vmem:[%s1409 + $0x48] sm:$0xff]
        %v1420 = vld [vmem:[%s1409 + $0x50] sm:$0xff]
        %v1421 = vld [vmem:[%s1409 + $0x58] sm:$0xff]
        %v1422 = vld [vmem:[%s1409 + $0x60] sm:$0xff]
        %v1423 = vld [vmem:[%s1409 + $0x68] sm:$0xff]
        %v1424 = vld [vmem:[%s1409 + $0x70] sm:$0xff]
        %v1425 = vld [vmem:[%s1409 + $0x78] sm:$0xff]
        %v1426 = vmul.f32 %v1410, %v188
        %v1427 = vmul.f32 %v1411, %v188
        %v1428 = vmul.f32 %v1412, %v188
        %v1429 = vmul.f32 %v1413, %v188
        %v1430 = vmul.f32 %v1414, %v188
        %v1431 = vmul.f32 %v1415, %v188
        %v1432 = vmul.f32 %v1416, %v188
        %v1433 = vmul.f32 %v1417, %v188
        %v1434 = vmul.f32 %v1418, %v188
        %v1435 = vmul.f32 %v1419, %v188
        %v1436 = vmul.f32 %v1420, %v188
        %v1437 = vmul.f32 %v1421, %v188
        %v1438 = vmul.f32 %v1422, %v188
        %v1439 = vmul.f32 %v1423, %v188
        %v1440 = vmul.f32 %v1424, %v188
        %v1441 = vmul.f32 %v1425, %v188
        %v1442 = vmax.f32 %v1426, 0.0
        %v1443 = vmax.f32 %v1427, 0.0
        %v1444 = vmax.f32 %v1428, 0.0
        %v1445 = vmax.f32 %v1429, 0.0
        %v1446 = vmax.f32 %v1430, 0.0
        %v1447 = vmax.f32 %v1431, 0.0
        %v1448 = vmax.f32 %v1432, 0.0
        %v1449 = vmax.f32 %v1433, 0.0
        %v1450 = vmax.f32 %v1434, 0.0
        %v1451 = vmax.f32 %v1435, 0.0
        %v1452 = vmax.f32 %v1436, 0.0
        %v1453 = vmax.f32 %v1437, 0.0
        %v1454 = vmax.f32 %v1438, 0.0
        %v1455 = vmax.f32 %v1439, 0.0
        %v1456 = vmax.f32 %v1440, 0.0
        %v1457 = vmax.f32 %v1441, 0.0
        %v1458 = vmul.f32 %v1442, %v318
        %v1459 = vmul.f32 %v1443, %v318
        %v1460 = vmul.f32 %v1444, %v318
        %v1461 = vmul.f32 %v1445, %v318
        %v1462 = vmul.f32 %v1446, %v318
        %v1463 = vmul.f32 %v1447, %v318
        %v1464 = vmul.f32 %v1448, %v318
        %v1465 = vmul.f32 %v1449, %v318
        %v1466 = vmul.f32 %v1450, %v318
        %v1467 = vmul.f32 %v1451, %v318
        %v1468 = vmul.f32 %v1452, %v318
        %v1469 = vmul.f32 %v1453, %v318
        %v1470 = vmul.f32 %v1454, %v318
        %v1471 = vmul.f32 %v1455, %v318
        %v1472 = vmul.f32 %v1456, %v318
        %v1473 = vmul.f32 %v1457, %v318
        %v1474 = vmul.f32 %v1458, %v1458
        %v1475 = vmul.f32 %v1459, %v1459
        %v1476 = vmul.f32 %v1460, %v1460
        %v1477 = vmul.f32 %v1461, %v1461
        %v1478 = vmul.f32 %v1462, %v1462
        %v1479 = vmul.f32 %v1463, %v1463
        %v1480 = vmul.f32 %v1464, %v1464
        %v1481 = vmul.f32 %v1465, %v1465
        %v1482 = vmul.f32 %v1466, %v1466
        %v1483 = vmul.f32 %v1467, %v1467
        %v1484 = vmul.f32 %v1468, %v1468
        %v1485 = vmul.f32 %v1469, %v1469
        %v1486 = vmul.f32 %v1470, %v1470
        %v1487 = vmul.f32 %v1471, %v1471
        %v1488 = vmul.f32 %v1472, %v1472
        %v1489 = vmul.f32 %v1473, %v1473
        %v1490 = vsel %vm447, %v1474, 0.0
        %1491 = vadd.xlane.f32.xlu0 %v1490
        %v1492 = vpop.xlane.xlu0 %1491
        %v1493 = vsel %vm447, %v1475, 0.0
        %1494 = vadd.xlane.f32.xlu0 %v1493
        %v1495 = vpop.xlane.xlu0 %1494
        %v1496 = vsel %vm447, %v1476, 0.0
        %1497 = vadd.xlane.f32.xlu0 %v1496
        %v1498 = vpop.xlane.xlu0 %1497
        %v1499 = vsel %vm447, %v1477, 0.0
        %1500 = vadd.xlane.f32.xlu0 %v1499
        %v1501 = vpop.xlane.xlu0 %1500
        %v1502 = vsel %vm447, %v1478, 0.0
        %1503 = vadd.xlane.f32.xlu0 %v1502
        %v1504 = vpop.xlane.xlu0 %1503
        %v1505 = vsel %vm447, %v1479, 0.0
        %1506 = vadd.xlane.f32.xlu0 %v1505
        %v1507 = vpop.xlane.xlu0 %1506
        %v1508 = vsel %vm447, %v1480, 0.0
        %1509 = vadd.xlane.f32.xlu0 %v1508
        %v1510 = vpop.xlane.xlu0 %1509
        %v1511 = vsel %vm447, %v1481, 0.0
        %1512 = vadd.xlane.f32.xlu0 %v1511
        %v1513 = vpop.xlane.xlu0 %1512
        %v1514 = vsel %vm447, %v1482, 0.0
        %1515 = vadd.xlane.f32.xlu0 %v1514
        %v1516 = vpop.xlane.xlu0 %1515
        %v1517 = vsel %vm447, %v1483, 0.0
        %1518 = vadd.xlane.f32.xlu0 %v1517
        %v1519 = vpop.xlane.xlu0 %1518
        %v1520 = vsel %vm447, %v1484, 0.0
        %1521 = vadd.xlane.f32.xlu0 %v1520
        %v1522 = vpop.xlane.xlu0 %1521
        %v1523 = vsel %vm447, %v1485, 0.0
        %1524 = vadd.xlane.f32.xlu0 %v1523
        %v1525 = vpop.xlane.xlu0 %1524
        %v1526 = vsel %vm447, %v1486, 0.0
        %1527 = vadd.xlane.f32.xlu0 %v1526
        %v1528 = vpop.xlane.xlu0 %1527
        %v1529 = vsel %vm447, %v1487, 0.0
        %1530 = vadd.xlane.f32.xlu0 %v1529
        %v1531 = vpop.xlane.xlu0 %1530
        %v1532 = vsel %vm447, %v1488, 0.0
        %1533 = vadd.xlane.f32.xlu0 %v1532
        %v1534 = vpop.xlane.xlu0 %1533
        %v1535 = vsel %vm447, %v1489, 0.0
        %1536 = vadd.xlane.f32.xlu0 %v1535
        %v1537 = vpop.xlane.xlu0 %1536
        %v1538 = vmax.f32 %v1492, 1e-24
        %v1539 = vmax.f32 %v1495, 1e-24
        %v1540 = vmax.f32 %v1498, 1e-24
        %v1541 = vmax.f32 %v1501, 1e-24
        %v1542 = vmax.f32 %v1504, 1e-24
        %v1543 = vmax.f32 %v1507, 1e-24
        %v1544 = vmax.f32 %v1510, 1e-24
        %v1545 = vmax.f32 %v1513, 1e-24
        %v1546 = vmax.f32 %v1516, 1e-24
        %v1547 = vmax.f32 %v1519, 1e-24
        %v1548 = vmax.f32 %v1522, 1e-24
        %v1549 = vmax.f32 %v1525, 1e-24
        %v1550 = vmax.f32 %v1528, 1e-24
        %v1551 = vmax.f32 %v1531, 1e-24
        %v1552 = vmax.f32 %v1534, 1e-24
        %v1553 = vmax.f32 %v1537, 1e-24
        %v1554 = vrsqrt.pop %v1538
        %v1555 = vmul.f32 %v1554, %v1538
        %v1556 = vmul.f32 %v1555, %v1554
        %v1557 = vmul.f32 0.5, %v1556
        %v1558 = vsub.f32 1.5, %v1557
        %v1559 = vmul.f32 %v1554, %v1558
        %vm1560 = vweird.f32 %v1538
        %vm1561 = vweird.f32 %v1554
        %vm1562 = vmor %vm1560, %vm1561
        %v1563 = vsel %vm1562, %v1554, %v1559
        %v1564 = vrsqrt.pop %v1539
        %v1565 = vmul.f32 %v1564, %v1539
        %v1566 = vmul.f32 %v1565, %v1564
        %v1567 = vmul.f32 0.5, %v1566
        %v1568 = vsub.f32 1.5, %v1567
        %v1569 = vmul.f32 %v1564, %v1568
        %vm1570 = vweird.f32 %v1539
        %vm1571 = vweird.f32 %v1564
        %vm1572 = vmor %vm1570, %vm1571
        %v1573 = vsel %vm1572, %v1564, %v1569
        %v1574 = vrsqrt.pop %v1540
        %v1575 = vmul.f32 %v1574, %v1540
        %v1576 = vmul.f32 %v1575, %v1574
        %v1577 = vmul.f32 0.5, %v1576
        %v1578 = vsub.f32 1.5, %v1577
        %v1579 = vmul.f32 %v1574, %v1578
        %vm1580 = vweird.f32 %v1540
        %vm1581 = vweird.f32 %v1574
        %vm1582 = vmor %vm1580, %vm1581
        %v1583 = vsel %vm1582, %v1574, %v1579
        %v1584 = vrsqrt.pop %v1541
        %v1585 = vmul.f32 %v1584, %v1541
        %v1586 = vmul.f32 %v1585, %v1584
        %v1587 = vmul.f32 0.5, %v1586
        %v1588 = vsub.f32 1.5, %v1587
        %v1589 = vmul.f32 %v1584, %v1588
        %vm1590 = vweird.f32 %v1541
        %vm1591 = vweird.f32 %v1584
        %vm1592 = vmor %vm1590, %vm1591
        %v1593 = vsel %vm1592, %v1584, %v1589
        %v1594 = vrsqrt.pop %v1542
        %v1595 = vmul.f32 %v1594, %v1542
        %v1596 = vmul.f32 %v1595, %v1594
        %v1597 = vmul.f32 0.5, %v1596
        %v1598 = vsub.f32 1.5, %v1597
        %v1599 = vmul.f32 %v1594, %v1598
        %vm1600 = vweird.f32 %v1542
        %vm1601 = vweird.f32 %v1594
        %vm1602 = vmor %vm1600, %vm1601
        %v1603 = vsel %vm1602, %v1594, %v1599
        %v1604 = vrsqrt.pop %v1543
        %v1605 = vmul.f32 %v1604, %v1543
        %v1606 = vmul.f32 %v1605, %v1604
        %v1607 = vmul.f32 0.5, %v1606
        %v1608 = vsub.f32 1.5, %v1607
        %v1609 = vmul.f32 %v1604, %v1608
        %vm1610 = vweird.f32 %v1543
        %vm1611 = vweird.f32 %v1604
        %vm1612 = vmor %vm1610, %vm1611
        %v1613 = vsel %vm1612, %v1604, %v1609
        %v1614 = vrsqrt.pop %v1544
        %v1615 = vmul.f32 %v1614, %v1544
        %v1616 = vmul.f32 %v1615, %v1614
        %v1617 = vmul.f32 0.5, %v1616
        %v1618 = vsub.f32 1.5, %v1617
        %v1619 = vmul.f32 %v1614, %v1618
        %vm1620 = vweird.f32 %v1544
        %vm1621 = vweird.f32 %v1614
        %vm1622 = vmor %vm1620, %vm1621
        %v1623 = vsel %vm1622, %v1614, %v1619
        %v1624 = vrsqrt.pop %v1545
        %v1625 = vmul.f32 %v1624, %v1545
        %v1626 = vmul.f32 %v1625, %v1624
        %v1627 = vmul.f32 0.5, %v1626
        %v1628 = vsub.f32 1.5, %v1627
        %v1629 = vmul.f32 %v1624, %v1628
        %vm1630 = vweird.f32 %v1545
        %vm1631 = vweird.f32 %v1624
        %vm1632 = vmor %vm1630, %vm1631
        %v1633 = vsel %vm1632, %v1624, %v1629
        %v1634 = vrsqrt.pop %v1546
        %v1635 = vmul.f32 %v1634, %v1546
        %v1636 = vmul.f32 %v1635, %v1634
        %v1637 = vmul.f32 0.5, %v1636
        %v1638 = vsub.f32 1.5, %v1637
        %v1639 = vmul.f32 %v1634, %v1638
        %vm1640 = vweird.f32 %v1546
        %vm1641 = vweird.f32 %v1634
        %vm1642 = vmor %vm1640, %vm1641
        %v1643 = vsel %vm1642, %v1634, %v1639
        %v1644 = vrsqrt.pop %v1547
        %v1645 = vmul.f32 %v1644, %v1547
        %v1646 = vmul.f32 %v1645, %v1644
        %v1647 = vmul.f32 0.5, %v1646
        %v1648 = vsub.f32 1.5, %v1647
        %v1649 = vmul.f32 %v1644, %v1648
        %vm1650 = vweird.f32 %v1547
        %vm1651 = vweird.f32 %v1644
        %vm1652 = vmor %vm1650, %vm1651
        %v1653 = vsel %vm1652, %v1644, %v1649
        %v1654 = vrsqrt.pop %v1548
        %v1655 = vmul.f32 %v1654, %v1548
        %v1656 = vmul.f32 %v1655, %v1654
        %v1657 = vmul.f32 0.5, %v1656
        %v1658 = vsub.f32 1.5, %v1657
        %v1659 = vmul.f32 %v1654, %v1658
        %vm1660 = vweird.f32 %v1548
        %vm1661 = vweird.f32 %v1654
        %vm1662 = vmor %vm1660, %vm1661
        %v1663 = vsel %vm1662, %v1654, %v1659
        %v1664 = vrsqrt.pop %v1549
        %v1665 = vmul.f32 %v1664, %v1549
        %v1666 = vmul.f32 %v1665, %v1664
        %v1667 = vmul.f32 0.5, %v1666
        %v1668 = vsub.f32 1.5, %v1667
        %v1669 = vmul.f32 %v1664, %v1668
        %vm1670 = vweird.f32 %v1549
        %vm1671 = vweird.f32 %v1664
        %vm1672 = vmor %vm1670, %vm1671
        %v1673 = vsel %vm1672, %v1664, %v1669
        %v1674 = vrsqrt.pop %v1550
        %v1675 = vmul.f32 %v1674, %v1550
        %v1676 = vmul.f32 %v1675, %v1674
        %v1677 = vmul.f32 0.5, %v1676
        %v1678 = vsub.f32 1.5, %v1677
        %v1679 = vmul.f32 %v1674, %v1678
        %vm1680 = vweird.f32 %v1550
        %vm1681 = vweird.f32 %v1674
        %vm1682 = vmor %vm1680, %vm1681
        %v1683 = vsel %vm1682, %v1674, %v1679
        %v1684 = vrsqrt.pop %v1551
        %v1685 = vmul.f32 %v1684, %v1551
        %v1686 = vmul.f32 %v1685, %v1684
        %v1687 = vmul.f32 0.5, %v1686
        %v1688 = vsub.f32 1.5, %v1687
        %v1689 = vmul.f32 %v1684, %v1688
        %vm1690 = vweird.f32 %v1551
        %vm1691 = vweird.f32 %v1684
        %vm1692 = vmor %vm1690, %vm1691
        %v1693 = vsel %vm1692, %v1684, %v1689
        %v1694 = vrsqrt.pop %v1552
        %v1695 = vmul.f32 %v1694, %v1552
        %v1696 = vmul.f32 %v1695, %v1694
        %v1697 = vmul.f32 0.5, %v1696
        %v1698 = vsub.f32 1.5, %v1697
        %v1699 = vmul.f32 %v1694, %v1698
        %vm1700 = vweird.f32 %v1552
        %vm1701 = vweird.f32 %v1694
        %vm1702 = vmor %vm1700, %vm1701
        %v1703 = vsel %vm1702, %v1694, %v1699
        %v1704 = vrsqrt.pop %v1553
        %v1705 = vmul.f32 %v1704, %v1553
        %v1706 = vmul.f32 %v1705, %v1704
        %v1707 = vmul.f32 0.5, %v1706
        %v1708 = vsub.f32 1.5, %v1707
        %v1709 = vmul.f32 %v1704, %v1708
        %vm1710 = vweird.f32 %v1553
        %vm1711 = vweird.f32 %v1704
        %vm1712 = vmor %vm1710, %vm1711
        %v1713 = vsel %vm1712, %v1704, %v1709
        %v1714 = vmul.f32 %v1458, %v1563
        %v1715 = vmul.f32 %v1459, %v1573
        %v1716 = vmul.f32 %v1460, %v1583
        %v1717 = vmul.f32 %v1461, %v1593
        %v1718 = vmul.f32 %v1462, %v1603
        %v1719 = vmul.f32 %v1463, %v1613
        %v1720 = vmul.f32 %v1464, %v1623
        %v1721 = vmul.f32 %v1465, %v1633
        %v1722 = vmul.f32 %v1466, %v1643
        %v1723 = vmul.f32 %v1467, %v1653
        %v1724 = vmul.f32 %v1468, %v1663
        %v1725 = vmul.f32 %v1469, %v1673
        %v1726 = vmul.f32 %v1470, %v1683
        %v1727 = vmul.f32 %v1471, %v1693
        %v1728 = vmul.f32 %v1472, %v1703
        %v1729 = vmul.f32 %v1473, %v1713
        %v1731 = vsel %vm447, %v1714, 0
        %v1734 = vsel %vm447, %v1715, 0
        %v1737 = vsel %vm447, %v1716, 0
        %v1740 = vsel %vm447, %v1717, 0
        %v1743 = vsel %vm447, %v1718, 0
        %v1746 = vsel %vm447, %v1719, 0
        %v1749 = vsel %vm447, %v1720, 0
        %v1752 = vsel %vm447, %v1721, 0
        %v1755 = vsel %vm447, %v1722, 0
        %v1758 = vsel %vm447, %v1723, 0
        %v1761 = vsel %vm447, %v1724, 0
        %v1764 = vsel %vm447, %v1725, 0
        %v1767 = vsel %vm447, %v1726, 0
        %v1770 = vsel %vm447, %v1727, 0
        %v1773 = vsel %vm447, %v1728, 0
        %v1776 = vsel %vm447, %v1729, 0
        %v1779 = vsel %vm447, %v1344, 0
        %v1782 = vsel %vm447, %v1345, 0
        %v1785 = vsel %vm447, %v1346, 0
        %v1788 = vsel %vm447, %v1347, 0
        %v1791 = vsel %vm447, %v1348, 0
        %v1794 = vsel %vm447, %v1349, 0
        %v1797 = vsel %vm447, %v1350, 0
        %v1800 = vsel %vm447, %v1351, 0
        %v1803 = vsel %vm447, %v1352, 0
        %v1806 = vsel %vm447, %v1353, 0
        %v1809 = vsel %vm447, %v1354, 0
        %v1812 = vsel %vm447, %v1355, 0
        %v1815 = vsel %vm447, %v1356, 0
        %v1818 = vsel %vm447, %v1357, 0
        %v1821 = vsel %vm447, %v1358, 0
        %v1824 = vsel %vm447, %v1359, 0
        %v1827 = vsel %vm447, %v1360, 0
        %v1830 = vsel %vm447, %v1361, 0
        %v1833 = vsel %vm447, %v1362, 0
        %v1836 = vsel %vm447, %v1363, 0
        %v1839 = vsel %vm447, %v1364, 0
        %v1842 = vsel %vm447, %v1365, 0
        %v1845 = vsel %vm447, %v1366, 0
        %v1848 = vsel %vm447, %v1367, 0
        %v1851 = vsel %vm447, %v1368, 0
        %v1854 = vsel %vm447, %v1369, 0
        %v1857 = vsel %vm447, %v1370, 0
        %v1860 = vsel %vm447, %v1371, 0
        %v1863 = vsel %vm447, %v1372, 0
        %v1866 = vsel %vm447, %v1373, 0
        %v1869 = vsel %vm447, %v1374, 0
        %v1872 = vsel %vm447, %v1375, 0
        %1874 = vmatpush.xpose.msra.mxu0 %v1824
        %1875 = vmatpush.xpose.msra.mxu0 %v1821
        %1876 = vmatpush.xpose.msra.mxu0 %v1818
        %1877 = vmatpush.xpose.msra.mxu0 %v1815
        %1878 = vmatpush.xpose.msra.mxu0 %v1812
        %1879 = vmatpush.xpose.msra.mxu0 %v1809
        %1880 = vmatpush.xpose.msra.mxu0 %v1806
        %1881 = vmatpush.xpose.msra.mxu0 %v1803
        %1882 = vmatpush.xpose.msra.mxu0 %v1800
        %1883 = vmatpush.xpose.msra.mxu0 %v1797
        %1884 = vmatpush.xpose.msra.mxu0 %v1794
        %1885 = vmatpush.xpose.msra.mxu0 %v1791
        %1886 = vmatpush.xpose.msra.mxu0 %v1788
        %1887 = vmatpush.xpose.msra.mxu0 %v1785
        %1888 = vmatpush.xpose.msra.mxu0 %v1782
        %1889 = vmatpush.xpose.msra.mxu0 %v1779
        %1890 = vmatmul.f32.gmra.mxu0 %v1731
        %v1891 = vpop.f32.mrf.mxu0
        %v1892 = vadd.f32 0.0, %v1891
        %1893 = vmatmul.f32.gmra.mxu0 %v1734
        %v1894 = vpop.f32.mrf.mxu0
        %v1895 = vadd.f32 0.0, %v1894
        %1896 = vmatmul.f32.gmra.mxu0 %v1737
        %v1897 = vpop.f32.mrf.mxu0
        %v1898 = vadd.f32 0.0, %v1897
        %1899 = vmatmul.f32.gmra.mxu0 %v1740
        %v1900 = vpop.f32.mrf.mxu0
        %v1901 = vadd.f32 0.0, %v1900
        %1902 = vmatmul.f32.gmra.mxu0 %v1743
        %v1903 = vpop.f32.mrf.mxu0
        %v1904 = vadd.f32 0.0, %v1903
        %1905 = vmatmul.f32.gmra.mxu0 %v1746
        %v1906 = vpop.f32.mrf.mxu0
        %v1907 = vadd.f32 0.0, %v1906
        %1908 = vmatmul.f32.gmra.mxu0 %v1749
        %v1909 = vpop.f32.mrf.mxu0
        %v1910 = vadd.f32 0.0, %v1909
        %1911 = vmatmul.f32.gmra.mxu0 %v1752
        %v1912 = vpop.f32.mrf.mxu0
        %v1913 = vadd.f32 0.0, %v1912
        %1914 = vmatmul.f32.gmra.mxu0 %v1755
        %v1915 = vpop.f32.mrf.mxu0
        %v1916 = vadd.f32 0.0, %v1915
        %1917 = vmatmul.f32.gmra.mxu0 %v1758
        %v1918 = vpop.f32.mrf.mxu0
        %v1919 = vadd.f32 0.0, %v1918
        %1920 = vmatmul.f32.gmra.mxu0 %v1761
        %v1921 = vpop.f32.mrf.mxu0
        %v1922 = vadd.f32 0.0, %v1921
        %1923 = vmatmul.f32.gmra.mxu0 %v1764
        %v1924 = vpop.f32.mrf.mxu0
        %v1925 = vadd.f32 0.0, %v1924
        %1926 = vmatmul.f32.gmra.mxu0 %v1767
        %v1927 = vpop.f32.mrf.mxu0
        %v1928 = vadd.f32 0.0, %v1927
        %1929 = vmatmul.f32.gmra.mxu0 %v1770
        %v1930 = vpop.f32.mrf.mxu0
        %v1931 = vadd.f32 0.0, %v1930
        %1932 = vmatmul.f32.gmra.mxu0 %v1773
        %v1933 = vpop.f32.mrf.mxu0
        %v1934 = vadd.f32 0.0, %v1933
        %1935 = vmatmul.f32.gmra.mxu0 %v1776
        %v1936 = vpop.f32.mrf.mxu0
        %v1937 = vadd.f32 0.0, %v1936
        %1938 = vdwg.mxu0
        %1939 = vmatpush.xpose.msra.mxu0 %v1872
        %1940 = vmatpush.xpose.msra.mxu0 %v1869
        %1941 = vmatpush.xpose.msra.mxu0 %v1866
        %1942 = vmatpush.xpose.msra.mxu0 %v1863
        %1943 = vmatpush.xpose.msra.mxu0 %v1860
        %1944 = vmatpush.xpose.msra.mxu0 %v1857
        %1945 = vmatpush.xpose.msra.mxu0 %v1854
        %1946 = vmatpush.xpose.msra.mxu0 %v1851
        %1947 = vmatpush.xpose.msra.mxu0 %v1848
        %1948 = vmatpush.xpose.msra.mxu0 %v1845
        %1949 = vmatpush.xpose.msra.mxu0 %v1842
        %1950 = vmatpush.xpose.msra.mxu0 %v1839
        %1951 = vmatpush.xpose.msra.mxu0 %v1836
        %1952 = vmatpush.xpose.msra.mxu0 %v1833
        %1953 = vmatpush.xpose.msra.mxu0 %v1830
        %1954 = vmatpush.xpose.msra.mxu0 %v1827
        %1955 = vmatmul.f32.gmra.mxu0 %v1731
        %v1956 = vpop.f32.mrf.mxu0
        %v1957 = vadd.f32 0.0, %v1956
        %1958 = vmatmul.f32.gmra.mxu0 %v1734
        %v1959 = vpop.f32.mrf.mxu0
        %v1960 = vadd.f32 0.0, %v1959
        %1961 = vmatmul.f32.gmra.mxu0 %v1737
        %v1962 = vpop.f32.mrf.mxu0
        %v1963 = vadd.f32 0.0, %v1962
        %1964 = vmatmul.f32.gmra.mxu0 %v1740
        %v1965 = vpop.f32.mrf.mxu0
        %v1966 = vadd.f32 0.0, %v1965
        %1967 = vmatmul.f32.gmra.mxu0 %v1743
        %v1968 = vpop.f32.mrf.mxu0
        %v1969 = vadd.f32 0.0, %v1968
        %1970 = vmatmul.f32.gmra.mxu0 %v1746
        %v1971 = vpop.f32.mrf.mxu0
        %v1972 = vadd.f32 0.0, %v1971
        %1973 = vmatmul.f32.gmra.mxu0 %v1749
        %v1974 = vpop.f32.mrf.mxu0
        %v1975 = vadd.f32 0.0, %v1974
        %1976 = vmatmul.f32.gmra.mxu0 %v1752
        %v1977 = vpop.f32.mrf.mxu0
        %v1978 = vadd.f32 0.0, %v1977
        %1979 = vmatmul.f32.gmra.mxu0 %v1755
        %v1980 = vpop.f32.mrf.mxu0
        %v1981 = vadd.f32 0.0, %v1980
        %1982 = vmatmul.f32.gmra.mxu0 %v1758
        %v1983 = vpop.f32.mrf.mxu0
        %v1984 = vadd.f32 0.0, %v1983
        %1985 = vmatmul.f32.gmra.mxu0 %v1761
        %v1986 = vpop.f32.mrf.mxu0
        %v1987 = vadd.f32 0.0, %v1986
        %1988 = vmatmul.f32.gmra.mxu0 %v1764
        %v1989 = vpop.f32.mrf.mxu0
        %v1990 = vadd.f32 0.0, %v1989
        %1991 = vmatmul.f32.gmra.mxu0 %v1767
        %v1992 = vpop.f32.mrf.mxu0
        %v1993 = vadd.f32 0.0, %v1992
        %1994 = vmatmul.f32.gmra.mxu0 %v1770
        %v1995 = vpop.f32.mrf.mxu0
        %v1996 = vadd.f32 0.0, %v1995
        %1997 = vmatmul.f32.gmra.mxu0 %v1773
        %v1998 = vpop.f32.mrf.mxu0
        %v1999 = vadd.f32 0.0, %v1998
        %2000 = vmatmul.f32.gmra.mxu0 %v1776
        %v2001 = vpop.f32.mrf.mxu0
        %v2002 = vadd.f32 0.0, %v2001
        %2003 = vdwg.mxu0
        %v2004 = vmax.f32 %v1892, %v1957
        %2005 = vmax.xlane.f32.xlu0 %v2004
        %v2006 = vpop.xlane.xlu0 %2005
        %v2007 = vmax.f32 %v1895, %v1960
        %2008 = vmax.xlane.f32.xlu0 %v2007
        %v2009 = vpop.xlane.xlu0 %2008
        %v2010 = vmax.f32 %v1898, %v1963
        %2011 = vmax.xlane.f32.xlu0 %v2010
        %v2012 = vpop.xlane.xlu0 %2011
        %v2013 = vmax.f32 %v1901, %v1966
        %2014 = vmax.xlane.f32.xlu0 %v2013
        %v2015 = vpop.xlane.xlu0 %2014
        %v2016 = vmax.f32 %v1904, %v1969
        %2017 = vmax.xlane.f32.xlu0 %v2016
        %v2018 = vpop.xlane.xlu0 %2017
        %v2019 = vmax.f32 %v1907, %v1972
        %2020 = vmax.xlane.f32.xlu0 %v2019
        %v2021 = vpop.xlane.xlu0 %2020
        %v2022 = vmax.f32 %v1910, %v1975
        %2023 = vmax.xlane.f32.xlu0 %v2022
        %v2024 = vpop.xlane.xlu0 %2023
        %v2025 = vmax.f32 %v1913, %v1978
        %2026 = vmax.xlane.f32.xlu0 %v2025
        %v2027 = vpop.xlane.xlu0 %2026
        %v2028 = vmax.f32 %v1916, %v1981
        %2029 = vmax.xlane.f32.xlu0 %v2028
        %v2030 = vpop.xlane.xlu0 %2029
        %v2031 = vmax.f32 %v1919, %v1984
        %2032 = vmax.xlane.f32.xlu0 %v2031
        %v2033 = vpop.xlane.xlu0 %2032
        %v2034 = vmax.f32 %v1922, %v1987
        %2035 = vmax.xlane.f32.xlu0 %v2034
        %v2036 = vpop.xlane.xlu0 %2035
        %v2037 = vmax.f32 %v1925, %v1990
        %2038 = vmax.xlane.f32.xlu0 %v2037
        %v2039 = vpop.xlane.xlu0 %2038
        %v2040 = vmax.f32 %v1928, %v1993
        %2041 = vmax.xlane.f32.xlu0 %v2040
        %v2042 = vpop.xlane.xlu0 %2041
        %v2043 = vmax.f32 %v1931, %v1996
        %2044 = vmax.xlane.f32.xlu0 %v2043
        %v2045 = vpop.xlane.xlu0 %2044
        %v2046 = vmax.f32 %v1934, %v1999
        %2047 = vmax.xlane.f32.xlu0 %v2046
        %v2048 = vpop.xlane.xlu0 %2047
        %v2049 = vmax.f32 %v1937, %v2002
        %2050 = vmax.xlane.f32.xlu0 %v2049
        %v2051 = vpop.xlane.xlu0 %2050
        %vm2052 = vcmp.ge.f32.partialorder %v1892, %v2006
        %vm2053 = vcmp.ge.f32.partialorder %v1957, %v2006
        %vm2054 = vcmp.ge.f32.partialorder %v1895, %v2009
        %vm2055 = vcmp.ge.f32.partialorder %v1960, %v2009
        %vm2056 = vcmp.ge.f32.partialorder %v1898, %v2012
        %vm2057 = vcmp.ge.f32.partialorder %v1963, %v2012
        %vm2058 = vcmp.ge.f32.partialorder %v1901, %v2015
        %vm2059 = vcmp.ge.f32.partialorder %v1966, %v2015
        %vm2060 = vcmp.ge.f32.partialorder %v1904, %v2018
        %vm2061 = vcmp.ge.f32.partialorder %v1969, %v2018
        %vm2062 = vcmp.ge.f32.partialorder %v1907, %v2021
        %vm2063 = vcmp.ge.f32.partialorder %v1972, %v2021
        %vm2064 = vcmp.ge.f32.partialorder %v1910, %v2024
        %vm2065 = vcmp.ge.f32.partialorder %v1975, %v2024
        %vm2066 = vcmp.ge.f32.partialorder %v1913, %v2027
        %vm2067 = vcmp.ge.f32.partialorder %v1978, %v2027
        %vm2068 = vcmp.ge.f32.partialorder %v1916, %v2030
        %vm2069 = vcmp.ge.f32.partialorder %v1981, %v2030
        %vm2070 = vcmp.ge.f32.partialorder %v1919, %v2033
        %vm2071 = vcmp.ge.f32.partialorder %v1984, %v2033
        %vm2072 = vcmp.ge.f32.partialorder %v1922, %v2036
        %vm2073 = vcmp.ge.f32.partialorder %v1987, %v2036
        %vm2074 = vcmp.ge.f32.partialorder %v1925, %v2039
        %vm2075 = vcmp.ge.f32.partialorder %v1990, %v2039
        %vm2076 = vcmp.ge.f32.partialorder %v1928, %v2042
        %vm2077 = vcmp.ge.f32.partialorder %v1993, %v2042
        %vm2078 = vcmp.ge.f32.partialorder %v1931, %v2045
        %vm2079 = vcmp.ge.f32.partialorder %v1996, %v2045
        %vm2080 = vcmp.ge.f32.partialorder %v1934, %v2048
        %vm2081 = vcmp.ge.f32.partialorder %v1999, %v2048
        %vm2082 = vcmp.ge.f32.partialorder %v1937, %v2051
        %vm2083 = vcmp.ge.f32.partialorder %v2002, %v2051
        %v2084 = vsel %vm2052, -inf, %v1892
        %v2085 = vsel %vm2053, -inf, %v1957
        %v2086 = vsel %vm2054, -inf, %v1895
        %v2087 = vsel %vm2055, -inf, %v1960
        %v2088 = vsel %vm2056, -inf, %v1898
        %v2089 = vsel %vm2057, -inf, %v1963
        %v2090 = vsel %vm2058, -inf, %v1901
        %v2091 = vsel %vm2059, -inf, %v1966
        %v2092 = vsel %vm2060, -inf, %v1904
        %v2093 = vsel %vm2061, -inf, %v1969
        %v2094 = vsel %vm2062, -inf, %v1907
        %v2095 = vsel %vm2063, -inf, %v1972
        %v2096 = vsel %vm2064, -inf, %v1910
        %v2097 = vsel %vm2065, -inf, %v1975
        %v2098 = vsel %vm2066, -inf, %v1913
        %v2099 = vsel %vm2067, -inf, %v1978
        %v2100 = vsel %vm2068, -inf, %v1916
        %v2101 = vsel %vm2069, -inf, %v1981
        %v2102 = vsel %vm2070, -inf, %v1919
        %v2103 = vsel %vm2071, -inf, %v1984
        %v2104 = vsel %vm2072, -inf, %v1922
        %v2105 = vsel %vm2073, -inf, %v1987
        %v2106 = vsel %vm2074, -inf, %v1925
        %v2107 = vsel %vm2075, -inf, %v1990
        %v2108 = vsel %vm2076, -inf, %v1928
        %v2109 = vsel %vm2077, -inf, %v1993
        %v2110 = vsel %vm2078, -inf, %v1931
        %v2111 = vsel %vm2079, -inf, %v1996
        %v2112 = vsel %vm2080, -inf, %v1934
        %v2113 = vsel %vm2081, -inf, %v1999
        %v2114 = vsel %vm2082, -inf, %v1937
        %v2115 = vsel %vm2083, -inf, %v2002
        %v2116 = vmax.f32 %v2084, %v2085
        %2117 = vmax.xlane.f32.xlu0 %v2116
        %v2118 = vpop.xlane.xlu0 %2117
        %v2119 = vmax.f32 %v2086, %v2087
        %2120 = vmax.xlane.f32.xlu0 %v2119
        %v2121 = vpop.xlane.xlu0 %2120
        %v2122 = vmax.f32 %v2088, %v2089
        %2123 = vmax.xlane.f32.xlu0 %v2122
        %v2124 = vpop.xlane.xlu0 %2123
        %v2125 = vmax.f32 %v2090, %v2091
        %2126 = vmax.xlane.f32.xlu0 %v2125
        %v2127 = vpop.xlane.xlu0 %2126
        %v2128 = vmax.f32 %v2092, %v2093
        %2129 = vmax.xlane.f32.xlu0 %v2128
        %v2130 = vpop.xlane.xlu0 %2129
        %v2131 = vmax.f32 %v2094, %v2095
        %2132 = vmax.xlane.f32.xlu0 %v2131
        %v2133 = vpop.xlane.xlu0 %2132
        %v2134 = vmax.f32 %v2096, %v2097
        %2135 = vmax.xlane.f32.xlu0 %v2134
        %v2136 = vpop.xlane.xlu0 %2135
        %v2137 = vmax.f32 %v2098, %v2099
        %2138 = vmax.xlane.f32.xlu0 %v2137
        %v2139 = vpop.xlane.xlu0 %2138
        %v2140 = vmax.f32 %v2100, %v2101
        %2141 = vmax.xlane.f32.xlu0 %v2140
        %v2142 = vpop.xlane.xlu0 %2141
        %v2143 = vmax.f32 %v2102, %v2103
        %2144 = vmax.xlane.f32.xlu0 %v2143
        %v2145 = vpop.xlane.xlu0 %2144
        %v2146 = vmax.f32 %v2104, %v2105
        %2147 = vmax.xlane.f32.xlu0 %v2146
        %v2148 = vpop.xlane.xlu0 %2147
        %v2149 = vmax.f32 %v2106, %v2107
        %2150 = vmax.xlane.f32.xlu0 %v2149
        %v2151 = vpop.xlane.xlu0 %2150
        %v2152 = vmax.f32 %v2108, %v2109
        %2153 = vmax.xlane.f32.xlu0 %v2152
        %v2154 = vpop.xlane.xlu0 %2153
        %v2155 = vmax.f32 %v2110, %v2111
        %2156 = vmax.xlane.f32.xlu0 %v2155
        %v2157 = vpop.xlane.xlu0 %2156
        %v2158 = vmax.f32 %v2112, %v2113
        %2159 = vmax.xlane.f32.xlu0 %v2158
        %v2160 = vpop.xlane.xlu0 %2159
        %v2161 = vmax.f32 %v2114, %v2115
        %2162 = vmax.xlane.f32.xlu0 %v2161
        %v2163 = vpop.xlane.xlu0 %2162
        %vm2164 = vcmp.ge.f32.partialorder %v2084, %v2118
        %vm2165 = vcmp.ge.f32.partialorder %v2085, %v2118
        %vm2166 = vcmp.ge.f32.partialorder %v2086, %v2121
        %vm2167 = vcmp.ge.f32.partialorder %v2087, %v2121
        %vm2168 = vcmp.ge.f32.partialorder %v2088, %v2124
        %vm2169 = vcmp.ge.f32.partialorder %v2089, %v2124
        %vm2170 = vcmp.ge.f32.partialorder %v2090, %v2127
        %vm2171 = vcmp.ge.f32.partialorder %v2091, %v2127
        %vm2172 = vcmp.ge.f32.partialorder %v2092, %v2130
        %vm2173 = vcmp.ge.f32.partialorder %v2093, %v2130
        %vm2174 = vcmp.ge.f32.partialorder %v2094, %v2133
        %vm2175 = vcmp.ge.f32.partialorder %v2095, %v2133
        %vm2176 = vcmp.ge.f32.partialorder %v2096, %v2136
        %vm2177 = vcmp.ge.f32.partialorder %v2097, %v2136
        %vm2178 = vcmp.ge.f32.partialorder %v2098, %v2139
        %vm2179 = vcmp.ge.f32.partialorder %v2099, %v2139
        %vm2180 = vcmp.ge.f32.partialorder %v2100, %v2142
        %vm2181 = vcmp.ge.f32.partialorder %v2101, %v2142
        %vm2182 = vcmp.ge.f32.partialorder %v2102, %v2145
        %vm2183 = vcmp.ge.f32.partialorder %v2103, %v2145
        %vm2184 = vcmp.ge.f32.partialorder %v2104, %v2148
        %vm2185 = vcmp.ge.f32.partialorder %v2105, %v2148
        %vm2186 = vcmp.ge.f32.partialorder %v2106, %v2151
        %vm2187 = vcmp.ge.f32.partialorder %v2107, %v2151
        %vm2188 = vcmp.ge.f32.partialorder %v2108, %v2154
        %vm2189 = vcmp.ge.f32.partialorder %v2109, %v2154
        %vm2190 = vcmp.ge.f32.partialorder %v2110, %v2157
        %vm2191 = vcmp.ge.f32.partialorder %v2111, %v2157
        %vm2192 = vcmp.ge.f32.partialorder %v2112, %v2160
        %vm2193 = vcmp.ge.f32.partialorder %v2113, %v2160
        %vm2194 = vcmp.ge.f32.partialorder %v2114, %v2163
        %vm2195 = vcmp.ge.f32.partialorder %v2115, %v2163
        %v2196 = vsel %vm2164, -inf, %v2084
        %v2197 = vsel %vm2165, -inf, %v2085
        %v2198 = vsel %vm2166, -inf, %v2086
        %v2199 = vsel %vm2167, -inf, %v2087
        %v2200 = vsel %vm2168, -inf, %v2088
        %v2201 = vsel %vm2169, -inf, %v2089
        %v2202 = vsel %vm2170, -inf, %v2090
        %v2203 = vsel %vm2171, -inf, %v2091
        %v2204 = vsel %vm2172, -inf, %v2092
        %v2205 = vsel %vm2173, -inf, %v2093
        %v2206 = vsel %vm2174, -inf, %v2094
        %v2207 = vsel %vm2175, -inf, %v2095
        %v2208 = vsel %vm2176, -inf, %v2096
        %v2209 = vsel %vm2177, -inf, %v2097
        %v2210 = vsel %vm2178, -inf, %v2098
        %v2211 = vsel %vm2179, -inf, %v2099
        %v2212 = vsel %vm2180, -inf, %v2100
        %v2213 = vsel %vm2181, -inf, %v2101
        %v2214 = vsel %vm2182, -inf, %v2102
        %v2215 = vsel %vm2183, -inf, %v2103
        %v2216 = vsel %vm2184, -inf, %v2104
        %v2217 = vsel %vm2185, -inf, %v2105
        %v2218 = vsel %vm2186, -inf, %v2106
        %v2219 = vsel %vm2187, -inf, %v2107
        %v2220 = vsel %vm2188, -inf, %v2108
        %v2221 = vsel %vm2189, -inf, %v2109
        %v2222 = vsel %vm2190, -inf, %v2110
        %v2223 = vsel %vm2191, -inf, %v2111
        %v2224 = vsel %vm2192, -inf, %v2112
        %v2225 = vsel %vm2193, -inf, %v2113
        %v2226 = vsel %vm2194, -inf, %v2114
        %v2227 = vsel %vm2195, -inf, %v2115
        %v2228 = vmax.f32 %v2196, %v2197
        %2229 = vmax.xlane.f32.xlu0 %v2228
        %v2230 = vpop.xlane.xlu0 %2229
        %v2231 = vmax.f32 %v2198, %v2199
        %2232 = vmax.xlane.f32.xlu0 %v2231
        %v2233 = vpop.xlane.xlu0 %2232
        %v2234 = vmax.f32 %v2200, %v2201
        %2235 = vmax.xlane.f32.xlu0 %v2234
        %v2236 = vpop.xlane.xlu0 %2235
        %v2237 = vmax.f32 %v2202, %v2203
        %2238 = vmax.xlane.f32.xlu0 %v2237
        %v2239 = vpop.xlane.xlu0 %2238
        %v2240 = vmax.f32 %v2204, %v2205
        %2241 = vmax.xlane.f32.xlu0 %v2240
        %v2242 = vpop.xlane.xlu0 %2241
        %v2243 = vmax.f32 %v2206, %v2207
        %2244 = vmax.xlane.f32.xlu0 %v2243
        %v2245 = vpop.xlane.xlu0 %2244
        %v2246 = vmax.f32 %v2208, %v2209
        %2247 = vmax.xlane.f32.xlu0 %v2246
        %v2248 = vpop.xlane.xlu0 %2247
        %v2249 = vmax.f32 %v2210, %v2211
        %2250 = vmax.xlane.f32.xlu0 %v2249
        %v2251 = vpop.xlane.xlu0 %2250
        %v2252 = vmax.f32 %v2212, %v2213
        %2253 = vmax.xlane.f32.xlu0 %v2252
        %v2254 = vpop.xlane.xlu0 %2253
        %v2255 = vmax.f32 %v2214, %v2215
        %2256 = vmax.xlane.f32.xlu0 %v2255
        %v2257 = vpop.xlane.xlu0 %2256
        %v2258 = vmax.f32 %v2216, %v2217
        %2259 = vmax.xlane.f32.xlu0 %v2258
        %v2260 = vpop.xlane.xlu0 %2259
        %v2261 = vmax.f32 %v2218, %v2219
        %2262 = vmax.xlane.f32.xlu0 %v2261
        %v2263 = vpop.xlane.xlu0 %2262
        %v2264 = vmax.f32 %v2220, %v2221
        %2265 = vmax.xlane.f32.xlu0 %v2264
        %v2266 = vpop.xlane.xlu0 %2265
        %v2267 = vmax.f32 %v2222, %v2223
        %2268 = vmax.xlane.f32.xlu0 %v2267
        %v2269 = vpop.xlane.xlu0 %2268
        %v2270 = vmax.f32 %v2224, %v2225
        %2271 = vmax.xlane.f32.xlu0 %v2270
        %v2272 = vpop.xlane.xlu0 %2271
        %v2273 = vmax.f32 %v2226, %v2227
        %2274 = vmax.xlane.f32.xlu0 %v2273
        %v2275 = vpop.xlane.xlu0 %2274
        %vm2276 = vcmp.ge.f32.partialorder %v2196, %v2230
        %vm2277 = vcmp.ge.f32.partialorder %v2197, %v2230
        %vm2278 = vcmp.ge.f32.partialorder %v2198, %v2233
        %vm2279 = vcmp.ge.f32.partialorder %v2199, %v2233
        %vm2280 = vcmp.ge.f32.partialorder %v2200, %v2236
        %vm2281 = vcmp.ge.f32.partialorder %v2201, %v2236
        %vm2282 = vcmp.ge.f32.partialorder %v2202, %v2239
        %vm2283 = vcmp.ge.f32.partialorder %v2203, %v2239
        %vm2284 = vcmp.ge.f32.partialorder %v2204, %v2242
        %vm2285 = vcmp.ge.f32.partialorder %v2205, %v2242
        %vm2286 = vcmp.ge.f32.partialorder %v2206, %v2245
        %vm2287 = vcmp.ge.f32.partialorder %v2207, %v2245
        %vm2288 = vcmp.ge.f32.partialorder %v2208, %v2248
        %vm2289 = vcmp.ge.f32.partialorder %v2209, %v2248
        %vm2290 = vcmp.ge.f32.partialorder %v2210, %v2251
        %vm2291 = vcmp.ge.f32.partialorder %v2211, %v2251
        %vm2292 = vcmp.ge.f32.partialorder %v2212, %v2254
        %vm2293 = vcmp.ge.f32.partialorder %v2213, %v2254
        %vm2294 = vcmp.ge.f32.partialorder %v2214, %v2257
        %vm2295 = vcmp.ge.f32.partialorder %v2215, %v2257
        %vm2296 = vcmp.ge.f32.partialorder %v2216, %v2260
        %vm2297 = vcmp.ge.f32.partialorder %v2217, %v2260
        %vm2298 = vcmp.ge.f32.partialorder %v2218, %v2263
        %vm2299 = vcmp.ge.f32.partialorder %v2219, %v2263
        %vm2300 = vcmp.ge.f32.partialorder %v2220, %v2266
        %vm2301 = vcmp.ge.f32.partialorder %v2221, %v2266
        %vm2302 = vcmp.ge.f32.partialorder %v2222, %v2269
        %vm2303 = vcmp.ge.f32.partialorder %v2223, %v2269
        %vm2304 = vcmp.ge.f32.partialorder %v2224, %v2272
        %vm2305 = vcmp.ge.f32.partialorder %v2225, %v2272
        %vm2306 = vcmp.ge.f32.partialorder %v2226, %v2275
        %vm2307 = vcmp.ge.f32.partialorder %v2227, %v2275
        %v2308 = vsel %vm2276, -inf, %v2196
        %v2309 = vsel %vm2277, -inf, %v2197
        %v2310 = vsel %vm2278, -inf, %v2198
        %v2311 = vsel %vm2279, -inf, %v2199
        %v2312 = vsel %vm2280, -inf, %v2200
        %v2313 = vsel %vm2281, -inf, %v2201
        %v2314 = vsel %vm2282, -inf, %v2202
        %v2315 = vsel %vm2283, -inf, %v2203
        %v2316 = vsel %vm2284, -inf, %v2204
        %v2317 = vsel %vm2285, -inf, %v2205
        %v2318 = vsel %vm2286, -inf, %v2206
        %v2319 = vsel %vm2287, -inf, %v2207
        %v2320 = vsel %vm2288, -inf, %v2208
        %v2321 = vsel %vm2289, -inf, %v2209
        %v2322 = vsel %vm2290, -inf, %v2210
        %v2323 = vsel %vm2291, -inf, %v2211
        %v2324 = vsel %vm2292, -inf, %v2212
        %v2325 = vsel %vm2293, -inf, %v2213
        %v2326 = vsel %vm2294, -inf, %v2214
        %v2327 = vsel %vm2295, -inf, %v2215
        %v2328 = vsel %vm2296, -inf, %v2216
        %v2329 = vsel %vm2297, -inf, %v2217
        %v2330 = vsel %vm2298, -inf, %v2218
        %v2331 = vsel %vm2299, -inf, %v2219
        %v2332 = vsel %vm2300, -inf, %v2220
        %v2333 = vsel %vm2301, -inf, %v2221
        %v2334 = vsel %vm2302, -inf, %v2222
        %v2335 = vsel %vm2303, -inf, %v2223
        %v2336 = vsel %vm2304, -inf, %v2224
        %v2337 = vsel %vm2305, -inf, %v2225
        %v2338 = vsel %vm2306, -inf, %v2226
        %v2339 = vsel %vm2307, -inf, %v2227
        %v2340 = vmax.f32 %v2308, %v2309
        %2341 = vmax.xlane.f32.xlu0 %v2340
        %v2342 = vpop.xlane.xlu0 %2341
        %v2343 = vmax.f32 %v2310, %v2311
        %2344 = vmax.xlane.f32.xlu0 %v2343
        %v2345 = vpop.xlane.xlu0 %2344
        %v2346 = vmax.f32 %v2312, %v2313
        %2347 = vmax.xlane.f32.xlu0 %v2346
        %v2348 = vpop.xlane.xlu0 %2347
        %v2349 = vmax.f32 %v2314, %v2315
        %2350 = vmax.xlane.f32.xlu0 %v2349
        %v2351 = vpop.xlane.xlu0 %2350
        %v2352 = vmax.f32 %v2316, %v2317
        %2353 = vmax.xlane.f32.xlu0 %v2352
        %v2354 = vpop.xlane.xlu0 %2353
        %v2355 = vmax.f32 %v2318, %v2319
        %2356 = vmax.xlane.f32.xlu0 %v2355
        %v2357 = vpop.xlane.xlu0 %2356
        %v2358 = vmax.f32 %v2320, %v2321
        %2359 = vmax.xlane.f32.xlu0 %v2358
        %v2360 = vpop.xlane.xlu0 %2359
        %v2361 = vmax.f32 %v2322, %v2323
        %2362 = vmax.xlane.f32.xlu0 %v2361
        %v2363 = vpop.xlane.xlu0 %2362
        %v2364 = vmax.f32 %v2324, %v2325
        %2365 = vmax.xlane.f32.xlu0 %v2364
        %v2366 = vpop.xlane.xlu0 %2365
        %v2367 = vmax.f32 %v2326, %v2327
        %2368 = vmax.xlane.f32.xlu0 %v2367
        %v2369 = vpop.xlane.xlu0 %2368
        %v2370 = vmax.f32 %v2328, %v2329
        %2371 = vmax.xlane.f32.xlu0 %v2370
        %v2372 = vpop.xlane.xlu0 %2371
        %v2373 = vmax.f32 %v2330, %v2331
        %2374 = vmax.xlane.f32.xlu0 %v2373
        %v2375 = vpop.xlane.xlu0 %2374
        %v2376 = vmax.f32 %v2332, %v2333
        %2377 = vmax.xlane.f32.xlu0 %v2376
        %v2378 = vpop.xlane.xlu0 %2377
        %v2379 = vmax.f32 %v2334, %v2335
        %2380 = vmax.xlane.f32.xlu0 %v2379
        %v2381 = vpop.xlane.xlu0 %2380
        %v2382 = vmax.f32 %v2336, %v2337
        %2383 = vmax.xlane.f32.xlu0 %v2382
        %v2384 = vpop.xlane.xlu0 %2383
        %v2385 = vmax.f32 %v2338, %v2339
        %2386 = vmax.xlane.f32.xlu0 %v2385
        %v2387 = vpop.xlane.xlu0 %2386
        %vm2388 = vcmask 7168
        %v2389 = vsel %vm2388, %v2006, %v2118
        %v2390 = vsel %vm2388, %v2009, %v2121
        %v2391 = vsel %vm2388, %v2012, %v2124
        %v2392 = vsel %vm2388, %v2015, %v2127
        %v2393 = vsel %vm2388, %v2018, %v2130
        %v2394 = vsel %vm2388, %v2021, %v2133
        %v2395 = vsel %vm2388, %v2024, %v2136
        %v2396 = vsel %vm2388, %v2027, %v2139
        %v2397 = vsel %vm2388, %v2030, %v2142
        %v2398 = vsel %vm2388, %v2033, %v2145
        %v2399 = vsel %vm2388, %v2036, %v2148
        %v2400 = vsel %vm2388, %v2039, %v2151
        %v2401 = vsel %vm2388, %v2042, %v2154
        %v2402 = vsel %vm2388, %v2045, %v2157
        %v2403 = vsel %vm2388, %v2048, %v2160
        %v2404 = vsel %vm2388, %v2051, %v2163
        %vm2405 = vcmask 15360
        %v2406 = vsel %vm2405, %v2389, %v2230
        %v2407 = vsel %vm2405, %v2390, %v2233
        %v2408 = vsel %vm2405, %v2391, %v2236
        %v2409 = vsel %vm2405, %v2392, %v2239
        %v2410 = vsel %vm2405, %v2393, %v2242
        %v2411 = vsel %vm2405, %v2394, %v2245
        %v2412 = vsel %vm2405, %v2395, %v2248
        %v2413 = vsel %vm2405, %v2396, %v2251
        %v2414 = vsel %vm2405, %v2397, %v2254
        %v2415 = vsel %vm2405, %v2398, %v2257
        %v2416 = vsel %vm2405, %v2399, %v2260
        %v2417 = vsel %vm2405, %v2400, %v2263
        %v2418 = vsel %vm2405, %v2401, %v2266
        %v2419 = vsel %vm2405, %v2402, %v2269
        %v2420 = vsel %vm2405, %v2403, %v2272
        %v2421 = vsel %vm2405, %v2404, %v2275
        %vm2422 = vcmask 23552
        %v2423 = vsel %vm2422, %v2406, %v2342
        %v2424 = vsel %vm2422, %v2407, %v2345
        %v2425 = vsel %vm2422, %v2408, %v2348
        %v2426 = vsel %vm2422, %v2409, %v2351
        %v2427 = vsel %vm2422, %v2410, %v2354
        %v2428 = vsel %vm2422, %v2411, %v2357
        %v2429 = vsel %vm2422, %v2412, %v2360
        %v2430 = vsel %vm2422, %v2413, %v2363
        %v2431 = vsel %vm2422, %v2414, %v2366
        %v2432 = vsel %vm2422, %v2415, %v2369
        %v2433 = vsel %vm2422, %v2416, %v2372
        %v2434 = vsel %vm2422, %v2417, %v2375
        %v2435 = vsel %vm2422, %v2418, %v2378
        %v2436 = vsel %vm2422, %v2419, %v2381
        %v2437 = vsel %vm2422, %v2420, %v2384
        %v2438 = vsel %vm2422, %v2421, %v2387
        %v2440 = vsel %vm447, %v1376, 0
        %v2443 = vsel %vm447, %v1377, 0
        %v2446 = vsel %vm447, %v1378, 0
        %v2449 = vsel %vm447, %v1379, 0
        %v2452 = vsel %vm447, %v1380, 0
        %v2455 = vsel %vm447, %v1381, 0
        %v2458 = vsel %vm447, %v1382, 0
        %v2461 = vsel %vm447, %v1383, 0
        %v2464 = vsel %vm447, %v1384, 0
        %v2467 = vsel %vm447, %v1385, 0
        %v2470 = vsel %vm447, %v1386, 0
        %v2473 = vsel %vm447, %v1387, 0
        %v2476 = vsel %vm447, %v1388, 0
        %v2479 = vsel %vm447, %v1389, 0
        %v2482 = vsel %vm447, %v1390, 0
        %v2485 = vsel %vm447, %v1391, 0
        %v2488 = vsel %vm447, %v1392, 0
        %v2491 = vsel %vm447, %v1393, 0
        %v2494 = vsel %vm447, %v1394, 0
        %v2497 = vsel %vm447, %v1395, 0
        %v2500 = vsel %vm447, %v1396, 0
        %v2503 = vsel %vm447, %v1397, 0
        %v2506 = vsel %vm447, %v1398, 0
        %v2509 = vsel %vm447, %v1399, 0
        %v2512 = vsel %vm447, %v1400, 0
        %v2515 = vsel %vm447, %v1401, 0
        %v2518 = vsel %vm447, %v1402, 0
        %v2521 = vsel %vm447, %v1403, 0
        %v2524 = vsel %vm447, %v1404, 0
        %v2527 = vsel %vm447, %v1405, 0
        %v2530 = vsel %vm447, %v1406, 0
        %v2533 = vsel %vm447, %v1407, 0
        %2535 = vmatpush.xpose.msra.mxu0 %v2485
        %2536 = vmatpush.xpose.msra.mxu0 %v2482
        %2537 = vmatpush.xpose.msra.mxu0 %v2479
        %2538 = vmatpush.xpose.msra.mxu0 %v2476
        %2539 = vmatpush.xpose.msra.mxu0 %v2473
        %2540 = vmatpush.xpose.msra.mxu0 %v2470
        %2541 = vmatpush.xpose.msra.mxu0 %v2467
        %2542 = vmatpush.xpose.msra.mxu0 %v2464
        %2543 = vmatpush.xpose.msra.mxu0 %v2461
        %2544 = vmatpush.xpose.msra.mxu0 %v2458
        %2545 = vmatpush.xpose.msra.mxu0 %v2455
        %2546 = vmatpush.xpose.msra.mxu0 %v2452
        %2547 = vmatpush.xpose.msra.mxu0 %v2449
        %2548 = vmatpush.xpose.msra.mxu0 %v2446
        %2549 = vmatpush.xpose.msra.mxu0 %v2443
        %2550 = vmatpush.xpose.msra.mxu0 %v2440
        %2551 = vmatmul.f32.gmra.mxu0 %v1731
        %v2552 = vpop.f32.mrf.mxu0
        %v2553 = vadd.f32 0.0, %v2552
        %2554 = vmatmul.f32.gmra.mxu0 %v1734
        %v2555 = vpop.f32.mrf.mxu0
        %v2556 = vadd.f32 0.0, %v2555
        %2557 = vmatmul.f32.gmra.mxu0 %v1737
        %v2558 = vpop.f32.mrf.mxu0
        %v2559 = vadd.f32 0.0, %v2558
        %2560 = vmatmul.f32.gmra.mxu0 %v1740
        %v2561 = vpop.f32.mrf.mxu0
        %v2562 = vadd.f32 0.0, %v2561
        %2563 = vmatmul.f32.gmra.mxu0 %v1743
        %v2564 = vpop.f32.mrf.mxu0
        %v2565 = vadd.f32 0.0, %v2564
        %2566 = vmatmul.f32.gmra.mxu0 %v1746
        %v2567 = vpop.f32.mrf.mxu0
        %v2568 = vadd.f32 0.0, %v2567
        %2569 = vmatmul.f32.gmra.mxu0 %v1749
        %v2570 = vpop.f32.mrf.mxu0
        %v2571 = vadd.f32 0.0, %v2570
        %2572 = vmatmul.f32.gmra.mxu0 %v1752
        %v2573 = vpop.f32.mrf.mxu0
        %v2574 = vadd.f32 0.0, %v2573
        %2575 = vmatmul.f32.gmra.mxu0 %v1755
        %v2576 = vpop.f32.mrf.mxu0
        %v2577 = vadd.f32 0.0, %v2576
        %2578 = vmatmul.f32.gmra.mxu0 %v1758
        %v2579 = vpop.f32.mrf.mxu0
        %v2580 = vadd.f32 0.0, %v2579
        %2581 = vmatmul.f32.gmra.mxu0 %v1761
        %v2582 = vpop.f32.mrf.mxu0
        %v2583 = vadd.f32 0.0, %v2582
        %2584 = vmatmul.f32.gmra.mxu0 %v1764
        %v2585 = vpop.f32.mrf.mxu0
        %v2586 = vadd.f32 0.0, %v2585
        %2587 = vmatmul.f32.gmra.mxu0 %v1767
        %v2588 = vpop.f32.mrf.mxu0
        %v2589 = vadd.f32 0.0, %v2588
        %2590 = vmatmul.f32.gmra.mxu0 %v1770
        %v2591 = vpop.f32.mrf.mxu0
        %v2592 = vadd.f32 0.0, %v2591
        %2593 = vmatmul.f32.gmra.mxu0 %v1773
        %v2594 = vpop.f32.mrf.mxu0
        %v2595 = vadd.f32 0.0, %v2594
        %2596 = vmatmul.f32.gmra.mxu0 %v1776
        %v2597 = vpop.f32.mrf.mxu0
        %v2598 = vadd.f32 0.0, %v2597
        %2599 = vdwg.mxu0
        %2600 = vmatpush.xpose.msra.mxu0 %v2533
        %2601 = vmatpush.xpose.msra.mxu0 %v2530
        %2602 = vmatpush.xpose.msra.mxu0 %v2527
        %2603 = vmatpush.xpose.msra.mxu0 %v2524
        %2604 = vmatpush.xpose.msra.mxu0 %v2521
        %2605 = vmatpush.xpose.msra.mxu0 %v2518
        %2606 = vmatpush.xpose.msra.mxu0 %v2515
        %2607 = vmatpush.xpose.msra.mxu0 %v2512
        %2608 = vmatpush.xpose.msra.mxu0 %v2509
        %2609 = vmatpush.xpose.msra.mxu0 %v2506
        %2610 = vmatpush.xpose.msra.mxu0 %v2503
        %2611 = vmatpush.xpose.msra.mxu0 %v2500
        %2612 = vmatpush.xpose.msra.mxu0 %v2497
        %2613 = vmatpush.xpose.msra.mxu0 %v2494
        %2614 = vmatpush.xpose.msra.mxu0 %v2491
        %2615 = vmatpush.xpose.msra.mxu0 %v2488
        %2616 = vmatmul.f32.gmra.mxu0 %v1731
        %v2617 = vpop.f32.mrf.mxu0
        %v2618 = vadd.f32 0.0, %v2617
        %2619 = vmatmul.f32.gmra.mxu0 %v1734
        %v2620 = vpop.f32.mrf.mxu0
        %v2621 = vadd.f32 0.0, %v2620
        %2622 = vmatmul.f32.gmra.mxu0 %v1737
        %v2623 = vpop.f32.mrf.mxu0
        %v2624 = vadd.f32 0.0, %v2623
        %2625 = vmatmul.f32.gmra.mxu0 %v1740
        %v2626 = vpop.f32.mrf.mxu0
        %v2627 = vadd.f32 0.0, %v2626
        %2628 = vmatmul.f32.gmra.mxu0 %v1743
        %v2629 = vpop.f32.mrf.mxu0
        %v2630 = vadd.f32 0.0, %v2629
        %2631 = vmatmul.f32.gmra.mxu0 %v1746
        %v2632 = vpop.f32.mrf.mxu0
        %v2633 = vadd.f32 0.0, %v2632
        %2634 = vmatmul.f32.gmra.mxu0 %v1749
        %v2635 = vpop.f32.mrf.mxu0
        %v2636 = vadd.f32 0.0, %v2635
        %2637 = vmatmul.f32.gmra.mxu0 %v1752
        %v2638 = vpop.f32.mrf.mxu0
        %v2639 = vadd.f32 0.0, %v2638
        %2640 = vmatmul.f32.gmra.mxu0 %v1755
        %v2641 = vpop.f32.mrf.mxu0
        %v2642 = vadd.f32 0.0, %v2641
        %2643 = vmatmul.f32.gmra.mxu0 %v1758
        %v2644 = vpop.f32.mrf.mxu0
        %v2645 = vadd.f32 0.0, %v2644
        %2646 = vmatmul.f32.gmra.mxu0 %v1761
        %v2647 = vpop.f32.mrf.mxu0
        %v2648 = vadd.f32 0.0, %v2647
        %2649 = vmatmul.f32.gmra.mxu0 %v1764
        %v2650 = vpop.f32.mrf.mxu0
        %v2651 = vadd.f32 0.0, %v2650
        %2652 = vmatmul.f32.gmra.mxu0 %v1767
        %v2653 = vpop.f32.mrf.mxu0
        %v2654 = vadd.f32 0.0, %v2653
        %2655 = vmatmul.f32.gmra.mxu0 %v1770
        %v2656 = vpop.f32.mrf.mxu0
        %v2657 = vadd.f32 0.0, %v2656
        %2658 = vmatmul.f32.gmra.mxu0 %v1773
        %v2659 = vpop.f32.mrf.mxu0
        %v2660 = vadd.f32 0.0, %v2659
        %2661 = vmatmul.f32.gmra.mxu0 %v1776
        %v2662 = vpop.f32.mrf.mxu0
        %v2663 = vadd.f32 0.0, %v2662
        %2664 = vdwg.mxu0
        %v2665 = vmax.f32 %v2553, %v2618
        %2666 = vmax.xlane.f32.xlu0 %v2665
        %v2667 = vpop.xlane.xlu0 %2666
        %v2668 = vmax.f32 %v2556, %v2621
        %2669 = vmax.xlane.f32.xlu0 %v2668
        %v2670 = vpop.xlane.xlu0 %2669
        %v2671 = vmax.f32 %v2559, %v2624
        %2672 = vmax.xlane.f32.xlu0 %v2671
        %v2673 = vpop.xlane.xlu0 %2672
        %v2674 = vmax.f32 %v2562, %v2627
        %2675 = vmax.xlane.f32.xlu0 %v2674
        %v2676 = vpop.xlane.xlu0 %2675
        %v2677 = vmax.f32 %v2565, %v2630
        %2678 = vmax.xlane.f32.xlu0 %v2677
        %v2679 = vpop.xlane.xlu0 %2678
        %v2680 = vmax.f32 %v2568, %v2633
        %2681 = vmax.xlane.f32.xlu0 %v2680
        %v2682 = vpop.xlane.xlu0 %2681
        %v2683 = vmax.f32 %v2571, %v2636
        %2684 = vmax.xlane.f32.xlu0 %v2683
        %v2685 = vpop.xlane.xlu0 %2684
        %v2686 = vmax.f32 %v2574, %v2639
        %2687 = vmax.xlane.f32.xlu0 %v2686
        %v2688 = vpop.xlane.xlu0 %2687
        %v2689 = vmax.f32 %v2577, %v2642
        %2690 = vmax.xlane.f32.xlu0 %v2689
        %v2691 = vpop.xlane.xlu0 %2690
        %v2692 = vmax.f32 %v2580, %v2645
        %2693 = vmax.xlane.f32.xlu0 %v2692
        %v2694 = vpop.xlane.xlu0 %2693
        %v2695 = vmax.f32 %v2583, %v2648
        %2696 = vmax.xlane.f32.xlu0 %v2695
        %v2697 = vpop.xlane.xlu0 %2696
        %v2698 = vmax.f32 %v2586, %v2651
        %2699 = vmax.xlane.f32.xlu0 %v2698
        %v2700 = vpop.xlane.xlu0 %2699
        %v2701 = vmax.f32 %v2589, %v2654
        %2702 = vmax.xlane.f32.xlu0 %v2701
        %v2703 = vpop.xlane.xlu0 %2702
        %v2704 = vmax.f32 %v2592, %v2657
        %2705 = vmax.xlane.f32.xlu0 %v2704
        %v2706 = vpop.xlane.xlu0 %2705
        %v2707 = vmax.f32 %v2595, %v2660
        %2708 = vmax.xlane.f32.xlu0 %v2707
        %v2709 = vpop.xlane.xlu0 %2708
        %v2710 = vmax.f32 %v2598, %v2663
        %2711 = vmax.xlane.f32.xlu0 %v2710
        %v2712 = vpop.xlane.xlu0 %2711
        %vm2713 = vcmask 31744
        %v2714 = vsel %vm2713, %v2423, -inf
        %2715 = vmax.xlane.f32.xlu0 %v2714
        %v2716 = vpop.xlane.xlu0 %2715
        %v2717 = vsel %vm2713, %v2424, -inf
        %2718 = vmax.xlane.f32.xlu0 %v2717
        %v2719 = vpop.xlane.xlu0 %2718
        %v2720 = vsel %vm2713, %v2425, -inf
        %2721 = vmax.xlane.f32.xlu0 %v2720
        %v2722 = vpop.xlane.xlu0 %2721
        %v2723 = vsel %vm2713, %v2426, -inf
        %2724 = vmax.xlane.f32.xlu0 %v2723
        %v2725 = vpop.xlane.xlu0 %2724
        %v2726 = vsel %vm2713, %v2427, -inf
        %2727 = vmax.xlane.f32.xlu0 %v2726
        %v2728 = vpop.xlane.xlu0 %2727
        %v2729 = vsel %vm2713, %v2428, -inf
        %2730 = vmax.xlane.f32.xlu0 %v2729
        %v2731 = vpop.xlane.xlu0 %2730
        %v2732 = vsel %vm2713, %v2429, -inf
        %2733 = vmax.xlane.f32.xlu0 %v2732
        %v2734 = vpop.xlane.xlu0 %2733
        %v2735 = vsel %vm2713, %v2430, -inf
        %2736 = vmax.xlane.f32.xlu0 %v2735
        %v2737 = vpop.xlane.xlu0 %2736
        %v2738 = vsel %vm2713, %v2431, -inf
        %2739 = vmax.xlane.f32.xlu0 %v2738
        %v2740 = vpop.xlane.xlu0 %2739
        %v2741 = vsel %vm2713, %v2432, -inf
        %2742 = vmax.xlane.f32.xlu0 %v2741
        %v2743 = vpop.xlane.xlu0 %2742
        %v2744 = vsel %vm2713, %v2433, -inf
        %2745 = vmax.xlane.f32.xlu0 %v2744
        %v2746 = vpop.xlane.xlu0 %2745
        %v2747 = vsel %vm2713, %v2434, -inf
        %2748 = vmax.xlane.f32.xlu0 %v2747
        %v2749 = vpop.xlane.xlu0 %2748
        %v2750 = vsel %vm2713, %v2435, -inf
        %2751 = vmax.xlane.f32.xlu0 %v2750
        %v2752 = vpop.xlane.xlu0 %2751
        %v2753 = vsel %vm2713, %v2436, -inf
        %2754 = vmax.xlane.f32.xlu0 %v2753
        %v2755 = vpop.xlane.xlu0 %2754
        %v2756 = vsel %vm2713, %v2437, -inf
        %2757 = vmax.xlane.f32.xlu0 %v2756
        %v2758 = vpop.xlane.xlu0 %2757
        %v2759 = vsel %vm2713, %v2438, -inf
        %2760 = vmax.xlane.f32.xlu0 %v2759
        %v2761 = vpop.xlane.xlu0 %2760
        %v2762 = vmax.f32 %v2667, %v2716
        %v2763 = vmax.f32 %v2670, %v2719
        %v2764 = vmax.f32 %v2673, %v2722
        %v2765 = vmax.f32 %v2676, %v2725
        %v2766 = vmax.f32 %v2679, %v2728
        %v2767 = vmax.f32 %v2682, %v2731
        %v2768 = vmax.f32 %v2685, %v2734
        %v2769 = vmax.f32 %v2688, %v2737
        %v2770 = vmax.f32 %v2691, %v2740
        %v2771 = vmax.f32 %v2694, %v2743
        %v2772 = vmax.f32 %v2697, %v2746
        %v2773 = vmax.f32 %v2700, %v2749
        %v2774 = vmax.f32 %v2703, %v2752
        %v2775 = vmax.f32 %v2706, %v2755
        %v2776 = vmax.f32 %v2709, %v2758
        %v2777 = vmax.f32 %v2712, %v2761
        %vm2778 = vcmp.ge.f32.partialorder %v2553, %v2762
        %vm2779 = vcmp.ge.f32.partialorder %v2618, %v2762
        %vm2780 = vcmp.ge.f32.partialorder %v2556, %v2763
        %vm2781 = vcmp.ge.f32.partialorder %v2621, %v2763
        %vm2782 = vcmp.ge.f32.partialorder %v2559, %v2764
        %vm2783 = vcmp.ge.f32.partialorder %v2624, %v2764
        %vm2784 = vcmp.ge.f32.partialorder %v2562, %v2765
        %vm2785 = vcmp.ge.f32.partialorder %v2627, %v2765
        %vm2786 = vcmp.ge.f32.partialorder %v2565, %v2766
        %vm2787 = vcmp.ge.f32.partialorder %v2630, %v2766
        %vm2788 = vcmp.ge.f32.partialorder %v2568, %v2767
        %vm2789 = vcmp.ge.f32.partialorder %v2633, %v2767
        %vm2790 = vcmp.ge.f32.partialorder %v2571, %v2768
        %vm2791 = vcmp.ge.f32.partialorder %v2636, %v2768
        %vm2792 = vcmp.ge.f32.partialorder %v2574, %v2769
        %vm2793 = vcmp.ge.f32.partialorder %v2639, %v2769
        %vm2794 = vcmp.ge.f32.partialorder %v2577, %v2770
        %vm2795 = vcmp.ge.f32.partialorder %v2642, %v2770
        %vm2796 = vcmp.ge.f32.partialorder %v2580, %v2771
        %vm2797 = vcmp.ge.f32.partialorder %v2645, %v2771
        %vm2798 = vcmp.ge.f32.partialorder %v2583, %v2772
        %vm2799 = vcmp.ge.f32.partialorder %v2648, %v2772
        %vm2800 = vcmp.ge.f32.partialorder %v2586, %v2773
        %vm2801 = vcmp.ge.f32.partialorder %v2651, %v2773
        %vm2802 = vcmp.ge.f32.partialorder %v2589, %v2774
        %vm2803 = vcmp.ge.f32.partialorder %v2654, %v2774
        %vm2804 = vcmp.ge.f32.partialorder %v2592, %v2775
        %vm2805 = vcmp.ge.f32.partialorder %v2657, %v2775
        %vm2806 = vcmp.ge.f32.partialorder %v2595, %v2776
        %vm2807 = vcmp.ge.f32.partialorder %v2660, %v2776
        %vm2808 = vcmp.ge.f32.partialorder %v2598, %v2777
        %vm2809 = vcmp.ge.f32.partialorder %v2663, %v2777
        %v2810 = vsel %vm2778, -inf, %v2553
        %v2811 = vsel %vm2779, -inf, %v2618
        %v2812 = vsel %vm2780, -inf, %v2556
        %v2813 = vsel %vm2781, -inf, %v2621
        %v2814 = vsel %vm2782, -inf, %v2559
        %v2815 = vsel %vm2783, -inf, %v2624
        %v2816 = vsel %vm2784, -inf, %v2562
        %v2817 = vsel %vm2785, -inf, %v2627
        %v2818 = vsel %vm2786, -inf, %v2565
        %v2819 = vsel %vm2787, -inf, %v2630
        %v2820 = vsel %vm2788, -inf, %v2568
        %v2821 = vsel %vm2789, -inf, %v2633
        %v2822 = vsel %vm2790, -inf, %v2571
        %v2823 = vsel %vm2791, -inf, %v2636
        %v2824 = vsel %vm2792, -inf, %v2574
        %v2825 = vsel %vm2793, -inf, %v2639
        %v2826 = vsel %vm2794, -inf, %v2577
        %v2827 = vsel %vm2795, -inf, %v2642
        %v2828 = vsel %vm2796, -inf, %v2580
        %v2829 = vsel %vm2797, -inf, %v2645
        %v2830 = vsel %vm2798, -inf, %v2583
        %v2831 = vsel %vm2799, -inf, %v2648
        %v2832 = vsel %vm2800, -inf, %v2586
        %v2833 = vsel %vm2801, -inf, %v2651
        %v2834 = vsel %vm2802, -inf, %v2589
        %v2835 = vsel %vm2803, -inf, %v2654
        %v2836 = vsel %vm2804, -inf, %v2592
        %v2837 = vsel %vm2805, -inf, %v2657
        %v2838 = vsel %vm2806, -inf, %v2595
        %v2839 = vsel %vm2807, -inf, %v2660
        %v2840 = vsel %vm2808, -inf, %v2598
        %v2841 = vsel %vm2809, -inf, %v2663
        %vm2842 = vcmp.ge.f32.partialorder %v2423, %v2762
        %vm2843 = vcmp.ge.f32.partialorder %v2424, %v2763
        %vm2844 = vcmp.ge.f32.partialorder %v2425, %v2764
        %vm2845 = vcmp.ge.f32.partialorder %v2426, %v2765
        %vm2846 = vcmp.ge.f32.partialorder %v2427, %v2766
        %vm2847 = vcmp.ge.f32.partialorder %v2428, %v2767
        %vm2848 = vcmp.ge.f32.partialorder %v2429, %v2768
        %vm2849 = vcmp.ge.f32.partialorder %v2430, %v2769
        %vm2850 = vcmp.ge.f32.partialorder %v2431, %v2770
        %vm2851 = vcmp.ge.f32.partialorder %v2432, %v2771
        %vm2852 = vcmp.ge.f32.partialorder %v2433, %v2772
        %vm2853 = vcmp.ge.f32.partialorder %v2434, %v2773
        %vm2854 = vcmp.ge.f32.partialorder %v2435, %v2774
        %vm2855 = vcmp.ge.f32.partialorder %v2436, %v2775
        %vm2856 = vcmp.ge.f32.partialorder %v2437, %v2776
        %vm2857 = vcmp.ge.f32.partialorder %v2438, %v2777
        %v2858 = vsel %vm2842, -inf, %v2423
        %v2859 = vsel %vm2843, -inf, %v2424
        %v2860 = vsel %vm2844, -inf, %v2425
        %v2861 = vsel %vm2845, -inf, %v2426
        %v2862 = vsel %vm2846, -inf, %v2427
        %v2863 = vsel %vm2847, -inf, %v2428
        %v2864 = vsel %vm2848, -inf, %v2429
        %v2865 = vsel %vm2849, -inf, %v2430
        %v2866 = vsel %vm2850, -inf, %v2431
        %v2867 = vsel %vm2851, -inf, %v2432
        %v2868 = vsel %vm2852, -inf, %v2433
        %v2869 = vsel %vm2853, -inf, %v2434
        %v2870 = vsel %vm2854, -inf, %v2435
        %v2871 = vsel %vm2855, -inf, %v2436
        %v2872 = vsel %vm2856, -inf, %v2437
        %v2873 = vsel %vm2857, -inf, %v2438
        %v2874 = vmax.f32 %v2810, %v2811
        %2875 = vmax.xlane.f32.xlu0 %v2874
        %v2876 = vpop.xlane.xlu0 %2875
        %v2877 = vmax.f32 %v2812, %v2813
        %2878 = vmax.xlane.f32.xlu0 %v2877
        %v2879 = vpop.xlane.xlu0 %2878
        %v2880 = vmax.f32 %v2814, %v2815
        %2881 = vmax.xlane.f32.xlu0 %v2880
        %v2882 = vpop.xlane.xlu0 %2881
        %v2883 = vmax.f32 %v2816, %v2817
        %2884 = vmax.xlane.f32.xlu0 %v2883
        %v2885 = vpop.xlane.xlu0 %2884
        %v2886 = vmax.f32 %v2818, %v2819
        %2887 = vmax.xlane.f32.xlu0 %v2886
        %v2888 = vpop.xlane.xlu0 %2887
        %v2889 = vmax.f32 %v2820, %v2821
        %2890 = vmax.xlane.f32.xlu0 %v2889
        %v2891 = vpop.xlane.xlu0 %2890
        %v2892 = vmax.f32 %v2822, %v2823
        %2893 = vmax.xlane.f32.xlu0 %v2892
        %v2894 = vpop.xlane.xlu0 %2893
        %v2895 = vmax.f32 %v2824, %v2825
        %2896 = vmax.xlane.f32.xlu0 %v2895
        %v2897 = vpop.xlane.xlu0 %2896
        %v2898 = vmax.f32 %v2826, %v2827
        %2899 = vmax.xlane.f32.xlu0 %v2898
        %v2900 = vpop.xlane.xlu0 %2899
        %v2901 = vmax.f32 %v2828, %v2829
        %2902 = vmax.xlane.f32.xlu0 %v2901
        %v2903 = vpop.xlane.xlu0 %2902
        %v2904 = vmax.f32 %v2830, %v2831
        %2905 = vmax.xlane.f32.xlu0 %v2904
        %v2906 = vpop.xlane.xlu0 %2905
        %v2907 = vmax.f32 %v2832, %v2833
        %2908 = vmax.xlane.f32.xlu0 %v2907
        %v2909 = vpop.xlane.xlu0 %2908
        %v2910 = vmax.f32 %v2834, %v2835
        %2911 = vmax.xlane.f32.xlu0 %v2910
        %v2912 = vpop.xlane.xlu0 %2911
        %v2913 = vmax.f32 %v2836, %v2837
        %2914 = vmax.xlane.f32.xlu0 %v2913
        %v2915 = vpop.xlane.xlu0 %2914
        %v2916 = vmax.f32 %v2838, %v2839
        %2917 = vmax.xlane.f32.xlu0 %v2916
        %v2918 = vpop.xlane.xlu0 %2917
        %v2919 = vmax.f32 %v2840, %v2841
        %2920 = vmax.xlane.f32.xlu0 %v2919
        %v2921 = vpop.xlane.xlu0 %2920
        %v2922 = vsel %vm2713, %v2858, -inf
        %2923 = vmax.xlane.f32.xlu0 %v2922
        %v2924 = vpop.xlane.xlu0 %2923
        %v2925 = vsel %vm2713, %v2859, -inf
        %2926 = vmax.xlane.f32.xlu0 %v2925
        %v2927 = vpop.xlane.xlu0 %2926
        %v2928 = vsel %vm2713, %v2860, -inf
        %2929 = vmax.xlane.f32.xlu0 %v2928
        %v2930 = vpop.xlane.xlu0 %2929
        %v2931 = vsel %vm2713, %v2861, -inf
        %2932 = vmax.xlane.f32.xlu0 %v2931
        %v2933 = vpop.xlane.xlu0 %2932
        %v2934 = vsel %vm2713, %v2862, -inf
        %2935 = vmax.xlane.f32.xlu0 %v2934
        %v2936 = vpop.xlane.xlu0 %2935
        %v2937 = vsel %vm2713, %v2863, -inf
        %2938 = vmax.xlane.f32.xlu0 %v2937
        %v2939 = vpop.xlane.xlu0 %2938
        %v2940 = vsel %vm2713, %v2864, -inf
        %2941 = vmax.xlane.f32.xlu0 %v2940
        %v2942 = vpop.xlane.xlu0 %2941
        %v2943 = vsel %vm2713, %v2865, -inf
        %2944 = vmax.xlane.f32.xlu0 %v2943
        %v2945 = vpop.xlane.xlu0 %2944
        %v2946 = vsel %vm2713, %v2866, -inf
        %2947 = vmax.xlane.f32.xlu0 %v2946
        %v2948 = vpop.xlane.xlu0 %2947
        %v2949 = vsel %vm2713, %v2867, -inf
        %2950 = vmax.xlane.f32.xlu0 %v2949
        %v2951 = vpop.xlane.xlu0 %2950
        %v2952 = vsel %vm2713, %v2868, -inf
        %2953 = vmax.xlane.f32.xlu0 %v2952
        %v2954 = vpop.xlane.xlu0 %2953
        %v2955 = vsel %vm2713, %v2869, -inf
        %2956 = vmax.xlane.f32.xlu0 %v2955
        %v2957 = vpop.xlane.xlu0 %2956
        %v2958 = vsel %vm2713, %v2870, -inf
        %2959 = vmax.xlane.f32.xlu0 %v2958
        %v2960 = vpop.xlane.xlu0 %2959
        %v2961 = vsel %vm2713, %v2871, -inf
        %2962 = vmax.xlane.f32.xlu0 %v2961
        %v2963 = vpop.xlane.xlu0 %2962
        %v2964 = vsel %vm2713, %v2872, -inf
        %2965 = vmax.xlane.f32.xlu0 %v2964
        %v2966 = vpop.xlane.xlu0 %2965
        %v2967 = vsel %vm2713, %v2873, -inf
        %2968 = vmax.xlane.f32.xlu0 %v2967
        %v2969 = vpop.xlane.xlu0 %2968
        %v2970 = vmax.f32 %v2876, %v2924
        %v2971 = vmax.f32 %v2879, %v2927
        %v2972 = vmax.f32 %v2882, %v2930
        %v2973 = vmax.f32 %v2885, %v2933
        %v2974 = vmax.f32 %v2888, %v2936
        %v2975 = vmax.f32 %v2891, %v2939
        %v2976 = vmax.f32 %v2894, %v2942
        %v2977 = vmax.f32 %v2897, %v2945
        %v2978 = vmax.f32 %v2900, %v2948
        %v2979 = vmax.f32 %v2903, %v2951
        %v2980 = vmax.f32 %v2906, %v2954
        %v2981 = vmax.f32 %v2909, %v2957
        %v2982 = vmax.f32 %v2912, %v2960
        %v2983 = vmax.f32 %v2915, %v2963
        %v2984 = vmax.f32 %v2918, %v2966
        %v2985 = vmax.f32 %v2921, %v2969
        %vm2986 = vcmp.ge.f32.partialorder %v2810, %v2970
        %vm2987 = vcmp.ge.f32.partialorder %v2811, %v2970
        %vm2988 = vcmp.ge.f32.partialorder %v2812, %v2971
        %vm2989 = vcmp.ge.f32.partialorder %v2813, %v2971
        %vm2990 = vcmp.ge.f32.partialorder %v2814, %v2972
        %vm2991 = vcmp.ge.f32.partialorder %v2815, %v2972
        %vm2992 = vcmp.ge.f32.partialorder %v2816, %v2973
        %vm2993 = vcmp.ge.f32.partialorder %v2817, %v2973
        %vm2994 = vcmp.ge.f32.partialorder %v2818, %v2974
        %vm2995 = vcmp.ge.f32.partialorder %v2819, %v2974
        %vm2996 = vcmp.ge.f32.partialorder %v2820, %v2975
        %vm2997 = vcmp.ge.f32.partialorder %v2821, %v2975
        %vm2998 = vcmp.ge.f32.partialorder %v2822, %v2976
        %vm2999 = vcmp.ge.f32.partialorder %v2823, %v2976
        %vm3000 = vcmp.ge.f32.partialorder %v2824, %v2977
        %vm3001 = vcmp.ge.f32.partialorder %v2825, %v2977
        %vm3002 = vcmp.ge.f32.partialorder %v2826, %v2978
        %vm3003 = vcmp.ge.f32.partialorder %v2827, %v2978
        %vm3004 = vcmp.ge.f32.partialorder %v2828, %v2979
        %vm3005 = vcmp.ge.f32.partialorder %v2829, %v2979
        %vm3006 = vcmp.ge.f32.partialorder %v2830, %v2980
        %vm3007 = vcmp.ge.f32.partialorder %v2831, %v2980
        %vm3008 = vcmp.ge.f32.partialorder %v2832, %v2981
        %vm3009 = vcmp.ge.f32.partialorder %v2833, %v2981
        %vm3010 = vcmp.ge.f32.partialorder %v2834, %v2982
        %vm3011 = vcmp.ge.f32.partialorder %v2835, %v2982
        %vm3012 = vcmp.ge.f32.partialorder %v2836, %v2983
        %vm3013 = vcmp.ge.f32.partialorder %v2837, %v2983
        %vm3014 = vcmp.ge.f32.partialorder %v2838, %v2984
        %vm3015 = vcmp.ge.f32.partialorder %v2839, %v2984
        %vm3016 = vcmp.ge.f32.partialorder %v2840, %v2985
        %vm3017 = vcmp.ge.f32.partialorder %v2841, %v2985
        %v3018 = vsel %vm2986, -inf, %v2810
        %v3019 = vsel %vm2987, -inf, %v2811
        %v3020 = vsel %vm2988, -inf, %v2812
        %v3021 = vsel %vm2989, -inf, %v2813
        %v3022 = vsel %vm2990, -inf, %v2814
        %v3023 = vsel %vm2991, -inf, %v2815
        %v3024 = vsel %vm2992, -inf, %v2816
        %v3025 = vsel %vm2993, -inf, %v2817
        %v3026 = vsel %vm2994, -inf, %v2818
        %v3027 = vsel %vm2995, -inf, %v2819
        %v3028 = vsel %vm2996, -inf, %v2820
        %v3029 = vsel %vm2997, -inf, %v2821
        %v3030 = vsel %vm2998, -inf, %v2822
        %v3031 = vsel %vm2999, -inf, %v2823
        %v3032 = vsel %vm3000, -inf, %v2824
        %v3033 = vsel %vm3001, -inf, %v2825
        %v3034 = vsel %vm3002, -inf, %v2826
        %v3035 = vsel %vm3003, -inf, %v2827
        %v3036 = vsel %vm3004, -inf, %v2828
        %v3037 = vsel %vm3005, -inf, %v2829
        %v3038 = vsel %vm3006, -inf, %v2830
        %v3039 = vsel %vm3007, -inf, %v2831
        %v3040 = vsel %vm3008, -inf, %v2832
        %v3041 = vsel %vm3009, -inf, %v2833
        %v3042 = vsel %vm3010, -inf, %v2834
        %v3043 = vsel %vm3011, -inf, %v2835
        %v3044 = vsel %vm3012, -inf, %v2836
        %v3045 = vsel %vm3013, -inf, %v2837
        %v3046 = vsel %vm3014, -inf, %v2838
        %v3047 = vsel %vm3015, -inf, %v2839
        %v3048 = vsel %vm3016, -inf, %v2840
        %v3049 = vsel %vm3017, -inf, %v2841
        %vm3050 = vcmp.ge.f32.partialorder %v2858, %v2970
        %vm3051 = vcmp.ge.f32.partialorder %v2859, %v2971
        %vm3052 = vcmp.ge.f32.partialorder %v2860, %v2972
        %vm3053 = vcmp.ge.f32.partialorder %v2861, %v2973
        %vm3054 = vcmp.ge.f32.partialorder %v2862, %v2974
        %vm3055 = vcmp.ge.f32.partialorder %v2863, %v2975
        %vm3056 = vcmp.ge.f32.partialorder %v2864, %v2976
        %vm3057 = vcmp.ge.f32.partialorder %v2865, %v2977
        %vm3058 = vcmp.ge.f32.partialorder %v2866, %v2978
        %vm3059 = vcmp.ge.f32.partialorder %v2867, %v2979
        %vm3060 = vcmp.ge.f32.partialorder %v2868, %v2980
        %vm3061 = vcmp.ge.f32.partialorder %v2869, %v2981
        %vm3062 = vcmp.ge.f32.partialorder %v2870, %v2982
        %vm3063 = vcmp.ge.f32.partialorder %v2871, %v2983
        %vm3064 = vcmp.ge.f32.partialorder %v2872, %v2984
        %vm3065 = vcmp.ge.f32.partialorder %v2873, %v2985
        %v3066 = vsel %vm3050, -inf, %v2858
        %v3067 = vsel %vm3051, -inf, %v2859
        %v3068 = vsel %vm3052, -inf, %v2860
        %v3069 = vsel %vm3053, -inf, %v2861
        %v3070 = vsel %vm3054, -inf, %v2862
        %v3071 = vsel %vm3055, -inf, %v2863
        %v3072 = vsel %vm3056, -inf, %v2864
        %v3073 = vsel %vm3057, -inf, %v2865
        %v3074 = vsel %vm3058, -inf, %v2866
        %v3075 = vsel %vm3059, -inf, %v2867
        %v3076 = vsel %vm3060, -inf, %v2868
        %v3077 = vsel %vm3061, -inf, %v2869
        %v3078 = vsel %vm3062, -inf, %v2870
        %v3079 = vsel %vm3063, -inf, %v2871
        %v3080 = vsel %vm3064, -inf, %v2872
        %v3081 = vsel %vm3065, -inf, %v2873
        %v3082 = vmax.f32 %v3018, %v3019
        %3083 = vmax.xlane.f32.xlu0 %v3082
        %v3084 = vpop.xlane.xlu0 %3083
        %v3085 = vmax.f32 %v3020, %v3021
        %3086 = vmax.xlane.f32.xlu0 %v3085
        %v3087 = vpop.xlane.xlu0 %3086
        %v3088 = vmax.f32 %v3022, %v3023
        %3089 = vmax.xlane.f32.xlu0 %v3088
        %v3090 = vpop.xlane.xlu0 %3089
        %v3091 = vmax.f32 %v3024, %v3025
        %3092 = vmax.xlane.f32.xlu0 %v3091
        %v3093 = vpop.xlane.xlu0 %3092
        %v3094 = vmax.f32 %v3026, %v3027
        %3095 = vmax.xlane.f32.xlu0 %v3094
        %v3096 = vpop.xlane.xlu0 %3095
        %v3097 = vmax.f32 %v3028, %v3029
        %3098 = vmax.xlane.f32.xlu0 %v3097
        %v3099 = vpop.xlane.xlu0 %3098
        %v3100 = vmax.f32 %v3030, %v3031
        %3101 = vmax.xlane.f32.xlu0 %v3100
        %v3102 = vpop.xlane.xlu0 %3101
        %v3103 = vmax.f32 %v3032, %v3033
        %3104 = vmax.xlane.f32.xlu0 %v3103
        %v3105 = vpop.xlane.xlu0 %3104
        %v3106 = vmax.f32 %v3034, %v3035
        %3107 = vmax.xlane.f32.xlu0 %v3106
        %v3108 = vpop.xlane.xlu0 %3107
        %v3109 = vmax.f32 %v3036, %v3037
        %3110 = vmax.xlane.f32.xlu0 %v3109
        %v3111 = vpop.xlane.xlu0 %3110
        %v3112 = vmax.f32 %v3038, %v3039
        %3113 = vmax.xlane.f32.xlu0 %v3112
        %v3114 = vpop.xlane.xlu0 %3113
        %v3115 = vmax.f32 %v3040, %v3041
        %3116 = vmax.xlane.f32.xlu0 %v3115
        %v3117 = vpop.xlane.xlu0 %3116
        %v3118 = vmax.f32 %v3042, %v3043
        %3119 = vmax.xlane.f32.xlu0 %v3118
        %v3120 = vpop.xlane.xlu0 %3119
        %v3121 = vmax.f32 %v3044, %v3045
        %3122 = vmax.xlane.f32.xlu0 %v3121
        %v3123 = vpop.xlane.xlu0 %3122
        %v3124 = vmax.f32 %v3046, %v3047
        %3125 = vmax.xlane.f32.xlu0 %v3124
        %v3126 = vpop.xlane.xlu0 %3125
        %v3127 = vmax.f32 %v3048, %v3049
        %3128 = vmax.xlane.f32.xlu0 %v3127
        %v3129 = vpop.xlane.xlu0 %3128
        %v3130 = vsel %vm2713, %v3066, -inf
        %3131 = vmax.xlane.f32.xlu0 %v3130
        %v3132 = vpop.xlane.xlu0 %3131
        %v3133 = vsel %vm2713, %v3067, -inf
        %3134 = vmax.xlane.f32.xlu0 %v3133
        %v3135 = vpop.xlane.xlu0 %3134
        %v3136 = vsel %vm2713, %v3068, -inf
        %3137 = vmax.xlane.f32.xlu0 %v3136
        %v3138 = vpop.xlane.xlu0 %3137
        %v3139 = vsel %vm2713, %v3069, -inf
        %3140 = vmax.xlane.f32.xlu0 %v3139
        %v3141 = vpop.xlane.xlu0 %3140
        %v3142 = vsel %vm2713, %v3070, -inf
        %3143 = vmax.xlane.f32.xlu0 %v3142
        %v3144 = vpop.xlane.xlu0 %3143
        %v3145 = vsel %vm2713, %v3071, -inf
        %3146 = vmax.xlane.f32.xlu0 %v3145
        %v3147 = vpop.xlane.xlu0 %3146
        %v3148 = vsel %vm2713, %v3072, -inf
        %3149 = vmax.xlane.f32.xlu0 %v3148
        %v3150 = vpop.xlane.xlu0 %3149
        %v3151 = vsel %vm2713, %v3073, -inf
        %3152 = vmax.xlane.f32.xlu0 %v3151
        %v3153 = vpop.xlane.xlu0 %3152
        %v3154 = vsel %vm2713, %v3074, -inf
        %3155 = vmax.xlane.f32.xlu0 %v3154
        %v3156 = vpop.xlane.xlu0 %3155
        %v3157 = vsel %vm2713, %v3075, -inf
        %3158 = vmax.xlane.f32.xlu0 %v3157
        %v3159 = vpop.xlane.xlu0 %3158
        %v3160 = vsel %vm2713, %v3076, -inf
        %3161 = vmax.xlane.f32.xlu0 %v3160
        %v3162 = vpop.xlane.xlu0 %3161
        %v3163 = vsel %vm2713, %v3077, -inf
        %3164 = vmax.xlane.f32.xlu0 %v3163
        %v3165 = vpop.xlane.xlu0 %3164
        %v3166 = vsel %vm2713, %v3078, -inf
        %3167 = vmax.xlane.f32.xlu0 %v3166
        %v3168 = vpop.xlane.xlu0 %3167
        %v3169 = vsel %vm2713, %v3079, -inf
        %3170 = vmax.xlane.f32.xlu0 %v3169
        %v3171 = vpop.xlane.xlu0 %3170
        %v3172 = vsel %vm2713, %v3080, -inf
        %3173 = vmax.xlane.f32.xlu0 %v3172
        %v3174 = vpop.xlane.xlu0 %3173
        %v3175 = vsel %vm2713, %v3081, -inf
        %3176 = vmax.xlane.f32.xlu0 %v3175
        %v3177 = vpop.xlane.xlu0 %3176
        %v3178 = vmax.f32 %v3084, %v3132
        %v3179 = vmax.f32 %v3087, %v3135
        %v3180 = vmax.f32 %v3090, %v3138
        %v3181 = vmax.f32 %v3093, %v3141
        %v3182 = vmax.f32 %v3096, %v3144
        %v3183 = vmax.f32 %v3099, %v3147
        %v3184 = vmax.f32 %v3102, %v3150
        %v3185 = vmax.f32 %v3105, %v3153
        %v3186 = vmax.f32 %v3108, %v3156
        %v3187 = vmax.f32 %v3111, %v3159
        %v3188 = vmax.f32 %v3114, %v3162
        %v3189 = vmax.f32 %v3117, %v3165
        %v3190 = vmax.f32 %v3120, %v3168
        %v3191 = vmax.f32 %v3123, %v3171
        %v3192 = vmax.f32 %v3126, %v3174
        %v3193 = vmax.f32 %v3129, %v3177
        %vm3194 = vcmp.ge.f32.partialorder %v3018, %v3178
        %vm3195 = vcmp.ge.f32.partialorder %v3019, %v3178
        %vm3196 = vcmp.ge.f32.partialorder %v3020, %v3179
        %vm3197 = vcmp.ge.f32.partialorder %v3021, %v3179
        %vm3198 = vcmp.ge.f32.partialorder %v3022, %v3180
        %vm3199 = vcmp.ge.f32.partialorder %v3023, %v3180
        %vm3200 = vcmp.ge.f32.partialorder %v3024, %v3181
        %vm3201 = vcmp.ge.f32.partialorder %v3025, %v3181
        %vm3202 = vcmp.ge.f32.partialorder %v3026, %v3182
        %vm3203 = vcmp.ge.f32.partialorder %v3027, %v3182
        %vm3204 = vcmp.ge.f32.partialorder %v3028, %v3183
        %vm3205 = vcmp.ge.f32.partialorder %v3029, %v3183
        %vm3206 = vcmp.ge.f32.partialorder %v3030, %v3184
        %vm3207 = vcmp.ge.f32.partialorder %v3031, %v3184
        %vm3208 = vcmp.ge.f32.partialorder %v3032, %v3185
        %vm3209 = vcmp.ge.f32.partialorder %v3033, %v3185
        %vm3210 = vcmp.ge.f32.partialorder %v3034, %v3186
        %vm3211 = vcmp.ge.f32.partialorder %v3035, %v3186
        %vm3212 = vcmp.ge.f32.partialorder %v3036, %v3187
        %vm3213 = vcmp.ge.f32.partialorder %v3037, %v3187
        %vm3214 = vcmp.ge.f32.partialorder %v3038, %v3188
        %vm3215 = vcmp.ge.f32.partialorder %v3039, %v3188
        %vm3216 = vcmp.ge.f32.partialorder %v3040, %v3189
        %vm3217 = vcmp.ge.f32.partialorder %v3041, %v3189
        %vm3218 = vcmp.ge.f32.partialorder %v3042, %v3190
        %vm3219 = vcmp.ge.f32.partialorder %v3043, %v3190
        %vm3220 = vcmp.ge.f32.partialorder %v3044, %v3191
        %vm3221 = vcmp.ge.f32.partialorder %v3045, %v3191
        %vm3222 = vcmp.ge.f32.partialorder %v3046, %v3192
        %vm3223 = vcmp.ge.f32.partialorder %v3047, %v3192
        %vm3224 = vcmp.ge.f32.partialorder %v3048, %v3193
        %vm3225 = vcmp.ge.f32.partialorder %v3049, %v3193
        %v3226 = vsel %vm3194, -inf, %v3018
        %v3227 = vsel %vm3195, -inf, %v3019
        %v3228 = vsel %vm3196, -inf, %v3020
        %v3229 = vsel %vm3197, -inf, %v3021
        %v3230 = vsel %vm3198, -inf, %v3022
        %v3231 = vsel %vm3199, -inf, %v3023
        %v3232 = vsel %vm3200, -inf, %v3024
        %v3233 = vsel %vm3201, -inf, %v3025
        %v3234 = vsel %vm3202, -inf, %v3026
        %v3235 = vsel %vm3203, -inf, %v3027
        %v3236 = vsel %vm3204, -inf, %v3028
        %v3237 = vsel %vm3205, -inf, %v3029
        %v3238 = vsel %vm3206, -inf, %v3030
        %v3239 = vsel %vm3207, -inf, %v3031
        %v3240 = vsel %vm3208, -inf, %v3032
        %v3241 = vsel %vm3209, -inf, %v3033
        %v3242 = vsel %vm3210, -inf, %v3034
        %v3243 = vsel %vm3211, -inf, %v3035
        %v3244 = vsel %vm3212, -inf, %v3036
        %v3245 = vsel %vm3213, -inf, %v3037
        %v3246 = vsel %vm3214, -inf, %v3038
        %v3247 = vsel %vm3215, -inf, %v3039
        %v3248 = vsel %vm3216, -inf, %v3040
        %v3249 = vsel %vm3217, -inf, %v3041
        %v3250 = vsel %vm3218, -inf, %v3042
        %v3251 = vsel %vm3219, -inf, %v3043
        %v3252 = vsel %vm3220, -inf, %v3044
        %v3253 = vsel %vm3221, -inf, %v3045
        %v3254 = vsel %vm3222, -inf, %v3046
        %v3255 = vsel %vm3223, -inf, %v3047
        %v3256 = vsel %vm3224, -inf, %v3048
        %v3257 = vsel %vm3225, -inf, %v3049
        %vm3258 = vcmp.ge.f32.partialorder %v3066, %v3178
        %vm3259 = vcmp.ge.f32.partialorder %v3067, %v3179
        %vm3260 = vcmp.ge.f32.partialorder %v3068, %v3180
        %vm3261 = vcmp.ge.f32.partialorder %v3069, %v3181
        %vm3262 = vcmp.ge.f32.partialorder %v3070, %v3182
        %vm3263 = vcmp.ge.f32.partialorder %v3071, %v3183
        %vm3264 = vcmp.ge.f32.partialorder %v3072, %v3184
        %vm3265 = vcmp.ge.f32.partialorder %v3073, %v3185
        %vm3266 = vcmp.ge.f32.partialorder %v3074, %v3186
        %vm3267 = vcmp.ge.f32.partialorder %v3075, %v3187
        %vm3268 = vcmp.ge.f32.partialorder %v3076, %v3188
        %vm3269 = vcmp.ge.f32.partialorder %v3077, %v3189
        %vm3270 = vcmp.ge.f32.partialorder %v3078, %v3190
        %vm3271 = vcmp.ge.f32.partialorder %v3079, %v3191
        %vm3272 = vcmp.ge.f32.partialorder %v3080, %v3192
        %vm3273 = vcmp.ge.f32.partialorder %v3081, %v3193
        %v3274 = vsel %vm3258, -inf, %v3066
        %v3275 = vsel %vm3259, -inf, %v3067
        %v3276 = vsel %vm3260, -inf, %v3068
        %v3277 = vsel %vm3261, -inf, %v3069
        %v3278 = vsel %vm3262, -inf, %v3070
        %v3279 = vsel %vm3263, -inf, %v3071
        %v3280 = vsel %vm3264, -inf, %v3072
        %v3281 = vsel %vm3265, -inf, %v3073
        %v3282 = vsel %vm3266, -inf, %v3074
        %v3283 = vsel %vm3267, -inf, %v3075
        %v3284 = vsel %vm3268, -inf, %v3076
        %v3285 = vsel %vm3269, -inf, %v3077
        %v3286 = vsel %vm3270, -inf, %v3078
        %v3287 = vsel %vm3271, -inf, %v3079
        %v3288 = vsel %vm3272, -inf, %v3080
        %v3289 = vsel %vm3273, -inf, %v3081
        %v3290 = vmax.f32 %v3226, %v3227
        %3291 = vmax.xlane.f32.xlu0 %v3290
        %v3292 = vpop.xlane.xlu0 %3291
        %v3293 = vmax.f32 %v3228, %v3229
        %3294 = vmax.xlane.f32.xlu0 %v3293
        %v3295 = vpop.xlane.xlu0 %3294
        %v3296 = vmax.f32 %v3230, %v3231
        %3297 = vmax.xlane.f32.xlu0 %v3296
        %v3298 = vpop.xlane.xlu0 %3297
        %v3299 = vmax.f32 %v3232, %v3233
        %3300 = vmax.xlane.f32.xlu0 %v3299
        %v3301 = vpop.xlane.xlu0 %3300
        %v3302 = vmax.f32 %v3234, %v3235
        %3303 = vmax.xlane.f32.xlu0 %v3302
        %v3304 = vpop.xlane.xlu0 %3303
        %v3305 = vmax.f32 %v3236, %v3237
        %3306 = vmax.xlane.f32.xlu0 %v3305
        %v3307 = vpop.xlane.xlu0 %3306
        %v3308 = vmax.f32 %v3238, %v3239
        %3309 = vmax.xlane.f32.xlu0 %v3308
        %v3310 = vpop.xlane.xlu0 %3309
        %v3311 = vmax.f32 %v3240, %v3241
        %3312 = vmax.xlane.f32.xlu0 %v3311
        %v3313 = vpop.xlane.xlu0 %3312
        %v3314 = vmax.f32 %v3242, %v3243
        %3315 = vmax.xlane.f32.xlu0 %v3314
        %v3316 = vpop.xlane.xlu0 %3315
        %v3317 = vmax.f32 %v3244, %v3245
        %3318 = vmax.xlane.f32.xlu0 %v3317
        %v3319 = vpop.xlane.xlu0 %3318
        %v3320 = vmax.f32 %v3246, %v3247
        %3321 = vmax.xlane.f32.xlu0 %v3320
        %v3322 = vpop.xlane.xlu0 %3321
        %v3323 = vmax.f32 %v3248, %v3249
        %3324 = vmax.xlane.f32.xlu0 %v3323
        %v3325 = vpop.xlane.xlu0 %3324
        %v3326 = vmax.f32 %v3250, %v3251
        %3327 = vmax.xlane.f32.xlu0 %v3326
        %v3328 = vpop.xlane.xlu0 %3327
        %v3329 = vmax.f32 %v3252, %v3253
        %3330 = vmax.xlane.f32.xlu0 %v3329
        %v3331 = vpop.xlane.xlu0 %3330
        %v3332 = vmax.f32 %v3254, %v3255
        %3333 = vmax.xlane.f32.xlu0 %v3332
        %v3334 = vpop.xlane.xlu0 %3333
        %v3335 = vmax.f32 %v3256, %v3257
        %3336 = vmax.xlane.f32.xlu0 %v3335
        %v3337 = vpop.xlane.xlu0 %3336
        %v3338 = vsel %vm2713, %v3274, -inf
        %3339 = vmax.xlane.f32.xlu0 %v3338
        %v3340 = vpop.xlane.xlu0 %3339
        %v3341 = vsel %vm2713, %v3275, -inf
        %3342 = vmax.xlane.f32.xlu0 %v3341
        %v3343 = vpop.xlane.xlu0 %3342
        %v3344 = vsel %vm2713, %v3276, -inf
        %3345 = vmax.xlane.f32.xlu0 %v3344
        %v3346 = vpop.xlane.xlu0 %3345
        %v3347 = vsel %vm2713, %v3277, -inf
        %3348 = vmax.xlane.f32.xlu0 %v3347
        %v3349 = vpop.xlane.xlu0 %3348
        %v3350 = vsel %vm2713, %v3278, -inf
        %3351 = vmax.xlane.f32.xlu0 %v3350
        %v3352 = vpop.xlane.xlu0 %3351
        %v3353 = vsel %vm2713, %v3279, -inf
        %3354 = vmax.xlane.f32.xlu0 %v3353
        %v3355 = vpop.xlane.xlu0 %3354
        %v3356 = vsel %vm2713, %v3280, -inf
        %3357 = vmax.xlane.f32.xlu0 %v3356
        %v3358 = vpop.xlane.xlu0 %3357
        %v3359 = vsel %vm2713, %v3281, -inf
        %3360 = vmax.xlane.f32.xlu0 %v3359
        %v3361 = vpop.xlane.xlu0 %3360
        %v3362 = vsel %vm2713, %v3282, -inf
        %3363 = vmax.xlane.f32.xlu0 %v3362
        %v3364 = vpop.xlane.xlu0 %3363
        %v3365 = vsel %vm2713, %v3283, -inf
        %3366 = vmax.xlane.f32.xlu0 %v3365
        %v3367 = vpop.xlane.xlu0 %3366
        %v3368 = vsel %vm2713, %v3284, -inf
        %3369 = vmax.xlane.f32.xlu0 %v3368
        %v3370 = vpop.xlane.xlu0 %3369
        %v3371 = vsel %vm2713, %v3285, -inf
        %3372 = vmax.xlane.f32.xlu0 %v3371
        %v3373 = vpop.xlane.xlu0 %3372
        %v3374 = vsel %vm2713, %v3286, -inf
        %3375 = vmax.xlane.f32.xlu0 %v3374
        %v3376 = vpop.xlane.xlu0 %3375
        %v3377 = vsel %vm2713, %v3287, -inf
        %3378 = vmax.xlane.f32.xlu0 %v3377
        %v3379 = vpop.xlane.xlu0 %3378
        %v3380 = vsel %vm2713, %v3288, -inf
        %3381 = vmax.xlane.f32.xlu0 %v3380
        %v3382 = vpop.xlane.xlu0 %3381
        %v3383 = vsel %vm2713, %v3289, -inf
        %3384 = vmax.xlane.f32.xlu0 %v3383
        %v3385 = vpop.xlane.xlu0 %3384
        %v3386 = vmax.f32 %v3292, %v3340
        %v3387 = vmax.f32 %v3295, %v3343
        %v3388 = vmax.f32 %v3298, %v3346
        %v3389 = vmax.f32 %v3301, %v3349
        %v3390 = vmax.f32 %v3304, %v3352
        %v3391 = vmax.f32 %v3307, %v3355
        %v3392 = vmax.f32 %v3310, %v3358
        %v3393 = vmax.f32 %v3313, %v3361
        %v3394 = vmax.f32 %v3316, %v3364
        %v3395 = vmax.f32 %v3319, %v3367
        %v3396 = vmax.f32 %v3322, %v3370
        %v3397 = vmax.f32 %v3325, %v3373
        %v3398 = vmax.f32 %v3328, %v3376
        %v3399 = vmax.f32 %v3331, %v3379
        %v3400 = vmax.f32 %v3334, %v3382
        %v3401 = vmax.f32 %v3337, %v3385
        %v3402 = vsel %vm2388, %v2762, %v2970
        %v3403 = vsel %vm2388, %v2763, %v2971
        %v3404 = vsel %vm2388, %v2764, %v2972
        %v3405 = vsel %vm2388, %v2765, %v2973
        %v3406 = vsel %vm2388, %v2766, %v2974
        %v3407 = vsel %vm2388, %v2767, %v2975
        %v3408 = vsel %vm2388, %v2768, %v2976
        %v3409 = vsel %vm2388, %v2769, %v2977
        %v3410 = vsel %vm2388, %v2770, %v2978
        %v3411 = vsel %vm2388, %v2771, %v2979
        %v3412 = vsel %vm2388, %v2772, %v2980
        %v3413 = vsel %vm2388, %v2773, %v2981
        %v3414 = vsel %vm2388, %v2774, %v2982
        %v3415 = vsel %vm2388, %v2775, %v2983
        %v3416 = vsel %vm2388, %v2776, %v2984
        %v3417 = vsel %vm2388, %v2777, %v2985
        %v3418 = vsel %vm2405, %v3402, %v3178
        %v3419 = vsel %vm2405, %v3403, %v3179
        %v3420 = vsel %vm2405, %v3404, %v3180
        %v3421 = vsel %vm2405, %v3405, %v3181
        %v3422 = vsel %vm2405, %v3406, %v3182
        %v3423 = vsel %vm2405, %v3407, %v3183
        %v3424 = vsel %vm2405, %v3408, %v3184
        %v3425 = vsel %vm2405, %v3409, %v3185
        %v3426 = vsel %vm2405, %v3410, %v3186
        %v3427 = vsel %vm2405, %v3411, %v3187
        %v3428 = vsel %vm2405, %v3412, %v3188
        %v3429 = vsel %vm2405, %v3413, %v3189
        %v3430 = vsel %vm2405, %v3414, %v3190
        %v3431 = vsel %vm2405, %v3415, %v3191
        %v3432 = vsel %vm2405, %v3416, %v3192
        %v3433 = vsel %vm2405, %v3417, %v3193
        %v3434 = vsel %vm2422, %v3418, %v3386
        %v3435 = vsel %vm2422, %v3419, %v3387
        %v3436 = vsel %vm2422, %v3420, %v3388
        %v3437 = vsel %vm2422, %v3421, %v3389
        %v3438 = vsel %vm2422, %v3422, %v3390
        %v3439 = vsel %vm2422, %v3423, %v3391
        %v3440 = vsel %vm2422, %v3424, %v3392
        %v3441 = vsel %vm2422, %v3425, %v3393
        %v3442 = vsel %vm2422, %v3426, %v3394
        %v3443 = vsel %vm2422, %v3427, %v3395
        %v3444 = vsel %vm2422, %v3428, %v3396
        %v3445 = vsel %vm2422, %v3429, %v3397
        %v3446 = vsel %vm2422, %v3430, %v3398
        %v3447 = vsel %vm2422, %v3431, %v3399
        %v3448 = vsel %vm2422, %v3432, %v3400
        %v3449 = vsel %vm2422, %v3433, %v3401
        %3451 = vset.pattern.permute.xlu0 3
        %3452 = vperm.xlu0 %3451, %v3434
        %v3453 = vpop.permute.xlu0 %3452
        %3456 = vset.pattern.permute.xlu0 3
        %3457 = vperm.xlu0 %3456, %v3435
        %v3458 = vpop.permute.xlu0 %3457
        %3461 = vset.pattern.permute.xlu0 3
        %3462 = vperm.xlu0 %3461, %v3436
        %v3463 = vpop.permute.xlu0 %3462
        %3466 = vset.pattern.permute.xlu0 3
        %3467 = vperm.xlu0 %3466, %v3437
        %v3468 = vpop.permute.xlu0 %3467
        %3471 = vset.pattern.permute.xlu0 3
        %3472 = vperm.xlu0 %3471, %v3438
        %v3473 = vpop.permute.xlu0 %3472
        %3476 = vset.pattern.permute.xlu0 3
        %3477 = vperm.xlu0 %3476, %v3439
        %v3478 = vpop.permute.xlu0 %3477
        %3481 = vset.pattern.permute.xlu0 3
        %3482 = vperm.xlu0 %3481, %v3440
        %v3483 = vpop.permute.xlu0 %3482
        %3486 = vset.pattern.permute.xlu0 3
        %3487 = vperm.xlu0 %3486, %v3441
        %v3488 = vpop.permute.xlu0 %3487
        %3491 = vset.pattern.permute.xlu0 3
        %3492 = vperm.xlu0 %3491, %v3442
        %v3493 = vpop.permute.xlu0 %3492
        %3496 = vset.pattern.permute.xlu0 3
        %3497 = vperm.xlu0 %3496, %v3443
        %v3498 = vpop.permute.xlu0 %3497
        %3501 = vset.pattern.permute.xlu0 3
        %3502 = vperm.xlu0 %3501, %v3444
        %v3503 = vpop.permute.xlu0 %3502
        %3506 = vset.pattern.permute.xlu0 3
        %3507 = vperm.xlu0 %3506, %v3445
        %v3508 = vpop.permute.xlu0 %3507
        %3511 = vset.pattern.permute.xlu0 3
        %3512 = vperm.xlu0 %3511, %v3446
        %v3513 = vpop.permute.xlu0 %3512
        %3516 = vset.pattern.permute.xlu0 3
        %3517 = vperm.xlu0 %3516, %v3447
        %v3518 = vpop.permute.xlu0 %3517
        %3521 = vset.pattern.permute.xlu0 3
        %3522 = vperm.xlu0 %3521, %v3448
        %v3523 = vpop.permute.xlu0 %3522
        %3526 = vset.pattern.permute.xlu0 3
        %3527 = vperm.xlu0 %3526, %v3449
        %v3528 = vpop.permute.xlu0 %3527
        %vm3530 = vcmp.ge.f32.partialorder %v1892, %v3453
        %vm3531 = vcmp.ge.f32.partialorder %v1957, %v3453
        %vm3532 = vcmp.ge.f32.partialorder %v1895, %v3458
        %vm3533 = vcmp.ge.f32.partialorder %v1960, %v3458
        %vm3534 = vcmp.ge.f32.partialorder %v1898, %v3463
        %vm3535 = vcmp.ge.f32.partialorder %v1963, %v3463
        %vm3536 = vcmp.ge.f32.partialorder %v1901, %v3468
        %vm3537 = vcmp.ge.f32.partialorder %v1966, %v3468
        %vm3538 = vcmp.ge.f32.partialorder %v1904, %v3473
        %vm3539 = vcmp.ge.f32.partialorder %v1969, %v3473
        %vm3540 = vcmp.ge.f32.partialorder %v1907, %v3478
        %vm3541 = vcmp.ge.f32.partialorder %v1972, %v3478
        %vm3542 = vcmp.ge.f32.partialorder %v1910, %v3483
        %vm3543 = vcmp.ge.f32.partialorder %v1975, %v3483
        %vm3544 = vcmp.ge.f32.partialorder %v1913, %v3488
        %vm3545 = vcmp.ge.f32.partialorder %v1978, %v3488
        %vm3546 = vcmp.ge.f32.partialorder %v1916, %v3493
        %vm3547 = vcmp.ge.f32.partialorder %v1981, %v3493
        %vm3548 = vcmp.ge.f32.partialorder %v1919, %v3498
        %vm3549 = vcmp.ge.f32.partialorder %v1984, %v3498
        %vm3550 = vcmp.ge.f32.partialorder %v1922, %v3503
        %vm3551 = vcmp.ge.f32.partialorder %v1987, %v3503
        %vm3552 = vcmp.ge.f32.partialorder %v1925, %v3508
        %vm3553 = vcmp.ge.f32.partialorder %v1990, %v3508
        %vm3554 = vcmp.ge.f32.partialorder %v1928, %v3513
        %vm3555 = vcmp.ge.f32.partialorder %v1993, %v3513
        %vm3556 = vcmp.ge.f32.partialorder %v1931, %v3518
        %vm3557 = vcmp.ge.f32.partialorder %v1996, %v3518
        %vm3558 = vcmp.ge.f32.partialorder %v1934, %v3523
        %vm3559 = vcmp.ge.f32.partialorder %v1999, %v3523
        %vm3560 = vcmp.ge.f32.partialorder %v1937, %v3528
        %vm3561 = vcmp.ge.f32.partialorder %v2002, %v3528
        %v3562 = vmax.f32 %v1892, 0.0
        %v3563 = vmax.f32 %v1957, 0.0
        %v3564 = vmax.f32 %v1895, 0.0
        %v3565 = vmax.f32 %v1960, 0.0
        %v3566 = vmax.f32 %v1898, 0.0
        %v3567 = vmax.f32 %v1963, 0.0
        %v3568 = vmax.f32 %v1901, 0.0
        %v3569 = vmax.f32 %v1966, 0.0
        %v3570 = vmax.f32 %v1904, 0.0
        %v3571 = vmax.f32 %v1969, 0.0
        %v3572 = vmax.f32 %v1907, 0.0
        %v3573 = vmax.f32 %v1972, 0.0
        %v3574 = vmax.f32 %v1910, 0.0
        %v3575 = vmax.f32 %v1975, 0.0
        %v3576 = vmax.f32 %v1913, 0.0
        %v3577 = vmax.f32 %v1978, 0.0
        %v3578 = vmax.f32 %v1916, 0.0
        %v3579 = vmax.f32 %v1981, 0.0
        %v3580 = vmax.f32 %v1919, 0.0
        %v3581 = vmax.f32 %v1984, 0.0
        %v3582 = vmax.f32 %v1922, 0.0
        %v3583 = vmax.f32 %v1987, 0.0
        %v3584 = vmax.f32 %v1925, 0.0
        %v3585 = vmax.f32 %v1990, 0.0
        %v3586 = vmax.f32 %v1928, 0.0
        %v3587 = vmax.f32 %v1993, 0.0
        %v3588 = vmax.f32 %v1931, 0.0
        %v3589 = vmax.f32 %v1996, 0.0
        %v3590 = vmax.f32 %v1934, 0.0
        %v3591 = vmax.f32 %v1999, 0.0
        %v3592 = vmax.f32 %v1937, 0.0
        %v3593 = vmax.f32 %v2002, 0.0
        %v3594 = vsel %vm3530, %v3562, 0.0
        %v3595 = vsel %vm3531, %v3563, 0.0
        %v3596 = vsel %vm3532, %v3564, 0.0
        %v3597 = vsel %vm3533, %v3565, 0.0
        %v3598 = vsel %vm3534, %v3566, 0.0
        %v3599 = vsel %vm3535, %v3567, 0.0
        %v3600 = vsel %vm3536, %v3568, 0.0
        %v3601 = vsel %vm3537, %v3569, 0.0
        %v3602 = vsel %vm3538, %v3570, 0.0
        %v3603 = vsel %vm3539, %v3571, 0.0
        %v3604 = vsel %vm3540, %v3572, 0.0
        %v3605 = vsel %vm3541, %v3573, 0.0
        %v3606 = vsel %vm3542, %v3574, 0.0
        %v3607 = vsel %vm3543, %v3575, 0.0
        %v3608 = vsel %vm3544, %v3576, 0.0
        %v3609 = vsel %vm3545, %v3577, 0.0
        %v3610 = vsel %vm3546, %v3578, 0.0
        %v3611 = vsel %vm3547, %v3579, 0.0
        %v3612 = vsel %vm3548, %v3580, 0.0
        %v3613 = vsel %vm3549, %v3581, 0.0
        %v3614 = vsel %vm3550, %v3582, 0.0
        %v3615 = vsel %vm3551, %v3583, 0.0
        %v3616 = vsel %vm3552, %v3584, 0.0
        %v3617 = vsel %vm3553, %v3585, 0.0
        %v3618 = vsel %vm3554, %v3586, 0.0
        %v3619 = vsel %vm3555, %v3587, 0.0
        %v3620 = vsel %vm3556, %v3588, 0.0
        %v3621 = vsel %vm3557, %v3589, 0.0
        %v3622 = vsel %vm3558, %v3590, 0.0
        %v3623 = vsel %vm3559, %v3591, 0.0
        %v3624 = vsel %vm3560, %v3592, 0.0
        %v3625 = vsel %vm3561, %v3593, 0.0
        %3626 = vst [vmem:[%s121] sm:$0xff] %v3594
        %3627 = vst [vmem:[%s121 + $0x8] sm:$0xff] %v3595
        %3628 = vst [vmem:[%s121 + $0x20] sm:$0xff] %v3596
        %3629 = vst [vmem:[%s121 + $0x28] sm:$0xff] %v3597
        %3630 = vst [vmem:[%s121 + $0x40] sm:$0xff] %v3598
        %3631 = vst [vmem:[%s121 + $0x48] sm:$0xff] %v3599
        %3632 = vst [vmem:[%s121 + $0x60] sm:$0xff] %v3600
        %3633 = vst [vmem:[%s121 + $0x68] sm:$0xff] %v3601
        %3634 = vst [vmem:[%s121 + $0x80] sm:$0xff] %v3602
        %3635 = vst [vmem:[%s121 + $0x88] sm:$0xff] %v3603
        %3636 = vst [vmem:[%s121 + $0xa0] sm:$0xff] %v3604
        %3637 = vst [vmem:[%s121 + $0xa8] sm:$0xff] %v3605
        %3638 = vst [vmem:[%s121 + $0xc0] sm:$0xff] %v3606
        %3639 = vst [vmem:[%s121 + $0xc8] sm:$0xff] %v3607
        %3640 = vst [vmem:[%s121 + $0xe0] sm:$0xff] %v3608
        %3641 = vst [vmem:[%s121 + $0xe8] sm:$0xff] %v3609
        %3642 = vst [vmem:[%s121 + $0x100] sm:$0xff] %v3610
        %3643 = vst [vmem:[%s121 + $0x108] sm:$0xff] %v3611
        %3644 = vst [vmem:[%s121 + $0x120] sm:$0xff] %v3612
        %3645 = vst [vmem:[%s121 + $0x128] sm:$0xff] %v3613
        %3646 = vst [vmem:[%s121 + $0x140] sm:$0xff] %v3614
        %3647 = vst [vmem:[%s121 + $0x148] sm:$0xff] %v3615
        %3648 = vst [vmem:[%s121 + $0x160] sm:$0xff] %v3616
        %3649 = vst [vmem:[%s121 + $0x168] sm:$0xff] %v3617
        %3650 = vst [vmem:[%s121 + $0x180] sm:$0xff] %v3618
        %3651 = vst [vmem:[%s121 + $0x188] sm:$0xff] %v3619
        %3652 = vst [vmem:[%s121 + $0x1a0] sm:$0xff] %v3620
        %3653 = vst [vmem:[%s121 + $0x1a8] sm:$0xff] %v3621
        %3654 = vst [vmem:[%s121 + $0x1c0] sm:$0xff] %v3622
        %3655 = vst [vmem:[%s121 + $0x1c8] sm:$0xff] %v3623
        %3656 = vst [vmem:[%s121 + $0x1e0] sm:$0xff] %v3624
        %3657 = vst [vmem:[%s121 + $0x1e8] sm:$0xff] %v3625
        %vm3658 = vcmp.ge.f32.partialorder %v2553, %v3453
        %vm3659 = vcmp.ge.f32.partialorder %v2618, %v3453
        %vm3660 = vcmp.ge.f32.partialorder %v2556, %v3458
        %vm3661 = vcmp.ge.f32.partialorder %v2621, %v3458
        %vm3662 = vcmp.ge.f32.partialorder %v2559, %v3463
        %vm3663 = vcmp.ge.f32.partialorder %v2624, %v3463
        %vm3664 = vcmp.ge.f32.partialorder %v2562, %v3468
        %vm3665 = vcmp.ge.f32.partialorder %v2627, %v3468
        %vm3666 = vcmp.ge.f32.partialorder %v2565, %v3473
        %vm3667 = vcmp.ge.f32.partialorder %v2630, %v3473
        %vm3668 = vcmp.ge.f32.partialorder %v2568, %v3478
        %vm3669 = vcmp.ge.f32.partialorder %v2633, %v3478
        %vm3670 = vcmp.ge.f32.partialorder %v2571, %v3483
        %vm3671 = vcmp.ge.f32.partialorder %v2636, %v3483
        %vm3672 = vcmp.ge.f32.partialorder %v2574, %v3488
        %vm3673 = vcmp.ge.f32.partialorder %v2639, %v3488
        %vm3674 = vcmp.ge.f32.partialorder %v2577, %v3493
        %vm3675 = vcmp.ge.f32.partialorder %v2642, %v3493
        %vm3676 = vcmp.ge.f32.partialorder %v2580, %v3498
        %vm3677 = vcmp.ge.f32.partialorder %v2645, %v3498
        %vm3678 = vcmp.ge.f32.partialorder %v2583, %v3503
        %vm3679 = vcmp.ge.f32.partialorder %v2648, %v3503
        %vm3680 = vcmp.ge.f32.partialorder %v2586, %v3508
        %vm3681 = vcmp.ge.f32.partialorder %v2651, %v3508
        %vm3682 = vcmp.ge.f32.partialorder %v2589, %v3513
        %vm3683 = vcmp.ge.f32.partialorder %v2654, %v3513
        %vm3684 = vcmp.ge.f32.partialorder %v2592, %v3518
        %vm3685 = vcmp.ge.f32.partialorder %v2657, %v3518
        %vm3686 = vcmp.ge.f32.partialorder %v2595, %v3523
        %vm3687 = vcmp.ge.f32.partialorder %v2660, %v3523
        %vm3688 = vcmp.ge.f32.partialorder %v2598, %v3528
        %vm3689 = vcmp.ge.f32.partialorder %v2663, %v3528
        %v3690 = vmax.f32 %v2553, 0.0
        %v3691 = vmax.f32 %v2618, 0.0
        %v3692 = vmax.f32 %v2556, 0.0
        %v3693 = vmax.f32 %v2621, 0.0
        %v3694 = vmax.f32 %v2559, 0.0
        %v3695 = vmax.f32 %v2624, 0.0
        %v3696 = vmax.f32 %v2562, 0.0
        %v3697 = vmax.f32 %v2627, 0.0
        %v3698 = vmax.f32 %v2565, 0.0
        %v3699 = vmax.f32 %v2630, 0.0
        %v3700 = vmax.f32 %v2568, 0.0
        %v3701 = vmax.f32 %v2633, 0.0
        %v3702 = vmax.f32 %v2571, 0.0
        %v3703 = vmax.f32 %v2636, 0.0
        %v3704 = vmax.f32 %v2574, 0.0
        %v3705 = vmax.f32 %v2639, 0.0
        %v3706 = vmax.f32 %v2577, 0.0
        %v3707 = vmax.f32 %v2642, 0.0
        %v3708 = vmax.f32 %v2580, 0.0
        %v3709 = vmax.f32 %v2645, 0.0
        %v3710 = vmax.f32 %v2583, 0.0
        %v3711 = vmax.f32 %v2648, 0.0
        %v3712 = vmax.f32 %v2586, 0.0
        %v3713 = vmax.f32 %v2651, 0.0
        %v3714 = vmax.f32 %v2589, 0.0
        %v3715 = vmax.f32 %v2654, 0.0
        %v3716 = vmax.f32 %v2592, 0.0
        %v3717 = vmax.f32 %v2657, 0.0
        %v3718 = vmax.f32 %v2595, 0.0
        %v3719 = vmax.f32 %v2660, 0.0
        %v3720 = vmax.f32 %v2598, 0.0
        %v3721 = vmax.f32 %v2663, 0.0
        %v3722 = vsel %vm3658, %v3690, 0.0
        %v3723 = vsel %vm3659, %v3691, 0.0
        %v3724 = vsel %vm3660, %v3692, 0.0
        %v3725 = vsel %vm3661, %v3693, 0.0
        %v3726 = vsel %vm3662, %v3694, 0.0
        %v3727 = vsel %vm3663, %v3695, 0.0
        %v3728 = vsel %vm3664, %v3696, 0.0
        %v3729 = vsel %vm3665, %v3697, 0.0
        %v3730 = vsel %vm3666, %v3698, 0.0
        %v3731 = vsel %vm3667, %v3699, 0.0
        %v3732 = vsel %vm3668, %v3700, 0.0
        %v3733 = vsel %vm3669, %v3701, 0.0
        %v3734 = vsel %vm3670, %v3702, 0.0
        %v3735 = vsel %vm3671, %v3703, 0.0
        %v3736 = vsel %vm3672, %v3704, 0.0
        %v3737 = vsel %vm3673, %v3705, 0.0
        %v3738 = vsel %vm3674, %v3706, 0.0
        %v3739 = vsel %vm3675, %v3707, 0.0
        %v3740 = vsel %vm3676, %v3708, 0.0
        %v3741 = vsel %vm3677, %v3709, 0.0
        %v3742 = vsel %vm3678, %v3710, 0.0
        %v3743 = vsel %vm3679, %v3711, 0.0
        %v3744 = vsel %vm3680, %v3712, 0.0
        %v3745 = vsel %vm3681, %v3713, 0.0
        %v3746 = vsel %vm3682, %v3714, 0.0
        %v3747 = vsel %vm3683, %v3715, 0.0
        %v3748 = vsel %vm3684, %v3716, 0.0
        %v3749 = vsel %vm3685, %v3717, 0.0
        %v3750 = vsel %vm3686, %v3718, 0.0
        %v3751 = vsel %vm3687, %v3719, 0.0
        %v3752 = vsel %vm3688, %v3720, 0.0
        %v3753 = vsel %vm3689, %v3721, 0.0
        %3754 = vst [vmem:[%s121 + $0x10] sm:$0xff] %v3722
        %3755 = vst [vmem:[%s121 + $0x18] sm:$0xff] %v3723
        %3756 = vst [vmem:[%s121 + $0x30] sm:$0xff] %v3724
        %3757 = vst [vmem:[%s121 + $0x38] sm:$0xff] %v3725
        %3758 = vst [vmem:[%s121 + $0x50] sm:$0xff] %v3726
        %3759 = vst [vmem:[%s121 + $0x58] sm:$0xff] %v3727
        %3760 = vst [vmem:[%s121 + $0x70] sm:$0xff] %v3728
        %3761 = vst [vmem:[%s121 + $0x78] sm:$0xff] %v3729
        %3762 = vst [vmem:[%s121 + $0x90] sm:$0xff] %v3730
        %3763 = vst [vmem:[%s121 + $0x98] sm:$0xff] %v3731
        %3764 = vst [vmem:[%s121 + $0xb0] sm:$0xff] %v3732
        %3765 = vst [vmem:[%s121 + $0xb8] sm:$0xff] %v3733
        %3766 = vst [vmem:[%s121 + $0xd0] sm:$0xff] %v3734
        %3767 = vst [vmem:[%s121 + $0xd8] sm:$0xff] %v3735
        %3768 = vst [vmem:[%s121 + $0xf0] sm:$0xff] %v3736
        %3769 = vst [vmem:[%s121 + $0xf8] sm:$0xff] %v3737
        %3770 = vst [vmem:[%s121 + $0x110] sm:$0xff] %v3738
        %3771 = vst [vmem:[%s121 + $0x118] sm:$0xff] %v3739
        %3772 = vst [vmem:[%s121 + $0x130] sm:$0xff] %v3740
        %3773 = vst [vmem:[%s121 + $0x138] sm:$0xff] %v3741
        %3774 = vst [vmem:[%s121 + $0x150] sm:$0xff] %v3742
        %3775 = vst [vmem:[%s121 + $0x158] sm:$0xff] %v3743
        %3776 = vst [vmem:[%s121 + $0x170] sm:$0xff] %v3744
        %3777 = vst [vmem:[%s121 + $0x178] sm:$0xff] %v3745
        %3778 = vst [vmem:[%s121 + $0x190] sm:$0xff] %v3746
        %3779 = vst [vmem:[%s121 + $0x198] sm:$0xff] %v3747
        %3780 = vst [vmem:[%s121 + $0x1b0] sm:$0xff] %v3748
        %3781 = vst [vmem:[%s121 + $0x1b8] sm:$0xff] %v3749
        %3782 = vst [vmem:[%s121 + $0x1d0] sm:$0xff] %v3750
        %3783 = vst [vmem:[%s121 + $0x1d8] sm:$0xff] %v3751
        %3784 = vst [vmem:[%s121 + $0x1f0] sm:$0xff] %v3752
        %3785 = vst [vmem:[%s121 + $0x1f8] sm:$0xff] %v3753
        %s3786 = sand.u32 %s66, 1
        %s3787 = scalar_lea.sflag [#allocation3], %s3786
        %s3788 = sand.u32 %s66, 1
        %s3789 = smul.addr %s3788, 512
        %s3790 = scalar_lea.vmem [#allocation2], %s3789
        // Predicated region
        $region29: #{tpu_custom_call.1} parent=27 // pred_check
          %p3791 = pneg %p76
        $region30: #{tpu_custom_call.1} parent=27 // pred_check_branch
          %3793 = sbr.rel (%p3791) target = $region32
        $region31: #{tpu_custom_call.1} parent=27 // pred_region
          %s3794 = smul.u32 16, %s16
          %3796 = vsyncadd %s3787, 0
          %s3797 = smul.addr %s3794, 4
          %s3798 = smul.addr %s3797, 8
          %s3799 = scalar_lea.hbm %s2, %s3798
          %s3800 = sshll.u32 %s3790, 4
          %s3801 = int_to_ptr.vmem [resolvable:$true] %s3800
          %s3802 = sshll.u32 %s3799, 4
          %s3803 = int_to_ptr.hbm [resolvable:$true] %s3802
          %3808 = dma.vmem_to_hbm [thread:$0]  %s3801, 8192, %s3803, %s3787, 512, 512, 32
        $region32: #{tpu_custom_call.1} parent=27 // pred_fallthru
          _
      $region28: #{tpu_custom_call.1} parent=5 // pred_fallthru
        _
      %p3809 = scmp.le.s32.totalorder 2, %s11
      // Predicated region
      $region33: #{tpu_custom_call.1} parent=5 // pred_check
        %p3810 = pneg %p3809
      $region34: #{tpu_custom_call.1} parent=5 // pred_check_branch
        %3812 = sbr.rel (%p3810) target = $region36
      $region35: #{tpu_custom_call.1} parent=5 // pred_region
        %s3813 = ssub.s32 %s11, 2
        // Predicated region
        $region37: #{tpu_custom_call.1} parent=35 // pred_check
          %p3814 = pneg %p82
        $region38: #{tpu_custom_call.1} parent=35 // pred_check_branch
          %3816 = sbr.rel (%p3814) target = $region40
        $region39: #{tpu_custom_call.1} parent=35 // pred_region
          %s3817 = sand.u32 %s67, 1
          %s3818 = scalar_lea.sflag [#allocation3], %s3817
          %s3819 = sand.u32 %s67, 1
          %s3820 = smul.addr %s3819, 512
          %s3821 = scalar_lea.vmem [#allocation2], %s3820
          %3823 = dma.done %s3818, 8192
        $region40: #{tpu_custom_call.1} parent=35 // pred_fallthru
          _
      $region36: #{tpu_custom_call.1} parent=5 // pred_fallthru
        _
    $region6: #{tpu_custom_call.1} parent=1 // loop_footer
      %s15 = sadd.s32 1, %s11
    $region7: #{tpu_custom_call.1} parent=1 // loop_footer_branch
      %10 = sbr.rel target = $region3
    $region8: #{tpu_custom_call.1} parent=1 // loop_exit
      _
    %3824 = vsyncpa [#allocation3], 1
    %s3825 = scalar_lea.sflag [#allocation3], 1
    %3826 = vsyncpa %s3825, 1

</llo_original>
